<compile_context>
chip_gen: v5e
topology: v5e:2x2
jax: 0.10.0
libtpu: 0.0.40
codegen_flags: <defaults>
</compile_context>

<pallas_src>
import functools

import jax
import jax.numpy as jnp
from jax import lax
from jax.experimental import pallas as pl
from jax.experimental.pallas import tpu as pltpu


# ---------------------------------------------------------------------------
# Small helpers
# ---------------------------------------------------------------------------
def _round_up(a, b):
    return (a + b - 1) // b * b


def _softmax_last(x):
    m = jnp.max(x, axis=-1, keepdims=True)
    e = jnp.exp(x - m)
    return e / jnp.sum(e, axis=-1, keepdims=True)


def _rep(shape):
    # Replicated (full-array) weight block, same block for every grid step.
    return pl.BlockSpec(shape, lambda n: (0,) * len(shape))


# Grid steps are fully independent -> let v7x shard them across both TCs;
# harmless on single-TC v5e/v6e.
_PARALLEL = pltpu.CompilerParams(dimension_semantics=("parallel",))


def _fused_qkv(p, prefix, nhead):
    """Concatenate Wq|Wk|Wv into one [E,3E] (pre-transposed) weight; fold the
    1/sqrt(head_dim) attention scale into the Q slice."""
    E = p[f"{prefix}_wq"].shape[0]
    scale = 1.0 / float(E // nhead) ** 0.5
    wqkv_t = jnp.concatenate(
        [p[f"{prefix}_wq"] * scale, p[f"{prefix}_wk"], p[f"{prefix}_wv"]],
        axis=0).T                                              # [E, 3E]
    bqkv = jnp.concatenate(
        [p[f"{prefix}_bq"] * scale, p[f"{prefix}_bk"], p[f"{prefix}_bv"]],
        axis=1)                                                # [1, 3E]
    return wqkv_t, bqkv


# ---------------------------------------------------------------------------
# Kernel 1: batched review encoder (token MHA + proj + additive pooling)
# ---------------------------------------------------------------------------
def review_encoder_kernel(x_ref, wqkv_ref, bqkv_ref, wo_ref, bo_ref,
                          wp_ref, bp_ref, wa_ref, ba_ref, wav_ref,
                          out_ref, o_scr, *, nhead):
    TB, S, E = x_ref.shape
    hd = E // nhead

    x2 = x_ref[...].reshape(TB * S, E)

    # Fused QKV projection (scale already folded into the Q slice).
    qkv = jnp.dot(x2, wqkv_ref[...],
                  preferred_element_type=jnp.float32) + bqkv_ref[...]  # [TB*S, 3E]
    q3 = qkv[:, 0 * E:1 * E].reshape(TB, S, E)
    k3 = qkv[:, 1 * E:2 * E].reshape(TB, S, E)
    v3 = qkv[:, 2 * E:3 * E].reshape(TB, S, E)

    # Per-head attention, batched over the TB sequences.  Head outputs go
    # straight into a VMEM scratch slab (no concatenate / relayout).
    for h in range(nhead):                       # static, nhead is small
        sl = slice(h * hd, (h + 1) * hd)
        s = jnp.einsum("bqd,bkd->bqk", q3[:, :, sl], k3[:, :, sl],
                       preferred_element_type=jnp.float32)     # [TB, S, S]
        p = _softmax_last(s)
        o_scr[:, :, sl] = jnp.einsum("bqk,bkd->bqd", p, v3[:, :, sl],
                                     preferred_element_type=jnp.float32)

    o2 = o_scr[...].reshape(TB * S, E)
    attn = jnp.dot(o2, wo_ref[...],
                   preferred_element_type=jnp.float32) + bo_ref[...]   # [TB*S, E]
    pj = jnp.dot(attn, wp_ref[...],
                 preferred_element_type=jnp.float32) + bp_ref[...]     # [TB*S, Enc]
    Enc = pj.shape[1]

    # Additive attention pooled over S.  (proj_v bias is a constant shift of
    # the softmax logits and cancels exactly, so it is omitted.)
    t = jnp.tanh(jnp.dot(pj, wa_ref[...],
                         preferred_element_type=jnp.float32) + ba_ref[...])  # [TB*S, V]
    w = jnp.dot(t, wav_ref[...], preferred_element_type=jnp.float32)         # [TB*S, 1]

    pj3 = pj.reshape(TB, S, Enc)
    w3 = w.reshape(TB, S, 1)
    w3 = w3 - jnp.max(w3, axis=1, keepdims=True)
    e = jnp.exp(w3)
    a = e / jnp.sum(e, axis=1, keepdims=True)                  # [TB, S, 1]
    out_ref[...] = jnp.sum(a * pj3, axis=1)                    # [TB, Enc]


def pallas_review_encoder(x_emb, p, nhead, block_seqs=16):
    N, S, E = x_emb.shape
    Enc = p["proj_w"].shape[0]
    V = p["attn_w"].shape[0]

    wqkv_t, bqkv = _fused_qkv(p, "mha1", nhead)
    wo_t = p["mha1_wo"].T          # [E, E]
    wp_t = p["proj_w"].T           # [E, Enc]
    wa_t = p["attn_w"].T           # [Enc, V]
    wav_t = p["attn_vw"].T         # [V, 1]

    TB = _round_up(int(min(block_seqs, _round_up(N, 8))), 8)
    N_pad = _round_up(N, TB)
    if N_pad != N:
        x_emb = jnp.pad(x_emb, ((0, N_pad - N), (0, 0), (0, 0)))

    out = pl.pallas_call(
        functools.partial(review_encoder_kernel, nhead=nhead),
        out_shape=jax.ShapeDtypeStruct((N_pad, Enc), jnp.float32),
        grid=(N_pad // TB,),
        in_specs=[
            pl.BlockSpec((TB, S, E), lambda n: (n, 0, 0)),
            _rep((E, 3 * E)), _rep((1, 3 * E)),     # fused QKV
            _rep((E, E)), _rep((1, E)),             # out proj
            _rep((E, Enc)), _rep((1, Enc)),         # encoder proj
            _rep((Enc, V)), _rep((1, V)),           # additive proj
            _rep((V, 1)),                           # additive proj_v (bias cancels)
        ],
        out_specs=pl.BlockSpec((TB, Enc), lambda n: (n, 0)),
        scratch_shapes=[pltpu.VMEM((TB, S, E), jnp.float32)],
        compiler_params=_PARALLEL,
    )(x_emb, wqkv_t, bqkv, wo_t, p["mha1_bo"], wp_t, p["proj_b"],
      wa_t, p["attn_b"], wav_t)
    return out[:N]


# ---------------------------------------------------------------------------
# Kernel 2: fused per-user tail (doc-level MHA x2 + additive pooling + logits)
# ---------------------------------------------------------------------------
def nrms_tail_kernel(w_ref, l_ref, c_ref, wqkv_ref, bqkv_ref, wo_ref, bo_ref,
                     wa_ref, ba_ref, wav_ref, out_ref, *, nhead):
    E = bo_ref.shape[1]
    hd = E // nhead
    wqkv = wqkv_ref[...]
    bqkv = bqkv_ref[...]
    wo_t = wo_ref[...]
    bo = bo_ref[...]
    wa_t = wa_ref[...]
    ba = ba_ref[...]
    wav_t = wav_ref[...]

    def mha(x):                                   # x: [L, E]
        qkv = jnp.dot(x, wqkv, preferred_element_type=jnp.float32) + bqkv
        acc = None
        for h in range(nhead):                    # static head loop
            sl = slice(h * hd, (h + 1) * hd)
            qh = qkv[:, sl]
            kh = qkv[:, E + h * hd:E + (h + 1) * hd]
            vh = qkv[:, 2 * E + h * hd:2 * E + (h + 1) * hd]
            s = jnp.dot(qh, kh.T, preferred_element_type=jnp.float32)
            p_ = _softmax_last(s)
            oh = jnp.dot(p_, vh, preferred_element_type=jnp.float32)
            # Fold the output projection per head: sum_h oh @ Wo[:, h].T
            term = jnp.dot(oh, wo_t[sl, :], preferred_element_type=jnp.float32)
            acc = term if acc is None else acc + term
        return acc + bo

    def scores(x):                                # x: [L, E] -> [L, 1]
        t = jnp.tanh(jnp.dot(x, wa_t, preferred_element_type=jnp.float32) + ba)
        return jnp.dot(t, wav_t, preferred_element_type=jnp.float32)

    w_docs = mha(w_ref[0])                        # [Dw, E]
    l_docs = mha(l_ref[0])                        # [Dl, E]

    # Additive attention over the concatenation of write/like docs, computed
    # as a joint softmax over the two score vectors (no physical concat).
    sw = scores(w_docs)
    sl_ = scores(l_docs)
    m = jnp.maximum(jnp.max(sw, keepdims=True), jnp.max(sl_, keepdims=True))
    ew = jnp.exp(sw - m)
    el = jnp.exp(sl_ - m)
    z = jnp.sum(ew, keepdims=True) + jnp.sum(el, keepdims=True)
    user = (jnp.sum(ew * w_docs, axis=0, keepdims=True)
            + jnp.sum(el * l_docs, axis=0, keepdims=True)) / z          # [1, E]

    # Candidate logits: user . cand^T (contract the feature dim).
    out_ref[0] = lax.dot_general(user, c_ref[0],
                                 dimension_numbers=(((1,), (1,)), ((), ())),
                                 preferred_element_type=jnp.float32)    # [1, C]


def pallas_nrms_tail(w_emb, l_emb, c_emb, p, nhead):
    U, Dw, E = w_emb.shape
    Dl = l_emb.shape[1]
    C = c_emb.shape[1]
    V = p["attn2_w"].shape[0]

    wqkv_t, bqkv = _fused_qkv(p, "mha2", nhead)
    wo_t = p["mha2_wo"].T
    wa_t = p["attn2_w"].T
    wav_t = p["attn2_vw"].T

    out = pl.pallas_call(
        functools.partial(nrms_tail_kernel, nhead=nhead),
        out_shape=jax.ShapeDtypeStruct((U, 1, C), jnp.float32),
        grid=(U,),
        in_specs=[
            pl.BlockSpec((1, Dw, E), lambda u: (u, 0, 0)),
            pl.BlockSpec((1, Dl, E), lambda u: (u, 0, 0)),
            pl.BlockSpec((1, C, E), lambda u: (u, 0, 0)),
            _rep((E, 3 * E)), _rep((1, 3 * E)),
            _rep((E, E)), _rep((1, E)),
            _rep((E, V)), _rep((1, V)),
            _rep((V, 1)),
        ],
        out_specs=pl.BlockSpec((1, 1, C), lambda u: (u, 0, 0)),
        compiler_params=_PARALLEL,
    )(w_emb, l_emb, c_emb, wqkv_t, bqkv, wo_t, p["mha2_bo"],
      wa_t, p["attn2_b"], wav_t)
    return out[:, 0, :]


# ---------------------------------------------------------------------------
# Parameters & full forward (glue in plain JAX)
# ---------------------------------------------------------------------------
def init_params(key, hp, vocab=100):
    E, Enc, V = hp["embed_size"], hp["encoder_size"], hp["v_size"]
    keys = iter(jax.random.split(key, 32))

    def w(shape, scale=0.1):
        return (scale * jax.random.normal(next(keys), shape)).astype(jnp.float32)

    p = {"embedding": w((vocab, E), 0.5)}
    for prefix in ("mha1", "mha2"):
        for name in ("wq", "wk", "wv", "wo"):
            p[f"{prefix}_{name}"] = w((E, E))
        for name in ("bq", "bk", "bv", "bo"):
            p[f"{prefix}_{name}"] = w((1, E))
    p["proj_w"] = w((Enc, E))
    p["proj_b"] = w((1, Enc))
    for prefix in ("attn", "attn2"):
        p[f"{prefix}_w"] = w((V, Enc))
        p[f"{prefix}_b"] = w((1, V))
        p[f"{prefix}_vw"] = w((1, V))
        p[f"{prefix}_vb"] = w((1, 1))
    return p


def nrms_forward(params, hp, write_reviews, like_reviews, candidates):
    U, Dw, S = write_reviews.shape
    Dl = like_reviews.shape[1]
    C = candidates.shape[1]
    Enc = hp["encoder_size"]
    # The second nn.MultiheadAttention consumes encoder outputs but is built
    # with embed_size -> the module only works when these match.
    assert hp["encoder_size"] == hp["embed_size"]

    # One encoder invocation over ALL sequences (write + like + candidates).
    tokens = jnp.concatenate([write_reviews, like_reviews, candidates], axis=1)
    flat = tokens.reshape(-1, S)
    emb = jnp.take(params["embedding"], flat, axis=0).astype(jnp.float32)
    # F.dropout / MHA dropout treated as identity (inference mode).
    enc = pallas_review_encoder(emb, params, hp["nhead"])      # [N, Enc]
    enc = enc.reshape(U, Dw + Dl + C, Enc)

    w_emb = enc[:, :Dw]
    l_emb = enc[:, Dw:Dw + Dl]
    c_emb = enc[:, Dw + Dl:]
    return pallas_nrms_tail(w_emb, l_emb, c_emb, params, hp["nhead"])   # [U, C]


# ---------------------------------------------------------------------------
# Pure-JAX reference (for correctness check)
# ---------------------------------------------------------------------------
def _ref_mha(x, p, prefix, nhead):
    B, L, E = x.shape
    hd = E // nhead
    q = x @ p[f"{prefix}_wq"].T + p[f"{prefix}_bq"]
    k = x @ p[f"{prefix}_wk"].T + p[f"{prefix}_bk"]
    v = x @ p[f"{prefix}_wv"].T + p[f"{prefix}_bv"]

    def split(t):
        return t.reshape(B, L, nhead, hd).transpose(0, 2, 1, 3)

    q, k, v = split(q) / float(hd) ** 0.5, split(k), split(v)
    a = jax.nn.softmax(jnp.einsum("bhqd,bhkd->bhqk", q, k), axis=-1)
    o = jnp.einsum("bhqk,bhkd->bhqd", a, v).transpose(0, 2, 1, 3).reshape(B, L, E)
    return o @ p[f"{prefix}_wo"].T + p[f"{prefix}_bo"]


def _ref_additive(c, p, prefix):
    t = jnp.tanh(c @ p[f"{prefix}_w"].T + p[f"{prefix}_b"])
    w = (t @ p[f"{prefix}_vw"].T + p[f"{prefix}_vb"])[..., 0]
    w = jax.nn.softmax(w, axis=-1)
    return jnp.einsum("bl,ble->be", w, c)


def ref_forward(params, hp, wr, lr, cand):
    U, Dw, S = wr.shape
    Dl, C = lr.shape[1], cand.shape[1]
    Enc = hp["encoder_size"]

    def enc(tokens):
        x = jnp.take(params["embedding"], tokens.reshape(-1, S), axis=0)
        o = _ref_mha(x, params, "mha1", hp["nhead"])
        o = o @ params["proj_w"].T + params["proj_b"]
        return _ref_additive(o, params, "attn")

    we = enc(wr).reshape(U, Dw, Enc)
    le = enc(lr).reshape(U, Dl, Enc)
    ce = enc(cand).reshape(U, C, Enc)
    wo = _ref_mha(we, params, "mha2", hp["nhead"])
    lo = _ref_mha(le, params, "mha2", hp["nhead"])
    user = _ref_additive(jnp.concatenate([wo, lo], axis=1), params, "attn2")
    return jnp.einsum("ue,uce->uc", user, ce)


# ---------------------------------------------------------------------------
if __name__ == "__main__":
    hp = {"embed_size": 32, "nhead": 4, "encoder_size": 32, "v_size": 16,
          "dropout": 0.2}
    key = jax.random.PRNGKey(0)
    kp, kw, kl, kc = jax.random.split(key, 4)
    params = init_params(kp, hp, vocab=100)

    U, Dw, Dl, C, S = 2, 3, 3, 4, 8
    write_reviews = jax.random.randint(kw, (U, Dw, S), 0, 100, dtype=jnp.int32)
    like_reviews = jax.random.randint(kl, (U, Dl, S), 0, 100, dtype=jnp.int32)
    candidates = jax.random.randint(kc, (U, C, S), 0, 100, dtype=jnp.int32)

    fwd = jax.jit(lambda prm, w, l, c: nrms_forward(prm, hp, w, l, c))
    logits = jax.block_until_ready(fwd(params, write_reviews, like_reviews,
                                       candidates))
    ref = ref_forward(params, hp, write_reviews, like_reviews, candidates)

    assert logits.shape == (U, C), logits.shape
    assert jnp.allclose(logits, ref, atol=2e-3, rtol=2e-3), (logits, ref)
    print("KERNEL_OK")
</pallas_src>

<mosaic_0001>
module attributes {stable_mosaic.version = 11 : i64} {
  func.func @review_encoder_kernel(%arg0: i32, %arg1: memref<16x8x32xf32, #tpu.memory_space<vmem>>, %arg2: memref<32x96xf32, #tpu.memory_space<vmem>>, %arg3: memref<1x96xf32, #tpu.memory_space<vmem>>, %arg4: memref<32x32xf32, #tpu.memory_space<vmem>>, %arg5: memref<1x32xf32, #tpu.memory_space<vmem>>, %arg6: memref<32x32xf32, #tpu.memory_space<vmem>>, %arg7: memref<1x32xf32, #tpu.memory_space<vmem>>, %arg8: memref<32x16xf32, #tpu.memory_space<vmem>>, %arg9: memref<1x16xf32, #tpu.memory_space<vmem>>, %arg10: memref<16x1xf32, #tpu.memory_space<vmem>>, %arg11: memref<16x32xf32, #tpu.memory_space<vmem>>, %arg12: memref<16x8x32xf32, #tpu.memory_space<vmem>>) attributes {dimension_semantics = [#tpu.dimension_semantics<parallel>], iteration_bounds = array<i64: 2>, scalar_prefetch = 0 : i64, scratch_operands = 1 : i64, tpu.core_type = #tpu.core_type<tc>, window_params = [{transform_indices = @transform_0, window_bounds = array<i64: 16, 8, 32>}, {pipeline_mode = #tpu.pipeline_mode<synchronous>, transform_indices = @transform_1, window_bounds = array<i64: 32, 96>}, {pipeline_mode = #tpu.pipeline_mode<synchronous>, transform_indices = @transform_2, window_bounds = array<i64: 1, 96>}, {pipeline_mode = #tpu.pipeline_mode<synchronous>, transform_indices = @transform_3, window_bounds = array<i64: 32, 32>}, {pipeline_mode = #tpu.pipeline_mode<synchronous>, transform_indices = @transform_4, window_bounds = array<i64: 1, 32>}, {pipeline_mode = #tpu.pipeline_mode<synchronous>, transform_indices = @transform_5, window_bounds = array<i64: 32, 32>}, {pipeline_mode = #tpu.pipeline_mode<synchronous>, transform_indices = @transform_6, window_bounds = array<i64: 1, 32>}, {pipeline_mode = #tpu.pipeline_mode<synchronous>, transform_indices = @transform_7, window_bounds = array<i64: 32, 16>}, {pipeline_mode = #tpu.pipeline_mode<synchronous>, transform_indices = @transform_8, window_bounds = array<i64: 1, 16>}, {pipeline_mode = #tpu.pipeline_mode<synchronous>, transform_indices = @transform_9, window_bounds = array<i64: 16, 1>}, {transform_indices = @transform_10, window_bounds = array<i64: 16, 32>}]} {
    %c0 = arith.constant 0 : index
    %c0_0 = arith.constant 0 : index
    %c0_1 = arith.constant 0 : index
    %0 = vector.load %arg1[%c0, %c0_0, %c0_1] : memref<16x8x32xf32, #tpu.memory_space<vmem>>, vector<16x8x32xf32>
    %1 = vector.shape_cast %0 : vector<16x8x32xf32> to vector<128x32xf32>
    %c0_2 = arith.constant 0 : index
    %c0_3 = arith.constant 0 : index
    %2 = vector.load %arg2[%c0_2, %c0_3] : memref<32x96xf32, #tpu.memory_space<vmem>>, vector<32x96xf32>
    %cst = arith.constant dense<0.000000e+00> : vector<128x96xf32>
    %3 = tpu.matmul %1, %2, %cst {dimension_numbers = #tpu.dot_dimension_numbers<[1], [0], [0], [1], [0, 0, 1, 1], [], []>} : vector<128x32xf32>, vector<32x96xf32>, vector<128x96xf32> -> vector<128x96xf32>
    %c0_4 = arith.constant 0 : index
    %c0_5 = arith.constant 0 : index
    %4 = vector.load %arg3[%c0_4, %c0_5] : memref<1x96xf32, #tpu.memory_space<vmem>>, vector<1x96xf32>
    %5 = vector.broadcast %4 : vector<1x96xf32> to vector<128x96xf32>
    %6 = arith.addf %3, %5 : vector<128x96xf32>
    %7 = vector.extract_strided_slice %6 {offsets = [0, 0], sizes = [128, 32], strides = [1, 1]} : vector<128x96xf32> to vector<128x32xf32>
    %8 = vector.shape_cast %7 : vector<128x32xf32> to vector<16x8x32xf32>
    %9 = vector.extract_strided_slice %6 {offsets = [0, 32], sizes = [128, 32], strides = [1, 1]} : vector<128x96xf32> to vector<128x32xf32>
    %10 = vector.shape_cast %9 : vector<128x32xf32> to vector<16x8x32xf32>
    %11 = vector.extract_strided_slice %6 {offsets = [0, 64], sizes = [128, 32], strides = [1, 1]} : vector<128x96xf32> to vector<128x32xf32>
    %12 = vector.shape_cast %11 : vector<128x32xf32> to vector<16x8x32xf32>
    %13 = vector.extract_strided_slice %8 {offsets = [0, 0, 0], sizes = [16, 8, 8], strides = [1, 1, 1]} : vector<16x8x32xf32> to vector<16x8x8xf32>
    %14 = vector.extract_strided_slice %10 {offsets = [0, 0, 0], sizes = [16, 8, 8], strides = [1, 1, 1]} : vector<16x8x32xf32> to vector<16x8x8xf32>
    "tpu.trace_start"() <{level = 10 : i32, message = "bqd,bkd->bqk"}> : () -> ()
    %cst_6 = arith.constant dense<0.000000e+00> : vector<16x8x8xf32>
    %15 = tpu.matmul %13, %14, %cst_6 {dimension_numbers = #tpu.dot_dimension_numbers<[2], [2], [1], [1], [0, 0, 0, 1, 1, 1], [0], [0]>} : vector<16x8x8xf32>, vector<16x8x8xf32>, vector<16x8x8xf32> -> vector<16x8x8xf32>
    "tpu.trace_stop"() : () -> ()
    %cst_7 = arith.constant dense<0xFF800000> : vector<16x8xf32>
    %16 = vector.multi_reduction <maximumf>, %15, %cst_7 [2] : vector<16x8x8xf32> to vector<16x8xf32>
    %17 = vector.shape_cast %16 : vector<16x8xf32> to vector<16x8x1xf32>
    %18 = vector.broadcast %17 : vector<16x8x1xf32> to vector<16x8x8xf32>
    %19 = arith.subf %15, %18 : vector<16x8x8xf32>
    %20 = math.exp %19 : vector<16x8x8xf32>
    %cst_8 = arith.constant dense<0.000000e+00> : vector<16x8xf32>
    %21 = vector.multi_reduction <add>, %20, %cst_8 [2] : vector<16x8x8xf32> to vector<16x8xf32>
    %22 = vector.shape_cast %21 : vector<16x8xf32> to vector<16x8x1xf32>
    %23 = vector.broadcast %22 : vector<16x8x1xf32> to vector<16x8x8xf32>
    %24 = arith.divf %20, %23 : vector<16x8x8xf32>
    %25 = vector.extract_strided_slice %12 {offsets = [0, 0, 0], sizes = [16, 8, 8], strides = [1, 1, 1]} : vector<16x8x32xf32> to vector<16x8x8xf32>
    "tpu.trace_start"() <{level = 10 : i32, message = "bqk,bkd->bqd"}> : () -> ()
    %cst_9 = arith.constant dense<0.000000e+00> : vector<16x8x8xf32>
    %26 = tpu.matmul %24, %25, %cst_9 {dimension_numbers = #tpu.dot_dimension_numbers<[2], [1], [1], [2], [0, 0, 0, 1, 1, 2], [0], [0]>} : vector<16x8x8xf32>, vector<16x8x8xf32>, vector<16x8x8xf32> -> vector<16x8x8xf32>
    "tpu.trace_stop"() : () -> ()
    %c0_10 = arith.constant 0 : index
    %c0_11 = arith.constant 0 : index
    %c0_12 = arith.constant 0 : index
    %27 = vector.load %arg12[%c0_10, %c0_11, %c0_12] : memref<16x8x32xf32, #tpu.memory_space<vmem>>, vector<16x8x8xf32>
    tpu.vector_store %arg12[%c0_10, %c0_11, %c0_12], %26 {strides = array<i32>} : memref<16x8x32xf32, #tpu.memory_space<vmem>>, vector<16x8x8xf32>,
    %28 = vector.extract_strided_slice %8 {offsets = [0, 0, 8], sizes = [16, 8, 8], strides = [1, 1, 1]} : vector<16x8x32xf32> to vector<16x8x8xf32>
    %29 = vector.extract_strided_slice %10 {offsets = [0, 0, 8], sizes = [16, 8, 8], strides = [1, 1, 1]} : vector<16x8x32xf32> to vector<16x8x8xf32>
    "tpu.trace_start"() <{level = 10 : i32, message = "bqd,bkd->bqk"}> : () -> ()
    %cst_13 = arith.constant dense<0.000000e+00> : vector<16x8x8xf32>
    %30 = tpu.matmul %28, %29, %cst_13 {dimension_numbers = #tpu.dot_dimension_numbers<[2], [2], [1], [1], [0, 0, 0, 1, 1, 1], [0], [0]>} : vector<16x8x8xf32>, vector<16x8x8xf32>, vector<16x8x8xf32> -> vector<16x8x8xf32>
    "tpu.trace_stop"() : () -> ()
    %cst_14 = arith.constant dense<0xFF800000> : vector<16x8xf32>
    %31 = vector.multi_reduction <maximumf>, %30, %cst_14 [2] : vector<16x8x8xf32> to vector<16x8xf32>
    %32 = vector.shape_cast %31 : vector<16x8xf32> to vector<16x8x1xf32>
    %33 = vector.broadcast %32 : vector<16x8x1xf32> to vector<16x8x8xf32>
    %34 = arith.subf %30, %33 : vector<16x8x8xf32>
    %35 = math.exp %34 : vector<16x8x8xf32>
    %cst_15 = arith.constant dense<0.000000e+00> : vector<16x8xf32>
    %36 = vector.multi_reduction <add>, %35, %cst_15 [2] : vector<16x8x8xf32> to vector<16x8xf32>
    %37 = vector.shape_cast %36 : vector<16x8xf32> to vector<16x8x1xf32>
    %38 = vector.broadcast %37 : vector<16x8x1xf32> to vector<16x8x8xf32>
    %39 = arith.divf %35, %38 : vector<16x8x8xf32>
    %40 = vector.extract_strided_slice %12 {offsets = [0, 0, 8], sizes = [16, 8, 8], strides = [1, 1, 1]} : vector<16x8x32xf32> to vector<16x8x8xf32>
    "tpu.trace_start"() <{level = 10 : i32, message = "bqk,bkd->bqd"}> : () -> ()
    %cst_16 = arith.constant dense<0.000000e+00> : vector<16x8x8xf32>
    %41 = tpu.matmul %39, %40, %cst_16 {dimension_numbers = #tpu.dot_dimension_numbers<[2], [1], [1], [2], [0, 0, 0, 1, 1, 2], [0], [0]>} : vector<16x8x8xf32>, vector<16x8x8xf32>, vector<16x8x8xf32> -> vector<16x8x8xf32>
    "tpu.trace_stop"() : () -> ()
    %c0_17 = arith.constant 0 : index
    %c0_18 = arith.constant 0 : index
    %c8 = arith.constant 8 : index
    %42 = vector.load %arg12[%c0_17, %c0_18, %c8] : memref<16x8x32xf32, #tpu.memory_space<vmem>>, vector<16x8x8xf32>
    tpu.vector_store %arg12[%c0_17, %c0_18, %c8], %41 {strides = array<i32>} : memref<16x8x32xf32, #tpu.memory_space<vmem>>, vector<16x8x8xf32>,
    %43 = vector.extract_strided_slice %8 {offsets = [0, 0, 16], sizes = [16, 8, 8], strides = [1, 1, 1]} : vector<16x8x32xf32> to vector<16x8x8xf32>
    %44 = vector.extract_strided_slice %10 {offsets = [0, 0, 16], sizes = [16, 8, 8], strides = [1, 1, 1]} : vector<16x8x32xf32> to vector<16x8x8xf32>
    "tpu.trace_start"() <{level = 10 : i32, message = "bqd,bkd->bqk"}> : () -> ()
    %cst_19 = arith.constant dense<0.000000e+00> : vector<16x8x8xf32>
    %45 = tpu.matmul %43, %44, %cst_19 {dimension_numbers = #tpu.dot_dimension_numbers<[2], [2], [1], [1], [0, 0, 0, 1, 1, 1], [0], [0]>} : vector<16x8x8xf32>, vector<16x8x8xf32>, vector<16x8x8xf32> -> vector<16x8x8xf32>
    "tpu.trace_stop"() : () -> ()
    %cst_20 = arith.constant dense<0xFF800000> : vector<16x8xf32>
    %46 = vector.multi_reduction <maximumf>, %45, %cst_20 [2] : vector<16x8x8xf32> to vector<16x8xf32>
    %47 = vector.shape_cast %46 : vector<16x8xf32> to vector<16x8x1xf32>
    %48 = vector.broadcast %47 : vector<16x8x1xf32> to vector<16x8x8xf32>
    %49 = arith.subf %45, %48 : vector<16x8x8xf32>
    %50 = math.exp %49 : vector<16x8x8xf32>
    %cst_21 = arith.constant dense<0.000000e+00> : vector<16x8xf32>
    %51 = vector.multi_reduction <add>, %50, %cst_21 [2] : vector<16x8x8xf32> to vector<16x8xf32>
    %52 = vector.shape_cast %51 : vector<16x8xf32> to vector<16x8x1xf32>
    %53 = vector.broadcast %52 : vector<16x8x1xf32> to vector<16x8x8xf32>
    %54 = arith.divf %50, %53 : vector<16x8x8xf32>
    %55 = vector.extract_strided_slice %12 {offsets = [0, 0, 16], sizes = [16, 8, 8], strides = [1, 1, 1]} : vector<16x8x32xf32> to vector<16x8x8xf32>
    "tpu.trace_start"() <{level = 10 : i32, message = "bqk,bkd->bqd"}> : () -> ()
    %cst_22 = arith.constant dense<0.000000e+00> : vector<16x8x8xf32>
    %56 = tpu.matmul %54, %55, %cst_22 {dimension_numbers = #tpu.dot_dimension_numbers<[2], [1], [1], [2], [0, 0, 0, 1, 1, 2], [0], [0]>} : vector<16x8x8xf32>, vector<16x8x8xf32>, vector<16x8x8xf32> -> vector<16x8x8xf32>
    "tpu.trace_stop"() : () -> ()
    %c0_23 = arith.constant 0 : index
    %c0_24 = arith.constant 0 : index
    %c16 = arith.constant 16 : index
    %57 = vector.load %arg12[%c0_23, %c0_24, %c16] : memref<16x8x32xf32, #tpu.memory_space<vmem>>, vector<16x8x8xf32>
    tpu.vector_store %arg12[%c0_23, %c0_24, %c16], %56 {strides = array<i32>} : memref<16x8x32xf32, #tpu.memory_space<vmem>>, vector<16x8x8xf32>,
    %58 = vector.extract_strided_slice %8 {offsets = [0, 0, 24], sizes = [16, 8, 8], strides = [1, 1, 1]} : vector<16x8x32xf32> to vector<16x8x8xf32>
    %59 = vector.extract_strided_slice %10 {offsets = [0, 0, 24], sizes = [16, 8, 8], strides = [1, 1, 1]} : vector<16x8x32xf32> to vector<16x8x8xf32>
    "tpu.trace_start"() <{level = 10 : i32, message = "bqd,bkd->bqk"}> : () -> ()
    %cst_25 = arith.constant dense<0.000000e+00> : vector<16x8x8xf32>
    %60 = tpu.matmul %58, %59, %cst_25 {dimension_numbers = #tpu.dot_dimension_numbers<[2], [2], [1], [1], [0, 0, 0, 1, 1, 1], [0], [0]>} : vector<16x8x8xf32>, vector<16x8x8xf32>, vector<16x8x8xf32> -> vector<16x8x8xf32>
    "tpu.trace_stop"() : () -> ()
    %cst_26 = arith.constant dense<0xFF800000> : vector<16x8xf32>
    %61 = vector.multi_reduction <maximumf>, %60, %cst_26 [2] : vector<16x8x8xf32> to vector<16x8xf32>
    %62 = vector.shape_cast %61 : vector<16x8xf32> to vector<16x8x1xf32>
    %63 = vector.broadcast %62 : vector<16x8x1xf32> to vector<16x8x8xf32>
    %64 = arith.subf %60, %63 : vector<16x8x8xf32>
    %65 = math.exp %64 : vector<16x8x8xf32>
    %cst_27 = arith.constant dense<0.000000e+00> : vector<16x8xf32>
    %66 = vector.multi_reduction <add>, %65, %cst_27 [2] : vector<16x8x8xf32> to vector<16x8xf32>
    %67 = vector.shape_cast %66 : vector<16x8xf32> to vector<16x8x1xf32>
    %68 = vector.broadcast %67 : vector<16x8x1xf32> to vector<16x8x8xf32>
    %69 = arith.divf %65, %68 : vector<16x8x8xf32>
    %70 = vector.extract_strided_slice %12 {offsets = [0, 0, 24], sizes = [16, 8, 8], strides = [1, 1, 1]} : vector<16x8x32xf32> to vector<16x8x8xf32>
    "tpu.trace_start"() <{level = 10 : i32, message = "bqk,bkd->bqd"}> : () -> ()
    %cst_28 = arith.constant dense<0.000000e+00> : vector<16x8x8xf32>
    %71 = tpu.matmul %69, %70, %cst_28 {dimension_numbers = #tpu.dot_dimension_numbers<[2], [1], [1], [2], [0, 0, 0, 1, 1, 2], [0], [0]>} : vector<16x8x8xf32>, vector<16x8x8xf32>, vector<16x8x8xf32> -> vector<16x8x8xf32>
    "tpu.trace_stop"() : () -> ()
    %c0_29 = arith.constant 0 : index
    %c0_30 = arith.constant 0 : index
    %c24 = arith.constant 24 : index
    %72 = vector.load %arg12[%c0_29, %c0_30, %c24] : memref<16x8x32xf32, #tpu.memory_space<vmem>>, vector<16x8x8xf32>
    tpu.vector_store %arg12[%c0_29, %c0_30, %c24], %71 {strides = array<i32>} : memref<16x8x32xf32, #tpu.memory_space<vmem>>, vector<16x8x8xf32>,
    %c0_31 = arith.constant 0 : index
    %c0_32 = arith.constant 0 : index
    %c0_33 = arith.constant 0 : index
    %73 = vector.load %arg12[%c0_31, %c0_32, %c0_33] : memref<16x8x32xf32, #tpu.memory_space<vmem>>, vector<16x8x32xf32>
    %74 = vector.shape_cast %73 : vector<16x8x32xf32> to vector<128x32xf32>
    %c0_34 = arith.constant 0 : index
    %c0_35 = arith.constant 0 : index
    %75 = vector.load %arg4[%c0_34, %c0_35] : memref<32x32xf32, #tpu.memory_space<vmem>>, vector<32x32xf32>
    %cst_36 = arith.constant dense<0.000000e+00> : vector<128x32xf32>
    %76 = tpu.matmul %74, %75, %cst_36 {dimension_numbers = #tpu.dot_dimension_numbers<[1], [0], [0], [1], [0, 0, 1, 1], [], []>} : vector<128x32xf32>, vector<32x32xf32>, vector<128x32xf32> -> vector<128x32xf32>
    %c0_37 = arith.constant 0 : index
    %c0_38 = arith.constant 0 : index
    %77 = vector.load %arg5[%c0_37, %c0_38] : memref<1x32xf32, #tpu.memory_space<vmem>>, vector<1x32xf32>
    %78 = vector.broadcast %77 : vector<1x32xf32> to vector<128x32xf32>
    %79 = arith.addf %76, %78 : vector<128x32xf32>
    %c0_39 = arith.constant 0 : index
    %c0_40 = arith.constant 0 : index
    %80 = vector.load %arg6[%c0_39, %c0_40] : memref<32x32xf32, #tpu.memory_space<vmem>>, vector<32x32xf32>
    %cst_41 = arith.constant dense<0.000000e+00> : vector<128x32xf32>
    %81 = tpu.matmul %79, %80, %cst_41 {dimension_numbers = #tpu.dot_dimension_numbers<[1], [0], [0], [1], [0, 0, 1, 1], [], []>} : vector<128x32xf32>, vector<32x32xf32>, vector<128x32xf32> -> vector<128x32xf32>
    %c0_42 = arith.constant 0 : index
    %c0_43 = arith.constant 0 : index
    %82 = vector.load %arg7[%c0_42, %c0_43] : memref<1x32xf32, #tpu.memory_space<vmem>>, vector<1x32xf32>
    %83 = vector.broadcast %82 : vector<1x32xf32> to vector<128x32xf32>
    %84 = arith.addf %81, %83 : vector<128x32xf32>
    %c0_44 = arith.constant 0 : index
    %c0_45 = arith.constant 0 : index
    %85 = vector.load %arg8[%c0_44, %c0_45] : memref<32x16xf32, #tpu.memory_space<vmem>>, vector<32x16xf32>
    %cst_46 = arith.constant dense<0.000000e+00> : vector<128x16xf32>
    %86 = tpu.matmul %84, %85, %cst_46 {dimension_numbers = #tpu.dot_dimension_numbers<[1], [0], [0], [1], [0, 0, 1, 1], [], []>} : vector<128x32xf32>, vector<32x16xf32>, vector<128x16xf32> -> vector<128x16xf32>
    %c0_47 = arith.constant 0 : index
    %c0_48 = arith.constant 0 : index
    %87 = vector.load %arg9[%c0_47, %c0_48] : memref<1x16xf32, #tpu.memory_space<vmem>>, vector<1x16xf32>
    %88 = vector.broadcast %87 : vector<1x16xf32> to vector<128x16xf32>
    %89 = arith.addf %86, %88 : vector<128x16xf32>
    %90 = math.tanh %89 : vector<128x16xf32>
    %c0_49 = arith.constant 0 : index
    %c0_50 = arith.constant 0 : index
    %91 = vector.load %arg10[%c0_49, %c0_50] : memref<16x1xf32, #tpu.memory_space<vmem>>, vector<16x1xf32>
    %cst_51 = arith.constant dense<0.000000e+00> : vector<128x1xf32>
    %92 = tpu.matmul %90, %91, %cst_51 {dimension_numbers = #tpu.dot_dimension_numbers<[1], [0], [0], [1], [0, 0, 1, 1], [], []>} : vector<128x16xf32>, vector<16x1xf32>, vector<128x1xf32> -> vector<128x1xf32>
    %93 = vector.shape_cast %84 : vector<128x32xf32> to vector<16x8x32xf32>
    %94 = vector.shape_cast %92 : vector<128x1xf32> to vector<16x8x1xf32>
    %cst_52 = arith.constant dense<0xFF800000> : vector<16x1xf32>
    %95 = vector.multi_reduction <maximumf>, %94, %cst_52 [1] : vector<16x8x1xf32> to vector<16x1xf32>
    %96 = vector.shape_cast %95 : vector<16x1xf32> to vector<16x1x1xf32>
    %97 = vector.broadcast %96 : vector<16x1x1xf32> to vector<16x8x1xf32>
    %98 = arith.subf %94, %97 : vector<16x8x1xf32>
    %99 = math.exp %98 : vector<16x8x1xf32>
    %cst_53 = arith.constant dense<0.000000e+00> : vector<16x1xf32>
    %100 = vector.multi_reduction <add>, %99, %cst_53 [1] : vector<16x8x1xf32> to vector<16x1xf32>
    %101 = vector.shape_cast %100 : vector<16x1xf32> to vector<16x1x1xf32>
    %102 = vector.broadcast %101 : vector<16x1x1xf32> to vector<16x8x1xf32>
    %103 = arith.divf %99, %102 : vector<16x8x1xf32>
    %104 = vector.broadcast %103 : vector<16x8x1xf32> to vector<16x8x32xf32>
    %105 = arith.mulf %104, %93 : vector<16x8x32xf32>
    %cst_54 = arith.constant dense<0.000000e+00> : vector<16x32xf32>
    %106 = vector.multi_reduction <add>, %105, %cst_54 [1] : vector<16x8x32xf32> to vector<16x32xf32>
    %c0_55 = arith.constant 0 : index
    %c0_56 = arith.constant 0 : index
    %107 = vector.load %arg11[%c0_55, %c0_56] : memref<16x32xf32, #tpu.memory_space<vmem>>, vector<16x32xf32>
    tpu.vector_store %arg11[%c0_55, %c0_56], %106 {strides = array<i32>} : memref<16x32xf32, #tpu.memory_space<vmem>>, vector<16x32xf32>,
    return
  }
  func.func @transform_0(%arg0: i32) -> (i32, i32, i32) {
    %c0_i32 = arith.constant 0 : i32
    %c0_i32_0 = arith.constant 0 : i32
    %c0_i32_1 = arith.constant 0 : i32
    return %arg0, %c0_i32, %c0_i32_0 : i32, i32, i32
  }
  func.func @transform_1(%arg0: i32) -> (i32, i32) {
    %c0_i32 = arith.constant 0 : i32
    %c0_i32_0 = arith.constant 0 : i32
    %c0_i32_1 = arith.constant 0 : i32
    return %c0_i32, %c0_i32_0 : i32, i32
  }
  func.func @transform_2(%arg0: i32) -> (i32, i32) {
    %c0_i32 = arith.constant 0 : i32
    %c0_i32_0 = arith.constant 0 : i32
    %c0_i32_1 = arith.constant 0 : i32
    return %c0_i32, %c0_i32_0 : i32, i32
  }
  func.func @transform_3(%arg0: i32) -> (i32, i32) {
    %c0_i32 = arith.constant 0 : i32
    %c0_i32_0 = arith.constant 0 : i32
    %c0_i32_1 = arith.constant 0 : i32
    return %c0_i32, %c0_i32_0 : i32, i32
  }
  func.func @transform_4(%arg0: i32) -> (i32, i32) {
    %c0_i32 = arith.constant 0 : i32
    %c0_i32_0 = arith.constant 0 : i32
    %c0_i32_1 = arith.constant 0 : i32
    return %c0_i32, %c0_i32_0 : i32, i32
  }
  func.func @transform_5(%arg0: i32) -> (i32, i32) {
    %c0_i32 = arith.constant 0 : i32
    %c0_i32_0 = arith.constant 0 : i32
    %c0_i32_1 = arith.constant 0 : i32
    return %c0_i32, %c0_i32_0 : i32, i32
  }
  func.func @transform_6(%arg0: i32) -> (i32, i32) {
    %c0_i32 = arith.constant 0 : i32
    %c0_i32_0 = arith.constant 0 : i32
    %c0_i32_1 = arith.constant 0 : i32
    return %c0_i32, %c0_i32_0 : i32, i32
  }
  func.func @transform_7(%arg0: i32) -> (i32, i32) {
    %c0_i32 = arith.constant 0 : i32
    %c0_i32_0 = arith.constant 0 : i32
    %c0_i32_1 = arith.constant 0 : i32
    return %c0_i32, %c0_i32_0 : i32, i32
  }
  func.func @transform_8(%arg0: i32) -> (i32, i32) {
    %c0_i32 = arith.constant 0 : i32
    %c0_i32_0 = arith.constant 0 : i32
    %c0_i32_1 = arith.constant 0 : i32
    return %c0_i32, %c0_i32_0 : i32, i32
  }
  func.func @transform_9(%arg0: i32) -> (i32, i32) {
    %c0_i32 = arith.constant 0 : i32
    %c0_i32_0 = arith.constant 0 : i32
    %c0_i32_1 = arith.constant 0 : i32
    return %c0_i32, %c0_i32_0 : i32, i32
  }
  func.func @transform_10(%arg0: i32) -> (i32, i32) {
    %c0_i32 = arith.constant 0 : i32
    %c0_i32_0 = arith.constant 0 : i32
    return %arg0, %c0_i32 : i32, i32
  }
}

module attributes {stable_mosaic.version = 11 : i64} {
  func.func @nrms_tail_kernel(%arg0: i32, %arg1: memref<1x3x32xf32, #tpu.memory_space<vmem>>, %arg2: memref<1x3x32xf32, #tpu.memory_space<vmem>>, %arg3: memref<1x4x32xf32, #tpu.memory_space<vmem>>, %arg4: memref<32x96xf32, #tpu.memory_space<vmem>>, %arg5: memref<1x96xf32, #tpu.memory_space<vmem>>, %arg6: memref<32x32xf32, #tpu.memory_space<vmem>>, %arg7: memref<1x32xf32, #tpu.memory_space<vmem>>, %arg8: memref<32x16xf32, #tpu.memory_space<vmem>>, %arg9: memref<1x16xf32, #tpu.memory_space<vmem>>, %arg10: memref<16x1xf32, #tpu.memory_space<vmem>>, %arg11: memref<1x1x4xf32, #tpu.memory_space<vmem>>) attributes {dimension_semantics = [#tpu.dimension_semantics<parallel>], iteration_bounds = array<i64: 2>, scalar_prefetch = 0 : i64, scratch_operands = 0 : i64, tpu.core_type = #tpu.core_type<tc>, window_params = [{transform_indices = @transform_0, window_bounds = array<i64: 1, 3, 32>}, {transform_indices = @transform_1, window_bounds = array<i64: 1, 3, 32>}, {transform_indices = @transform_2, window_bounds = array<i64: 1, 4, 32>}, {pipeline_mode = #tpu.pipeline_mode<synchronous>, transform_indices = @transform_3, window_bounds = array<i64: 32, 96>}, {pipeline_mode = #tpu.pipeline_mode<synchronous>, transform_indices = @transform_4, window_bounds = array<i64: 1, 96>}, {pipeline_mode = #tpu.pipeline_mode<synchronous>, transform_indices = @transform_5, window_bounds = array<i64: 32, 32>}, {pipeline_mode = #tpu.pipeline_mode<synchronous>, transform_indices = @transform_6, window_bounds = array<i64: 1, 32>}, {pipeline_mode = #tpu.pipeline_mode<synchronous>, transform_indices = @transform_7, window_bounds = array<i64: 32, 16>}, {pipeline_mode = #tpu.pipeline_mode<synchronous>, transform_indices = @transform_8, window_bounds = array<i64: 1, 16>}, {pipeline_mode = #tpu.pipeline_mode<synchronous>, transform_indices = @transform_9, window_bounds = array<i64: 16, 1>}, {transform_indices = @transform_10, window_bounds = array<i64: 1, 1, 4>}]} {
    %c0 = arith.constant 0 : index
    %c0_0 = arith.constant 0 : index
    %0 = vector.load %arg4[%c0, %c0_0] : memref<32x96xf32, #tpu.memory_space<vmem>>, vector<32x96xf32>
    %c0_1 = arith.constant 0 : index
    %c0_2 = arith.constant 0 : index
    %1 = vector.load %arg5[%c0_1, %c0_2] : memref<1x96xf32, #tpu.memory_space<vmem>>, vector<1x96xf32>
    %c0_3 = arith.constant 0 : index
    %c0_4 = arith.constant 0 : index
    %2 = vector.load %arg6[%c0_3, %c0_4] : memref<32x32xf32, #tpu.memory_space<vmem>>, vector<32x32xf32>
    %c0_5 = arith.constant 0 : index
    %c0_6 = arith.constant 0 : index
    %3 = vector.load %arg7[%c0_5, %c0_6] : memref<1x32xf32, #tpu.memory_space<vmem>>, vector<1x32xf32>
    %c0_7 = arith.constant 0 : index
    %c0_8 = arith.constant 0 : index
    %4 = vector.load %arg8[%c0_7, %c0_8] : memref<32x16xf32, #tpu.memory_space<vmem>>, vector<32x16xf32>
    %c0_9 = arith.constant 0 : index
    %c0_10 = arith.constant 0 : index
    %5 = vector.load %arg9[%c0_9, %c0_10] : memref<1x16xf32, #tpu.memory_space<vmem>>, vector<1x16xf32>
    %c0_11 = arith.constant 0 : index
    %c0_12 = arith.constant 0 : index
    %6 = vector.load %arg10[%c0_11, %c0_12] : memref<16x1xf32, #tpu.memory_space<vmem>>, vector<16x1xf32>
    %c0_13 = arith.constant 0 : index
    %c0_14 = arith.constant 0 : index
    %c0_15 = arith.constant 0 : index
    %7 = vector.load %arg1[%c0_13, %c0_14, %c0_15] : memref<1x3x32xf32, #tpu.memory_space<vmem>>, vector<1x3x32xf32>
    %8 = vector.shape_cast %7 : vector<1x3x32xf32> to vector<3x32xf32>
    %cst = arith.constant dense<0.000000e+00> : vector<3x96xf32>
    %9 = tpu.matmul %8, %0, %cst {dimension_numbers = #tpu.dot_dimension_numbers<[1], [0], [0], [1], [0, 0, 1, 1], [], []>} : vector<3x32xf32>, vector<32x96xf32>, vector<3x96xf32> -> vector<3x96xf32>
    %10 = vector.broadcast %1 : vector<1x96xf32> to vector<3x96xf32>
    %11 = arith.addf %9, %10 : vector<3x96xf32>
    %12 = vector.extract_strided_slice %11 {offsets = [0, 0], sizes = [3, 8], strides = [1, 1]} : vector<3x96xf32> to vector<3x8xf32>
    %13 = vector.extract_strided_slice %11 {offsets = [0, 32], sizes = [3, 8], strides = [1, 1]} : vector<3x96xf32> to vector<3x8xf32>
    %14 = vector.extract_strided_slice %11 {offsets = [0, 64], sizes = [3, 8], strides = [1, 1]} : vector<3x96xf32> to vector<3x8xf32>
    %15 = tpu.transpose %13, [1, 0] : vector<3x8xf32> -> vector<8x3xf32>
    %cst_16 = arith.constant dense<0.000000e+00> : vector<3x3xf32>
    %16 = tpu.matmul %12, %15, %cst_16 {dimension_numbers = #tpu.dot_dimension_numbers<[1], [0], [0], [1], [0, 0, 1, 1], [], []>} : vector<3x8xf32>, vector<8x3xf32>, vector<3x3xf32> -> vector<3x3xf32>
    %cst_17 = arith.constant dense<0xFF800000> : vector<3xf32>
    %17 = vector.multi_reduction <maximumf>, %16, %cst_17 [1] : vector<3x3xf32> to vector<3xf32>
    %18 = vector.shape_cast %17 : vector<3xf32> to vector<3x1xf32>
    %19 = vector.broadcast %18 : vector<3x1xf32> to vector<3x3xf32>
    %20 = arith.subf %16, %19 : vector<3x3xf32>
    %21 = math.exp %20 : vector<3x3xf32>
    %cst_18 = arith.constant dense<0.000000e+00> : vector<3xf32>
    %22 = vector.multi_reduction <add>, %21, %cst_18 [1] : vector<3x3xf32> to vector<3xf32>
    %23 = vector.shape_cast %22 : vector<3xf32> to vector<3x1xf32>
    %24 = vector.broadcast %23 : vector<3x1xf32> to vector<3x3xf32>
    %25 = arith.divf %21, %24 : vector<3x3xf32>
    %cst_19 = arith.constant dense<0.000000e+00> : vector<3x8xf32>
    %26 = tpu.matmul %25, %14, %cst_19 {dimension_numbers = #tpu.dot_dimension_numbers<[1], [0], [0], [1], [0, 0, 1, 1], [], []>} : vector<3x3xf32>, vector<3x8xf32>, vector<3x8xf32> -> vector<3x8xf32>
    %27 = vector.extract_strided_slice %2 {offsets = [0, 0], sizes = [8, 32], strides = [1, 1]} : vector<32x32xf32> to vector<8x32xf32>
    %cst_20 = arith.constant dense<0.000000e+00> : vector<3x32xf32>
    %28 = tpu.matmul %26, %27, %cst_20 {dimension_numbers = #tpu.dot_dimension_numbers<[1], [0], [0], [1], [0, 0, 1, 1], [], []>} : vector<3x8xf32>, vector<8x32xf32>, vector<3x32xf32> -> vector<3x32xf32>
    %29 = vector.extract_strided_slice %11 {offsets = [0, 8], sizes = [3, 8], strides = [1, 1]} : vector<3x96xf32> to vector<3x8xf32>
    %30 = vector.extract_strided_slice %11 {offsets = [0, 40], sizes = [3, 8], strides = [1, 1]} : vector<3x96xf32> to vector<3x8xf32>
    %31 = vector.extract_strided_slice %11 {offsets = [0, 72], sizes = [3, 8], strides = [1, 1]} : vector<3x96xf32> to vector<3x8xf32>
    %32 = tpu.transpose %30, [1, 0] : vector<3x8xf32> -> vector<8x3xf32>
    %cst_21 = arith.constant dense<0.000000e+00> : vector<3x3xf32>
    %33 = tpu.matmul %29, %32, %cst_21 {dimension_numbers = #tpu.dot_dimension_numbers<[1], [0], [0], [1], [0, 0, 1, 1], [], []>} : vector<3x8xf32>, vector<8x3xf32>, vector<3x3xf32> -> vector<3x3xf32>
    %cst_22 = arith.constant dense<0xFF800000> : vector<3xf32>
    %34 = vector.multi_reduction <maximumf>, %33, %cst_22 [1] : vector<3x3xf32> to vector<3xf32>
    %35 = vector.shape_cast %34 : vector<3xf32> to vector<3x1xf32>
    %36 = vector.broadcast %35 : vector<3x1xf32> to vector<3x3xf32>
    %37 = arith.subf %33, %36 : vector<3x3xf32>
    %38 = math.exp %37 : vector<3x3xf32>
    %cst_23 = arith.constant dense<0.000000e+00> : vector<3xf32>
    %39 = vector.multi_reduction <add>, %38, %cst_23 [1] : vector<3x3xf32> to vector<3xf32>
    %40 = vector.shape_cast %39 : vector<3xf32> to vector<3x1xf32>
    %41 = vector.broadcast %40 : vector<3x1xf32> to vector<3x3xf32>
    %42 = arith.divf %38, %41 : vector<3x3xf32>
    %cst_24 = arith.constant dense<0.000000e+00> : vector<3x8xf32>
    %43 = tpu.matmul %42, %31, %cst_24 {dimension_numbers = #tpu.dot_dimension_numbers<[1], [0], [0], [1], [0, 0, 1, 1], [], []>} : vector<3x3xf32>, vector<3x8xf32>, vector<3x8xf32> -> vector<3x8xf32>
    %44 = vector.extract_strided_slice %2 {offsets = [8, 0], sizes = [8, 32], strides = [1, 1]} : vector<32x32xf32> to vector<8x32xf32>
    %cst_25 = arith.constant dense<0.000000e+00> : vector<3x32xf32>
    %45 = tpu.matmul %43, %44, %cst_25 {dimension_numbers = #tpu.dot_dimension_numbers<[1], [0], [0], [1], [0, 0, 1, 1], [], []>} : vector<3x8xf32>, vector<8x32xf32>, vector<3x32xf32> -> vector<3x32xf32>
    %46 = arith.addf %28, %45 : vector<3x32xf32>
    %47 = vector.extract_strided_slice %11 {offsets = [0, 16], sizes = [3, 8], strides = [1, 1]} : vector<3x96xf32> to vector<3x8xf32>
    %48 = vector.extract_strided_slice %11 {offsets = [0, 48], sizes = [3, 8], strides = [1, 1]} : vector<3x96xf32> to vector<3x8xf32>
    %49 = vector.extract_strided_slice %11 {offsets = [0, 80], sizes = [3, 8], strides = [1, 1]} : vector<3x96xf32> to vector<3x8xf32>
    %50 = tpu.transpose %48, [1, 0] : vector<3x8xf32> -> vector<8x3xf32>
    %cst_26 = arith.constant dense<0.000000e+00> : vector<3x3xf32>
    %51 = tpu.matmul %47, %50, %cst_26 {dimension_numbers = #tpu.dot_dimension_numbers<[1], [0], [0], [1], [0, 0, 1, 1], [], []>} : vector<3x8xf32>, vector<8x3xf32>, vector<3x3xf32> -> vector<3x3xf32>
    %cst_27 = arith.constant dense<0xFF800000> : vector<3xf32>
    %52 = vector.multi_reduction <maximumf>, %51, %cst_27 [1] : vector<3x3xf32> to vector<3xf32>
    %53 = vector.shape_cast %52 : vector<3xf32> to vector<3x1xf32>
    %54 = vector.broadcast %53 : vector<3x1xf32> to vector<3x3xf32>
    %55 = arith.subf %51, %54 : vector<3x3xf32>
    %56 = math.exp %55 : vector<3x3xf32>
    %cst_28 = arith.constant dense<0.000000e+00> : vector<3xf32>
    %57 = vector.multi_reduction <add>, %56, %cst_28 [1] : vector<3x3xf32> to vector<3xf32>
    %58 = vector.shape_cast %57 : vector<3xf32> to vector<3x1xf32>
    %59 = vector.broadcast %58 : vector<3x1xf32> to vector<3x3xf32>
    %60 = arith.divf %56, %59 : vector<3x3xf32>
    %cst_29 = arith.constant dense<0.000000e+00> : vector<3x8xf32>
    %61 = tpu.matmul %60, %49, %cst_29 {dimension_numbers = #tpu.dot_dimension_numbers<[1], [0], [0], [1], [0, 0, 1, 1], [], []>} : vector<3x3xf32>, vector<3x8xf32>, vector<3x8xf32> -> vector<3x8xf32>
    %62 = vector.extract_strided_slice %2 {offsets = [16, 0], sizes = [8, 32], strides = [1, 1]} : vector<32x32xf32> to vector<8x32xf32>
    %cst_30 = arith.constant dense<0.000000e+00> : vector<3x32xf32>
    %63 = tpu.matmul %61, %62, %cst_30 {dimension_numbers = #tpu.dot_dimension_numbers<[1], [0], [0], [1], [0, 0, 1, 1], [], []>} : vector<3x8xf32>, vector<8x32xf32>, vector<3x32xf32> -> vector<3x32xf32>
    %64 = arith.addf %46, %63 : vector<3x32xf32>
    %65 = vector.extract_strided_slice %11 {offsets = [0, 24], sizes = [3, 8], strides = [1, 1]} : vector<3x96xf32> to vector<3x8xf32>
    %66 = vector.extract_strided_slice %11 {offsets = [0, 56], sizes = [3, 8], strides = [1, 1]} : vector<3x96xf32> to vector<3x8xf32>
    %67 = vector.extract_strided_slice %11 {offsets = [0, 88], sizes = [3, 8], strides = [1, 1]} : vector<3x96xf32> to vector<3x8xf32>
    %68 = tpu.transpose %66, [1, 0] : vector<3x8xf32> -> vector<8x3xf32>
    %cst_31 = arith.constant dense<0.000000e+00> : vector<3x3xf32>
    %69 = tpu.matmul %65, %68, %cst_31 {dimension_numbers = #tpu.dot_dimension_numbers<[1], [0], [0], [1], [0, 0, 1, 1], [], []>} : vector<3x8xf32>, vector<8x3xf32>, vector<3x3xf32> -> vector<3x3xf32>
    %cst_32 = arith.constant dense<0xFF800000> : vector<3xf32>
    %70 = vector.multi_reduction <maximumf>, %69, %cst_32 [1] : vector<3x3xf32> to vector<3xf32>
    %71 = vector.shape_cast %70 : vector<3xf32> to vector<3x1xf32>
    %72 = vector.broadcast %71 : vector<3x1xf32> to vector<3x3xf32>
    %73 = arith.subf %69, %72 : vector<3x3xf32>
    %74 = math.exp %73 : vector<3x3xf32>
    %cst_33 = arith.constant dense<0.000000e+00> : vector<3xf32>
    %75 = vector.multi_reduction <add>, %74, %cst_33 [1] : vector<3x3xf32> to vector<3xf32>
    %76 = vector.shape_cast %75 : vector<3xf32> to vector<3x1xf32>
    %77 = vector.broadcast %76 : vector<3x1xf32> to vector<3x3xf32>
    %78 = arith.divf %74, %77 : vector<3x3xf32>
    %cst_34 = arith.constant dense<0.000000e+00> : vector<3x8xf32>
    %79 = tpu.matmul %78, %67, %cst_34 {dimension_numbers = #tpu.dot_dimension_numbers<[1], [0], [0], [1], [0, 0, 1, 1], [], []>} : vector<3x3xf32>, vector<3x8xf32>, vector<3x8xf32> -> vector<3x8xf32>
    %80 = vector.extract_strided_slice %2 {offsets = [24, 0], sizes = [8, 32], strides = [1, 1]} : vector<32x32xf32> to vector<8x32xf32>
    %cst_35 = arith.constant dense<0.000000e+00> : vector<3x32xf32>
    %81 = tpu.matmul %79, %80, %cst_35 {dimension_numbers = #tpu.dot_dimension_numbers<[1], [0], [0], [1], [0, 0, 1, 1], [], []>} : vector<3x8xf32>, vector<8x32xf32>, vector<3x32xf32> -> vector<3x32xf32>
    %82 = arith.addf %64, %81 : vector<3x32xf32>
    %83 = vector.broadcast %3 : vector<1x32xf32> to vector<3x32xf32>
    %84 = arith.addf %82, %83 : vector<3x32xf32>
    %c0_36 = arith.constant 0 : index
    %c0_37 = arith.constant 0 : index
    %c0_38 = arith.constant 0 : index
    %85 = vector.load %arg2[%c0_36, %c0_37, %c0_38] : memref<1x3x32xf32, #tpu.memory_space<vmem>>, vector<1x3x32xf32>
    %86 = vector.shape_cast %85 : vector<1x3x32xf32> to vector<3x32xf32>
    %cst_39 = arith.constant dense<0.000000e+00> : vector<3x96xf32>
    %87 = tpu.matmul %86, %0, %cst_39 {dimension_numbers = #tpu.dot_dimension_numbers<[1], [0], [0], [1], [0, 0, 1, 1], [], []>} : vector<3x32xf32>, vector<32x96xf32>, vector<3x96xf32> -> vector<3x96xf32>
    %88 = vector.broadcast %1 : vector<1x96xf32> to vector<3x96xf32>
    %89 = arith.addf %87, %88 : vector<3x96xf32>
    %90 = vector.extract_strided_slice %89 {offsets = [0, 0], sizes = [3, 8], strides = [1, 1]} : vector<3x96xf32> to vector<3x8xf32>
    %91 = vector.extract_strided_slice %89 {offsets = [0, 32], sizes = [3, 8], strides = [1, 1]} : vector<3x96xf32> to vector<3x8xf32>
    %92 = vector.extract_strided_slice %89 {offsets = [0, 64], sizes = [3, 8], strides = [1, 1]} : vector<3x96xf32> to vector<3x8xf32>
    %93 = tpu.transpose %91, [1, 0] : vector<3x8xf32> -> vector<8x3xf32>
    %cst_40 = arith.constant dense<0.000000e+00> : vector<3x3xf32>
    %94 = tpu.matmul %90, %93, %cst_40 {dimension_numbers = #tpu.dot_dimension_numbers<[1], [0], [0], [1], [0, 0, 1, 1], [], []>} : vector<3x8xf32>, vector<8x3xf32>, vector<3x3xf32> -> vector<3x3xf32>
    %cst_41 = arith.constant dense<0xFF800000> : vector<3xf32>
    %95 = vector.multi_reduction <maximumf>, %94, %cst_41 [1] : vector<3x3xf32> to vector<3xf32>
    %96 = vector.shape_cast %95 : vector<3xf32> to vector<3x1xf32>
    %97 = vector.broadcast %96 : vector<3x1xf32> to vector<3x3xf32>
    %98 = arith.subf %94, %97 : vector<3x3xf32>
    %99 = math.exp %98 : vector<3x3xf32>
    %cst_42 = arith.constant dense<0.000000e+00> : vector<3xf32>
    %100 = vector.multi_reduction <add>, %99, %cst_42 [1] : vector<3x3xf32> to vector<3xf32>
    %101 = vector.shape_cast %100 : vector<3xf32> to vector<3x1xf32>
    %102 = vector.broadcast %101 : vector<3x1xf32> to vector<3x3xf32>
    %103 = arith.divf %99, %102 : vector<3x3xf32>
    %cst_43 = arith.constant dense<0.000000e+00> : vector<3x8xf32>
    %104 = tpu.matmul %103, %92, %cst_43 {dimension_numbers = #tpu.dot_dimension_numbers<[1], [0], [0], [1], [0, 0, 1, 1], [], []>} : vector<3x3xf32>, vector<3x8xf32>, vector<3x8xf32> -> vector<3x8xf32>
    %105 = vector.extract_strided_slice %2 {offsets = [0, 0], sizes = [8, 32], strides = [1, 1]} : vector<32x32xf32> to vector<8x32xf32>
    %cst_44 = arith.constant dense<0.000000e+00> : vector<3x32xf32>
    %106 = tpu.matmul %104, %105, %cst_44 {dimension_numbers = #tpu.dot_dimension_numbers<[1], [0], [0], [1], [0, 0, 1, 1], [], []>} : vector<3x8xf32>, vector<8x32xf32>, vector<3x32xf32> -> vector<3x32xf32>
    %107 = vector.extract_strided_slice %89 {offsets = [0, 8], sizes = [3, 8], strides = [1, 1]} : vector<3x96xf32> to vector<3x8xf32>
    %108 = vector.extract_strided_slice %89 {offsets = [0, 40], sizes = [3, 8], strides = [1, 1]} : vector<3x96xf32> to vector<3x8xf32>
    %109 = vector.extract_strided_slice %89 {offsets = [0, 72], sizes = [3, 8], strides = [1, 1]} : vector<3x96xf32> to vector<3x8xf32>
    %110 = tpu.transpose %108, [1, 0] : vector<3x8xf32> -> vector<8x3xf32>
    %cst_45 = arith.constant dense<0.000000e+00> : vector<3x3xf32>
    %111 = tpu.matmul %107, %110, %cst_45 {dimension_numbers = #tpu.dot_dimension_numbers<[1], [0], [0], [1], [0, 0, 1, 1], [], []>} : vector<3x8xf32>, vector<8x3xf32>, vector<3x3xf32> -> vector<3x3xf32>
    %cst_46 = arith.constant dense<0xFF800000> : vector<3xf32>
    %112 = vector.multi_reduction <maximumf>, %111, %cst_46 [1] : vector<3x3xf32> to vector<3xf32>
    %113 = vector.shape_cast %112 : vector<3xf32> to vector<3x1xf32>
    %114 = vector.broadcast %113 : vector<3x1xf32> to vector<3x3xf32>
    %115 = arith.subf %111, %114 : vector<3x3xf32>
    %116 = math.exp %115 : vector<3x3xf32>
    %cst_47 = arith.constant dense<0.000000e+00> : vector<3xf32>
    %117 = vector.multi_reduction <add>, %116, %cst_47 [1] : vector<3x3xf32> to vector<3xf32>
    %118 = vector.shape_cast %117 : vector<3xf32> to vector<3x1xf32>
    %119 = vector.broadcast %118 : vector<3x1xf32> to vector<3x3xf32>
    %120 = arith.divf %116, %119 : vector<3x3xf32>
    %cst_48 = arith.constant dense<0.000000e+00> : vector<3x8xf32>
    %121 = tpu.matmul %120, %109, %cst_48 {dimension_numbers = #tpu.dot_dimension_numbers<[1], [0], [0], [1], [0, 0, 1, 1], [], []>} : vector<3x3xf32>, vector<3x8xf32>, vector<3x8xf32> -> vector<3x8xf32>
    %122 = vector.extract_strided_slice %2 {offsets = [8, 0], sizes = [8, 32], strides = [1, 1]} : vector<32x32xf32> to vector<8x32xf32>
    %cst_49 = arith.constant dense<0.000000e+00> : vector<3x32xf32>
    %123 = tpu.matmul %121, %122, %cst_49 {dimension_numbers = #tpu.dot_dimension_numbers<[1], [0], [0], [1], [0, 0, 1, 1], [], []>} : vector<3x8xf32>, vector<8x32xf32>, vector<3x32xf32> -> vector<3x32xf32>
    %124 = arith.addf %106, %123 : vector<3x32xf32>
    %125 = vector.extract_strided_slice %89 {offsets = [0, 16], sizes = [3, 8], strides = [1, 1]} : vector<3x96xf32> to vector<3x8xf32>
    %126 = vector.extract_strided_slice %89 {offsets = [0, 48], sizes = [3, 8], strides = [1, 1]} : vector<3x96xf32> to vector<3x8xf32>
    %127 = vector.extract_strided_slice %89 {offsets = [0, 80], sizes = [3, 8], strides = [1, 1]} : vector<3x96xf32> to vector<3x8xf32>
    %128 = tpu.transpose %126, [1, 0] : vector<3x8xf32> -> vector<8x3xf32>
    %cst_50 = arith.constant dense<0.000000e+00> : vector<3x3xf32>
    %129 = tpu.matmul %125, %128, %cst_50 {dimension_numbers = #tpu.dot_dimension_numbers<[1], [0], [0], [1], [0, 0, 1, 1], [], []>} : vector<3x8xf32>, vector<8x3xf32>, vector<3x3xf32> -> vector<3x3xf32>
    %cst_51 = arith.constant dense<0xFF800000> : vector<3xf32>
    %130 = vector.multi_reduction <maximumf>, %129, %cst_51 [1] : vector<3x3xf32> to vector<3xf32>
    %131 = vector.shape_cast %130 : vector<3xf32> to vector<3x1xf32>
    %132 = vector.broadcast %131 : vector<3x1xf32> to vector<3x3xf32>
    %133 = arith.subf %129, %132 : vector<3x3xf32>
    %134 = math.exp %133 : vector<3x3xf32>
    %cst_52 = arith.constant dense<0.000000e+00> : vector<3xf32>
    %135 = vector.multi_reduction <add>, %134, %cst_52 [1] : vector<3x3xf32> to vector<3xf32>
    %136 = vector.shape_cast %135 : vector<3xf32> to vector<3x1xf32>
    %137 = vector.broadcast %136 : vector<3x1xf32> to vector<3x3xf32>
    %138 = arith.divf %134, %137 : vector<3x3xf32>
    %cst_53 = arith.constant dense<0.000000e+00> : vector<3x8xf32>
    %139 = tpu.matmul %138, %127, %cst_53 {dimension_numbers = #tpu.dot_dimension_numbers<[1], [0], [0], [1], [0, 0, 1, 1], [], []>} : vector<3x3xf32>, vector<3x8xf32>, vector<3x8xf32> -> vector<3x8xf32>
    %140 = vector.extract_strided_slice %2 {offsets = [16, 0], sizes = [8, 32], strides = [1, 1]} : vector<32x32xf32> to vector<8x32xf32>
    %cst_54 = arith.constant dense<0.000000e+00> : vector<3x32xf32>
    %141 = tpu.matmul %139, %140, %cst_54 {dimension_numbers = #tpu.dot_dimension_numbers<[1], [0], [0], [1], [0, 0, 1, 1], [], []>} : vector<3x8xf32>, vector<8x32xf32>, vector<3x32xf32> -> vector<3x32xf32>
    %142 = arith.addf %124, %141 : vector<3x32xf32>
    %143 = vector.extract_strided_slice %89 {offsets = [0, 24], sizes = [3, 8], strides = [1, 1]} : vector<3x96xf32> to vector<3x8xf32>
    %144 = vector.extract_strided_slice %89 {offsets = [0, 56], sizes = [3, 8], strides = [1, 1]} : vector<3x96xf32> to vector<3x8xf32>
    %145 = vector.extract_strided_slice %89 {offsets = [0, 88], sizes = [3, 8], strides = [1, 1]} : vector<3x96xf32> to vector<3x8xf32>
    %146 = tpu.transpose %144, [1, 0] : vector<3x8xf32> -> vector<8x3xf32>
    %cst_55 = arith.constant dense<0.000000e+00> : vector<3x3xf32>
    %147 = tpu.matmul %143, %146, %cst_55 {dimension_numbers = #tpu.dot_dimension_numbers<[1], [0], [0], [1], [0, 0, 1, 1], [], []>} : vector<3x8xf32>, vector<8x3xf32>, vector<3x3xf32> -> vector<3x3xf32>
    %cst_56 = arith.constant dense<0xFF800000> : vector<3xf32>
    %148 = vector.multi_reduction <maximumf>, %147, %cst_56 [1] : vector<3x3xf32> to vector<3xf32>
    %149 = vector.shape_cast %148 : vector<3xf32> to vector<3x1xf32>
    %150 = vector.broadcast %149 : vector<3x1xf32> to vector<3x3xf32>
    %151 = arith.subf %147, %150 : vector<3x3xf32>
    %152 = math.exp %151 : vector<3x3xf32>
    %cst_57 = arith.constant dense<0.000000e+00> : vector<3xf32>
    %153 = vector.multi_reduction <add>, %152, %cst_57 [1] : vector<3x3xf32> to vector<3xf32>
    %154 = vector.shape_cast %153 : vector<3xf32> to vector<3x1xf32>
    %155 = vector.broadcast %154 : vector<3x1xf32> to vector<3x3xf32>
    %156 = arith.divf %152, %155 : vector<3x3xf32>
    %cst_58 = arith.constant dense<0.000000e+00> : vector<3x8xf32>
    %157 = tpu.matmul %156, %145, %cst_58 {dimension_numbers = #tpu.dot_dimension_numbers<[1], [0], [0], [1], [0, 0, 1, 1], [], []>} : vector<3x3xf32>, vector<3x8xf32>, vector<3x8xf32> -> vector<3x8xf32>
    %158 = vector.extract_strided_slice %2 {offsets = [24, 0], sizes = [8, 32], strides = [1, 1]} : vector<32x32xf32> to vector<8x32xf32>
    %cst_59 = arith.constant dense<0.000000e+00> : vector<3x32xf32>
    %159 = tpu.matmul %157, %158, %cst_59 {dimension_numbers = #tpu.dot_dimension_numbers<[1], [0], [0], [1], [0, 0, 1, 1], [], []>} : vector<3x8xf32>, vector<8x32xf32>, vector<3x32xf32> -> vector<3x32xf32>
    %160 = arith.addf %142, %159 : vector<3x32xf32>
    %161 = vector.broadcast %3 : vector<1x32xf32> to vector<3x32xf32>
    %162 = arith.addf %160, %161 : vector<3x32xf32>
    %cst_60 = arith.constant dense<0.000000e+00> : vector<3x16xf32>
    %163 = tpu.matmul %84, %4, %cst_60 {dimension_numbers = #tpu.dot_dimension_numbers<[1], [0], [0], [1], [0, 0, 1, 1], [], []>} : vector<3x32xf32>, vector<32x16xf32>, vector<3x16xf32> -> vector<3x16xf32>
    %164 = vector.broadcast %5 : vector<1x16xf32> to vector<3x16xf32>
    %165 = arith.addf %163, %164 : vector<3x16xf32>
    %166 = math.tanh %165 : vector<3x16xf32>
    %cst_61 = arith.constant dense<0.000000e+00> : vector<3x1xf32>
    %167 = tpu.matmul %166, %6, %cst_61 {dimension_numbers = #tpu.dot_dimension_numbers<[1], [0], [0], [1], [0, 0, 1, 1], [], []>} : vector<3x16xf32>, vector<16x1xf32>, vector<3x1xf32> -> vector<3x1xf32>
    %cst_62 = arith.constant dense<0.000000e+00> : vector<3x16xf32>
    %168 = tpu.matmul %162, %4, %cst_62 {dimension_numbers = #tpu.dot_dimension_numbers<[1], [0], [0], [1], [0, 0, 1, 1], [], []>} : vector<3x32xf32>, vector<32x16xf32>, vector<3x16xf32> -> vector<3x16xf32>
    %169 = vector.broadcast %5 : vector<1x16xf32> to vector<3x16xf32>
    %170 = arith.addf %168, %169 : vector<3x16xf32>
    %171 = math.tanh %170 : vector<3x16xf32>
    %cst_63 = arith.constant dense<0.000000e+00> : vector<3x1xf32>
    %172 = tpu.matmul %171, %6, %cst_63 {dimension_numbers = #tpu.dot_dimension_numbers<[1], [0], [0], [1], [0, 0, 1, 1], [], []>} : vector<3x16xf32>, vector<16x1xf32>, vector<3x1xf32> -> vector<3x1xf32>
    %173 = vector.shape_cast %167 : vector<3x1xf32> to vector<1x3x1xf32>
    %cst_64 = arith.constant dense<0xFF800000> : vector<1xf32>
    %174 = vector.multi_reduction <maximumf>, %173, %cst_64 [1, 2] : vector<1x3x1xf32> to vector<1xf32>
    %175 = vector.shape_cast %174 : vector<1xf32> to vector<1x1x1xf32>
    %176 = vector.extract %175[0, 0, 0] : f32 from vector<1x1x1xf32>
    %177 = vector.broadcast %176 : f32 to vector<1x1xf32>
    %178 = vector.shape_cast %172 : vector<3x1xf32> to vector<1x3x1xf32>
    %cst_65 = arith.constant dense<0xFF800000> : vector<1xf32>
    %179 = vector.multi_reduction <maximumf>, %178, %cst_65 [1, 2] : vector<1x3x1xf32> to vector<1xf32>
    %180 = vector.shape_cast %179 : vector<1xf32> to vector<1x1x1xf32>
    %181 = vector.extract %180[0, 0, 0] : f32 from vector<1x1x1xf32>
    %182 = vector.broadcast %181 : f32 to vector<1x1xf32>
    %183 = arith.maximumf %177, %182 : vector<1x1xf32>
    %184 = vector.broadcast %183 : vector<1x1xf32> to vector<3x1xf32>
    %185 = arith.subf %167, %184 : vector<3x1xf32>
    %186 = math.exp %185 : vector<3x1xf32>
    %187 = vector.broadcast %183 : vector<1x1xf32> to vector<3x1xf32>
    %188 = arith.subf %172, %187 : vector<3x1xf32>
    %189 = math.exp %188 : vector<3x1xf32>
    %190 = vector.shape_cast %186 : vector<3x1xf32> to vector<1x3x1xf32>
    %cst_66 = arith.constant dense<0.000000e+00> : vector<1xf32>
    %191 = vector.multi_reduction <add>, %190, %cst_66 [1, 2] : vector<1x3x1xf32> to vector<1xf32>
    %192 = vector.shape_cast %191 : vector<1xf32> to vector<1x1x1xf32>
    %193 = vector.extract %192[0, 0, 0] : f32 from vector<1x1x1xf32>
    %194 = vector.broadcast %193 : f32 to vector<1x1xf32>
    %195 = vector.shape_cast %189 : vector<3x1xf32> to vector<1x3x1xf32>
    %cst_67 = arith.constant dense<0.000000e+00> : vector<1xf32>
    %196 = vector.multi_reduction <add>, %195, %cst_67 [1, 2] : vector<1x3x1xf32> to vector<1xf32>
    %197 = vector.shape_cast %196 : vector<1xf32> to vector<1x1x1xf32>
    %198 = vector.extract %197[0, 0, 0] : f32 from vector<1x1x1xf32>
    %199 = vector.broadcast %198 : f32 to vector<1x1xf32>
    %200 = arith.addf %194, %199 : vector<1x1xf32>
    %201 = vector.broadcast %186 : vector<3x1xf32> to vector<3x32xf32>
    %202 = arith.mulf %201, %84 : vector<3x32xf32>
    %cst_68 = arith.constant dense<0.000000e+00> : vector<32xf32>
    %203 = vector.multi_reduction <add>, %202, %cst_68 [0] : vector<3x32xf32> to vector<32xf32>
    %204 = vector.shape_cast %203 : vector<32xf32> to vector<1x32xf32>
    %205 = vector.broadcast %189 : vector<3x1xf32> to vector<3x32xf32>
    %206 = arith.mulf %205, %162 : vector<3x32xf32>
    %cst_69 = arith.constant dense<0.000000e+00> : vector<32xf32>
    %207 = vector.multi_reduction <add>, %206, %cst_69 [0] : vector<3x32xf32> to vector<32xf32>
    %208 = vector.shape_cast %207 : vector<32xf32> to vector<1x32xf32>
    %209 = arith.addf %204, %208 : vector<1x32xf32>
    %210 = vector.broadcast %200 : vector<1x1xf32> to vector<1x32xf32>
    %211 = arith.divf %209, %210 : vector<1x32xf32>
    %c0_70 = arith.constant 0 : index
    %c0_71 = arith.constant 0 : index
    %c0_72 = arith.constant 0 : index
    %212 = vector.load %arg3[%c0_70, %c0_71, %c0_72] : memref<1x4x32xf32, #tpu.memory_space<vmem>>, vector<1x4x32xf32>
    %213 = vector.shape_cast %212 : vector<1x4x32xf32> to vector<4x32xf32>
    %cst_73 = arith.constant dense<0.000000e+00> : vector<1x4xf32>
    %214 = tpu.matmul %211, %213, %cst_73 {dimension_numbers = #tpu.dot_dimension_numbers<[1], [1], [0], [0], [0, 0, 1, 0], [], []>} : vector<1x32xf32>, vector<4x32xf32>, vector<1x4xf32> -> vector<1x4xf32>
    %c0_74 = arith.constant 0 : index
    %c0_75 = arith.constant 0 : index
    %c0_76 = arith.constant 0 : index
    %215 = vector.load %arg11[%c0_74, %c0_75, %c0_76] : memref<1x1x4xf32, #tpu.memory_space<vmem>>, vector<1x1x4xf32>
    %216 = vector.shape_cast %215 : vector<1x1x4xf32> to vector<1x4xf32>
    %217 = vector.shape_cast %214 : vector<1x4xf32> to vector<1x1x4xf32>
    tpu.vector_store %arg11[%c0_74, %c0_75, %c0_76], %217 {strides = array<i32>} : memref<1x1x4xf32, #tpu.memory_space<vmem>>, vector<1x1x4xf32>,
    return
  }
  func.func @transform_0(%arg0: i32) -> (i32, i32, i32) {
    %c0_i32 = arith.constant 0 : i32
    %c0_i32_0 = arith.constant 0 : i32
    %c0_i32_1 = arith.constant 0 : i32
    return %arg0, %c0_i32, %c0_i32_0 : i32, i32, i32
  }
  func.func @transform_1(%arg0: i32) -> (i32, i32, i32) {
    %c0_i32 = arith.constant 0 : i32
    %c0_i32_0 = arith.constant 0 : i32
    %c0_i32_1 = arith.constant 0 : i32
    return %arg0, %c0_i32, %c0_i32_0 : i32, i32, i32
  }
  func.func @transform_2(%arg0: i32) -> (i32, i32, i32) {
    %c0_i32 = arith.constant 0 : i32
    %c0_i32_0 = arith.constant 0 : i32
    %c0_i32_1 = arith.constant 0 : i32
    return %arg0, %c0_i32, %c0_i32_0 : i32, i32, i32
  }
  func.func @transform_3(%arg0: i32) -> (i32, i32) {
    %c0_i32 = arith.constant 0 : i32
    %c0_i32_0 = arith.constant 0 : i32
    %c0_i32_1 = arith.constant 0 : i32
    return %c0_i32, %c0_i32_0 : i32, i32
  }
  func.func @transform_4(%arg0: i32) -> (i32, i32) {
    %c0_i32 = arith.constant 0 : i32
    %c0_i32_0 = arith.constant 0 : i32
    %c0_i32_1 = arith.constant 0 : i32
    return %c0_i32, %c0_i32_0 : i32, i32
  }
  func.func @transform_5(%arg0: i32) -> (i32, i32) {
    %c0_i32 = arith.constant 0 : i32
    %c0_i32_0 = arith.constant 0 : i32
    %c0_i32_1 = arith.constant 0 : i32
    return %c0_i32, %c0_i32_0 : i32, i32
  }
  func.func @transform_6(%arg0: i32) -> (i32, i32) {
    %c0_i32 = arith.constant 0 : i32
    %c0_i32_0 = arith.constant 0 : i32
    %c0_i32_1 = arith.constant 0 : i32
    return %c0_i32, %c0_i32_0 : i32, i32
  }
  func.func @transform_7(%arg0: i32) -> (i32, i32) {
    %c0_i32 = arith.constant 0 : i32
    %c0_i32_0 = arith.constant 0 : i32
    %c0_i32_1 = arith.constant 0 : i32
    return %c0_i32, %c0_i32_0 : i32, i32
  }
  func.func @transform_8(%arg0: i32) -> (i32, i32) {
    %c0_i32 = arith.constant 0 : i32
    %c0_i32_0 = arith.constant 0 : i32
    %c0_i32_1 = arith.constant 0 : i32
    return %c0_i32, %c0_i32_0 : i32, i32
  }
  func.func @transform_9(%arg0: i32) -> (i32, i32) {
    %c0_i32 = arith.constant 0 : i32
    %c0_i32_0 = arith.constant 0 : i32
    %c0_i32_1 = arith.constant 0 : i32
    return %c0_i32, %c0_i32_0 : i32, i32
  }
  func.func @transform_10(%arg0: i32) -> (i32, i32, i32) {
    %c0_i32 = arith.constant 0 : i32
    %c0_i32_0 = arith.constant 0 : i32
    %c0_i32_1 = arith.constant 0 : i32
    return %arg0, %c0_i32, %c0_i32_0 : i32, i32, i32
  }
}

</mosaic_0001>

<llo_original>
// kernel: _lambda_.3
$region0: #{_lambda_.3}
  #allocation0 [shape = 'u32[]', space=smem, size = 0x4, offset = 0x4, fixed_abs, tag = 'smem constant byte address 0x4 - core index']
  #allocation1 [shape = 'u32[72,128]{1,0:T(1,128)}', space=vmem, size = 0x9000, scoped, tag = 'internal scratch']
  %s0 = inlined_call_operand.vmem [shape: f32[2,3,32], index: 0, kind: input, shape index: {}]
  %s1 = inlined_call_operand.vmem [shape: f32[2,3,32], index: 1, kind: input, shape index: {}]
  %s2 = inlined_call_operand.vmem [shape: f32[2,4,32], index: 2, kind: input, shape index: {}]
  %s3 = inlined_call_operand.vmem [shape: f32[32,96], index: 3, kind: input, shape index: {}]
  %s4 = inlined_call_operand.vmem [shape: f32[1,96], index: 4, kind: input, shape index: {}]
  %s5 = inlined_call_operand.vmem [shape: f32[32,32], index: 5, kind: input, shape index: {}]
  %s6 = inlined_call_operand.vmem [shape: f32[1,32], index: 6, kind: input, shape index: {}]
  %s7 = inlined_call_operand.vmem [shape: f32[32,16], index: 7, kind: input, shape index: {}]
  %s8 = inlined_call_operand.vmem [shape: f32[1,16], index: 8, kind: input, shape index: {}]
  %s9 = inlined_call_operand.vmem [shape: f32[16,1], index: 9, kind: input, shape index: {}]
  %s10 = inlined_call_operand.hbm [shape: f32[2,1,4], index: 10, kind: output, shape index: {}]
  %s11 = sld [smem:[#allocation0]]
  $region73: #{_lambda_.3} parent=0
    _
  %s13 = ssub.s32 1, %s11
  %s14 = scalar_select 0, %s13, %s11
  $region1: #{_lambda_.3} parent=0
    #allocation2 [shape = 'u8[1024]{0}', space=vmem, size = 0x400, scoped, tag = 'output window, operand 0']
    #allocation3 [shape = 's32[2]{0}', space=sflag, size = 0x8, scoped, tag = 'scoped memory for _lambda_.3']
    %15 = vsyncpa [#allocation3], 0
    %s16 = scalar_lea.sflag [#allocation3], 1
    %17 = vsyncpa %s16, 0
    loop: start=0, step=1, limit=4
    $region2: #{_lambda_.3} parent=1 // loop_pre_header
      _
    $region3: #{_lambda_.3} parent=1 // loop_header
      %s19 = sphi 0, %s23
      %p20 = scmp.ge.s32.totalorder %s19, 4
      %s29 = sphi 0, %s31
      %s32 = sphi 0, %s29
      %s33 = sphi 0, %s32
      %s49 = sphi 0, %s33
      %s55 = sphi 0, %s57
      %s58 = sphi 0, %s55
      %s59 = sphi 0, %s58
      %s75 = sphi 0, %s59
      %s81 = sphi 0, %s83
      %s84 = sphi 0, %s81
      %s85 = sphi 0, %s84
      %s101 = sphi 0, %s85
      %s105 = sphi 0, %s105
      %s107 = sphi 0, %s105
      %s108 = sphi 0, %s107
      %s122 = sphi 0, %s108
      %s126 = sphi 0, %s126
      %s128 = sphi 0, %s126
      %s129 = sphi 0, %s128
      %s143 = sphi 0, %s129
      %s147 = sphi 0, %s147
      %s149 = sphi 0, %s147
      %s150 = sphi 0, %s149
      %s164 = sphi 0, %s150
      %s168 = sphi 0, %s168
      %s170 = sphi 0, %s168
      %s171 = sphi 0, %s170
      %s185 = sphi 0, %s171
      %s189 = sphi 0, %s189
      %s191 = sphi 0, %s189
      %s192 = sphi 0, %s191
      %s206 = sphi 0, %s192
      %s210 = sphi 0, %s210
      %s212 = sphi 0, %s210
      %s213 = sphi 0, %s212
      %s227 = sphi 0, %s213
      %s231 = sphi 0, %s231
      %s233 = sphi 0, %s231
      %s234 = sphi 0, %s233
      %s248 = sphi 0, %s234
      %s254 = sphi 0, %s256
      %s257 = sphi 0, %s254
      %s258 = sphi 0, %s257
      %s274 = sphi 0, %s258
    $region4: #{_lambda_.3} parent=1 // loop_header_branch
      %22 = sbr.rel (%p20) target = $region8
    $region5: #{_lambda_.3} parent=1 // loop_body
      %s24 = ssub.s32 %s19, 1
      %s25 = ssub.s32 %s19, 2
      %s26 = sadd.s32 %s19, 1
      %s27 = ssub.s32 %s19, %s26
      %p28 = scmp.eq.s32.totalorder %s27, 0
      %s30 = sadd.s32 %s29, 1
      %s31 = scalar_select %p28, %s29, %s30
      %p34 = pneg %p28
      %p35 = scmp.eq.s32.totalorder %s19, 1
      %p36 = por %p34, %p35
      %p37 = scmp.ne.s32.totalorder %s29, %s32
      %p38 = scmp.eq.s32.totalorder %s19, 0
      %p39 = por %p37, %p38
      %p40 = scmp.ne.s32.totalorder %s29, %s32
      %p41 = scmp.eq.s32.totalorder %s24, 1
      %p42 = por %p40, %p41
      %p43 = scmp.ne.s32.totalorder %s32, %s33
      %p44 = scmp.eq.s32.totalorder %s24, 0
      %p45 = por %p43, %p44
      %p46 = scmp.ne.s32.totalorder %s32, %s33
      %p47 = scmp.eq.s32.totalorder %s25, 1
      %p48 = por %p46, %p47
      %p50 = scmp.ne.s32.totalorder %s33, %s49
      %p51 = scmp.eq.s32.totalorder %s25, 0
      %p52 = por %p50, %p51
      %s53 = ssub.s32 %s19, %s26
      %p54 = scmp.eq.s32.totalorder %s53, 0
      %s56 = sadd.s32 %s55, 1
      %s57 = scalar_select %p54, %s55, %s56
      %p60 = pneg %p54
      %p61 = scmp.eq.s32.totalorder %s19, 1
      %p62 = por %p60, %p61
      %p63 = scmp.ne.s32.totalorder %s55, %s58
      %p64 = scmp.eq.s32.totalorder %s19, 0
      %p65 = por %p63, %p64
      %p66 = scmp.ne.s32.totalorder %s55, %s58
      %p67 = scmp.eq.s32.totalorder %s24, 1
      %p68 = por %p66, %p67
      %p69 = scmp.ne.s32.totalorder %s58, %s59
      %p70 = scmp.eq.s32.totalorder %s24, 0
      %p71 = por %p69, %p70
      %p72 = scmp.ne.s32.totalorder %s58, %s59
      %p73 = scmp.eq.s32.totalorder %s25, 1
      %p74 = por %p72, %p73
      %p76 = scmp.ne.s32.totalorder %s59, %s75
      %p77 = scmp.eq.s32.totalorder %s25, 0
      %p78 = por %p76, %p77
      %s79 = ssub.s32 %s19, %s26
      %p80 = scmp.eq.s32.totalorder %s79, 0
      %s82 = sadd.s32 %s81, 1
      %s83 = scalar_select %p80, %s81, %s82
      %p86 = pneg %p80
      %p87 = scmp.eq.s32.totalorder %s19, 1
      %p88 = por %p86, %p87
      %p89 = scmp.ne.s32.totalorder %s81, %s84
      %p90 = scmp.eq.s32.totalorder %s19, 0
      %p91 = por %p89, %p90
      %p92 = scmp.ne.s32.totalorder %s81, %s84
      %p93 = scmp.eq.s32.totalorder %s24, 1
      %p94 = por %p92, %p93
      %p95 = scmp.ne.s32.totalorder %s84, %s85
      %p96 = scmp.eq.s32.totalorder %s24, 0
      %p97 = por %p95, %p96
      %p98 = scmp.ne.s32.totalorder %s84, %s85
      %p99 = scmp.eq.s32.totalorder %s25, 1
      %p100 = por %p98, %p99
      %p102 = scmp.ne.s32.totalorder %s85, %s101
      %p103 = scmp.eq.s32.totalorder %s25, 0
      %p104 = por %p102, %p103
      %s106 = sadd.s32 %s105, 1
      %p109 = scmp.eq.s32.totalorder %s19, 1
      %p110 = scmp.ne.s32.totalorder %s105, %s107
      %p111 = scmp.eq.s32.totalorder %s19, 0
      %p112 = por %p110, %p111
      %p113 = scmp.ne.s32.totalorder %s105, %s107
      %p114 = scmp.eq.s32.totalorder %s24, 1
      %p115 = por %p113, %p114
      %p116 = scmp.ne.s32.totalorder %s107, %s108
      %p117 = scmp.eq.s32.totalorder %s24, 0
      %p118 = por %p116, %p117
      %p119 = scmp.ne.s32.totalorder %s107, %s108
      %p120 = scmp.eq.s32.totalorder %s25, 1
      %p121 = por %p119, %p120
      %p123 = scmp.ne.s32.totalorder %s108, %s122
      %p124 = scmp.eq.s32.totalorder %s25, 0
      %p125 = por %p123, %p124
      %s127 = sadd.s32 %s126, 1
      %p130 = scmp.eq.s32.totalorder %s19, 1
      %p131 = scmp.ne.s32.totalorder %s126, %s128
      %p132 = scmp.eq.s32.totalorder %s19, 0
      %p133 = por %p131, %p132
      %p134 = scmp.ne.s32.totalorder %s126, %s128
      %p135 = scmp.eq.s32.totalorder %s24, 1
      %p136 = por %p134, %p135
      %p137 = scmp.ne.s32.totalorder %s128, %s129
      %p138 = scmp.eq.s32.totalorder %s24, 0
      %p139 = por %p137, %p138
      %p140 = scmp.ne.s32.totalorder %s128, %s129
      %p141 = scmp.eq.s32.totalorder %s25, 1
      %p142 = por %p140, %p141
      %p144 = scmp.ne.s32.totalorder %s129, %s143
      %p145 = scmp.eq.s32.totalorder %s25, 0
      %p146 = por %p144, %p145
      %s148 = sadd.s32 %s147, 1
      %p151 = scmp.eq.s32.totalorder %s19, 1
      %p152 = scmp.ne.s32.totalorder %s147, %s149
      %p153 = scmp.eq.s32.totalorder %s19, 0
      %p154 = por %p152, %p153
      %p155 = scmp.ne.s32.totalorder %s147, %s149
      %p156 = scmp.eq.s32.totalorder %s24, 1
      %p157 = por %p155, %p156
      %p158 = scmp.ne.s32.totalorder %s149, %s150
      %p159 = scmp.eq.s32.totalorder %s24, 0
      %p160 = por %p158, %p159
      %p161 = scmp.ne.s32.totalorder %s149, %s150
      %p162 = scmp.eq.s32.totalorder %s25, 1
      %p163 = por %p161, %p162
      %p165 = scmp.ne.s32.totalorder %s150, %s164
      %p166 = scmp.eq.s32.totalorder %s25, 0
      %p167 = por %p165, %p166
      %s169 = sadd.s32 %s168, 1
      %p172 = scmp.eq.s32.totalorder %s19, 1
      %p173 = scmp.ne.s32.totalorder %s168, %s170
      %p174 = scmp.eq.s32.totalorder %s19, 0
      %p175 = por %p173, %p174
      %p176 = scmp.ne.s32.totalorder %s168, %s170
      %p177 = scmp.eq.s32.totalorder %s24, 1
      %p178 = por %p176, %p177
      %p179 = scmp.ne.s32.totalorder %s170, %s171
      %p180 = scmp.eq.s32.totalorder %s24, 0
      %p181 = por %p179, %p180
      %p182 = scmp.ne.s32.totalorder %s170, %s171
      %p183 = scmp.eq.s32.totalorder %s25, 1
      %p184 = por %p182, %p183
      %p186 = scmp.ne.s32.totalorder %s171, %s185
      %p187 = scmp.eq.s32.totalorder %s25, 0
      %p188 = por %p186, %p187
      %s190 = sadd.s32 %s189, 1
      %p193 = scmp.eq.s32.totalorder %s19, 1
      %p194 = scmp.ne.s32.totalorder %s189, %s191
      %p195 = scmp.eq.s32.totalorder %s19, 0
      %p196 = por %p194, %p195
      %p197 = scmp.ne.s32.totalorder %s189, %s191
      %p198 = scmp.eq.s32.totalorder %s24, 1
      %p199 = por %p197, %p198
      %p200 = scmp.ne.s32.totalorder %s191, %s192
      %p201 = scmp.eq.s32.totalorder %s24, 0
      %p202 = por %p200, %p201
      %p203 = scmp.ne.s32.totalorder %s191, %s192
      %p204 = scmp.eq.s32.totalorder %s25, 1
      %p205 = por %p203, %p204
      %p207 = scmp.ne.s32.totalorder %s192, %s206
      %p208 = scmp.eq.s32.totalorder %s25, 0
      %p209 = por %p207, %p208
      %s211 = sadd.s32 %s210, 1
      %p214 = scmp.eq.s32.totalorder %s19, 1
      %p215 = scmp.ne.s32.totalorder %s210, %s212
      %p216 = scmp.eq.s32.totalorder %s19, 0
      %p217 = por %p215, %p216
      %p218 = scmp.ne.s32.totalorder %s210, %s212
      %p219 = scmp.eq.s32.totalorder %s24, 1
      %p220 = por %p218, %p219
      %p221 = scmp.ne.s32.totalorder %s212, %s213
      %p222 = scmp.eq.s32.totalorder %s24, 0
      %p223 = por %p221, %p222
      %p224 = scmp.ne.s32.totalorder %s212, %s213
      %p225 = scmp.eq.s32.totalorder %s25, 1
      %p226 = por %p224, %p225
      %p228 = scmp.ne.s32.totalorder %s213, %s227
      %p229 = scmp.eq.s32.totalorder %s25, 0
      %p230 = por %p228, %p229
      %s232 = sadd.s32 %s231, 1
      %p235 = scmp.eq.s32.totalorder %s19, 1
      %p236 = scmp.ne.s32.totalorder %s231, %s233
      %p237 = scmp.eq.s32.totalorder %s19, 0
      %p238 = por %p236, %p237
      %p239 = scmp.ne.s32.totalorder %s231, %s233
      %p240 = scmp.eq.s32.totalorder %s24, 1
      %p241 = por %p239, %p240
      %p242 = scmp.ne.s32.totalorder %s233, %s234
      %p243 = scmp.eq.s32.totalorder %s24, 0
      %p244 = por %p242, %p243
      %p245 = scmp.ne.s32.totalorder %s233, %s234
      %p246 = scmp.eq.s32.totalorder %s25, 1
      %p247 = por %p245, %p246
      %p249 = scmp.ne.s32.totalorder %s234, %s248
      %p250 = scmp.eq.s32.totalorder %s25, 0
      %p251 = por %p249, %p250
      %s252 = ssub.s32 %s19, %s26
      %p253 = scmp.eq.s32.totalorder %s252, 0
      %s255 = sadd.s32 %s254, 1
      %s256 = scalar_select %p253, %s254, %s255
      %p259 = pneg %p253
      %p260 = scmp.eq.s32.totalorder %s19, 1
      %p261 = por %p259, %p260
      %p262 = scmp.ne.s32.totalorder %s254, %s257
      %p263 = scmp.eq.s32.totalorder %s19, 0
      %p264 = por %p262, %p263
      %p265 = scmp.ne.s32.totalorder %s254, %s257
      %p266 = scmp.eq.s32.totalorder %s24, 1
      %p267 = por %p265, %p266
      %p268 = scmp.ne.s32.totalorder %s257, %s258
      %p269 = scmp.eq.s32.totalorder %s24, 0
      %p270 = por %p268, %p269
      %p271 = scmp.ne.s32.totalorder %s257, %s258
      %p272 = scmp.eq.s32.totalorder %s25, 1
      %p273 = por %p271, %p272
      %p275 = scmp.ne.s32.totalorder %s258, %s274
      %p276 = scmp.eq.s32.totalorder %s25, 0
      %p277 = por %p275, %p276
      %p278 = scmp.le.s32.totalorder 1, %s19
      %p279 = scmp.lt.s32.totalorder %s19, 3
      %p280 = pnand %p278, %p279
      %p281 = pneg %p280
      // Predicated region
      $region9: #{_lambda_.3} parent=5 // pred_check
        _
      $region10: #{_lambda_.3} parent=5 // pred_check_branch
        %283 = sbr.rel (%p280) target = $region12
      $region11: #{_lambda_.3} parent=5 // pred_region
        %s284 = ssub.s32 %s19, 1
        // Predicated region
        $region13: #{_lambda_.3} parent=11 // pred_check
          %p285 = pneg %p118
        $region14: #{_lambda_.3} parent=11 // pred_check_branch
          %287 = sbr.rel (%p285) target = $region16
        $region15: #{_lambda_.3} parent=11 // pred_region
          _
        $region16: #{_lambda_.3} parent=11 // pred_fallthru
          _
        // Predicated region
        $region17: #{_lambda_.3} parent=11 // pred_check
          %p288 = pneg %p139
        $region18: #{_lambda_.3} parent=11 // pred_check_branch
          %290 = sbr.rel (%p288) target = $region20
        $region19: #{_lambda_.3} parent=11 // pred_region
          _
        $region20: #{_lambda_.3} parent=11 // pred_fallthru
          _
        // Predicated region
        $region21: #{_lambda_.3} parent=11 // pred_check
          %p291 = pneg %p160
        $region22: #{_lambda_.3} parent=11 // pred_check_branch
          %293 = sbr.rel (%p291) target = $region24
        $region23: #{_lambda_.3} parent=11 // pred_region
          _
        $region24: #{_lambda_.3} parent=11 // pred_fallthru
          _
        // Predicated region
        $region25: #{_lambda_.3} parent=11 // pred_check
          %p294 = pneg %p181
        $region26: #{_lambda_.3} parent=11 // pred_check_branch
          %296 = sbr.rel (%p294) target = $region28
        $region27: #{_lambda_.3} parent=11 // pred_region
          _
        $region28: #{_lambda_.3} parent=11 // pred_fallthru
          _
        // Predicated region
        $region29: #{_lambda_.3} parent=11 // pred_check
          %p297 = pneg %p202
        $region30: #{_lambda_.3} parent=11 // pred_check_branch
          %299 = sbr.rel (%p297) target = $region32
        $region31: #{_lambda_.3} parent=11 // pred_region
          _
        $region32: #{_lambda_.3} parent=11 // pred_fallthru
          _
        // Predicated region
        $region33: #{_lambda_.3} parent=11 // pred_check
          %p300 = pneg %p223
        $region34: #{_lambda_.3} parent=11 // pred_check_branch
          %302 = sbr.rel (%p300) target = $region36
        $region35: #{_lambda_.3} parent=11 // pred_region
          _
        $region36: #{_lambda_.3} parent=11 // pred_fallthru
          _
        // Predicated region
        $region37: #{_lambda_.3} parent=11 // pred_check
          %p303 = pneg %p244
        $region38: #{_lambda_.3} parent=11 // pred_check_branch
          %305 = sbr.rel (%p303) target = $region40
        $region39: #{_lambda_.3} parent=11 // pred_region
          _
        $region40: #{_lambda_.3} parent=11 // pred_fallthru
          _
      $region12: #{_lambda_.3} parent=5 // pred_fallthru
        _
      %p306 = scmp.lt.s32.totalorder %s19, 2
      // Predicated region
      $region41: #{_lambda_.3} parent=5 // pred_check
        %p307 = pneg %p306
      $region42: #{_lambda_.3} parent=5 // pred_check_branch
        %309 = sbr.rel (%p307) target = $region44
      $region43: #{_lambda_.3} parent=5 // pred_region
        // Predicated region
        $region45: #{_lambda_.3} parent=43 // pred_check
          %p310 = pneg %p39
        $region46: #{_lambda_.3} parent=43 // pred_check_branch
          %312 = sbr.rel (%p310) target = $region48
        $region47: #{_lambda_.3} parent=43 // pred_region
          %p313 = scmp.lt.s32.totalorder %s19, 1
          %s314 = scalar_select %p313, %s19, 1
          %s315 = smul.addr %s314, 4
          %s316 = scalar_lea.vmem %s0, %s315
        $region48: #{_lambda_.3} parent=43 // pred_fallthru
          _
        // Predicated region
        $region49: #{_lambda_.3} parent=43 // pred_check
          %p317 = pneg %p65
        $region50: #{_lambda_.3} parent=43 // pred_check_branch
          %319 = sbr.rel (%p317) target = $region52
        $region51: #{_lambda_.3} parent=43 // pred_region
          %p320 = scmp.lt.s32.totalorder %s19, 1
          %s321 = scalar_select %p320, %s19, 1
          %s322 = smul.addr %s321, 4
          %s323 = scalar_lea.vmem %s1, %s322
        $region52: #{_lambda_.3} parent=43 // pred_fallthru
          _
        // Predicated region
        $region53: #{_lambda_.3} parent=43 // pred_check
          %p324 = pneg %p91
        $region54: #{_lambda_.3} parent=43 // pred_check_branch
          %326 = sbr.rel (%p324) target = $region56
        $region55: #{_lambda_.3} parent=43 // pred_region
          %p327 = scmp.lt.s32.totalorder %s19, 1
          %s328 = scalar_select %p327, %s19, 1
          %s329 = smul.addr %s328, 4
          %s330 = scalar_lea.vmem %s2, %s329
        $region56: #{_lambda_.3} parent=43 // pred_fallthru
          _
      $region44: #{_lambda_.3} parent=5 // pred_fallthru
        _
      %p331 = scmp.le.s32.totalorder 1, %s19
      %p332 = scmp.lt.s32.totalorder %s19, 3
      %p333 = pnand %p331, %p332
      %p334 = pneg %p333
      // Predicated region
      $region57: #{_lambda_.3} parent=5 // pred_check
        _
      $region58: #{_lambda_.3} parent=5 // pred_check_branch
        %336 = sbr.rel (%p333) target = $region60
      $region59: #{_lambda_.3} parent=5 // pred_region
        %s337 = ssub.s32 %s19, 1
        %p338 = scmp.lt.s32.totalorder %s24, 1
        %s339 = scalar_select %p338, %s24, 1
        %s340 = smul.addr %s339, 4
        %s341 = scalar_lea.vmem %s0, %s340
        %p342 = pneg %p45
        %p343 = pneg %p42
        %p344 = scmp.lt.s32.totalorder %s24, 1
        %s345 = scalar_select %p344, %s24, 1
        %s346 = smul.addr %s345, 4
        %s347 = scalar_lea.vmem %s1, %s346
        %p348 = pneg %p71
        %p349 = pneg %p68
        %p350 = scmp.lt.s32.totalorder %s24, 1
        %s351 = scalar_select %p350, %s24, 1
        %s352 = smul.addr %s351, 4
        %s353 = scalar_lea.vmem %s2, %s352
        %p354 = pneg %p97
        %p355 = pneg %p94
        %p356 = pneg %p118
        %p357 = pneg %p115
        %p358 = pneg %p139
        %p359 = pneg %p136
        %p360 = pneg %p160
        %p361 = pneg %p157
        %p362 = pneg %p181
        %p363 = pneg %p178
        %p364 = pneg %p202
        %p365 = pneg %p199
        %p366 = pneg %p223
        %p367 = pneg %p220
        %p368 = pneg %p244
        %p369 = pneg %p241
        %p370 = pneg %p270
        %p371 = pneg %p267
        %s372 = sand.u32 %s257, 1
        %s373 = scalar_lea.sflag [#allocation3], %s372
        %s374 = sand.u32 %s257, 1
        %s375 = scalar_lea.vmem [#allocation2], %s374
        %p376 = scmp.lt.s32.totalorder %s24, 1
        %s377 = scalar_select %p376, %s24, 1
        %s378 = smul.addr %s377, 4
        %s379 = scalar_lea.vmem %s0, %s378
        %p380 = scmp.lt.s32.totalorder %s24, 1
        %s381 = scalar_select %p380, %s24, 1
        %s382 = smul.addr %s381, 4
        %s383 = scalar_lea.vmem %s1, %s382
        %p384 = scmp.lt.s32.totalorder %s24, 1
        %s385 = scalar_select %p384, %s24, 1
        %s386 = smul.addr %s385, 4
        %s387 = scalar_lea.vmem %s2, %s386
        %v388 = vld [vmem:[%s3] sm:$0xff]
        %v389 = vld [vmem:[%s3 + $0x8] sm:$0xff]
        %v390 = vld [vmem:[%s3 + $0x10] sm:$0xff]
        %v391 = vld [vmem:[%s3 + $0x18] sm:$0xff]
        %v392 = vld [vmem:[%s4] sm:$0x1]
        %v393 = vld [vmem:[%s5] sm:$0xff]
        %v394 = vld [vmem:[%s5 + $0x8] sm:$0xff]
        %v395 = vld [vmem:[%s5 + $0x10] sm:$0xff]
        %v396 = vld [vmem:[%s5 + $0x18] sm:$0xff]
        %v397 = vld [vmem:[%s6] sm:$0x1]
        %v398 = vld [vmem:[%s7] sm:$0xff]
        %v399 = vld [vmem:[%s7 + $0x8] sm:$0xff]
        %v400 = vld [vmem:[%s7 + $0x10] sm:$0xff]
        %v401 = vld [vmem:[%s7 + $0x18] sm:$0xff]
        %v402 = vld [vmem:[%s8] sm:$0x1]
        %v403 = vld [vmem:[%s9] sm:$0xff]
        %v404 = vld [vmem:[%s9 + $0x8] sm:$0xff]
        %v405 = vld [vmem:[%s379] sm:$0x7]
        %v407 = vperm.slane %v392, 0
        %vm409 = vcmask 261120
        %v411 = vsel %vm409, %v405, 0
        %413 = vmatpush.msra.mxu0 0.0
        %414 = vmatpush.msra.mxu0 0.0
        %415 = vmatpush.msra.mxu0 0.0
        %416 = vmatpush.msra.mxu0 0.0
        %417 = vmatpush.msra.mxu0 0.0
        %418 = vmatpush.msra.mxu0 0.0
        %419 = vmatpush.msra.mxu0 0.0
        %420 = vmatpush.msra.mxu0 0.0
        %421 = vmatpush.msra.mxu0 0.0
        %422 = vmatpush.msra.mxu0 0.0
        %423 = vmatpush.msra.mxu0 0.0
        %424 = vmatpush.msra.mxu0 0.0
        %425 = vmatpush.msra.mxu0 %v391
        %426 = vmatpush.msra.mxu0 %v390
        %427 = vmatpush.msra.mxu0 %v389
        %428 = vmatpush.msra.mxu0 %v388
        %429 = vmatmul.f32.gmra.mxu0 %v411
        %v430 = vpop.f32.mrf.mxu0
        %v431 = vadd.f32 %v407, %v430
        %432 = vdwg.mxu0
        %434 = vrot.lane.b32.xlu0 %v431, 96
        %v435 = vpop.permute.xlu0 %434
        %vm436 = vcmask 64512
        %v437 = vsel %vm436, %v431, 0
        %v439 = vsel %vm436, %v435, 0
        %441 = vmatpush.xpose.msra.mxu0 0.0
        %442 = vmatpush.xpose.msra.mxu0 0.0
        %443 = vmatpush.xpose.msra.mxu0 0.0
        %444 = vmatpush.xpose.msra.mxu0 0.0
        %445 = vmatpush.xpose.msra.mxu0 0.0
        %446 = vmatpush.xpose.msra.mxu0 0.0
        %447 = vmatpush.xpose.msra.mxu0 0.0
        %448 = vmatpush.xpose.msra.mxu0 0.0
        %449 = vmatpush.xpose.msra.mxu0 0.0
        %450 = vmatpush.xpose.msra.mxu0 0.0
        %451 = vmatpush.xpose.msra.mxu0 0.0
        %452 = vmatpush.xpose.msra.mxu0 0.0
        %453 = vmatpush.xpose.msra.mxu0 0.0
        %454 = vmatpush.xpose.msra.mxu0 0.0
        %455 = vmatpush.xpose.msra.mxu0 0.0
        %456 = vmatpush.xpose.msra.mxu0 %v439
        %457 = vmatmul.f32.gmra.mxu0 %v437
        %v458 = vpop.f32.mrf.mxu0
        %v459 = vadd.f32 0.0, %v458
        %460 = vdwg.mxu0
        %vm461 = vcmask 18432
        %v462 = vsel %vm461, %v459, -inf
        %463 = vmax.xlane.f32.xlu0 %v462
        %v464 = vpop.xlane.xlu0 %463
        %v465 = vsub.f32 %v459, %v464
        %v466 = vmul.f32 %v465, 1.442695
        %v467 = vpow.pop %v466
        %v468 = vsel %vm461, %v467, 0.0
        %469 = vadd.xlane.f32.xlu0 %v468
        %v470 = vpop.xlane.xlu0 %469
        %v471 = vrcp.pop %v470
        %v472 = vmul.f32 %v470, %v471
        %v473 = vsub.f32 1.0, %v472
        %v474 = vmul.f32 %v471, %v473
        %v475 = vadd.f32 %v471, %v474
        %vm476 = vweird.f32 %v470
        %vm477 = vweird.f32 %v471
        %vm478 = vmor %vm476, %vm477
        %v479 = vsel %vm478, %v471, %v475
        %v480 = vand.u32 2147483647, %v470
        %vm481 = vcmp.eq.f32.partialorder %v480, 8.507059e+37
        %v482 = vand.u32 %v470, 2147483648
        %v483 = vor.u32 1.1754944e-38, %v482
        %v484 = vsel %vm481, %v483, %v479
        %v485 = vmul.f32 %v467, %v484
        %486 = vrot.lane.b32.xlu0 %v431, 64
        %v487 = vpop.permute.xlu0 %486
        %vm488 = vcmask 23552
        %v490 = vsel %vm488, %v485, 0
        %vm492 = vcmask 1042432
        %v493 = vsel %vm492, %v487, 0
        %495 = vmatpush.msra.mxu0 0.0
        %496 = vmatpush.msra.mxu0 0.0
        %497 = vmatpush.msra.mxu0 0.0
        %498 = vmatpush.msra.mxu0 0.0
        %499 = vmatpush.msra.mxu0 0.0
        %500 = vmatpush.msra.mxu0 0.0
        %501 = vmatpush.msra.mxu0 0.0
        %502 = vmatpush.msra.mxu0 0.0
        %503 = vmatpush.msra.mxu0 0.0
        %504 = vmatpush.msra.mxu0 0.0
        %505 = vmatpush.msra.mxu0 0.0
        %506 = vmatpush.msra.mxu0 0.0
        %507 = vmatpush.msra.mxu0 0.0
        %508 = vmatpush.msra.mxu0 0.0
        %509 = vmatpush.msra.mxu0 0.0
        %510 = vmatpush.msra.mxu0 %v493
        %511 = vmatmul.f32.gmra.mxu0 %v490
        %v512 = vpop.f32.mrf.mxu0
        %v513 = vadd.f32 0.0, %v512
        %514 = vdwg.mxu0
        %515 = vrot.lane.b32.xlu0 %v431, 120
        %v516 = vpop.permute.xlu0 %515
        %517 = vrot.lane.b32.xlu0 %v431, 88
        %v518 = vpop.permute.xlu0 %517
        %v519 = vsel %vm436, %v516, 0
        %v521 = vsel %vm436, %v518, 0
        %523 = vmatpush.xpose.msra.mxu0 0.0
        %524 = vmatpush.xpose.msra.mxu0 0.0
        %525 = vmatpush.xpose.msra.mxu0 0.0
        %526 = vmatpush.xpose.msra.mxu0 0.0
        %527 = vmatpush.xpose.msra.mxu0 0.0
        %528 = vmatpush.xpose.msra.mxu0 0.0
        %529 = vmatpush.xpose.msra.mxu0 0.0
        %530 = vmatpush.xpose.msra.mxu0 0.0
        %531 = vmatpush.xpose.msra.mxu0 0.0
        %532 = vmatpush.xpose.msra.mxu0 0.0
        %533 = vmatpush.xpose.msra.mxu0 0.0
        %534 = vmatpush.xpose.msra.mxu0 0.0
        %535 = vmatpush.xpose.msra.mxu0 0.0
        %536 = vmatpush.xpose.msra.mxu0 0.0
        %537 = vmatpush.xpose.msra.mxu0 0.0
        %538 = vmatpush.xpose.msra.mxu0 %v521
        %539 = vmatmul.f32.gmra.mxu0 %v519
        %v540 = vpop.f32.mrf.mxu0
        %v541 = vadd.f32 0.0, %v540
        %542 = vdwg.mxu0
        %v543 = vsel %vm461, %v541, -inf
        %544 = vmax.xlane.f32.xlu0 %v543
        %v545 = vpop.xlane.xlu0 %544
        %v546 = vsub.f32 %v541, %v545
        %v547 = vmul.f32 %v546, 1.442695
        %v548 = vpow.pop %v547
        %v549 = vsel %vm461, %v548, 0.0
        %550 = vadd.xlane.f32.xlu0 %v549
        %v551 = vpop.xlane.xlu0 %550
        %v552 = vrcp.pop %v551
        %v553 = vmul.f32 %v551, %v552
        %v554 = vsub.f32 1.0, %v553
        %v555 = vmul.f32 %v552, %v554
        %v556 = vadd.f32 %v552, %v555
        %vm557 = vweird.f32 %v551
        %vm558 = vweird.f32 %v552
        %vm559 = vmor %vm557, %vm558
        %v560 = vsel %vm559, %v552, %v556
        %v561 = vand.u32 2147483647, %v551
        %vm562 = vcmp.eq.f32.partialorder %v561, 8.507059e+37
        %v563 = vand.u32 %v551, 2147483648
        %v564 = vor.u32 1.1754944e-38, %v563
        %v565 = vsel %vm562, %v564, %v560
        %v566 = vmul.f32 %v548, %v565
        %567 = vrot.lane.b32.xlu0 %v431, 56
        %v568 = vpop.permute.xlu0 %567
        %v570 = vsel %vm488, %v566, 0
        %v572 = vsel %vm492, %v568, 0
        %574 = vmatpush.msra.mxu0 0.0
        %575 = vmatpush.msra.mxu0 0.0
        %576 = vmatpush.msra.mxu0 0.0
        %577 = vmatpush.msra.mxu0 0.0
        %578 = vmatpush.msra.mxu0 0.0
        %579 = vmatpush.msra.mxu0 0.0
        %580 = vmatpush.msra.mxu0 0.0
        %581 = vmatpush.msra.mxu0 0.0
        %582 = vmatpush.msra.mxu0 0.0
        %583 = vmatpush.msra.mxu0 0.0
        %584 = vmatpush.msra.mxu0 0.0
        %585 = vmatpush.msra.mxu0 0.0
        %586 = vmatpush.msra.mxu0 0.0
        %587 = vmatpush.msra.mxu0 0.0
        %588 = vmatpush.msra.mxu0 0.0
        %589 = vmatpush.msra.mxu0 %v572
        %590 = vmatmul.f32.gmra.mxu0 %v570
        %v591 = vpop.f32.mrf.mxu0
        %v592 = vadd.f32 0.0, %v591
        %593 = vdwg.mxu0
        %v595 = vsel %vm436, %v592, 0
        %597 = vmatpush.msra.mxu0 0.0
        %598 = vmatpush.msra.mxu0 0.0
        %599 = vmatpush.msra.mxu0 0.0
        %600 = vmatpush.msra.mxu0 0.0
        %601 = vmatpush.msra.mxu0 0.0
        %602 = vmatpush.msra.mxu0 0.0
        %603 = vmatpush.msra.mxu0 0.0
        %604 = vmatpush.msra.mxu0 0.0
        %605 = vmatpush.msra.mxu0 0.0
        %606 = vmatpush.msra.mxu0 0.0
        %607 = vmatpush.msra.mxu0 0.0
        %608 = vmatpush.msra.mxu0 0.0
        %609 = vmatpush.msra.mxu0 0.0
        %610 = vmatpush.msra.mxu0 0.0
        %611 = vmatpush.msra.mxu0 0.0
        %612 = vmatpush.msra.mxu0 %v394
        %613 = vmatmul.f32.gmra.mxu0 %v595
        %v614 = vpop.f32.mrf.mxu0
        %v615 = vadd.f32 0.0, %v614
        %616 = vdwg.mxu0
        %v618 = vsel %vm436, %v513, 0
        %620 = vmatpush.msra.mxu0 0.0
        %621 = vmatpush.msra.mxu0 0.0
        %622 = vmatpush.msra.mxu0 0.0
        %623 = vmatpush.msra.mxu0 0.0
        %624 = vmatpush.msra.mxu0 0.0
        %625 = vmatpush.msra.mxu0 0.0
        %626 = vmatpush.msra.mxu0 0.0
        %627 = vmatpush.msra.mxu0 0.0
        %628 = vmatpush.msra.mxu0 0.0
        %629 = vmatpush.msra.mxu0 0.0
        %630 = vmatpush.msra.mxu0 0.0
        %631 = vmatpush.msra.mxu0 0.0
        %632 = vmatpush.msra.mxu0 0.0
        %633 = vmatpush.msra.mxu0 0.0
        %634 = vmatpush.msra.mxu0 0.0
        %635 = vmatpush.msra.mxu0 %v393
        %636 = vmatmul.f32.gmra.mxu0 %v618
        %v637 = vpop.f32.mrf.mxu0
        %v638 = vadd.f32 %v615, %v637
        %639 = vdwg.mxu0
        %640 = vrot.lane.b32.xlu0 %v431, 112
        %v641 = vpop.permute.xlu0 %640
        %642 = vrot.lane.b32.xlu0 %v431, 80
        %v643 = vpop.permute.xlu0 %642
        %v644 = vsel %vm436, %v641, 0
        %v646 = vsel %vm436, %v643, 0
        %648 = vmatpush.xpose.msra.mxu0 0.0
        %649 = vmatpush.xpose.msra.mxu0 0.0
        %650 = vmatpush.xpose.msra.mxu0 0.0
        %651 = vmatpush.xpose.msra.mxu0 0.0
        %652 = vmatpush.xpose.msra.mxu0 0.0
        %653 = vmatpush.xpose.msra.mxu0 0.0
        %654 = vmatpush.xpose.msra.mxu0 0.0
        %655 = vmatpush.xpose.msra.mxu0 0.0
        %656 = vmatpush.xpose.msra.mxu0 0.0
        %657 = vmatpush.xpose.msra.mxu0 0.0
        %658 = vmatpush.xpose.msra.mxu0 0.0
        %659 = vmatpush.xpose.msra.mxu0 0.0
        %660 = vmatpush.xpose.msra.mxu0 0.0
        %661 = vmatpush.xpose.msra.mxu0 0.0
        %662 = vmatpush.xpose.msra.mxu0 0.0
        %663 = vmatpush.xpose.msra.mxu0 %v646
        %664 = vmatmul.f32.gmra.mxu0 %v644
        %v665 = vpop.f32.mrf.mxu0
        %v666 = vadd.f32 0.0, %v665
        %667 = vdwg.mxu0
        %v668 = vsel %vm461, %v666, -inf
        %669 = vmax.xlane.f32.xlu0 %v668
        %v670 = vpop.xlane.xlu0 %669
        %v671 = vsub.f32 %v666, %v670
        %v672 = vmul.f32 %v671, 1.442695
        %v673 = vpow.pop %v672
        %v674 = vsel %vm461, %v673, 0.0
        %675 = vadd.xlane.f32.xlu0 %v674
        %v676 = vpop.xlane.xlu0 %675
        %v677 = vrcp.pop %v676
        %v678 = vmul.f32 %v676, %v677
        %v679 = vsub.f32 1.0, %v678
        %v680 = vmul.f32 %v677, %v679
        %v681 = vadd.f32 %v677, %v680
        %vm682 = vweird.f32 %v676
        %vm683 = vweird.f32 %v677
        %vm684 = vmor %vm682, %vm683
        %v685 = vsel %vm684, %v677, %v681
        %v686 = vand.u32 2147483647, %v676
        %vm687 = vcmp.eq.f32.partialorder %v686, 8.507059e+37
        %v688 = vand.u32 %v676, 2147483648
        %v689 = vor.u32 1.1754944e-38, %v688
        %v690 = vsel %vm687, %v689, %v685
        %v691 = vmul.f32 %v673, %v690
        %692 = vrot.lane.b32.xlu0 %v431, 48
        %v693 = vpop.permute.xlu0 %692
        %v695 = vsel %vm488, %v691, 0
        %v697 = vsel %vm492, %v693, 0
        %699 = vmatpush.msra.mxu0 0.0
        %700 = vmatpush.msra.mxu0 0.0
        %701 = vmatpush.msra.mxu0 0.0
        %702 = vmatpush.msra.mxu0 0.0
        %703 = vmatpush.msra.mxu0 0.0
        %704 = vmatpush.msra.mxu0 0.0
        %705 = vmatpush.msra.mxu0 0.0
        %706 = vmatpush.msra.mxu0 0.0
        %707 = vmatpush.msra.mxu0 0.0
        %708 = vmatpush.msra.mxu0 0.0
        %709 = vmatpush.msra.mxu0 0.0
        %710 = vmatpush.msra.mxu0 0.0
        %711 = vmatpush.msra.mxu0 0.0
        %712 = vmatpush.msra.mxu0 0.0
        %713 = vmatpush.msra.mxu0 0.0
        %714 = vmatpush.msra.mxu0 %v697
        %715 = vmatmul.f32.gmra.mxu0 %v695
        %v716 = vpop.f32.mrf.mxu0
        %v717 = vadd.f32 0.0, %v716
        %718 = vdwg.mxu0
        %v720 = vsel %vm436, %v717, 0
        %722 = vmatpush.msra.mxu0 0.0
        %723 = vmatpush.msra.mxu0 0.0
        %724 = vmatpush.msra.mxu0 0.0
        %725 = vmatpush.msra.mxu0 0.0
        %726 = vmatpush.msra.mxu0 0.0
        %727 = vmatpush.msra.mxu0 0.0
        %728 = vmatpush.msra.mxu0 0.0
        %729 = vmatpush.msra.mxu0 0.0
        %730 = vmatpush.msra.mxu0 0.0
        %731 = vmatpush.msra.mxu0 0.0
        %732 = vmatpush.msra.mxu0 0.0
        %733 = vmatpush.msra.mxu0 0.0
        %734 = vmatpush.msra.mxu0 0.0
        %735 = vmatpush.msra.mxu0 0.0
        %736 = vmatpush.msra.mxu0 0.0
        %737 = vmatpush.msra.mxu0 %v395
        %738 = vmatmul.f32.gmra.mxu0 %v720
        %v739 = vpop.f32.mrf.mxu0
        %v740 = vadd.f32 0.0, %v739
        %741 = vdwg.mxu0
        %v742 = vadd.f32 %v638, %v740
        %743 = vrot.lane.b32.xlu0 %v431, 104
        %v744 = vpop.permute.xlu0 %743
        %745 = vrot.lane.b32.xlu0 %v431, 72
        %v746 = vpop.permute.xlu0 %745
        %v747 = vsel %vm436, %v744, 0
        %v749 = vsel %vm436, %v746, 0
        %751 = vmatpush.xpose.msra.mxu0 0.0
        %752 = vmatpush.xpose.msra.mxu0 0.0
        %753 = vmatpush.xpose.msra.mxu0 0.0
        %754 = vmatpush.xpose.msra.mxu0 0.0
        %755 = vmatpush.xpose.msra.mxu0 0.0
        %756 = vmatpush.xpose.msra.mxu0 0.0
        %757 = vmatpush.xpose.msra.mxu0 0.0
        %758 = vmatpush.xpose.msra.mxu0 0.0
        %759 = vmatpush.xpose.msra.mxu0 0.0
        %760 = vmatpush.xpose.msra.mxu0 0.0
        %761 = vmatpush.xpose.msra.mxu0 0.0
        %762 = vmatpush.xpose.msra.mxu0 0.0
        %763 = vmatpush.xpose.msra.mxu0 0.0
        %764 = vmatpush.xpose.msra.mxu0 0.0
        %765 = vmatpush.xpose.msra.mxu0 0.0
        %766 = vmatpush.xpose.msra.mxu0 %v749
        %767 = vmatmul.f32.gmra.mxu0 %v747
        %v768 = vpop.f32.mrf.mxu0
        %v769 = vadd.f32 0.0, %v768
        %770 = vdwg.mxu0
        %v771 = vsel %vm461, %v769, -inf
        %772 = vmax.xlane.f32.xlu0 %v771
        %v773 = vpop.xlane.xlu0 %772
        %v774 = vsub.f32 %v769, %v773
        %v775 = vmul.f32 %v774, 1.442695
        %v776 = vpow.pop %v775
        %v777 = vsel %vm461, %v776, 0.0
        %778 = vadd.xlane.f32.xlu0 %v777
        %v779 = vpop.xlane.xlu0 %778
        %v780 = vrcp.pop %v779
        %v781 = vmul.f32 %v779, %v780
        %v782 = vsub.f32 1.0, %v781
        %v783 = vmul.f32 %v780, %v782
        %v784 = vadd.f32 %v780, %v783
        %vm785 = vweird.f32 %v779
        %vm786 = vweird.f32 %v780
        %vm787 = vmor %vm785, %vm786
        %v788 = vsel %vm787, %v780, %v784
        %v789 = vand.u32 2147483647, %v779
        %vm790 = vcmp.eq.f32.partialorder %v789, 8.507059e+37
        %v791 = vand.u32 %v779, 2147483648
        %v792 = vor.u32 1.1754944e-38, %v791
        %v793 = vsel %vm790, %v792, %v788
        %v794 = vmul.f32 %v776, %v793
        %795 = vrot.lane.b32.xlu0 %v431, 40
        %v796 = vpop.permute.xlu0 %795
        %v798 = vsel %vm488, %v794, 0
        %v800 = vsel %vm492, %v796, 0
        %802 = vmatpush.msra.mxu0 0.0
        %803 = vmatpush.msra.mxu0 0.0
        %804 = vmatpush.msra.mxu0 0.0
        %805 = vmatpush.msra.mxu0 0.0
        %806 = vmatpush.msra.mxu0 0.0
        %807 = vmatpush.msra.mxu0 0.0
        %808 = vmatpush.msra.mxu0 0.0
        %809 = vmatpush.msra.mxu0 0.0
        %810 = vmatpush.msra.mxu0 0.0
        %811 = vmatpush.msra.mxu0 0.0
        %812 = vmatpush.msra.mxu0 0.0
        %813 = vmatpush.msra.mxu0 0.0
        %814 = vmatpush.msra.mxu0 0.0
        %815 = vmatpush.msra.mxu0 0.0
        %816 = vmatpush.msra.mxu0 0.0
        %817 = vmatpush.msra.mxu0 %v800
        %818 = vmatmul.f32.gmra.mxu0 %v798
        %v819 = vpop.f32.mrf.mxu0
        %v820 = vadd.f32 0.0, %v819
        %821 = vdwg.mxu0
        %v823 = vsel %vm436, %v820, 0
        %825 = vmatpush.msra.mxu0 0.0
        %826 = vmatpush.msra.mxu0 0.0
        %827 = vmatpush.msra.mxu0 0.0
        %828 = vmatpush.msra.mxu0 0.0
        %829 = vmatpush.msra.mxu0 0.0
        %830 = vmatpush.msra.mxu0 0.0
        %831 = vmatpush.msra.mxu0 0.0
        %832 = vmatpush.msra.mxu0 0.0
        %833 = vmatpush.msra.mxu0 0.0
        %834 = vmatpush.msra.mxu0 0.0
        %835 = vmatpush.msra.mxu0 0.0
        %836 = vmatpush.msra.mxu0 0.0
        %837 = vmatpush.msra.mxu0 0.0
        %838 = vmatpush.msra.mxu0 0.0
        %839 = vmatpush.msra.mxu0 0.0
        %840 = vmatpush.msra.mxu0 %v396
        %841 = vmatmul.f32.gmra.mxu0 %v823
        %v842 = vpop.f32.mrf.mxu0
        %v843 = vadd.f32 0.0, %v842
        %844 = vdwg.mxu0
        %v845 = vadd.f32 %v742, %v843
        %v847 = vperm.slane %v397, 0
        %v849 = vadd.f32 %v845, %v847
        %v850 = vld [vmem:[%s383] sm:$0x7]
        %v852 = vsel %vm409, %v850, 0
        %854 = vmatpush.msra.mxu0 0.0
        %855 = vmatpush.msra.mxu0 0.0
        %856 = vmatpush.msra.mxu0 0.0
        %857 = vmatpush.msra.mxu0 0.0
        %858 = vmatpush.msra.mxu0 0.0
        %859 = vmatpush.msra.mxu0 0.0
        %860 = vmatpush.msra.mxu0 0.0
        %861 = vmatpush.msra.mxu0 0.0
        %862 = vmatpush.msra.mxu0 0.0
        %863 = vmatpush.msra.mxu0 0.0
        %864 = vmatpush.msra.mxu0 0.0
        %865 = vmatpush.msra.mxu0 0.0
        %866 = vmatpush.msra.mxu0 %v391
        %867 = vmatpush.msra.mxu0 %v390
        %868 = vmatpush.msra.mxu0 %v389
        %869 = vmatpush.msra.mxu0 %v388
        %870 = vmatmul.f32.gmra.mxu0 %v852
        %v871 = vpop.f32.mrf.mxu0
        %v872 = vadd.f32 %v407, %v871
        %873 = vdwg.mxu0
        %875 = vrot.lane.b32.xlu0 %v872, 96
        %v876 = vpop.permute.xlu0 %875
        %v877 = vsel %vm436, %v872, 0
        %v879 = vsel %vm436, %v876, 0
        %881 = vmatpush.xpose.msra.mxu0 0.0
        %882 = vmatpush.xpose.msra.mxu0 0.0
        %883 = vmatpush.xpose.msra.mxu0 0.0
        %884 = vmatpush.xpose.msra.mxu0 0.0
        %885 = vmatpush.xpose.msra.mxu0 0.0
        %886 = vmatpush.xpose.msra.mxu0 0.0
        %887 = vmatpush.xpose.msra.mxu0 0.0
        %888 = vmatpush.xpose.msra.mxu0 0.0
        %889 = vmatpush.xpose.msra.mxu0 0.0
        %890 = vmatpush.xpose.msra.mxu0 0.0
        %891 = vmatpush.xpose.msra.mxu0 0.0
        %892 = vmatpush.xpose.msra.mxu0 0.0
        %893 = vmatpush.xpose.msra.mxu0 0.0
        %894 = vmatpush.xpose.msra.mxu0 0.0
        %895 = vmatpush.xpose.msra.mxu0 0.0
        %896 = vmatpush.xpose.msra.mxu0 %v879
        %897 = vmatmul.f32.gmra.mxu0 %v877
        %v898 = vpop.f32.mrf.mxu0
        %v899 = vadd.f32 0.0, %v898
        %900 = vdwg.mxu0
        %v901 = vsel %vm461, %v899, -inf
        %902 = vmax.xlane.f32.xlu0 %v901
        %v903 = vpop.xlane.xlu0 %902
        %v904 = vsub.f32 %v899, %v903
        %v905 = vmul.f32 %v904, 1.442695
        %v906 = vpow.pop %v905
        %v907 = vsel %vm461, %v906, 0.0
        %908 = vadd.xlane.f32.xlu0 %v907
        %v909 = vpop.xlane.xlu0 %908
        %v910 = vrcp.pop %v909
        %v911 = vmul.f32 %v909, %v910
        %v912 = vsub.f32 1.0, %v911
        %v913 = vmul.f32 %v910, %v912
        %v914 = vadd.f32 %v910, %v913
        %vm915 = vweird.f32 %v909
        %vm916 = vweird.f32 %v910
        %vm917 = vmor %vm915, %vm916
        %v918 = vsel %vm917, %v910, %v914
        %v919 = vand.u32 2147483647, %v909
        %vm920 = vcmp.eq.f32.partialorder %v919, 8.507059e+37
        %v921 = vand.u32 %v909, 2147483648
        %v922 = vor.u32 1.1754944e-38, %v921
        %v923 = vsel %vm920, %v922, %v918
        %v924 = vmul.f32 %v906, %v923
        %925 = vrot.lane.b32.xlu0 %v872, 64
        %v926 = vpop.permute.xlu0 %925
        %v928 = vsel %vm488, %v924, 0
        %v930 = vsel %vm492, %v926, 0
        %932 = vmatpush.msra.mxu0 0.0
        %933 = vmatpush.msra.mxu0 0.0
        %934 = vmatpush.msra.mxu0 0.0
        %935 = vmatpush.msra.mxu0 0.0
        %936 = vmatpush.msra.mxu0 0.0
        %937 = vmatpush.msra.mxu0 0.0
        %938 = vmatpush.msra.mxu0 0.0
        %939 = vmatpush.msra.mxu0 0.0
        %940 = vmatpush.msra.mxu0 0.0
        %941 = vmatpush.msra.mxu0 0.0
        %942 = vmatpush.msra.mxu0 0.0
        %943 = vmatpush.msra.mxu0 0.0
        %944 = vmatpush.msra.mxu0 0.0
        %945 = vmatpush.msra.mxu0 0.0
        %946 = vmatpush.msra.mxu0 0.0
        %947 = vmatpush.msra.mxu0 %v930
        %948 = vmatmul.f32.gmra.mxu0 %v928
        %v949 = vpop.f32.mrf.mxu0
        %v950 = vadd.f32 0.0, %v949
        %951 = vdwg.mxu0
        %952 = vrot.lane.b32.xlu0 %v872, 120
        %v953 = vpop.permute.xlu0 %952
        %954 = vrot.lane.b32.xlu0 %v872, 88
        %v955 = vpop.permute.xlu0 %954
        %v956 = vsel %vm436, %v953, 0
        %v958 = vsel %vm436, %v955, 0
        %960 = vmatpush.xpose.msra.mxu0 0.0
        %961 = vmatpush.xpose.msra.mxu0 0.0
        %962 = vmatpush.xpose.msra.mxu0 0.0
        %963 = vmatpush.xpose.msra.mxu0 0.0
        %964 = vmatpush.xpose.msra.mxu0 0.0
        %965 = vmatpush.xpose.msra.mxu0 0.0
        %966 = vmatpush.xpose.msra.mxu0 0.0
        %967 = vmatpush.xpose.msra.mxu0 0.0
        %968 = vmatpush.xpose.msra.mxu0 0.0
        %969 = vmatpush.xpose.msra.mxu0 0.0
        %970 = vmatpush.xpose.msra.mxu0 0.0
        %971 = vmatpush.xpose.msra.mxu0 0.0
        %972 = vmatpush.xpose.msra.mxu0 0.0
        %973 = vmatpush.xpose.msra.mxu0 0.0
        %974 = vmatpush.xpose.msra.mxu0 0.0
        %975 = vmatpush.xpose.msra.mxu0 %v958
        %976 = vmatmul.f32.gmra.mxu0 %v956
        %v977 = vpop.f32.mrf.mxu0
        %v978 = vadd.f32 0.0, %v977
        %979 = vdwg.mxu0
        %v980 = vsel %vm461, %v978, -inf
        %981 = vmax.xlane.f32.xlu0 %v980
        %v982 = vpop.xlane.xlu0 %981
        %v983 = vsub.f32 %v978, %v982
        %v984 = vmul.f32 %v983, 1.442695
        %v985 = vpow.pop %v984
        %v986 = vsel %vm461, %v985, 0.0
        %987 = vadd.xlane.f32.xlu0 %v986
        %v988 = vpop.xlane.xlu0 %987
        %v989 = vrcp.pop %v988
        %v990 = vmul.f32 %v988, %v989
        %v991 = vsub.f32 1.0, %v990
        %v992 = vmul.f32 %v989, %v991
        %v993 = vadd.f32 %v989, %v992
        %vm994 = vweird.f32 %v988
        %vm995 = vweird.f32 %v989
        %vm996 = vmor %vm994, %vm995
        %v997 = vsel %vm996, %v989, %v993
        %v998 = vand.u32 2147483647, %v988
        %vm999 = vcmp.eq.f32.partialorder %v998, 8.507059e+37
        %v1000 = vand.u32 %v988, 2147483648
        %v1001 = vor.u32 1.1754944e-38, %v1000
        %v1002 = vsel %vm999, %v1001, %v997
        %v1003 = vmul.f32 %v985, %v1002
        %1004 = vrot.lane.b32.xlu0 %v872, 56
        %v1005 = vpop.permute.xlu0 %1004
        %v1007 = vsel %vm488, %v1003, 0
        %v1009 = vsel %vm492, %v1005, 0
        %1011 = vmatpush.msra.mxu0 0.0
        %1012 = vmatpush.msra.mxu0 0.0
        %1013 = vmatpush.msra.mxu0 0.0
        %1014 = vmatpush.msra.mxu0 0.0
        %1015 = vmatpush.msra.mxu0 0.0
        %1016 = vmatpush.msra.mxu0 0.0
        %1017 = vmatpush.msra.mxu0 0.0
        %1018 = vmatpush.msra.mxu0 0.0
        %1019 = vmatpush.msra.mxu0 0.0
        %1020 = vmatpush.msra.mxu0 0.0
        %1021 = vmatpush.msra.mxu0 0.0
        %1022 = vmatpush.msra.mxu0 0.0
        %1023 = vmatpush.msra.mxu0 0.0
        %1024 = vmatpush.msra.mxu0 0.0
        %1025 = vmatpush.msra.mxu0 0.0
        %1026 = vmatpush.msra.mxu0 %v1009
        %1027 = vmatmul.f32.gmra.mxu0 %v1007
        %v1028 = vpop.f32.mrf.mxu0
        %v1029 = vadd.f32 0.0, %v1028
        %1030 = vdwg.mxu0
        %v1032 = vsel %vm436, %v1029, 0
        %1034 = vmatpush.msra.mxu0 0.0
        %1035 = vmatpush.msra.mxu0 0.0
        %1036 = vmatpush.msra.mxu0 0.0
        %1037 = vmatpush.msra.mxu0 0.0
        %1038 = vmatpush.msra.mxu0 0.0
        %1039 = vmatpush.msra.mxu0 0.0
        %1040 = vmatpush.msra.mxu0 0.0
        %1041 = vmatpush.msra.mxu0 0.0
        %1042 = vmatpush.msra.mxu0 0.0
        %1043 = vmatpush.msra.mxu0 0.0
        %1044 = vmatpush.msra.mxu0 0.0
        %1045 = vmatpush.msra.mxu0 0.0
        %1046 = vmatpush.msra.mxu0 0.0
        %1047 = vmatpush.msra.mxu0 0.0
        %1048 = vmatpush.msra.mxu0 0.0
        %1049 = vmatpush.msra.mxu0 %v394
        %1050 = vmatmul.f32.gmra.mxu0 %v1032
        %v1051 = vpop.f32.mrf.mxu0
        %v1052 = vadd.f32 0.0, %v1051
        %1053 = vdwg.mxu0
        %v1055 = vsel %vm436, %v950, 0
        %1057 = vmatpush.msra.mxu0 0.0
        %1058 = vmatpush.msra.mxu0 0.0
        %1059 = vmatpush.msra.mxu0 0.0
        %1060 = vmatpush.msra.mxu0 0.0
        %1061 = vmatpush.msra.mxu0 0.0
        %1062 = vmatpush.msra.mxu0 0.0
        %1063 = vmatpush.msra.mxu0 0.0
        %1064 = vmatpush.msra.mxu0 0.0
        %1065 = vmatpush.msra.mxu0 0.0
        %1066 = vmatpush.msra.mxu0 0.0
        %1067 = vmatpush.msra.mxu0 0.0
        %1068 = vmatpush.msra.mxu0 0.0
        %1069 = vmatpush.msra.mxu0 0.0
        %1070 = vmatpush.msra.mxu0 0.0
        %1071 = vmatpush.msra.mxu0 0.0
        %1072 = vmatpush.msra.mxu0 %v393
        %1073 = vmatmul.f32.gmra.mxu0 %v1055
        %v1074 = vpop.f32.mrf.mxu0
        %v1075 = vadd.f32 %v1052, %v1074
        %1076 = vdwg.mxu0
        %1077 = vrot.lane.b32.xlu0 %v872, 112
        %v1078 = vpop.permute.xlu0 %1077
        %1079 = vrot.lane.b32.xlu0 %v872, 80
        %v1080 = vpop.permute.xlu0 %1079
        %v1081 = vsel %vm436, %v1078, 0
        %v1083 = vsel %vm436, %v1080, 0
        %1085 = vmatpush.xpose.msra.mxu0 0.0
        %1086 = vmatpush.xpose.msra.mxu0 0.0
        %1087 = vmatpush.xpose.msra.mxu0 0.0
        %1088 = vmatpush.xpose.msra.mxu0 0.0
        %1089 = vmatpush.xpose.msra.mxu0 0.0
        %1090 = vmatpush.xpose.msra.mxu0 0.0
        %1091 = vmatpush.xpose.msra.mxu0 0.0
        %1092 = vmatpush.xpose.msra.mxu0 0.0
        %1093 = vmatpush.xpose.msra.mxu0 0.0
        %1094 = vmatpush.xpose.msra.mxu0 0.0
        %1095 = vmatpush.xpose.msra.mxu0 0.0
        %1096 = vmatpush.xpose.msra.mxu0 0.0
        %1097 = vmatpush.xpose.msra.mxu0 0.0
        %1098 = vmatpush.xpose.msra.mxu0 0.0
        %1099 = vmatpush.xpose.msra.mxu0 0.0
        %1100 = vmatpush.xpose.msra.mxu0 %v1083
        %1101 = vmatmul.f32.gmra.mxu0 %v1081
        %v1102 = vpop.f32.mrf.mxu0
        %v1103 = vadd.f32 0.0, %v1102
        %1104 = vdwg.mxu0
        %v1105 = vsel %vm461, %v1103, -inf
        %1106 = vmax.xlane.f32.xlu0 %v1105
        %v1107 = vpop.xlane.xlu0 %1106
        %v1108 = vsub.f32 %v1103, %v1107
        %v1109 = vmul.f32 %v1108, 1.442695
        %v1110 = vpow.pop %v1109
        %v1111 = vsel %vm461, %v1110, 0.0
        %1112 = vadd.xlane.f32.xlu0 %v1111
        %v1113 = vpop.xlane.xlu0 %1112
        %v1114 = vrcp.pop %v1113
        %v1115 = vmul.f32 %v1113, %v1114
        %v1116 = vsub.f32 1.0, %v1115
        %v1117 = vmul.f32 %v1114, %v1116
        %v1118 = vadd.f32 %v1114, %v1117
        %vm1119 = vweird.f32 %v1113
        %vm1120 = vweird.f32 %v1114
        %vm1121 = vmor %vm1119, %vm1120
        %v1122 = vsel %vm1121, %v1114, %v1118
        %v1123 = vand.u32 2147483647, %v1113
        %vm1124 = vcmp.eq.f32.partialorder %v1123, 8.507059e+37
        %v1125 = vand.u32 %v1113, 2147483648
        %v1126 = vor.u32 1.1754944e-38, %v1125
        %v1127 = vsel %vm1124, %v1126, %v1122
        %v1128 = vmul.f32 %v1110, %v1127
        %1129 = vrot.lane.b32.xlu0 %v872, 48
        %v1130 = vpop.permute.xlu0 %1129
        %v1132 = vsel %vm488, %v1128, 0
        %v1134 = vsel %vm492, %v1130, 0
        %1136 = vmatpush.msra.mxu0 0.0
        %1137 = vmatpush.msra.mxu0 0.0
        %1138 = vmatpush.msra.mxu0 0.0
        %1139 = vmatpush.msra.mxu0 0.0
        %1140 = vmatpush.msra.mxu0 0.0
        %1141 = vmatpush.msra.mxu0 0.0
        %1142 = vmatpush.msra.mxu0 0.0
        %1143 = vmatpush.msra.mxu0 0.0
        %1144 = vmatpush.msra.mxu0 0.0
        %1145 = vmatpush.msra.mxu0 0.0
        %1146 = vmatpush.msra.mxu0 0.0
        %1147 = vmatpush.msra.mxu0 0.0
        %1148 = vmatpush.msra.mxu0 0.0
        %1149 = vmatpush.msra.mxu0 0.0
        %1150 = vmatpush.msra.mxu0 0.0
        %1151 = vmatpush.msra.mxu0 %v1134
        %1152 = vmatmul.f32.gmra.mxu0 %v1132
        %v1153 = vpop.f32.mrf.mxu0
        %v1154 = vadd.f32 0.0, %v1153
        %1155 = vdwg.mxu0
        %v1157 = vsel %vm436, %v1154, 0
        %1159 = vmatpush.msra.mxu0 0.0
        %1160 = vmatpush.msra.mxu0 0.0
        %1161 = vmatpush.msra.mxu0 0.0
        %1162 = vmatpush.msra.mxu0 0.0
        %1163 = vmatpush.msra.mxu0 0.0
        %1164 = vmatpush.msra.mxu0 0.0
        %1165 = vmatpush.msra.mxu0 0.0
        %1166 = vmatpush.msra.mxu0 0.0
        %1167 = vmatpush.msra.mxu0 0.0
        %1168 = vmatpush.msra.mxu0 0.0
        %1169 = vmatpush.msra.mxu0 0.0
        %1170 = vmatpush.msra.mxu0 0.0
        %1171 = vmatpush.msra.mxu0 0.0
        %1172 = vmatpush.msra.mxu0 0.0
        %1173 = vmatpush.msra.mxu0 0.0
        %1174 = vmatpush.msra.mxu0 %v395
        %1175 = vmatmul.f32.gmra.mxu0 %v1157
        %v1176 = vpop.f32.mrf.mxu0
        %v1177 = vadd.f32 0.0, %v1176
        %1178 = vdwg.mxu0
        %v1179 = vadd.f32 %v1075, %v1177
        %1180 = vrot.lane.b32.xlu0 %v872, 104
        %v1181 = vpop.permute.xlu0 %1180
        %1182 = vrot.lane.b32.xlu0 %v872, 72
        %v1183 = vpop.permute.xlu0 %1182
        %v1184 = vsel %vm436, %v1181, 0
        %v1186 = vsel %vm436, %v1183, 0
        %1188 = vmatpush.xpose.msra.mxu0 0.0
        %1189 = vmatpush.xpose.msra.mxu0 0.0
        %1190 = vmatpush.xpose.msra.mxu0 0.0
        %1191 = vmatpush.xpose.msra.mxu0 0.0
        %1192 = vmatpush.xpose.msra.mxu0 0.0
        %1193 = vmatpush.xpose.msra.mxu0 0.0
        %1194 = vmatpush.xpose.msra.mxu0 0.0
        %1195 = vmatpush.xpose.msra.mxu0 0.0
        %1196 = vmatpush.xpose.msra.mxu0 0.0
        %1197 = vmatpush.xpose.msra.mxu0 0.0
        %1198 = vmatpush.xpose.msra.mxu0 0.0
        %1199 = vmatpush.xpose.msra.mxu0 0.0
        %1200 = vmatpush.xpose.msra.mxu0 0.0
        %1201 = vmatpush.xpose.msra.mxu0 0.0
        %1202 = vmatpush.xpose.msra.mxu0 0.0
        %1203 = vmatpush.xpose.msra.mxu0 %v1186
        %1204 = vmatmul.f32.gmra.mxu0 %v1184
        %v1205 = vpop.f32.mrf.mxu0
        %v1206 = vadd.f32 0.0, %v1205
        %1207 = vdwg.mxu0
        %v1208 = vsel %vm461, %v1206, -inf
        %1209 = vmax.xlane.f32.xlu0 %v1208
        %v1210 = vpop.xlane.xlu0 %1209
        %v1211 = vsub.f32 %v1206, %v1210
        %v1212 = vmul.f32 %v1211, 1.442695
        %v1213 = vpow.pop %v1212
        %v1214 = vsel %vm461, %v1213, 0.0
        %1215 = vadd.xlane.f32.xlu0 %v1214
        %v1216 = vpop.xlane.xlu0 %1215
        %v1217 = vrcp.pop %v1216
        %v1218 = vmul.f32 %v1216, %v1217
        %v1219 = vsub.f32 1.0, %v1218
        %v1220 = vmul.f32 %v1217, %v1219
        %v1221 = vadd.f32 %v1217, %v1220
        %vm1222 = vweird.f32 %v1216
        %vm1223 = vweird.f32 %v1217
        %vm1224 = vmor %vm1222, %vm1223
        %v1225 = vsel %vm1224, %v1217, %v1221
        %v1226 = vand.u32 2147483647, %v1216
        %vm1227 = vcmp.eq.f32.partialorder %v1226, 8.507059e+37
        %v1228 = vand.u32 %v1216, 2147483648
        %v1229 = vor.u32 1.1754944e-38, %v1228
        %v1230 = vsel %vm1227, %v1229, %v1225
        %v1231 = vmul.f32 %v1213, %v1230
        %1232 = vrot.lane.b32.xlu0 %v872, 40
        %v1233 = vpop.permute.xlu0 %1232
        %v1235 = vsel %vm488, %v1231, 0
        %v1237 = vsel %vm492, %v1233, 0
        %1239 = vmatpush.msra.mxu0 0.0
        %1240 = vmatpush.msra.mxu0 0.0
        %1241 = vmatpush.msra.mxu0 0.0
        %1242 = vmatpush.msra.mxu0 0.0
        %1243 = vmatpush.msra.mxu0 0.0
        %1244 = vmatpush.msra.mxu0 0.0
        %1245 = vmatpush.msra.mxu0 0.0
        %1246 = vmatpush.msra.mxu0 0.0
        %1247 = vmatpush.msra.mxu0 0.0
        %1248 = vmatpush.msra.mxu0 0.0
        %1249 = vmatpush.msra.mxu0 0.0
        %1250 = vmatpush.msra.mxu0 0.0
        %1251 = vmatpush.msra.mxu0 0.0
        %1252 = vmatpush.msra.mxu0 0.0
        %1253 = vmatpush.msra.mxu0 0.0
        %1254 = vmatpush.msra.mxu0 %v1237
        %1255 = vmatmul.f32.gmra.mxu0 %v1235
        %v1256 = vpop.f32.mrf.mxu0
        %v1257 = vadd.f32 0.0, %v1256
        %1258 = vdwg.mxu0
        %v1260 = vsel %vm436, %v1257, 0
        %1262 = vmatpush.msra.mxu0 0.0
        %1263 = vmatpush.msra.mxu0 0.0
        %1264 = vmatpush.msra.mxu0 0.0
        %1265 = vmatpush.msra.mxu0 0.0
        %1266 = vmatpush.msra.mxu0 0.0
        %1267 = vmatpush.msra.mxu0 0.0
        %1268 = vmatpush.msra.mxu0 0.0
        %1269 = vmatpush.msra.mxu0 0.0
        %1270 = vmatpush.msra.mxu0 0.0
        %1271 = vmatpush.msra.mxu0 0.0
        %1272 = vmatpush.msra.mxu0 0.0
        %1273 = vmatpush.msra.mxu0 0.0
        %1274 = vmatpush.msra.mxu0 0.0
        %1275 = vmatpush.msra.mxu0 0.0
        %1276 = vmatpush.msra.mxu0 0.0
        %1277 = vmatpush.msra.mxu0 %v396
        %1278 = vmatmul.f32.gmra.mxu0 %v1260
        %v1279 = vpop.f32.mrf.mxu0
        %v1280 = vadd.f32 0.0, %v1279
        %1281 = vdwg.mxu0
        %v1282 = vadd.f32 %v1179, %v1280
        %v1283 = vadd.f32 %v1282, %v847
        %v1285 = vperm.slane %v402, 0
        %v1288 = vsel %vm409, %v849, 0
        %1290 = vmatpush.msra.mxu0 0.0
        %1291 = vmatpush.msra.mxu0 0.0
        %1292 = vmatpush.msra.mxu0 0.0
        %1293 = vmatpush.msra.mxu0 0.0
        %1294 = vmatpush.msra.mxu0 0.0
        %1295 = vmatpush.msra.mxu0 0.0
        %1296 = vmatpush.msra.mxu0 0.0
        %1297 = vmatpush.msra.mxu0 0.0
        %1298 = vmatpush.msra.mxu0 0.0
        %1299 = vmatpush.msra.mxu0 0.0
        %1300 = vmatpush.msra.mxu0 0.0
        %1301 = vmatpush.msra.mxu0 0.0
        %1302 = vmatpush.msra.mxu0 %v401
        %1303 = vmatpush.msra.mxu0 %v400
        %1304 = vmatpush.msra.mxu0 %v399
        %1305 = vmatpush.msra.mxu0 %v398
        %1306 = vmatmul.f32.gmra.mxu0 %v1288
        %v1307 = vpop.f32.mrf.mxu0
        %v1308 = vadd.f32 %v1285, %v1307
        %1309 = vdwg.mxu0
        %v1310 = vtanh.pop %v1308
        %vm1311 = vcmask 130048
        %v1313 = vsel %vm1311, %v1310, 0
        %1315 = vmatpush.msra.mxu0 0.0
        %1316 = vmatpush.msra.mxu0 0.0
        %1317 = vmatpush.msra.mxu0 0.0
        %1318 = vmatpush.msra.mxu0 0.0
        %1319 = vmatpush.msra.mxu0 0.0
        %1320 = vmatpush.msra.mxu0 0.0
        %1321 = vmatpush.msra.mxu0 0.0
        %1322 = vmatpush.msra.mxu0 0.0
        %1323 = vmatpush.msra.mxu0 0.0
        %1324 = vmatpush.msra.mxu0 0.0
        %1325 = vmatpush.msra.mxu0 0.0
        %1326 = vmatpush.msra.mxu0 0.0
        %1327 = vmatpush.msra.mxu0 0.0
        %1328 = vmatpush.msra.mxu0 0.0
        %1329 = vmatpush.msra.mxu0 %v404
        %1330 = vmatpush.msra.mxu0 %v403
        %1331 = vmatmul.f32.gmra.mxu0 %v1313
        %v1332 = vpop.f32.mrf.mxu0
        %v1333 = vadd.f32 0.0, %v1332
        %1334 = vdwg.mxu0
        %v1336 = vsel %vm409, %v1283, 0
        %1338 = vmatpush.msra.mxu0 0.0
        %1339 = vmatpush.msra.mxu0 0.0
        %1340 = vmatpush.msra.mxu0 0.0
        %1341 = vmatpush.msra.mxu0 0.0
        %1342 = vmatpush.msra.mxu0 0.0
        %1343 = vmatpush.msra.mxu0 0.0
        %1344 = vmatpush.msra.mxu0 0.0
        %1345 = vmatpush.msra.mxu0 0.0
        %1346 = vmatpush.msra.mxu0 0.0
        %1347 = vmatpush.msra.mxu0 0.0
        %1348 = vmatpush.msra.mxu0 0.0
        %1349 = vmatpush.msra.mxu0 0.0
        %1350 = vmatpush.msra.mxu0 %v401
        %1351 = vmatpush.msra.mxu0 %v400
        %1352 = vmatpush.msra.mxu0 %v399
        %1353 = vmatpush.msra.mxu0 %v398
        %1354 = vmatmul.f32.gmra.mxu0 %v1336
        %v1355 = vpop.f32.mrf.mxu0
        %v1356 = vadd.f32 %v1285, %v1355
        %1357 = vdwg.mxu0
        %v1358 = vtanh.pop %v1356
        %v1360 = vsel %vm1311, %v1358, 0
        %1362 = vmatpush.msra.mxu0 0.0
        %1363 = vmatpush.msra.mxu0 0.0
        %1364 = vmatpush.msra.mxu0 0.0
        %1365 = vmatpush.msra.mxu0 0.0
        %1366 = vmatpush.msra.mxu0 0.0
        %1367 = vmatpush.msra.mxu0 0.0
        %1368 = vmatpush.msra.mxu0 0.0
        %1369 = vmatpush.msra.mxu0 0.0
        %1370 = vmatpush.msra.mxu0 0.0
        %1371 = vmatpush.msra.mxu0 0.0
        %1372 = vmatpush.msra.mxu0 0.0
        %1373 = vmatpush.msra.mxu0 0.0
        %1374 = vmatpush.msra.mxu0 0.0
        %1375 = vmatpush.msra.mxu0 0.0
        %1376 = vmatpush.msra.mxu0 %v404
        %1377 = vmatpush.msra.mxu0 %v403
        %1378 = vmatmul.f32.gmra.mxu0 %v1360
        %v1379 = vpop.f32.mrf.mxu0
        %v1380 = vadd.f32 0.0, %v1379
        %1381 = vdwg.mxu0
        %vm1382 = vcmask 2048
        %v1383 = vsel %vm1382, %v1333, -inf
        %1384 = vmax.xlane.f32.xlu0 %v1383
        %v1385 = vpop.xlane.xlu0 %1384
        %v1386 = vrot.slane %v1385, 4
        %v1387 = vmax.f32 %v1385, %v1386
        %v1388 = vrot.slane %v1387, 2
        %v1389 = vmax.f32 %v1387, %v1388
        %v1390 = vrot.slane %v1389, 1
        %v1391 = vmax.f32 %v1389, %v1390
        %s1392 = vtos %v1391
        %v1393 = vstv %s1392
        %v1394 = vsel %vm1382, %v1380, -inf
        %1395 = vmax.xlane.f32.xlu0 %v1394
        %v1396 = vpop.xlane.xlu0 %1395
        %v1397 = vrot.slane %v1396, 4
        %v1398 = vmax.f32 %v1396, %v1397
        %v1399 = vrot.slane %v1398, 2
        %v1400 = vmax.f32 %v1398, %v1399
        %v1401 = vrot.slane %v1400, 1
        %v1402 = vmax.f32 %v1400, %v1401
        %s1403 = vtos %v1402
        %v1404 = vstv %s1403
        %v1405 = vmax.f32 %v1393, %v1404
        %v1406 = vsub.f32 %v1333, %v1405
        %v1407 = vmul.f32 %v1406, 1.442695
        %v1408 = vpow.pop %v1407
        %v1409 = vsub.f32 %v1380, %v1405
        %v1410 = vmul.f32 %v1409, 1.442695
        %v1411 = vpow.pop %v1410
        %v1412 = vsel %vm1382, %v1408, 0.0
        %1413 = vadd.xlane.f32.xlu0 %v1412
        %v1414 = vpop.xlane.xlu0 %1413
        %v1415 = vrot.slane %v1414, 4
        %v1416 = vadd.f32 %v1414, %v1415
        %v1417 = vrot.slane %v1416, 2
        %v1418 = vadd.f32 %v1416, %v1417
        %v1419 = vrot.slane %v1418, 1
        %v1420 = vadd.f32 %v1418, %v1419
        %s1421 = vtos %v1420
        %v1422 = vstv %s1421
        %v1423 = vsel %vm1382, %v1411, 0.0
        %1424 = vadd.xlane.f32.xlu0 %v1423
        %v1425 = vpop.xlane.xlu0 %1424
        %v1426 = vrot.slane %v1425, 4
        %v1427 = vadd.f32 %v1425, %v1426
        %v1428 = vrot.slane %v1427, 2
        %v1429 = vadd.f32 %v1427, %v1428
        %v1430 = vrot.slane %v1429, 1
        %v1431 = vadd.f32 %v1429, %v1430
        %s1432 = vtos %v1431
        %v1433 = vstv %s1432
        %v1434 = vadd.f32 %v1422, %v1433
        %1436 = vset.pattern.permute.xlu0 0
        %1437 = vperm.xlu0 %1436, %v1408
        %v1438 = vpop.permute.xlu0 %1437
        %v1440 = vmul.f32 %v1438, %v849
        %vm1441 = vcmask 256000
        %v1442 = vsel %vm1441, %v1440, 0.0
        %v1443 = vrot.slane %v1442, 4
        %v1444 = vadd.f32 %v1442, %v1443
        %v1445 = vrot.slane %v1444, 2
        %v1446 = vadd.f32 %v1444, %v1445
        %v1447 = vrot.slane %v1446, 1
        %v1448 = vadd.f32 %v1446, %v1447
        %1450 = vset.pattern.permute.xlu0 0
        %1451 = vperm.xlu0 %1450, %v1411
        %v1452 = vpop.permute.xlu0 %1451
        %v1454 = vmul.f32 %v1452, %v1283
        %v1455 = vsel %vm1441, %v1454, 0.0
        %v1456 = vrot.slane %v1455, 4
        %v1457 = vadd.f32 %v1455, %v1456
        %v1458 = vrot.slane %v1457, 2
        %v1459 = vadd.f32 %v1457, %v1458
        %v1460 = vrot.slane %v1459, 1
        %v1461 = vadd.f32 %v1459, %v1460
        %v1462 = vadd.f32 %v1448, %v1461
        %v1463 = vrcp.pop %v1434
        %v1464 = vmul.f32 %v1434, %v1463
        %v1465 = vsub.f32 1.0, %v1464
        %v1466 = vmul.f32 %v1463, %v1465
        %v1467 = vadd.f32 %v1463, %v1466
        %vm1468 = vweird.f32 %v1434
        %vm1469 = vweird.f32 %v1463
        %vm1470 = vmor %vm1468, %vm1469
        %v1471 = vsel %vm1470, %v1463, %v1467
        %v1472 = vand.u32 2147483647, %v1434
        %vm1473 = vcmp.eq.f32.partialorder %v1472, 8.507059e+37
        %v1474 = vand.u32 %v1434, 2147483648
        %v1475 = vor.u32 1.1754944e-38, %v1474
        %v1476 = vsel %vm1473, %v1475, %v1471
        %v1477 = vmul.f32 %v1462, %v1476
        %v1478 = vld [vmem:[%s387] sm:$0xf]
        %v1480 = vsel %vm409, %v1477, 0
        %v1483 = vsel %vm409, %v1478, 0
        %1485 = vmatpush.xpose.msra.mxu0 0.0
        %1486 = vmatpush.xpose.msra.mxu0 0.0
        %1487 = vmatpush.xpose.msra.mxu0 0.0
        %1488 = vmatpush.xpose.msra.mxu0 0.0
        %1489 = vmatpush.xpose.msra.mxu0 0.0
        %1490 = vmatpush.xpose.msra.mxu0 0.0
        %1491 = vmatpush.xpose.msra.mxu0 0.0
        %1492 = vmatpush.xpose.msra.mxu0 0.0
        %1493 = vmatpush.xpose.msra.mxu0 0.0
        %1494 = vmatpush.xpose.msra.mxu0 0.0
        %1495 = vmatpush.xpose.msra.mxu0 0.0
        %1496 = vmatpush.xpose.msra.mxu0 0.0
        %1497 = vmatpush.xpose.msra.mxu0 0.0
        %1498 = vmatpush.xpose.msra.mxu0 0.0
        %1499 = vmatpush.xpose.msra.mxu0 0.0
        %1500 = vmatpush.xpose.msra.mxu0 %v1483
        %1501 = vmatmul.f32.gmra.mxu0 %v1480
        %v1502 = vpop.f32.mrf.mxu0
        %v1503 = vadd.f32 0.0, %v1502
        %1504 = vdwg.mxu0
        %vm1505 = vcmask 24576
        %1506 = vst.msk [vmem:[%s375] sm:$0x1] %vm1505, %v1503
        %s1507 = sand.u32 %s257, 1
        %s1508 = scalar_lea.sflag [#allocation3], %s1507
        %s1509 = sand.u32 %s257, 1
        %s1510 = scalar_lea.vmem [#allocation2], %s1509
        // Predicated region
        $region61: #{_lambda_.3} parent=59 // pred_check
          %p1511 = pneg %p267
        $region62: #{_lambda_.3} parent=59 // pred_check_branch
          %1513 = sbr.rel (%p1511) target = $region64
        $region63: #{_lambda_.3} parent=59 // pred_region
          %1515 = vsyncadd %s1508, 0
          %s1516 = scalar_lea.hbm %s10, %s24
          %s1518 = sshll.u32 %s1510, 4
          %s1519 = int_to_ptr.vmem [resolvable:$true] %s1518
          %s1520 = sshll.u32 %s1516, 4
          %s1521 = int_to_ptr.hbm [resolvable:$true] %s1520
          %1523 = dma.vmem_to_hbm [thread:$0]  %s1519, 16, %s1521, %s1508
        $region64: #{_lambda_.3} parent=59 // pred_fallthru
          _
      $region60: #{_lambda_.3} parent=5 // pred_fallthru
        _
      %p1524 = scmp.le.s32.totalorder 2, %s19
      // Predicated region
      $region65: #{_lambda_.3} parent=5 // pred_check
        %p1525 = pneg %p1524
      $region66: #{_lambda_.3} parent=5 // pred_check_branch
        %1527 = sbr.rel (%p1525) target = $region68
      $region67: #{_lambda_.3} parent=5 // pred_region
        %s1528 = ssub.s32 %s19, 2
        // Predicated region
        $region69: #{_lambda_.3} parent=67 // pred_check
          %p1529 = pneg %p273
        $region70: #{_lambda_.3} parent=67 // pred_check_branch
          %1531 = sbr.rel (%p1529) target = $region72
        $region71: #{_lambda_.3} parent=67 // pred_region
          %s1532 = sand.u32 %s258, 1
          %s1533 = scalar_lea.sflag [#allocation3], %s1532
          %s1534 = sand.u32 %s258, 1
          %s1535 = scalar_lea.vmem [#allocation2], %s1534
          %1537 = dma.done %s1533, 16
        $region72: #{_lambda_.3} parent=67 // pred_fallthru
          _
      $region68: #{_lambda_.3} parent=5 // pred_fallthru
        _
    $region6: #{_lambda_.3} parent=1 // loop_footer
      %s23 = sadd.s32 1, %s19
    $region7: #{_lambda_.3} parent=1 // loop_footer_branch
      %18 = sbr.rel target = $region3
    $region8: #{_lambda_.3} parent=1 // loop_exit
      _
    %1538 = vsyncpa [#allocation3], 1
    %s1539 = scalar_lea.sflag [#allocation3], 1
    %1540 = vsyncpa %s1539, 1

// kernel: _lambda_.2
$region0: #{_lambda_.2}
  #allocation0 [shape = 'u32[]', space=smem, size = 0x4, offset = 0x4, fixed_abs, tag = 'smem constant byte address 0x4 - core index']
  #allocation1 [shape = 'u32[72,128]{1,0:T(1,128)}', space=vmem, size = 0x9000, scoped, tag = 'internal scratch']
  #allocation2 [shape = 'f32[16,8,32]{2,1,0:T(8,128)}', space=vmem, size = 0x10000, scoped, tag = 'scratch operand']
  %s0 = inlined_call_operand.vmem [shape: f32[32,8,32], index: 0, kind: input, shape index: {}]
  %s1 = inlined_call_operand.vmem [shape: f32[32,96], index: 1, kind: input, shape index: {}]
  %s2 = inlined_call_operand.vmem [shape: f32[1,96], index: 2, kind: input, shape index: {}]
  %s3 = inlined_call_operand.vmem [shape: f32[32,32], index: 3, kind: input, shape index: {}]
  %s4 = inlined_call_operand.vmem [shape: f32[1,32], index: 4, kind: input, shape index: {}]
  %s5 = inlined_call_operand.vmem [shape: f32[32,32], index: 5, kind: input, shape index: {}]
  %s6 = inlined_call_operand.vmem [shape: f32[1,32], index: 6, kind: input, shape index: {}]
  %s7 = inlined_call_operand.vmem [shape: f32[32,16], index: 7, kind: input, shape index: {}]
  %s8 = inlined_call_operand.vmem [shape: f32[1,16], index: 8, kind: input, shape index: {}]
  %s9 = inlined_call_operand.vmem [shape: f32[16,1], index: 9, kind: input, shape index: {}]
  %s10 = inlined_call_operand.vmem [shape: f32[32,32], index: 10, kind: output, shape index: {}]
  %s11 = sld [smem:[#allocation0]]
  $region73: #{_lambda_.2} parent=0
    _
  %s13 = ssub.s32 1, %s11
  %s14 = scalar_select 0, %s13, %s11
  loop: start=0, step=1, limit=4
  $region2: #{_lambda_.2} parent=0 // loop_pre_header
    _
  $region3: #{_lambda_.2} parent=0 // loop_header
    %s16 = sphi 0, %s20
    %p17 = scmp.ge.s32.totalorder %s16, 4
    %s26 = sphi 0, %s28
    %s29 = sphi 0, %s26
    %s30 = sphi 0, %s29
    %s46 = sphi 0, %s30
    %s50 = sphi 0, %s50
    %s52 = sphi 0, %s50
    %s53 = sphi 0, %s52
    %s67 = sphi 0, %s53
    %s71 = sphi 0, %s71
    %s73 = sphi 0, %s71
    %s74 = sphi 0, %s73
    %s88 = sphi 0, %s74
    %s92 = sphi 0, %s92
    %s94 = sphi 0, %s92
    %s95 = sphi 0, %s94
    %s109 = sphi 0, %s95
    %s113 = sphi 0, %s113
    %s115 = sphi 0, %s113
    %s116 = sphi 0, %s115
    %s130 = sphi 0, %s116
    %s134 = sphi 0, %s134
    %s136 = sphi 0, %s134
    %s137 = sphi 0, %s136
    %s151 = sphi 0, %s137
    %s155 = sphi 0, %s155
    %s157 = sphi 0, %s155
    %s158 = sphi 0, %s157
    %s172 = sphi 0, %s158
    %s176 = sphi 0, %s176
    %s178 = sphi 0, %s176
    %s179 = sphi 0, %s178
    %s193 = sphi 0, %s179
    %s197 = sphi 0, %s197
    %s199 = sphi 0, %s197
    %s200 = sphi 0, %s199
    %s214 = sphi 0, %s200
    %s218 = sphi 0, %s218
    %s220 = sphi 0, %s218
    %s221 = sphi 0, %s220
    %s235 = sphi 0, %s221
    %s241 = sphi 0, %s243
    %s244 = sphi 0, %s241
    %s245 = sphi 0, %s244
    %s261 = sphi 0, %s245
  $region4: #{_lambda_.2} parent=0 // loop_header_branch
    %19 = sbr.rel (%p17) target = $region8
  $region5: #{_lambda_.2} parent=0 // loop_body
    %s21 = ssub.s32 %s16, 1
    %s22 = ssub.s32 %s16, 2
    %s23 = sadd.s32 %s16, 1
    %s24 = ssub.s32 %s16, %s23
    %p25 = scmp.eq.s32.totalorder %s24, 0
    %s27 = sadd.s32 %s26, 1
    %s28 = scalar_select %p25, %s26, %s27
    %p31 = pneg %p25
    %p32 = scmp.eq.s32.totalorder %s16, 1
    %p33 = por %p31, %p32
    %p34 = scmp.ne.s32.totalorder %s26, %s29
    %p35 = scmp.eq.s32.totalorder %s16, 0
    %p36 = por %p34, %p35
    %p37 = scmp.ne.s32.totalorder %s26, %s29
    %p38 = scmp.eq.s32.totalorder %s21, 1
    %p39 = por %p37, %p38
    %p40 = scmp.ne.s32.totalorder %s29, %s30
    %p41 = scmp.eq.s32.totalorder %s21, 0
    %p42 = por %p40, %p41
    %p43 = scmp.ne.s32.totalorder %s29, %s30
    %p44 = scmp.eq.s32.totalorder %s22, 1
    %p45 = por %p43, %p44
    %p47 = scmp.ne.s32.totalorder %s30, %s46
    %p48 = scmp.eq.s32.totalorder %s22, 0
    %p49 = por %p47, %p48
    %s51 = sadd.s32 %s50, 1
    %p54 = scmp.eq.s32.totalorder %s16, 1
    %p55 = scmp.ne.s32.totalorder %s50, %s52
    %p56 = scmp.eq.s32.totalorder %s16, 0
    %p57 = por %p55, %p56
    %p58 = scmp.ne.s32.totalorder %s50, %s52
    %p59 = scmp.eq.s32.totalorder %s21, 1
    %p60 = por %p58, %p59
    %p61 = scmp.ne.s32.totalorder %s52, %s53
    %p62 = scmp.eq.s32.totalorder %s21, 0
    %p63 = por %p61, %p62
    %p64 = scmp.ne.s32.totalorder %s52, %s53
    %p65 = scmp.eq.s32.totalorder %s22, 1
    %p66 = por %p64, %p65
    %p68 = scmp.ne.s32.totalorder %s53, %s67
    %p69 = scmp.eq.s32.totalorder %s22, 0
    %p70 = por %p68, %p69
    %s72 = sadd.s32 %s71, 1
    %p75 = scmp.eq.s32.totalorder %s16, 1
    %p76 = scmp.ne.s32.totalorder %s71, %s73
    %p77 = scmp.eq.s32.totalorder %s16, 0
    %p78 = por %p76, %p77
    %p79 = scmp.ne.s32.totalorder %s71, %s73
    %p80 = scmp.eq.s32.totalorder %s21, 1
    %p81 = por %p79, %p80
    %p82 = scmp.ne.s32.totalorder %s73, %s74
    %p83 = scmp.eq.s32.totalorder %s21, 0
    %p84 = por %p82, %p83
    %p85 = scmp.ne.s32.totalorder %s73, %s74
    %p86 = scmp.eq.s32.totalorder %s22, 1
    %p87 = por %p85, %p86
    %p89 = scmp.ne.s32.totalorder %s74, %s88
    %p90 = scmp.eq.s32.totalorder %s22, 0
    %p91 = por %p89, %p90
    %s93 = sadd.s32 %s92, 1
    %p96 = scmp.eq.s32.totalorder %s16, 1
    %p97 = scmp.ne.s32.totalorder %s92, %s94
    %p98 = scmp.eq.s32.totalorder %s16, 0
    %p99 = por %p97, %p98
    %p100 = scmp.ne.s32.totalorder %s92, %s94
    %p101 = scmp.eq.s32.totalorder %s21, 1
    %p102 = por %p100, %p101
    %p103 = scmp.ne.s32.totalorder %s94, %s95
    %p104 = scmp.eq.s32.totalorder %s21, 0
    %p105 = por %p103, %p104
    %p106 = scmp.ne.s32.totalorder %s94, %s95
    %p107 = scmp.eq.s32.totalorder %s22, 1
    %p108 = por %p106, %p107
    %p110 = scmp.ne.s32.totalorder %s95, %s109
    %p111 = scmp.eq.s32.totalorder %s22, 0
    %p112 = por %p110, %p111
    %s114 = sadd.s32 %s113, 1
    %p117 = scmp.eq.s32.totalorder %s16, 1
    %p118 = scmp.ne.s32.totalorder %s113, %s115
    %p119 = scmp.eq.s32.totalorder %s16, 0
    %p120 = por %p118, %p119
    %p121 = scmp.ne.s32.totalorder %s113, %s115
    %p122 = scmp.eq.s32.totalorder %s21, 1
    %p123 = por %p121, %p122
    %p124 = scmp.ne.s32.totalorder %s115, %s116
    %p125 = scmp.eq.s32.totalorder %s21, 0
    %p126 = por %p124, %p125
    %p127 = scmp.ne.s32.totalorder %s115, %s116
    %p128 = scmp.eq.s32.totalorder %s22, 1
    %p129 = por %p127, %p128
    %p131 = scmp.ne.s32.totalorder %s116, %s130
    %p132 = scmp.eq.s32.totalorder %s22, 0
    %p133 = por %p131, %p132
    %s135 = sadd.s32 %s134, 1
    %p138 = scmp.eq.s32.totalorder %s16, 1
    %p139 = scmp.ne.s32.totalorder %s134, %s136
    %p140 = scmp.eq.s32.totalorder %s16, 0
    %p141 = por %p139, %p140
    %p142 = scmp.ne.s32.totalorder %s134, %s136
    %p143 = scmp.eq.s32.totalorder %s21, 1
    %p144 = por %p142, %p143
    %p145 = scmp.ne.s32.totalorder %s136, %s137
    %p146 = scmp.eq.s32.totalorder %s21, 0
    %p147 = por %p145, %p146
    %p148 = scmp.ne.s32.totalorder %s136, %s137
    %p149 = scmp.eq.s32.totalorder %s22, 1
    %p150 = por %p148, %p149
    %p152 = scmp.ne.s32.totalorder %s137, %s151
    %p153 = scmp.eq.s32.totalorder %s22, 0
    %p154 = por %p152, %p153
    %s156 = sadd.s32 %s155, 1
    %p159 = scmp.eq.s32.totalorder %s16, 1
    %p160 = scmp.ne.s32.totalorder %s155, %s157
    %p161 = scmp.eq.s32.totalorder %s16, 0
    %p162 = por %p160, %p161
    %p163 = scmp.ne.s32.totalorder %s155, %s157
    %p164 = scmp.eq.s32.totalorder %s21, 1
    %p165 = por %p163, %p164
    %p166 = scmp.ne.s32.totalorder %s157, %s158
    %p167 = scmp.eq.s32.totalorder %s21, 0
    %p168 = por %p166, %p167
    %p169 = scmp.ne.s32.totalorder %s157, %s158
    %p170 = scmp.eq.s32.totalorder %s22, 1
    %p171 = por %p169, %p170
    %p173 = scmp.ne.s32.totalorder %s158, %s172
    %p174 = scmp.eq.s32.totalorder %s22, 0
    %p175 = por %p173, %p174
    %s177 = sadd.s32 %s176, 1
    %p180 = scmp.eq.s32.totalorder %s16, 1
    %p181 = scmp.ne.s32.totalorder %s176, %s178
    %p182 = scmp.eq.s32.totalorder %s16, 0
    %p183 = por %p181, %p182
    %p184 = scmp.ne.s32.totalorder %s176, %s178
    %p185 = scmp.eq.s32.totalorder %s21, 1
    %p186 = por %p184, %p185
    %p187 = scmp.ne.s32.totalorder %s178, %s179
    %p188 = scmp.eq.s32.totalorder %s21, 0
    %p189 = por %p187, %p188
    %p190 = scmp.ne.s32.totalorder %s178, %s179
    %p191 = scmp.eq.s32.totalorder %s22, 1
    %p192 = por %p190, %p191
    %p194 = scmp.ne.s32.totalorder %s179, %s193
    %p195 = scmp.eq.s32.totalorder %s22, 0
    %p196 = por %p194, %p195
    %s198 = sadd.s32 %s197, 1
    %p201 = scmp.eq.s32.totalorder %s16, 1
    %p202 = scmp.ne.s32.totalorder %s197, %s199
    %p203 = scmp.eq.s32.totalorder %s16, 0
    %p204 = por %p202, %p203
    %p205 = scmp.ne.s32.totalorder %s197, %s199
    %p206 = scmp.eq.s32.totalorder %s21, 1
    %p207 = por %p205, %p206
    %p208 = scmp.ne.s32.totalorder %s199, %s200
    %p209 = scmp.eq.s32.totalorder %s21, 0
    %p210 = por %p208, %p209
    %p211 = scmp.ne.s32.totalorder %s199, %s200
    %p212 = scmp.eq.s32.totalorder %s22, 1
    %p213 = por %p211, %p212
    %p215 = scmp.ne.s32.totalorder %s200, %s214
    %p216 = scmp.eq.s32.totalorder %s22, 0
    %p217 = por %p215, %p216
    %s219 = sadd.s32 %s218, 1
    %p222 = scmp.eq.s32.totalorder %s16, 1
    %p223 = scmp.ne.s32.totalorder %s218, %s220
    %p224 = scmp.eq.s32.totalorder %s16, 0
    %p225 = por %p223, %p224
    %p226 = scmp.ne.s32.totalorder %s218, %s220
    %p227 = scmp.eq.s32.totalorder %s21, 1
    %p228 = por %p226, %p227
    %p229 = scmp.ne.s32.totalorder %s220, %s221
    %p230 = scmp.eq.s32.totalorder %s21, 0
    %p231 = por %p229, %p230
    %p232 = scmp.ne.s32.totalorder %s220, %s221
    %p233 = scmp.eq.s32.totalorder %s22, 1
    %p234 = por %p232, %p233
    %p236 = scmp.ne.s32.totalorder %s221, %s235
    %p237 = scmp.eq.s32.totalorder %s22, 0
    %p238 = por %p236, %p237
    %s239 = ssub.s32 %s16, %s23
    %p240 = scmp.eq.s32.totalorder %s239, 0
    %s242 = sadd.s32 %s241, 1
    %s243 = scalar_select %p240, %s241, %s242
    %p246 = pneg %p240
    %p247 = scmp.eq.s32.totalorder %s16, 1
    %p248 = por %p246, %p247
    %p249 = scmp.ne.s32.totalorder %s241, %s244
    %p250 = scmp.eq.s32.totalorder %s16, 0
    %p251 = por %p249, %p250
    %p252 = scmp.ne.s32.totalorder %s241, %s244
    %p253 = scmp.eq.s32.totalorder %s21, 1
    %p254 = por %p252, %p253
    %p255 = scmp.ne.s32.totalorder %s244, %s245
    %p256 = scmp.eq.s32.totalorder %s21, 0
    %p257 = por %p255, %p256
    %p258 = scmp.ne.s32.totalorder %s244, %s245
    %p259 = scmp.eq.s32.totalorder %s22, 1
    %p260 = por %p258, %p259
    %p262 = scmp.ne.s32.totalorder %s245, %s261
    %p263 = scmp.eq.s32.totalorder %s22, 0
    %p264 = por %p262, %p263
    %p265 = scmp.le.s32.totalorder 1, %s16
    %p266 = scmp.lt.s32.totalorder %s16, 3
    %p267 = pnand %p265, %p266
    %p268 = pneg %p267
    // Predicated region
    $region9: #{_lambda_.2} parent=5 // pred_check
      _
    $region10: #{_lambda_.2} parent=5 // pred_check_branch
      %270 = sbr.rel (%p267) target = $region12
    $region11: #{_lambda_.2} parent=5 // pred_region
      %s271 = ssub.s32 %s16, 1
      // Predicated region
      $region13: #{_lambda_.2} parent=11 // pred_check
        %p272 = pneg %p63
      $region14: #{_lambda_.2} parent=11 // pred_check_branch
        %274 = sbr.rel (%p272) target = $region16
      $region15: #{_lambda_.2} parent=11 // pred_region
        _
      $region16: #{_lambda_.2} parent=11 // pred_fallthru
        _
      // Predicated region
      $region17: #{_lambda_.2} parent=11 // pred_check
        %p275 = pneg %p84
      $region18: #{_lambda_.2} parent=11 // pred_check_branch
        %277 = sbr.rel (%p275) target = $region20
      $region19: #{_lambda_.2} parent=11 // pred_region
        _
      $region20: #{_lambda_.2} parent=11 // pred_fallthru
        _
      // Predicated region
      $region21: #{_lambda_.2} parent=11 // pred_check
        %p278 = pneg %p105
      $region22: #{_lambda_.2} parent=11 // pred_check_branch
        %280 = sbr.rel (%p278) target = $region24
      $region23: #{_lambda_.2} parent=11 // pred_region
        _
      $region24: #{_lambda_.2} parent=11 // pred_fallthru
        _
      // Predicated region
      $region25: #{_lambda_.2} parent=11 // pred_check
        %p281 = pneg %p126
      $region26: #{_lambda_.2} parent=11 // pred_check_branch
        %283 = sbr.rel (%p281) target = $region28
      $region27: #{_lambda_.2} parent=11 // pred_region
        _
      $region28: #{_lambda_.2} parent=11 // pred_fallthru
        _
      // Predicated region
      $region29: #{_lambda_.2} parent=11 // pred_check
        %p284 = pneg %p147
      $region30: #{_lambda_.2} parent=11 // pred_check_branch
        %286 = sbr.rel (%p284) target = $region32
      $region31: #{_lambda_.2} parent=11 // pred_region
        _
      $region32: #{_lambda_.2} parent=11 // pred_fallthru
        _
      // Predicated region
      $region33: #{_lambda_.2} parent=11 // pred_check
        %p287 = pneg %p168
      $region34: #{_lambda_.2} parent=11 // pred_check_branch
        %289 = sbr.rel (%p287) target = $region36
      $region35: #{_lambda_.2} parent=11 // pred_region
        _
      $region36: #{_lambda_.2} parent=11 // pred_fallthru
        _
      // Predicated region
      $region37: #{_lambda_.2} parent=11 // pred_check
        %p290 = pneg %p189
      $region38: #{_lambda_.2} parent=11 // pred_check_branch
        %292 = sbr.rel (%p290) target = $region40
      $region39: #{_lambda_.2} parent=11 // pred_region
        _
      $region40: #{_lambda_.2} parent=11 // pred_fallthru
        _
      // Predicated region
      $region41: #{_lambda_.2} parent=11 // pred_check
        %p293 = pneg %p210
      $region42: #{_lambda_.2} parent=11 // pred_check_branch
        %295 = sbr.rel (%p293) target = $region44
      $region43: #{_lambda_.2} parent=11 // pred_region
        _
      $region44: #{_lambda_.2} parent=11 // pred_fallthru
        _
      // Predicated region
      $region45: #{_lambda_.2} parent=11 // pred_check
        %p296 = pneg %p231
      $region46: #{_lambda_.2} parent=11 // pred_check_branch
        %298 = sbr.rel (%p296) target = $region48
      $region47: #{_lambda_.2} parent=11 // pred_region
        _
      $region48: #{_lambda_.2} parent=11 // pred_fallthru
        _
    $region12: #{_lambda_.2} parent=5 // pred_fallthru
      _
    %p299 = scmp.lt.s32.totalorder %s16, 2
    // Predicated region
    $region49: #{_lambda_.2} parent=5 // pred_check
      %p300 = pneg %p299
    $region50: #{_lambda_.2} parent=5 // pred_check_branch
      %302 = sbr.rel (%p300) target = $region52
    $region51: #{_lambda_.2} parent=5 // pred_region
      // Predicated region
      $region53: #{_lambda_.2} parent=51 // pred_check
        %p303 = pneg %p36
      $region54: #{_lambda_.2} parent=51 // pred_check_branch
        %305 = sbr.rel (%p303) target = $region56
      $region55: #{_lambda_.2} parent=51 // pred_region
        %s306 = smul.u32 16, %s16
        %p307 = scmp.lt.s32.totalorder %s306, 31
        %s308 = scalar_select %p307, %s306, 31
        %s309 = smul.addr %s308, 8
        %s310 = scalar_lea.vmem %s0, %s309
        %s311 = smul.u32 16, %s16
      $region56: #{_lambda_.2} parent=51 // pred_fallthru
        _
    $region52: #{_lambda_.2} parent=5 // pred_fallthru
      _
    %p312 = scmp.le.s32.totalorder 1, %s16
    %p313 = scmp.lt.s32.totalorder %s16, 3
    %p314 = pnand %p312, %p313
    %p315 = pneg %p314
    // Predicated region
    $region57: #{_lambda_.2} parent=5 // pred_check
      _
    $region58: #{_lambda_.2} parent=5 // pred_check_branch
      %317 = sbr.rel (%p314) target = $region60
    $region59: #{_lambda_.2} parent=5 // pred_region
      %s318 = ssub.s32 %s16, 1
      %s319 = smul.u32 16, %s21
      %p320 = scmp.lt.s32.totalorder %s319, 31
      %s321 = scalar_select %p320, %s319, 31
      %s322 = smul.addr %s321, 8
      %s323 = scalar_lea.vmem %s0, %s322
      %p324 = pneg %p42
      %p325 = pneg %p39
      %p326 = pneg %p63
      %p327 = pneg %p60
      %p328 = pneg %p84
      %p329 = pneg %p81
      %p330 = pneg %p105
      %p331 = pneg %p102
      %p332 = pneg %p126
      %p333 = pneg %p123
      %p334 = pneg %p147
      %p335 = pneg %p144
      %p336 = pneg %p168
      %p337 = pneg %p165
      %p338 = pneg %p189
      %p339 = pneg %p186
      %p340 = pneg %p210
      %p341 = pneg %p207
      %p342 = pneg %p231
      %p343 = pneg %p228
      %p344 = pneg %p257
      %p345 = pneg %p254
      %s346 = smul.u32 2, %s21
      %p347 = scmp.lt.s32.totalorder %s346, 3
      %s348 = scalar_select %p347, %s346, 3
      %s349 = smul.addr %s348, 8
      %s350 = scalar_lea.vmem %s10, %s349
      %s351 = smul.u32 16, %s21
      %p352 = scmp.lt.s32.totalorder %s351, 31
      %s353 = scalar_select %p352, %s351, 31
      %s354 = smul.addr %s353, 8
      %s355 = scalar_lea.vmem %s0, %s354
      %s356 = smul.u32 16, %s21
      %s357 = smul.u32 2, %s21
      %p358 = scmp.lt.s32.totalorder %s357, 3
      %s359 = scalar_select %p358, %s357, 3
      %s360 = smul.addr %s359, 8
      %s361 = scalar_lea.vmem %s10, %s360
      %s362 = smul.u32 2, %s21
      %v363 = vld [vmem:[%s355] sm:$0xff]
      %v364 = vld [vmem:[%s355 + $0x8] sm:$0xff]
      %v365 = vld [vmem:[%s355 + $0x10] sm:$0xff]
      %v366 = vld [vmem:[%s355 + $0x18] sm:$0xff]
      %v367 = vld [vmem:[%s355 + $0x20] sm:$0xff]
      %v368 = vld [vmem:[%s355 + $0x28] sm:$0xff]
      %v369 = vld [vmem:[%s355 + $0x30] sm:$0xff]
      %v370 = vld [vmem:[%s355 + $0x38] sm:$0xff]
      %v371 = vld [vmem:[%s355 + $0x40] sm:$0xff]
      %v372 = vld [vmem:[%s355 + $0x48] sm:$0xff]
      %v373 = vld [vmem:[%s355 + $0x50] sm:$0xff]
      %v374 = vld [vmem:[%s355 + $0x58] sm:$0xff]
      %v375 = vld [vmem:[%s355 + $0x60] sm:$0xff]
      %v376 = vld [vmem:[%s355 + $0x68] sm:$0xff]
      %v377 = vld [vmem:[%s355 + $0x70] sm:$0xff]
      %v378 = vld [vmem:[%s355 + $0x78] sm:$0xff]
      %v379 = vld [vmem:[%s1] sm:$0xff]
      %v380 = vld [vmem:[%s1 + $0x8] sm:$0xff]
      %v381 = vld [vmem:[%s1 + $0x10] sm:$0xff]
      %v382 = vld [vmem:[%s1 + $0x18] sm:$0xff]
      %v383 = vld [vmem:[%s2] sm:$0x1]
      %v385 = vperm.slane %v383, 0
      %vm387 = vcmask 261120
      %v389 = vsel %vm387, %v363, 0
      %v392 = vsel %vm387, %v364, 0
      %v395 = vsel %vm387, %v365, 0
      %v398 = vsel %vm387, %v366, 0
      %v401 = vsel %vm387, %v367, 0
      %v404 = vsel %vm387, %v368, 0
      %v407 = vsel %vm387, %v369, 0
      %v410 = vsel %vm387, %v370, 0
      %v413 = vsel %vm387, %v371, 0
      %v416 = vsel %vm387, %v372, 0
      %v419 = vsel %vm387, %v373, 0
      %v422 = vsel %vm387, %v374, 0
      %v425 = vsel %vm387, %v375, 0
      %v428 = vsel %vm387, %v376, 0
      %v431 = vsel %vm387, %v377, 0
      %v434 = vsel %vm387, %v378, 0
      %436 = vmatpush.msra.mxu0 0.0
      %437 = vmatpush.msra.mxu0 0.0
      %438 = vmatpush.msra.mxu0 0.0
      %439 = vmatpush.msra.mxu0 0.0
      %440 = vmatpush.msra.mxu0 0.0
      %441 = vmatpush.msra.mxu0 0.0
      %442 = vmatpush.msra.mxu0 0.0
      %443 = vmatpush.msra.mxu0 0.0
      %444 = vmatpush.msra.mxu0 0.0
      %445 = vmatpush.msra.mxu0 0.0
      %446 = vmatpush.msra.mxu0 0.0
      %447 = vmatpush.msra.mxu0 0.0
      %448 = vmatpush.msra.mxu0 %v382
      %449 = vmatpush.msra.mxu0 %v381
      %450 = vmatpush.msra.mxu0 %v380
      %451 = vmatpush.msra.mxu0 %v379
      %452 = vmatmul.f32.gmra.mxu0 %v389
      %v453 = vpop.f32.mrf.mxu0
      %v454 = vadd.f32 %v385, %v453
      %455 = vmatmul.f32.gmra.mxu0 %v392
      %v456 = vpop.f32.mrf.mxu0
      %v457 = vadd.f32 %v385, %v456
      %458 = vmatmul.f32.gmra.mxu0 %v395
      %v459 = vpop.f32.mrf.mxu0
      %v460 = vadd.f32 %v385, %v459
      %461 = vmatmul.f32.gmra.mxu0 %v398
      %v462 = vpop.f32.mrf.mxu0
      %v463 = vadd.f32 %v385, %v462
      %464 = vmatmul.f32.gmra.mxu0 %v401
      %v465 = vpop.f32.mrf.mxu0
      %v466 = vadd.f32 %v385, %v465
      %467 = vmatmul.f32.gmra.mxu0 %v404
      %v468 = vpop.f32.mrf.mxu0
      %v469 = vadd.f32 %v385, %v468
      %470 = vmatmul.f32.gmra.mxu0 %v407
      %v471 = vpop.f32.mrf.mxu0
      %v472 = vadd.f32 %v385, %v471
      %473 = vmatmul.f32.gmra.mxu0 %v410
      %v474 = vpop.f32.mrf.mxu0
      %v475 = vadd.f32 %v385, %v474
      %476 = vmatmul.f32.gmra.mxu0 %v413
      %v477 = vpop.f32.mrf.mxu0
      %v478 = vadd.f32 %v385, %v477
      %479 = vmatmul.f32.gmra.mxu0 %v416
      %v480 = vpop.f32.mrf.mxu0
      %v481 = vadd.f32 %v385, %v480
      %482 = vmatmul.f32.gmra.mxu0 %v419
      %v483 = vpop.f32.mrf.mxu0
      %v484 = vadd.f32 %v385, %v483
      %485 = vmatmul.f32.gmra.mxu0 %v422
      %v486 = vpop.f32.mrf.mxu0
      %v487 = vadd.f32 %v385, %v486
      %488 = vmatmul.f32.gmra.mxu0 %v425
      %v489 = vpop.f32.mrf.mxu0
      %v490 = vadd.f32 %v385, %v489
      %491 = vmatmul.f32.gmra.mxu0 %v428
      %v492 = vpop.f32.mrf.mxu0
      %v493 = vadd.f32 %v385, %v492
      %494 = vmatmul.f32.gmra.mxu0 %v431
      %v495 = vpop.f32.mrf.mxu0
      %v496 = vadd.f32 %v385, %v495
      %497 = vmatmul.f32.gmra.mxu0 %v434
      %v498 = vpop.f32.mrf.mxu0
      %v499 = vadd.f32 %v385, %v498
      %500 = vdwg.mxu0
      %502 = vrot.lane.b32.xlu0 %v454, 96
      %v503 = vpop.permute.xlu0 %502
      %vm504 = vcmask 64512
      %v505 = vsel %vm504, %v454, 0
      %v507 = vsel %vm504, %v503, 0
      %509 = vmatpush.xpose.msra.mxu0 0.0
      %510 = vmatpush.xpose.msra.mxu0 0.0
      %511 = vmatpush.xpose.msra.mxu0 0.0
      %512 = vmatpush.xpose.msra.mxu0 0.0
      %513 = vmatpush.xpose.msra.mxu0 0.0
      %514 = vmatpush.xpose.msra.mxu0 0.0
      %515 = vmatpush.xpose.msra.mxu0 0.0
      %516 = vmatpush.xpose.msra.mxu0 0.0
      %517 = vmatpush.xpose.msra.mxu0 0.0
      %518 = vmatpush.xpose.msra.mxu0 0.0
      %519 = vmatpush.xpose.msra.mxu0 0.0
      %520 = vmatpush.xpose.msra.mxu0 0.0
      %521 = vmatpush.xpose.msra.mxu0 0.0
      %522 = vmatpush.xpose.msra.mxu0 0.0
      %523 = vmatpush.xpose.msra.mxu0 0.0
      %524 = vmatpush.xpose.msra.mxu0 %v507
      %525 = vmatmul.f32.gmra.mxu0 %v505
      %v526 = vpop.f32.mrf.mxu0
      %v527 = vadd.f32 0.0, %v526
      %528 = vdwg.mxu0
      %530 = vrot.lane.b32.xlu0 %v457, 96
      %v531 = vpop.permute.xlu0 %530
      %v532 = vsel %vm504, %v457, 0
      %v534 = vsel %vm504, %v531, 0
      %536 = vmatpush.xpose.msra.mxu0 0.0
      %537 = vmatpush.xpose.msra.mxu0 0.0
      %538 = vmatpush.xpose.msra.mxu0 0.0
      %539 = vmatpush.xpose.msra.mxu0 0.0
      %540 = vmatpush.xpose.msra.mxu0 0.0
      %541 = vmatpush.xpose.msra.mxu0 0.0
      %542 = vmatpush.xpose.msra.mxu0 0.0
      %543 = vmatpush.xpose.msra.mxu0 0.0
      %544 = vmatpush.xpose.msra.mxu0 0.0
      %545 = vmatpush.xpose.msra.mxu0 0.0
      %546 = vmatpush.xpose.msra.mxu0 0.0
      %547 = vmatpush.xpose.msra.mxu0 0.0
      %548 = vmatpush.xpose.msra.mxu0 0.0
      %549 = vmatpush.xpose.msra.mxu0 0.0
      %550 = vmatpush.xpose.msra.mxu0 0.0
      %551 = vmatpush.xpose.msra.mxu0 %v534
      %552 = vmatmul.f32.gmra.mxu0 %v532
      %v553 = vpop.f32.mrf.mxu0
      %v554 = vadd.f32 0.0, %v553
      %555 = vdwg.mxu0
      %557 = vrot.lane.b32.xlu0 %v460, 96
      %v558 = vpop.permute.xlu0 %557
      %v559 = vsel %vm504, %v460, 0
      %v561 = vsel %vm504, %v558, 0
      %563 = vmatpush.xpose.msra.mxu0 0.0
      %564 = vmatpush.xpose.msra.mxu0 0.0
      %565 = vmatpush.xpose.msra.mxu0 0.0
      %566 = vmatpush.xpose.msra.mxu0 0.0
      %567 = vmatpush.xpose.msra.mxu0 0.0
      %568 = vmatpush.xpose.msra.mxu0 0.0
      %569 = vmatpush.xpose.msra.mxu0 0.0
      %570 = vmatpush.xpose.msra.mxu0 0.0
      %571 = vmatpush.xpose.msra.mxu0 0.0
      %572 = vmatpush.xpose.msra.mxu0 0.0
      %573 = vmatpush.xpose.msra.mxu0 0.0
      %574 = vmatpush.xpose.msra.mxu0 0.0
      %575 = vmatpush.xpose.msra.mxu0 0.0
      %576 = vmatpush.xpose.msra.mxu0 0.0
      %577 = vmatpush.xpose.msra.mxu0 0.0
      %578 = vmatpush.xpose.msra.mxu0 %v561
      %579 = vmatmul.f32.gmra.mxu0 %v559
      %v580 = vpop.f32.mrf.mxu0
      %v581 = vadd.f32 0.0, %v580
      %582 = vdwg.mxu0
      %584 = vrot.lane.b32.xlu0 %v463, 96
      %v585 = vpop.permute.xlu0 %584
      %v586 = vsel %vm504, %v463, 0
      %v588 = vsel %vm504, %v585, 0
      %590 = vmatpush.xpose.msra.mxu0 0.0
      %591 = vmatpush.xpose.msra.mxu0 0.0
      %592 = vmatpush.xpose.msra.mxu0 0.0
      %593 = vmatpush.xpose.msra.mxu0 0.0
      %594 = vmatpush.xpose.msra.mxu0 0.0
      %595 = vmatpush.xpose.msra.mxu0 0.0
      %596 = vmatpush.xpose.msra.mxu0 0.0
      %597 = vmatpush.xpose.msra.mxu0 0.0
      %598 = vmatpush.xpose.msra.mxu0 0.0
      %599 = vmatpush.xpose.msra.mxu0 0.0
      %600 = vmatpush.xpose.msra.mxu0 0.0
      %601 = vmatpush.xpose.msra.mxu0 0.0
      %602 = vmatpush.xpose.msra.mxu0 0.0
      %603 = vmatpush.xpose.msra.mxu0 0.0
      %604 = vmatpush.xpose.msra.mxu0 0.0
      %605 = vmatpush.xpose.msra.mxu0 %v588
      %606 = vmatmul.f32.gmra.mxu0 %v586
      %v607 = vpop.f32.mrf.mxu0
      %v608 = vadd.f32 0.0, %v607
      %609 = vdwg.mxu0
      %611 = vrot.lane.b32.xlu0 %v466, 96
      %v612 = vpop.permute.xlu0 %611
      %v613 = vsel %vm504, %v466, 0
      %v615 = vsel %vm504, %v612, 0
      %617 = vmatpush.xpose.msra.mxu0 0.0
      %618 = vmatpush.xpose.msra.mxu0 0.0
      %619 = vmatpush.xpose.msra.mxu0 0.0
      %620 = vmatpush.xpose.msra.mxu0 0.0
      %621 = vmatpush.xpose.msra.mxu0 0.0
      %622 = vmatpush.xpose.msra.mxu0 0.0
      %623 = vmatpush.xpose.msra.mxu0 0.0
      %624 = vmatpush.xpose.msra.mxu0 0.0
      %625 = vmatpush.xpose.msra.mxu0 0.0
      %626 = vmatpush.xpose.msra.mxu0 0.0
      %627 = vmatpush.xpose.msra.mxu0 0.0
      %628 = vmatpush.xpose.msra.mxu0 0.0
      %629 = vmatpush.xpose.msra.mxu0 0.0
      %630 = vmatpush.xpose.msra.mxu0 0.0
      %631 = vmatpush.xpose.msra.mxu0 0.0
      %632 = vmatpush.xpose.msra.mxu0 %v615
      %633 = vmatmul.f32.gmra.mxu0 %v613
      %v634 = vpop.f32.mrf.mxu0
      %v635 = vadd.f32 0.0, %v634
      %636 = vdwg.mxu0
      %638 = vrot.lane.b32.xlu0 %v469, 96
      %v639 = vpop.permute.xlu0 %638
      %v640 = vsel %vm504, %v469, 0
      %v642 = vsel %vm504, %v639, 0
      %644 = vmatpush.xpose.msra.mxu0 0.0
      %645 = vmatpush.xpose.msra.mxu0 0.0
      %646 = vmatpush.xpose.msra.mxu0 0.0
      %647 = vmatpush.xpose.msra.mxu0 0.0
      %648 = vmatpush.xpose.msra.mxu0 0.0
      %649 = vmatpush.xpose.msra.mxu0 0.0
      %650 = vmatpush.xpose.msra.mxu0 0.0
      %651 = vmatpush.xpose.msra.mxu0 0.0
      %652 = vmatpush.xpose.msra.mxu0 0.0
      %653 = vmatpush.xpose.msra.mxu0 0.0
      %654 = vmatpush.xpose.msra.mxu0 0.0
      %655 = vmatpush.xpose.msra.mxu0 0.0
      %656 = vmatpush.xpose.msra.mxu0 0.0
      %657 = vmatpush.xpose.msra.mxu0 0.0
      %658 = vmatpush.xpose.msra.mxu0 0.0
      %659 = vmatpush.xpose.msra.mxu0 %v642
      %660 = vmatmul.f32.gmra.mxu0 %v640
      %v661 = vpop.f32.mrf.mxu0
      %v662 = vadd.f32 0.0, %v661
      %663 = vdwg.mxu0
      %665 = vrot.lane.b32.xlu0 %v472, 96
      %v666 = vpop.permute.xlu0 %665
      %v667 = vsel %vm504, %v472, 0
      %v669 = vsel %vm504, %v666, 0
      %671 = vmatpush.xpose.msra.mxu0 0.0
      %672 = vmatpush.xpose.msra.mxu0 0.0
      %673 = vmatpush.xpose.msra.mxu0 0.0
      %674 = vmatpush.xpose.msra.mxu0 0.0
      %675 = vmatpush.xpose.msra.mxu0 0.0
      %676 = vmatpush.xpose.msra.mxu0 0.0
      %677 = vmatpush.xpose.msra.mxu0 0.0
      %678 = vmatpush.xpose.msra.mxu0 0.0
      %679 = vmatpush.xpose.msra.mxu0 0.0
      %680 = vmatpush.xpose.msra.mxu0 0.0
      %681 = vmatpush.xpose.msra.mxu0 0.0
      %682 = vmatpush.xpose.msra.mxu0 0.0
      %683 = vmatpush.xpose.msra.mxu0 0.0
      %684 = vmatpush.xpose.msra.mxu0 0.0
      %685 = vmatpush.xpose.msra.mxu0 0.0
      %686 = vmatpush.xpose.msra.mxu0 %v669
      %687 = vmatmul.f32.gmra.mxu0 %v667
      %v688 = vpop.f32.mrf.mxu0
      %v689 = vadd.f32 0.0, %v688
      %690 = vdwg.mxu0
      %692 = vrot.lane.b32.xlu0 %v475, 96
      %v693 = vpop.permute.xlu0 %692
      %v694 = vsel %vm504, %v475, 0
      %v696 = vsel %vm504, %v693, 0
      %698 = vmatpush.xpose.msra.mxu0 0.0
      %699 = vmatpush.xpose.msra.mxu0 0.0
      %700 = vmatpush.xpose.msra.mxu0 0.0
      %701 = vmatpush.xpose.msra.mxu0 0.0
      %702 = vmatpush.xpose.msra.mxu0 0.0
      %703 = vmatpush.xpose.msra.mxu0 0.0
      %704 = vmatpush.xpose.msra.mxu0 0.0
      %705 = vmatpush.xpose.msra.mxu0 0.0
      %706 = vmatpush.xpose.msra.mxu0 0.0
      %707 = vmatpush.xpose.msra.mxu0 0.0
      %708 = vmatpush.xpose.msra.mxu0 0.0
      %709 = vmatpush.xpose.msra.mxu0 0.0
      %710 = vmatpush.xpose.msra.mxu0 0.0
      %711 = vmatpush.xpose.msra.mxu0 0.0
      %712 = vmatpush.xpose.msra.mxu0 0.0
      %713 = vmatpush.xpose.msra.mxu0 %v696
      %714 = vmatmul.f32.gmra.mxu0 %v694
      %v715 = vpop.f32.mrf.mxu0
      %v716 = vadd.f32 0.0, %v715
      %717 = vdwg.mxu0
      %719 = vrot.lane.b32.xlu0 %v478, 96
      %v720 = vpop.permute.xlu0 %719
      %v721 = vsel %vm504, %v478, 0
      %v723 = vsel %vm504, %v720, 0
      %725 = vmatpush.xpose.msra.mxu0 0.0
      %726 = vmatpush.xpose.msra.mxu0 0.0
      %727 = vmatpush.xpose.msra.mxu0 0.0
      %728 = vmatpush.xpose.msra.mxu0 0.0
      %729 = vmatpush.xpose.msra.mxu0 0.0
      %730 = vmatpush.xpose.msra.mxu0 0.0
      %731 = vmatpush.xpose.msra.mxu0 0.0
      %732 = vmatpush.xpose.msra.mxu0 0.0
      %733 = vmatpush.xpose.msra.mxu0 0.0
      %734 = vmatpush.xpose.msra.mxu0 0.0
      %735 = vmatpush.xpose.msra.mxu0 0.0
      %736 = vmatpush.xpose.msra.mxu0 0.0
      %737 = vmatpush.xpose.msra.mxu0 0.0
      %738 = vmatpush.xpose.msra.mxu0 0.0
      %739 = vmatpush.xpose.msra.mxu0 0.0
      %740 = vmatpush.xpose.msra.mxu0 %v723
      %741 = vmatmul.f32.gmra.mxu0 %v721
      %v742 = vpop.f32.mrf.mxu0
      %v743 = vadd.f32 0.0, %v742
      %744 = vdwg.mxu0
      %746 = vrot.lane.b32.xlu0 %v481, 96
      %v747 = vpop.permute.xlu0 %746
      %v748 = vsel %vm504, %v481, 0
      %v750 = vsel %vm504, %v747, 0
      %752 = vmatpush.xpose.msra.mxu0 0.0
      %753 = vmatpush.xpose.msra.mxu0 0.0
      %754 = vmatpush.xpose.msra.mxu0 0.0
      %755 = vmatpush.xpose.msra.mxu0 0.0
      %756 = vmatpush.xpose.msra.mxu0 0.0
      %757 = vmatpush.xpose.msra.mxu0 0.0
      %758 = vmatpush.xpose.msra.mxu0 0.0
      %759 = vmatpush.xpose.msra.mxu0 0.0
      %760 = vmatpush.xpose.msra.mxu0 0.0
      %761 = vmatpush.xpose.msra.mxu0 0.0
      %762 = vmatpush.xpose.msra.mxu0 0.0
      %763 = vmatpush.xpose.msra.mxu0 0.0
      %764 = vmatpush.xpose.msra.mxu0 0.0
      %765 = vmatpush.xpose.msra.mxu0 0.0
      %766 = vmatpush.xpose.msra.mxu0 0.0
      %767 = vmatpush.xpose.msra.mxu0 %v750
      %768 = vmatmul.f32.gmra.mxu0 %v748
      %v769 = vpop.f32.mrf.mxu0
      %v770 = vadd.f32 0.0, %v769
      %771 = vdwg.mxu0
      %773 = vrot.lane.b32.xlu0 %v484, 96
      %v774 = vpop.permute.xlu0 %773
      %v775 = vsel %vm504, %v484, 0
      %v777 = vsel %vm504, %v774, 0
      %779 = vmatpush.xpose.msra.mxu0 0.0
      %780 = vmatpush.xpose.msra.mxu0 0.0
      %781 = vmatpush.xpose.msra.mxu0 0.0
      %782 = vmatpush.xpose.msra.mxu0 0.0
      %783 = vmatpush.xpose.msra.mxu0 0.0
      %784 = vmatpush.xpose.msra.mxu0 0.0
      %785 = vmatpush.xpose.msra.mxu0 0.0
      %786 = vmatpush.xpose.msra.mxu0 0.0
      %787 = vmatpush.xpose.msra.mxu0 0.0
      %788 = vmatpush.xpose.msra.mxu0 0.0
      %789 = vmatpush.xpose.msra.mxu0 0.0
      %790 = vmatpush.xpose.msra.mxu0 0.0
      %791 = vmatpush.xpose.msra.mxu0 0.0
      %792 = vmatpush.xpose.msra.mxu0 0.0
      %793 = vmatpush.xpose.msra.mxu0 0.0
      %794 = vmatpush.xpose.msra.mxu0 %v777
      %795 = vmatmul.f32.gmra.mxu0 %v775
      %v796 = vpop.f32.mrf.mxu0
      %v797 = vadd.f32 0.0, %v796
      %798 = vdwg.mxu0
      %800 = vrot.lane.b32.xlu0 %v487, 96
      %v801 = vpop.permute.xlu0 %800
      %v802 = vsel %vm504, %v487, 0
      %v804 = vsel %vm504, %v801, 0
      %806 = vmatpush.xpose.msra.mxu0 0.0
      %807 = vmatpush.xpose.msra.mxu0 0.0
      %808 = vmatpush.xpose.msra.mxu0 0.0
      %809 = vmatpush.xpose.msra.mxu0 0.0
      %810 = vmatpush.xpose.msra.mxu0 0.0
      %811 = vmatpush.xpose.msra.mxu0 0.0
      %812 = vmatpush.xpose.msra.mxu0 0.0
      %813 = vmatpush.xpose.msra.mxu0 0.0
      %814 = vmatpush.xpose.msra.mxu0 0.0
      %815 = vmatpush.xpose.msra.mxu0 0.0
      %816 = vmatpush.xpose.msra.mxu0 0.0
      %817 = vmatpush.xpose.msra.mxu0 0.0
      %818 = vmatpush.xpose.msra.mxu0 0.0
      %819 = vmatpush.xpose.msra.mxu0 0.0
      %820 = vmatpush.xpose.msra.mxu0 0.0
      %821 = vmatpush.xpose.msra.mxu0 %v804
      %822 = vmatmul.f32.gmra.mxu0 %v802
      %v823 = vpop.f32.mrf.mxu0
      %v824 = vadd.f32 0.0, %v823
      %825 = vdwg.mxu0
      %827 = vrot.lane.b32.xlu0 %v490, 96
      %v828 = vpop.permute.xlu0 %827
      %v829 = vsel %vm504, %v490, 0
      %v831 = vsel %vm504, %v828, 0
      %833 = vmatpush.xpose.msra.mxu0 0.0
      %834 = vmatpush.xpose.msra.mxu0 0.0
      %835 = vmatpush.xpose.msra.mxu0 0.0
      %836 = vmatpush.xpose.msra.mxu0 0.0
      %837 = vmatpush.xpose.msra.mxu0 0.0
      %838 = vmatpush.xpose.msra.mxu0 0.0
      %839 = vmatpush.xpose.msra.mxu0 0.0
      %840 = vmatpush.xpose.msra.mxu0 0.0
      %841 = vmatpush.xpose.msra.mxu0 0.0
      %842 = vmatpush.xpose.msra.mxu0 0.0
      %843 = vmatpush.xpose.msra.mxu0 0.0
      %844 = vmatpush.xpose.msra.mxu0 0.0
      %845 = vmatpush.xpose.msra.mxu0 0.0
      %846 = vmatpush.xpose.msra.mxu0 0.0
      %847 = vmatpush.xpose.msra.mxu0 0.0
      %848 = vmatpush.xpose.msra.mxu0 %v831
      %849 = vmatmul.f32.gmra.mxu0 %v829
      %v850 = vpop.f32.mrf.mxu0
      %v851 = vadd.f32 0.0, %v850
      %852 = vdwg.mxu0
      %854 = vrot.lane.b32.xlu0 %v493, 96
      %v855 = vpop.permute.xlu0 %854
      %v856 = vsel %vm504, %v493, 0
      %v858 = vsel %vm504, %v855, 0
      %860 = vmatpush.xpose.msra.mxu0 0.0
      %861 = vmatpush.xpose.msra.mxu0 0.0
      %862 = vmatpush.xpose.msra.mxu0 0.0
      %863 = vmatpush.xpose.msra.mxu0 0.0
      %864 = vmatpush.xpose.msra.mxu0 0.0
      %865 = vmatpush.xpose.msra.mxu0 0.0
      %866 = vmatpush.xpose.msra.mxu0 0.0
      %867 = vmatpush.xpose.msra.mxu0 0.0
      %868 = vmatpush.xpose.msra.mxu0 0.0
      %869 = vmatpush.xpose.msra.mxu0 0.0
      %870 = vmatpush.xpose.msra.mxu0 0.0
      %871 = vmatpush.xpose.msra.mxu0 0.0
      %872 = vmatpush.xpose.msra.mxu0 0.0
      %873 = vmatpush.xpose.msra.mxu0 0.0
      %874 = vmatpush.xpose.msra.mxu0 0.0
      %875 = vmatpush.xpose.msra.mxu0 %v858
      %876 = vmatmul.f32.gmra.mxu0 %v856
      %v877 = vpop.f32.mrf.mxu0
      %v878 = vadd.f32 0.0, %v877
      %879 = vdwg.mxu0
      %881 = vrot.lane.b32.xlu0 %v496, 96
      %v882 = vpop.permute.xlu0 %881
      %v883 = vsel %vm504, %v496, 0
      %v885 = vsel %vm504, %v882, 0
      %887 = vmatpush.xpose.msra.mxu0 0.0
      %888 = vmatpush.xpose.msra.mxu0 0.0
      %889 = vmatpush.xpose.msra.mxu0 0.0
      %890 = vmatpush.xpose.msra.mxu0 0.0
      %891 = vmatpush.xpose.msra.mxu0 0.0
      %892 = vmatpush.xpose.msra.mxu0 0.0
      %893 = vmatpush.xpose.msra.mxu0 0.0
      %894 = vmatpush.xpose.msra.mxu0 0.0
      %895 = vmatpush.xpose.msra.mxu0 0.0
      %896 = vmatpush.xpose.msra.mxu0 0.0
      %897 = vmatpush.xpose.msra.mxu0 0.0
      %898 = vmatpush.xpose.msra.mxu0 0.0
      %899 = vmatpush.xpose.msra.mxu0 0.0
      %900 = vmatpush.xpose.msra.mxu0 0.0
      %901 = vmatpush.xpose.msra.mxu0 0.0
      %902 = vmatpush.xpose.msra.mxu0 %v885
      %903 = vmatmul.f32.gmra.mxu0 %v883
      %v904 = vpop.f32.mrf.mxu0
      %v905 = vadd.f32 0.0, %v904
      %906 = vdwg.mxu0
      %908 = vrot.lane.b32.xlu0 %v499, 96
      %v909 = vpop.permute.xlu0 %908
      %v910 = vsel %vm504, %v499, 0
      %v912 = vsel %vm504, %v909, 0
      %914 = vmatpush.xpose.msra.mxu0 0.0
      %915 = vmatpush.xpose.msra.mxu0 0.0
      %916 = vmatpush.xpose.msra.mxu0 0.0
      %917 = vmatpush.xpose.msra.mxu0 0.0
      %918 = vmatpush.xpose.msra.mxu0 0.0
      %919 = vmatpush.xpose.msra.mxu0 0.0
      %920 = vmatpush.xpose.msra.mxu0 0.0
      %921 = vmatpush.xpose.msra.mxu0 0.0
      %922 = vmatpush.xpose.msra.mxu0 0.0
      %923 = vmatpush.xpose.msra.mxu0 0.0
      %924 = vmatpush.xpose.msra.mxu0 0.0
      %925 = vmatpush.xpose.msra.mxu0 0.0
      %926 = vmatpush.xpose.msra.mxu0 0.0
      %927 = vmatpush.xpose.msra.mxu0 0.0
      %928 = vmatpush.xpose.msra.mxu0 0.0
      %929 = vmatpush.xpose.msra.mxu0 %v912
      %930 = vmatmul.f32.gmra.mxu0 %v910
      %v931 = vpop.f32.mrf.mxu0
      %v932 = vadd.f32 0.0, %v931
      %933 = vdwg.mxu0
      %v934 = vsel %vm504, %v527, -inf
      %935 = vmax.xlane.f32.xlu0 %v934
      %v936 = vpop.xlane.xlu0 %935
      %v937 = vsel %vm504, %v554, -inf
      %938 = vmax.xlane.f32.xlu0 %v937
      %v939 = vpop.xlane.xlu0 %938
      %v940 = vsel %vm504, %v581, -inf
      %941 = vmax.xlane.f32.xlu0 %v940
      %v942 = vpop.xlane.xlu0 %941
      %v943 = vsel %vm504, %v608, -inf
      %944 = vmax.xlane.f32.xlu0 %v943
      %v945 = vpop.xlane.xlu0 %944
      %v946 = vsel %vm504, %v635, -inf
      %947 = vmax.xlane.f32.xlu0 %v946
      %v948 = vpop.xlane.xlu0 %947
      %v949 = vsel %vm504, %v662, -inf
      %950 = vmax.xlane.f32.xlu0 %v949
      %v951 = vpop.xlane.xlu0 %950
      %v952 = vsel %vm504, %v689, -inf
      %953 = vmax.xlane.f32.xlu0 %v952
      %v954 = vpop.xlane.xlu0 %953
      %v955 = vsel %vm504, %v716, -inf
      %956 = vmax.xlane.f32.xlu0 %v955
      %v957 = vpop.xlane.xlu0 %956
      %v958 = vsel %vm504, %v743, -inf
      %959 = vmax.xlane.f32.xlu0 %v958
      %v960 = vpop.xlane.xlu0 %959
      %v961 = vsel %vm504, %v770, -inf
      %962 = vmax.xlane.f32.xlu0 %v961
      %v963 = vpop.xlane.xlu0 %962
      %v964 = vsel %vm504, %v797, -inf
      %965 = vmax.xlane.f32.xlu0 %v964
      %v966 = vpop.xlane.xlu0 %965
      %v967 = vsel %vm504, %v824, -inf
      %968 = vmax.xlane.f32.xlu0 %v967
      %v969 = vpop.xlane.xlu0 %968
      %v970 = vsel %vm504, %v851, -inf
      %971 = vmax.xlane.f32.xlu0 %v970
      %v972 = vpop.xlane.xlu0 %971
      %v973 = vsel %vm504, %v878, -inf
      %974 = vmax.xlane.f32.xlu0 %v973
      %v975 = vpop.xlane.xlu0 %974
      %v976 = vsel %vm504, %v905, -inf
      %977 = vmax.xlane.f32.xlu0 %v976
      %v978 = vpop.xlane.xlu0 %977
      %v979 = vsel %vm504, %v932, -inf
      %980 = vmax.xlane.f32.xlu0 %v979
      %v981 = vpop.xlane.xlu0 %980
      %v982 = vsub.f32 %v527, %v936
      %v983 = vsub.f32 %v554, %v939
      %v984 = vsub.f32 %v581, %v942
      %v985 = vsub.f32 %v608, %v945
      %v986 = vsub.f32 %v635, %v948
      %v987 = vsub.f32 %v662, %v951
      %v988 = vsub.f32 %v689, %v954
      %v989 = vsub.f32 %v716, %v957
      %v990 = vsub.f32 %v743, %v960
      %v991 = vsub.f32 %v770, %v963
      %v992 = vsub.f32 %v797, %v966
      %v993 = vsub.f32 %v824, %v969
      %v994 = vsub.f32 %v851, %v972
      %v995 = vsub.f32 %v878, %v975
      %v996 = vsub.f32 %v905, %v978
      %v997 = vsub.f32 %v932, %v981
      %v998 = vmul.f32 %v982, 1.442695
      %v999 = vpow.pop %v998
      %v1000 = vmul.f32 %v983, 1.442695
      %v1001 = vpow.pop %v1000
      %v1002 = vmul.f32 %v984, 1.442695
      %v1003 = vpow.pop %v1002
      %v1004 = vmul.f32 %v985, 1.442695
      %v1005 = vpow.pop %v1004
      %v1006 = vmul.f32 %v986, 1.442695
      %v1007 = vpow.pop %v1006
      %v1008 = vmul.f32 %v987, 1.442695
      %v1009 = vpow.pop %v1008
      %v1010 = vmul.f32 %v988, 1.442695
      %v1011 = vpow.pop %v1010
      %v1012 = vmul.f32 %v989, 1.442695
      %v1013 = vpow.pop %v1012
      %v1014 = vmul.f32 %v990, 1.442695
      %v1015 = vpow.pop %v1014
      %v1016 = vmul.f32 %v991, 1.442695
      %v1017 = vpow.pop %v1016
      %v1018 = vmul.f32 %v992, 1.442695
      %v1019 = vpow.pop %v1018
      %v1020 = vmul.f32 %v993, 1.442695
      %v1021 = vpow.pop %v1020
      %v1022 = vmul.f32 %v994, 1.442695
      %v1023 = vpow.pop %v1022
      %v1024 = vmul.f32 %v995, 1.442695
      %v1025 = vpow.pop %v1024
      %v1026 = vmul.f32 %v996, 1.442695
      %v1027 = vpow.pop %v1026
      %v1028 = vmul.f32 %v997, 1.442695
      %v1029 = vpow.pop %v1028
      %v1030 = vsel %vm504, %v999, 0.0
      %1031 = vadd.xlane.f32.xlu0 %v1030
      %v1032 = vpop.xlane.xlu0 %1031
      %v1033 = vsel %vm504, %v1001, 0.0
      %1034 = vadd.xlane.f32.xlu0 %v1033
      %v1035 = vpop.xlane.xlu0 %1034
      %v1036 = vsel %vm504, %v1003, 0.0
      %1037 = vadd.xlane.f32.xlu0 %v1036
      %v1038 = vpop.xlane.xlu0 %1037
      %v1039 = vsel %vm504, %v1005, 0.0
      %1040 = vadd.xlane.f32.xlu0 %v1039
      %v1041 = vpop.xlane.xlu0 %1040
      %v1042 = vsel %vm504, %v1007, 0.0
      %1043 = vadd.xlane.f32.xlu0 %v1042
      %v1044 = vpop.xlane.xlu0 %1043
      %v1045 = vsel %vm504, %v1009, 0.0
      %1046 = vadd.xlane.f32.xlu0 %v1045
      %v1047 = vpop.xlane.xlu0 %1046
      %v1048 = vsel %vm504, %v1011, 0.0
      %1049 = vadd.xlane.f32.xlu0 %v1048
      %v1050 = vpop.xlane.xlu0 %1049
      %v1051 = vsel %vm504, %v1013, 0.0
      %1052 = vadd.xlane.f32.xlu0 %v1051
      %v1053 = vpop.xlane.xlu0 %1052
      %v1054 = vsel %vm504, %v1015, 0.0
      %1055 = vadd.xlane.f32.xlu0 %v1054
      %v1056 = vpop.xlane.xlu0 %1055
      %v1057 = vsel %vm504, %v1017, 0.0
      %1058 = vadd.xlane.f32.xlu0 %v1057
      %v1059 = vpop.xlane.xlu0 %1058
      %v1060 = vsel %vm504, %v1019, 0.0
      %1061 = vadd.xlane.f32.xlu0 %v1060
      %v1062 = vpop.xlane.xlu0 %1061
      %v1063 = vsel %vm504, %v1021, 0.0
      %1064 = vadd.xlane.f32.xlu0 %v1063
      %v1065 = vpop.xlane.xlu0 %1064
      %v1066 = vsel %vm504, %v1023, 0.0
      %1067 = vadd.xlane.f32.xlu0 %v1066
      %v1068 = vpop.xlane.xlu0 %1067
      %v1069 = vsel %vm504, %v1025, 0.0
      %1070 = vadd.xlane.f32.xlu0 %v1069
      %v1071 = vpop.xlane.xlu0 %1070
      %v1072 = vsel %vm504, %v1027, 0.0
      %1073 = vadd.xlane.f32.xlu0 %v1072
      %v1074 = vpop.xlane.xlu0 %1073
      %v1075 = vsel %vm504, %v1029, 0.0
      %1076 = vadd.xlane.f32.xlu0 %v1075
      %v1077 = vpop.xlane.xlu0 %1076
      %v1078 = vrcp.pop %v1032
      %v1079 = vmul.f32 %v1032, %v1078
      %v1080 = vsub.f32 1.0, %v1079
      %v1081 = vmul.f32 %v1078, %v1080
      %v1082 = vadd.f32 %v1078, %v1081
      %vm1083 = vweird.f32 %v1032
      %vm1084 = vweird.f32 %v1078
      %vm1085 = vmor %vm1083, %vm1084
      %v1086 = vsel %vm1085, %v1078, %v1082
      %v1087 = vand.u32 2147483647, %v1032
      %vm1088 = vcmp.eq.f32.partialorder %v1087, 8.507059e+37
      %v1089 = vand.u32 %v1032, 2147483648
      %v1090 = vor.u32 1.1754944e-38, %v1089
      %v1091 = vsel %vm1088, %v1090, %v1086
      %v1092 = vmul.f32 %v999, %v1091
      %v1093 = vrcp.pop %v1035
      %v1094 = vmul.f32 %v1035, %v1093
      %v1095 = vsub.f32 1.0, %v1094
      %v1096 = vmul.f32 %v1093, %v1095
      %v1097 = vadd.f32 %v1093, %v1096
      %vm1098 = vweird.f32 %v1035
      %vm1099 = vweird.f32 %v1093
      %vm1100 = vmor %vm1098, %vm1099
      %v1101 = vsel %vm1100, %v1093, %v1097
      %v1102 = vand.u32 2147483647, %v1035
      %vm1103 = vcmp.eq.f32.partialorder %v1102, 8.507059e+37
      %v1104 = vand.u32 %v1035, 2147483648
      %v1105 = vor.u32 1.1754944e-38, %v1104
      %v1106 = vsel %vm1103, %v1105, %v1101
      %v1107 = vmul.f32 %v1001, %v1106
      %v1108 = vrcp.pop %v1038
      %v1109 = vmul.f32 %v1038, %v1108
      %v1110 = vsub.f32 1.0, %v1109
      %v1111 = vmul.f32 %v1108, %v1110
      %v1112 = vadd.f32 %v1108, %v1111
      %vm1113 = vweird.f32 %v1038
      %vm1114 = vweird.f32 %v1108
      %vm1115 = vmor %vm1113, %vm1114
      %v1116 = vsel %vm1115, %v1108, %v1112
      %v1117 = vand.u32 2147483647, %v1038
      %vm1118 = vcmp.eq.f32.partialorder %v1117, 8.507059e+37
      %v1119 = vand.u32 %v1038, 2147483648
      %v1120 = vor.u32 1.1754944e-38, %v1119
      %v1121 = vsel %vm1118, %v1120, %v1116
      %v1122 = vmul.f32 %v1003, %v1121
      %v1123 = vrcp.pop %v1041
      %v1124 = vmul.f32 %v1041, %v1123
      %v1125 = vsub.f32 1.0, %v1124
      %v1126 = vmul.f32 %v1123, %v1125
      %v1127 = vadd.f32 %v1123, %v1126
      %vm1128 = vweird.f32 %v1041
      %vm1129 = vweird.f32 %v1123
      %vm1130 = vmor %vm1128, %vm1129
      %v1131 = vsel %vm1130, %v1123, %v1127
      %v1132 = vand.u32 2147483647, %v1041
      %vm1133 = vcmp.eq.f32.partialorder %v1132, 8.507059e+37
      %v1134 = vand.u32 %v1041, 2147483648
      %v1135 = vor.u32 1.1754944e-38, %v1134
      %v1136 = vsel %vm1133, %v1135, %v1131
      %v1137 = vmul.f32 %v1005, %v1136
      %v1138 = vrcp.pop %v1044
      %v1139 = vmul.f32 %v1044, %v1138
      %v1140 = vsub.f32 1.0, %v1139
      %v1141 = vmul.f32 %v1138, %v1140
      %v1142 = vadd.f32 %v1138, %v1141
      %vm1143 = vweird.f32 %v1044
      %vm1144 = vweird.f32 %v1138
      %vm1145 = vmor %vm1143, %vm1144
      %v1146 = vsel %vm1145, %v1138, %v1142
      %v1147 = vand.u32 2147483647, %v1044
      %vm1148 = vcmp.eq.f32.partialorder %v1147, 8.507059e+37
      %v1149 = vand.u32 %v1044, 2147483648
      %v1150 = vor.u32 1.1754944e-38, %v1149
      %v1151 = vsel %vm1148, %v1150, %v1146
      %v1152 = vmul.f32 %v1007, %v1151
      %v1153 = vrcp.pop %v1047
      %v1154 = vmul.f32 %v1047, %v1153
      %v1155 = vsub.f32 1.0, %v1154
      %v1156 = vmul.f32 %v1153, %v1155
      %v1157 = vadd.f32 %v1153, %v1156
      %vm1158 = vweird.f32 %v1047
      %vm1159 = vweird.f32 %v1153
      %vm1160 = vmor %vm1158, %vm1159
      %v1161 = vsel %vm1160, %v1153, %v1157
      %v1162 = vand.u32 2147483647, %v1047
      %vm1163 = vcmp.eq.f32.partialorder %v1162, 8.507059e+37
      %v1164 = vand.u32 %v1047, 2147483648
      %v1165 = vor.u32 1.1754944e-38, %v1164
      %v1166 = vsel %vm1163, %v1165, %v1161
      %v1167 = vmul.f32 %v1009, %v1166
      %v1168 = vrcp.pop %v1050
      %v1169 = vmul.f32 %v1050, %v1168
      %v1170 = vsub.f32 1.0, %v1169
      %v1171 = vmul.f32 %v1168, %v1170
      %v1172 = vadd.f32 %v1168, %v1171
      %vm1173 = vweird.f32 %v1050
      %vm1174 = vweird.f32 %v1168
      %vm1175 = vmor %vm1173, %vm1174
      %v1176 = vsel %vm1175, %v1168, %v1172
      %v1177 = vand.u32 2147483647, %v1050
      %vm1178 = vcmp.eq.f32.partialorder %v1177, 8.507059e+37
      %v1179 = vand.u32 %v1050, 2147483648
      %v1180 = vor.u32 1.1754944e-38, %v1179
      %v1181 = vsel %vm1178, %v1180, %v1176
      %v1182 = vmul.f32 %v1011, %v1181
      %v1183 = vrcp.pop %v1053
      %v1184 = vmul.f32 %v1053, %v1183
      %v1185 = vsub.f32 1.0, %v1184
      %v1186 = vmul.f32 %v1183, %v1185
      %v1187 = vadd.f32 %v1183, %v1186
      %vm1188 = vweird.f32 %v1053
      %vm1189 = vweird.f32 %v1183
      %vm1190 = vmor %vm1188, %vm1189
      %v1191 = vsel %vm1190, %v1183, %v1187
      %v1192 = vand.u32 2147483647, %v1053
      %vm1193 = vcmp.eq.f32.partialorder %v1192, 8.507059e+37
      %v1194 = vand.u32 %v1053, 2147483648
      %v1195 = vor.u32 1.1754944e-38, %v1194
      %v1196 = vsel %vm1193, %v1195, %v1191
      %v1197 = vmul.f32 %v1013, %v1196
      %v1198 = vrcp.pop %v1056
      %v1199 = vmul.f32 %v1056, %v1198
      %v1200 = vsub.f32 1.0, %v1199
      %v1201 = vmul.f32 %v1198, %v1200
      %v1202 = vadd.f32 %v1198, %v1201
      %vm1203 = vweird.f32 %v1056
      %vm1204 = vweird.f32 %v1198
      %vm1205 = vmor %vm1203, %vm1204
      %v1206 = vsel %vm1205, %v1198, %v1202
      %v1207 = vand.u32 2147483647, %v1056
      %vm1208 = vcmp.eq.f32.partialorder %v1207, 8.507059e+37
      %v1209 = vand.u32 %v1056, 2147483648
      %v1210 = vor.u32 1.1754944e-38, %v1209
      %v1211 = vsel %vm1208, %v1210, %v1206
      %v1212 = vmul.f32 %v1015, %v1211
      %v1213 = vrcp.pop %v1059
      %v1214 = vmul.f32 %v1059, %v1213
      %v1215 = vsub.f32 1.0, %v1214
      %v1216 = vmul.f32 %v1213, %v1215
      %v1217 = vadd.f32 %v1213, %v1216
      %vm1218 = vweird.f32 %v1059
      %vm1219 = vweird.f32 %v1213
      %vm1220 = vmor %vm1218, %vm1219
      %v1221 = vsel %vm1220, %v1213, %v1217
      %v1222 = vand.u32 2147483647, %v1059
      %vm1223 = vcmp.eq.f32.partialorder %v1222, 8.507059e+37
      %v1224 = vand.u32 %v1059, 2147483648
      %v1225 = vor.u32 1.1754944e-38, %v1224
      %v1226 = vsel %vm1223, %v1225, %v1221
      %v1227 = vmul.f32 %v1017, %v1226
      %v1228 = vrcp.pop %v1062
      %v1229 = vmul.f32 %v1062, %v1228
      %v1230 = vsub.f32 1.0, %v1229
      %v1231 = vmul.f32 %v1228, %v1230
      %v1232 = vadd.f32 %v1228, %v1231
      %vm1233 = vweird.f32 %v1062
      %vm1234 = vweird.f32 %v1228
      %vm1235 = vmor %vm1233, %vm1234
      %v1236 = vsel %vm1235, %v1228, %v1232
      %v1237 = vand.u32 2147483647, %v1062
      %vm1238 = vcmp.eq.f32.partialorder %v1237, 8.507059e+37
      %v1239 = vand.u32 %v1062, 2147483648
      %v1240 = vor.u32 1.1754944e-38, %v1239
      %v1241 = vsel %vm1238, %v1240, %v1236
      %v1242 = vmul.f32 %v1019, %v1241
      %v1243 = vrcp.pop %v1065
      %v1244 = vmul.f32 %v1065, %v1243
      %v1245 = vsub.f32 1.0, %v1244
      %v1246 = vmul.f32 %v1243, %v1245
      %v1247 = vadd.f32 %v1243, %v1246
      %vm1248 = vweird.f32 %v1065
      %vm1249 = vweird.f32 %v1243
      %vm1250 = vmor %vm1248, %vm1249
      %v1251 = vsel %vm1250, %v1243, %v1247
      %v1252 = vand.u32 2147483647, %v1065
      %vm1253 = vcmp.eq.f32.partialorder %v1252, 8.507059e+37
      %v1254 = vand.u32 %v1065, 2147483648
      %v1255 = vor.u32 1.1754944e-38, %v1254
      %v1256 = vsel %vm1253, %v1255, %v1251
      %v1257 = vmul.f32 %v1021, %v1256
      %v1258 = vrcp.pop %v1068
      %v1259 = vmul.f32 %v1068, %v1258
      %v1260 = vsub.f32 1.0, %v1259
      %v1261 = vmul.f32 %v1258, %v1260
      %v1262 = vadd.f32 %v1258, %v1261
      %vm1263 = vweird.f32 %v1068
      %vm1264 = vweird.f32 %v1258
      %vm1265 = vmor %vm1263, %vm1264
      %v1266 = vsel %vm1265, %v1258, %v1262
      %v1267 = vand.u32 2147483647, %v1068
      %vm1268 = vcmp.eq.f32.partialorder %v1267, 8.507059e+37
      %v1269 = vand.u32 %v1068, 2147483648
      %v1270 = vor.u32 1.1754944e-38, %v1269
      %v1271 = vsel %vm1268, %v1270, %v1266
      %v1272 = vmul.f32 %v1023, %v1271
      %v1273 = vrcp.pop %v1071
      %v1274 = vmul.f32 %v1071, %v1273
      %v1275 = vsub.f32 1.0, %v1274
      %v1276 = vmul.f32 %v1273, %v1275
      %v1277 = vadd.f32 %v1273, %v1276
      %vm1278 = vweird.f32 %v1071
      %vm1279 = vweird.f32 %v1273
      %vm1280 = vmor %vm1278, %vm1279
      %v1281 = vsel %vm1280, %v1273, %v1277
      %v1282 = vand.u32 2147483647, %v1071
      %vm1283 = vcmp.eq.f32.partialorder %v1282, 8.507059e+37
      %v1284 = vand.u32 %v1071, 2147483648
      %v1285 = vor.u32 1.1754944e-38, %v1284
      %v1286 = vsel %vm1283, %v1285, %v1281
      %v1287 = vmul.f32 %v1025, %v1286
      %v1288 = vrcp.pop %v1074
      %v1289 = vmul.f32 %v1074, %v1288
      %v1290 = vsub.f32 1.0, %v1289
      %v1291 = vmul.f32 %v1288, %v1290
      %v1292 = vadd.f32 %v1288, %v1291
      %vm1293 = vweird.f32 %v1074
      %vm1294 = vweird.f32 %v1288
      %vm1295 = vmor %vm1293, %vm1294
      %v1296 = vsel %vm1295, %v1288, %v1292
      %v1297 = vand.u32 2147483647, %v1074
      %vm1298 = vcmp.eq.f32.partialorder %v1297, 8.507059e+37
      %v1299 = vand.u32 %v1074, 2147483648
      %v1300 = vor.u32 1.1754944e-38, %v1299
      %v1301 = vsel %vm1298, %v1300, %v1296
      %v1302 = vmul.f32 %v1027, %v1301
      %v1303 = vrcp.pop %v1077
      %v1304 = vmul.f32 %v1077, %v1303
      %v1305 = vsub.f32 1.0, %v1304
      %v1306 = vmul.f32 %v1303, %v1305
      %v1307 = vadd.f32 %v1303, %v1306
      %vm1308 = vweird.f32 %v1077
      %vm1309 = vweird.f32 %v1303
      %vm1310 = vmor %vm1308, %vm1309
      %v1311 = vsel %vm1310, %v1303, %v1307
      %v1312 = vand.u32 2147483647, %v1077
      %vm1313 = vcmp.eq.f32.partialorder %v1312, 8.507059e+37
      %v1314 = vand.u32 %v1077, 2147483648
      %v1315 = vor.u32 1.1754944e-38, %v1314
      %v1316 = vsel %vm1313, %v1315, %v1311
      %v1317 = vmul.f32 %v1029, %v1316
      %1318 = vrot.lane.b32.xlu0 %v454, 64
      %v1319 = vpop.permute.xlu0 %1318
      %v1322 = vsel %vm504, %v1092, 0
      %1324 = vmatpush.msra.mxu0 0.0
      %1325 = vmatpush.msra.mxu0 0.0
      %1326 = vmatpush.msra.mxu0 0.0
      %1327 = vmatpush.msra.mxu0 0.0
      %1328 = vmatpush.msra.mxu0 0.0
      %1329 = vmatpush.msra.mxu0 0.0
      %1330 = vmatpush.msra.mxu0 0.0
      %1331 = vmatpush.msra.mxu0 0.0
      %1332 = vmatpush.msra.mxu0 0.0
      %1333 = vmatpush.msra.mxu0 0.0
      %1334 = vmatpush.msra.mxu0 0.0
      %1335 = vmatpush.msra.mxu0 0.0
      %1336 = vmatpush.msra.mxu0 0.0
      %1337 = vmatpush.msra.mxu0 0.0
      %1338 = vmatpush.msra.mxu0 0.0
      %1339 = vmatpush.msra.mxu0 %v1319
      %1340 = vmatmul.f32.gmra.mxu0 %v1322
      %v1341 = vpop.f32.mrf.mxu0
      %v1342 = vadd.f32 0.0, %v1341
      %1343 = vdwg.mxu0
      %1344 = vrot.lane.b32.xlu0 %v457, 64
      %v1345 = vpop.permute.xlu0 %1344
      %v1348 = vsel %vm504, %v1107, 0
      %1350 = vmatpush.msra.mxu0 0.0
      %1351 = vmatpush.msra.mxu0 0.0
      %1352 = vmatpush.msra.mxu0 0.0
      %1353 = vmatpush.msra.mxu0 0.0
      %1354 = vmatpush.msra.mxu0 0.0
      %1355 = vmatpush.msra.mxu0 0.0
      %1356 = vmatpush.msra.mxu0 0.0
      %1357 = vmatpush.msra.mxu0 0.0
      %1358 = vmatpush.msra.mxu0 0.0
      %1359 = vmatpush.msra.mxu0 0.0
      %1360 = vmatpush.msra.mxu0 0.0
      %1361 = vmatpush.msra.mxu0 0.0
      %1362 = vmatpush.msra.mxu0 0.0
      %1363 = vmatpush.msra.mxu0 0.0
      %1364 = vmatpush.msra.mxu0 0.0
      %1365 = vmatpush.msra.mxu0 %v1345
      %1366 = vmatmul.f32.gmra.mxu0 %v1348
      %v1367 = vpop.f32.mrf.mxu0
      %v1368 = vadd.f32 0.0, %v1367
      %1369 = vdwg.mxu0
      %1370 = vrot.lane.b32.xlu0 %v460, 64
      %v1371 = vpop.permute.xlu0 %1370
      %v1374 = vsel %vm504, %v1122, 0
      %1376 = vmatpush.msra.mxu0 0.0
      %1377 = vmatpush.msra.mxu0 0.0
      %1378 = vmatpush.msra.mxu0 0.0
      %1379 = vmatpush.msra.mxu0 0.0
      %1380 = vmatpush.msra.mxu0 0.0
      %1381 = vmatpush.msra.mxu0 0.0
      %1382 = vmatpush.msra.mxu0 0.0
      %1383 = vmatpush.msra.mxu0 0.0
      %1384 = vmatpush.msra.mxu0 0.0
      %1385 = vmatpush.msra.mxu0 0.0
      %1386 = vmatpush.msra.mxu0 0.0
      %1387 = vmatpush.msra.mxu0 0.0
      %1388 = vmatpush.msra.mxu0 0.0
      %1389 = vmatpush.msra.mxu0 0.0
      %1390 = vmatpush.msra.mxu0 0.0
      %1391 = vmatpush.msra.mxu0 %v1371
      %1392 = vmatmul.f32.gmra.mxu0 %v1374
      %v1393 = vpop.f32.mrf.mxu0
      %v1394 = vadd.f32 0.0, %v1393
      %1395 = vdwg.mxu0
      %1396 = vrot.lane.b32.xlu0 %v463, 64
      %v1397 = vpop.permute.xlu0 %1396
      %v1400 = vsel %vm504, %v1137, 0
      %1402 = vmatpush.msra.mxu0 0.0
      %1403 = vmatpush.msra.mxu0 0.0
      %1404 = vmatpush.msra.mxu0 0.0
      %1405 = vmatpush.msra.mxu0 0.0
      %1406 = vmatpush.msra.mxu0 0.0
      %1407 = vmatpush.msra.mxu0 0.0
      %1408 = vmatpush.msra.mxu0 0.0
      %1409 = vmatpush.msra.mxu0 0.0
      %1410 = vmatpush.msra.mxu0 0.0
      %1411 = vmatpush.msra.mxu0 0.0
      %1412 = vmatpush.msra.mxu0 0.0
      %1413 = vmatpush.msra.mxu0 0.0
      %1414 = vmatpush.msra.mxu0 0.0
      %1415 = vmatpush.msra.mxu0 0.0
      %1416 = vmatpush.msra.mxu0 0.0
      %1417 = vmatpush.msra.mxu0 %v1397
      %1418 = vmatmul.f32.gmra.mxu0 %v1400
      %v1419 = vpop.f32.mrf.mxu0
      %v1420 = vadd.f32 0.0, %v1419
      %1421 = vdwg.mxu0
      %1422 = vrot.lane.b32.xlu0 %v466, 64
      %v1423 = vpop.permute.xlu0 %1422
      %v1426 = vsel %vm504, %v1152, 0
      %1428 = vmatpush.msra.mxu0 0.0
      %1429 = vmatpush.msra.mxu0 0.0
      %1430 = vmatpush.msra.mxu0 0.0
      %1431 = vmatpush.msra.mxu0 0.0
      %1432 = vmatpush.msra.mxu0 0.0
      %1433 = vmatpush.msra.mxu0 0.0
      %1434 = vmatpush.msra.mxu0 0.0
      %1435 = vmatpush.msra.mxu0 0.0
      %1436 = vmatpush.msra.mxu0 0.0
      %1437 = vmatpush.msra.mxu0 0.0
      %1438 = vmatpush.msra.mxu0 0.0
      %1439 = vmatpush.msra.mxu0 0.0
      %1440 = vmatpush.msra.mxu0 0.0
      %1441 = vmatpush.msra.mxu0 0.0
      %1442 = vmatpush.msra.mxu0 0.0
      %1443 = vmatpush.msra.mxu0 %v1423
      %1444 = vmatmul.f32.gmra.mxu0 %v1426
      %v1445 = vpop.f32.mrf.mxu0
      %v1446 = vadd.f32 0.0, %v1445
      %1447 = vdwg.mxu0
      %1448 = vrot.lane.b32.xlu0 %v469, 64
      %v1449 = vpop.permute.xlu0 %1448
      %v1452 = vsel %vm504, %v1167, 0
      %1454 = vmatpush.msra.mxu0 0.0
      %1455 = vmatpush.msra.mxu0 0.0
      %1456 = vmatpush.msra.mxu0 0.0
      %1457 = vmatpush.msra.mxu0 0.0
      %1458 = vmatpush.msra.mxu0 0.0
      %1459 = vmatpush.msra.mxu0 0.0
      %1460 = vmatpush.msra.mxu0 0.0
      %1461 = vmatpush.msra.mxu0 0.0
      %1462 = vmatpush.msra.mxu0 0.0
      %1463 = vmatpush.msra.mxu0 0.0
      %1464 = vmatpush.msra.mxu0 0.0
      %1465 = vmatpush.msra.mxu0 0.0
      %1466 = vmatpush.msra.mxu0 0.0
      %1467 = vmatpush.msra.mxu0 0.0
      %1468 = vmatpush.msra.mxu0 0.0
      %1469 = vmatpush.msra.mxu0 %v1449
      %1470 = vmatmul.f32.gmra.mxu0 %v1452
      %v1471 = vpop.f32.mrf.mxu0
      %v1472 = vadd.f32 0.0, %v1471
      %1473 = vdwg.mxu0
      %1474 = vrot.lane.b32.xlu0 %v472, 64
      %v1475 = vpop.permute.xlu0 %1474
      %v1478 = vsel %vm504, %v1182, 0
      %1480 = vmatpush.msra.mxu0 0.0
      %1481 = vmatpush.msra.mxu0 0.0
      %1482 = vmatpush.msra.mxu0 0.0
      %1483 = vmatpush.msra.mxu0 0.0
      %1484 = vmatpush.msra.mxu0 0.0
      %1485 = vmatpush.msra.mxu0 0.0
      %1486 = vmatpush.msra.mxu0 0.0
      %1487 = vmatpush.msra.mxu0 0.0
      %1488 = vmatpush.msra.mxu0 0.0
      %1489 = vmatpush.msra.mxu0 0.0
      %1490 = vmatpush.msra.mxu0 0.0
      %1491 = vmatpush.msra.mxu0 0.0
      %1492 = vmatpush.msra.mxu0 0.0
      %1493 = vmatpush.msra.mxu0 0.0
      %1494 = vmatpush.msra.mxu0 0.0
      %1495 = vmatpush.msra.mxu0 %v1475
      %1496 = vmatmul.f32.gmra.mxu0 %v1478
      %v1497 = vpop.f32.mrf.mxu0
      %v1498 = vadd.f32 0.0, %v1497
      %1499 = vdwg.mxu0
      %1500 = vrot.lane.b32.xlu0 %v475, 64
      %v1501 = vpop.permute.xlu0 %1500
      %v1504 = vsel %vm504, %v1197, 0
      %1506 = vmatpush.msra.mxu0 0.0
      %1507 = vmatpush.msra.mxu0 0.0
      %1508 = vmatpush.msra.mxu0 0.0
      %1509 = vmatpush.msra.mxu0 0.0
      %1510 = vmatpush.msra.mxu0 0.0
      %1511 = vmatpush.msra.mxu0 0.0
      %1512 = vmatpush.msra.mxu0 0.0
      %1513 = vmatpush.msra.mxu0 0.0
      %1514 = vmatpush.msra.mxu0 0.0
      %1515 = vmatpush.msra.mxu0 0.0
      %1516 = vmatpush.msra.mxu0 0.0
      %1517 = vmatpush.msra.mxu0 0.0
      %1518 = vmatpush.msra.mxu0 0.0
      %1519 = vmatpush.msra.mxu0 0.0
      %1520 = vmatpush.msra.mxu0 0.0
      %1521 = vmatpush.msra.mxu0 %v1501
      %1522 = vmatmul.f32.gmra.mxu0 %v1504
      %v1523 = vpop.f32.mrf.mxu0
      %v1524 = vadd.f32 0.0, %v1523
      %1525 = vdwg.mxu0
      %1526 = vrot.lane.b32.xlu0 %v478, 64
      %v1527 = vpop.permute.xlu0 %1526
      %v1530 = vsel %vm504, %v1212, 0
      %1532 = vmatpush.msra.mxu0 0.0
      %1533 = vmatpush.msra.mxu0 0.0
      %1534 = vmatpush.msra.mxu0 0.0
      %1535 = vmatpush.msra.mxu0 0.0
      %1536 = vmatpush.msra.mxu0 0.0
      %1537 = vmatpush.msra.mxu0 0.0
      %1538 = vmatpush.msra.mxu0 0.0
      %1539 = vmatpush.msra.mxu0 0.0
      %1540 = vmatpush.msra.mxu0 0.0
      %1541 = vmatpush.msra.mxu0 0.0
      %1542 = vmatpush.msra.mxu0 0.0
      %1543 = vmatpush.msra.mxu0 0.0
      %1544 = vmatpush.msra.mxu0 0.0
      %1545 = vmatpush.msra.mxu0 0.0
      %1546 = vmatpush.msra.mxu0 0.0
      %1547 = vmatpush.msra.mxu0 %v1527
      %1548 = vmatmul.f32.gmra.mxu0 %v1530
      %v1549 = vpop.f32.mrf.mxu0
      %v1550 = vadd.f32 0.0, %v1549
      %1551 = vdwg.mxu0
      %1552 = vrot.lane.b32.xlu0 %v481, 64
      %v1553 = vpop.permute.xlu0 %1552
      %v1556 = vsel %vm504, %v1227, 0
      %1558 = vmatpush.msra.mxu0 0.0
      %1559 = vmatpush.msra.mxu0 0.0
      %1560 = vmatpush.msra.mxu0 0.0
      %1561 = vmatpush.msra.mxu0 0.0
      %1562 = vmatpush.msra.mxu0 0.0
      %1563 = vmatpush.msra.mxu0 0.0
      %1564 = vmatpush.msra.mxu0 0.0
      %1565 = vmatpush.msra.mxu0 0.0
      %1566 = vmatpush.msra.mxu0 0.0
      %1567 = vmatpush.msra.mxu0 0.0
      %1568 = vmatpush.msra.mxu0 0.0
      %1569 = vmatpush.msra.mxu0 0.0
      %1570 = vmatpush.msra.mxu0 0.0
      %1571 = vmatpush.msra.mxu0 0.0
      %1572 = vmatpush.msra.mxu0 0.0
      %1573 = vmatpush.msra.mxu0 %v1553
      %1574 = vmatmul.f32.gmra.mxu0 %v1556
      %v1575 = vpop.f32.mrf.mxu0
      %v1576 = vadd.f32 0.0, %v1575
      %1577 = vdwg.mxu0
      %1578 = vrot.lane.b32.xlu0 %v484, 64
      %v1579 = vpop.permute.xlu0 %1578
      %v1582 = vsel %vm504, %v1242, 0
      %1584 = vmatpush.msra.mxu0 0.0
      %1585 = vmatpush.msra.mxu0 0.0
      %1586 = vmatpush.msra.mxu0 0.0
      %1587 = vmatpush.msra.mxu0 0.0
      %1588 = vmatpush.msra.mxu0 0.0
      %1589 = vmatpush.msra.mxu0 0.0
      %1590 = vmatpush.msra.mxu0 0.0
      %1591 = vmatpush.msra.mxu0 0.0
      %1592 = vmatpush.msra.mxu0 0.0
      %1593 = vmatpush.msra.mxu0 0.0
      %1594 = vmatpush.msra.mxu0 0.0
      %1595 = vmatpush.msra.mxu0 0.0
      %1596 = vmatpush.msra.mxu0 0.0
      %1597 = vmatpush.msra.mxu0 0.0
      %1598 = vmatpush.msra.mxu0 0.0
      %1599 = vmatpush.msra.mxu0 %v1579
      %1600 = vmatmul.f32.gmra.mxu0 %v1582
      %v1601 = vpop.f32.mrf.mxu0
      %v1602 = vadd.f32 0.0, %v1601
      %1603 = vdwg.mxu0
      %1604 = vrot.lane.b32.xlu0 %v487, 64
      %v1605 = vpop.permute.xlu0 %1604
      %v1608 = vsel %vm504, %v1257, 0
      %1610 = vmatpush.msra.mxu0 0.0
      %1611 = vmatpush.msra.mxu0 0.0
      %1612 = vmatpush.msra.mxu0 0.0
      %1613 = vmatpush.msra.mxu0 0.0
      %1614 = vmatpush.msra.mxu0 0.0
      %1615 = vmatpush.msra.mxu0 0.0
      %1616 = vmatpush.msra.mxu0 0.0
      %1617 = vmatpush.msra.mxu0 0.0
      %1618 = vmatpush.msra.mxu0 0.0
      %1619 = vmatpush.msra.mxu0 0.0
      %1620 = vmatpush.msra.mxu0 0.0
      %1621 = vmatpush.msra.mxu0 0.0
      %1622 = vmatpush.msra.mxu0 0.0
      %1623 = vmatpush.msra.mxu0 0.0
      %1624 = vmatpush.msra.mxu0 0.0
      %1625 = vmatpush.msra.mxu0 %v1605
      %1626 = vmatmul.f32.gmra.mxu0 %v1608
      %v1627 = vpop.f32.mrf.mxu0
      %v1628 = vadd.f32 0.0, %v1627
      %1629 = vdwg.mxu0
      %1630 = vrot.lane.b32.xlu0 %v490, 64
      %v1631 = vpop.permute.xlu0 %1630
      %v1634 = vsel %vm504, %v1272, 0
      %1636 = vmatpush.msra.mxu0 0.0
      %1637 = vmatpush.msra.mxu0 0.0
      %1638 = vmatpush.msra.mxu0 0.0
      %1639 = vmatpush.msra.mxu0 0.0
      %1640 = vmatpush.msra.mxu0 0.0
      %1641 = vmatpush.msra.mxu0 0.0
      %1642 = vmatpush.msra.mxu0 0.0
      %1643 = vmatpush.msra.mxu0 0.0
      %1644 = vmatpush.msra.mxu0 0.0
      %1645 = vmatpush.msra.mxu0 0.0
      %1646 = vmatpush.msra.mxu0 0.0
      %1647 = vmatpush.msra.mxu0 0.0
      %1648 = vmatpush.msra.mxu0 0.0
      %1649 = vmatpush.msra.mxu0 0.0
      %1650 = vmatpush.msra.mxu0 0.0
      %1651 = vmatpush.msra.mxu0 %v1631
      %1652 = vmatmul.f32.gmra.mxu0 %v1634
      %v1653 = vpop.f32.mrf.mxu0
      %v1654 = vadd.f32 0.0, %v1653
      %1655 = vdwg.mxu0
      %1656 = vrot.lane.b32.xlu0 %v493, 64
      %v1657 = vpop.permute.xlu0 %1656
      %v1660 = vsel %vm504, %v1287, 0
      %1662 = vmatpush.msra.mxu0 0.0
      %1663 = vmatpush.msra.mxu0 0.0
      %1664 = vmatpush.msra.mxu0 0.0
      %1665 = vmatpush.msra.mxu0 0.0
      %1666 = vmatpush.msra.mxu0 0.0
      %1667 = vmatpush.msra.mxu0 0.0
      %1668 = vmatpush.msra.mxu0 0.0
      %1669 = vmatpush.msra.mxu0 0.0
      %1670 = vmatpush.msra.mxu0 0.0
      %1671 = vmatpush.msra.mxu0 0.0
      %1672 = vmatpush.msra.mxu0 0.0
      %1673 = vmatpush.msra.mxu0 0.0
      %1674 = vmatpush.msra.mxu0 0.0
      %1675 = vmatpush.msra.mxu0 0.0
      %1676 = vmatpush.msra.mxu0 0.0
      %1677 = vmatpush.msra.mxu0 %v1657
      %1678 = vmatmul.f32.gmra.mxu0 %v1660
      %v1679 = vpop.f32.mrf.mxu0
      %v1680 = vadd.f32 0.0, %v1679
      %1681 = vdwg.mxu0
      %1682 = vrot.lane.b32.xlu0 %v496, 64
      %v1683 = vpop.permute.xlu0 %1682
      %v1686 = vsel %vm504, %v1302, 0
      %1688 = vmatpush.msra.mxu0 0.0
      %1689 = vmatpush.msra.mxu0 0.0
      %1690 = vmatpush.msra.mxu0 0.0
      %1691 = vmatpush.msra.mxu0 0.0
      %1692 = vmatpush.msra.mxu0 0.0
      %1693 = vmatpush.msra.mxu0 0.0
      %1694 = vmatpush.msra.mxu0 0.0
      %1695 = vmatpush.msra.mxu0 0.0
      %1696 = vmatpush.msra.mxu0 0.0
      %1697 = vmatpush.msra.mxu0 0.0
      %1698 = vmatpush.msra.mxu0 0.0
      %1699 = vmatpush.msra.mxu0 0.0
      %1700 = vmatpush.msra.mxu0 0.0
      %1701 = vmatpush.msra.mxu0 0.0
      %1702 = vmatpush.msra.mxu0 0.0
      %1703 = vmatpush.msra.mxu0 %v1683
      %1704 = vmatmul.f32.gmra.mxu0 %v1686
      %v1705 = vpop.f32.mrf.mxu0
      %v1706 = vadd.f32 0.0, %v1705
      %1707 = vdwg.mxu0
      %1708 = vrot.lane.b32.xlu0 %v499, 64
      %v1709 = vpop.permute.xlu0 %1708
      %v1712 = vsel %vm504, %v1317, 0
      %1714 = vmatpush.msra.mxu0 0.0
      %1715 = vmatpush.msra.mxu0 0.0
      %1716 = vmatpush.msra.mxu0 0.0
      %1717 = vmatpush.msra.mxu0 0.0
      %1718 = vmatpush.msra.mxu0 0.0
      %1719 = vmatpush.msra.mxu0 0.0
      %1720 = vmatpush.msra.mxu0 0.0
      %1721 = vmatpush.msra.mxu0 0.0
      %1722 = vmatpush.msra.mxu0 0.0
      %1723 = vmatpush.msra.mxu0 0.0
      %1724 = vmatpush.msra.mxu0 0.0
      %1725 = vmatpush.msra.mxu0 0.0
      %1726 = vmatpush.msra.mxu0 0.0
      %1727 = vmatpush.msra.mxu0 0.0
      %1728 = vmatpush.msra.mxu0 0.0
      %1729 = vmatpush.msra.mxu0 %v1709
      %1730 = vmatmul.f32.gmra.mxu0 %v1712
      %v1731 = vpop.f32.mrf.mxu0
      %v1732 = vadd.f32 0.0, %v1731
      %1733 = vdwg.mxu0
      %1734 = vst.msk [vmem:[#allocation2] sm:$0xff] %vm504, %v1342
      %1735 = vst.msk [vmem:[#allocation2 + $0x8] sm:$0xff] %vm504, %v1368
      %1736 = vst.msk [vmem:[#allocation2 + $0x10] sm:$0xff] %vm504, %v1394
      %1737 = vst.msk [vmem:[#allocation2 + $0x18] sm:$0xff] %vm504, %v1420
      %1738 = vst.msk [vmem:[#allocation2 + $0x20] sm:$0xff] %vm504, %v1446
      %1739 = vst.msk [vmem:[#allocation2 + $0x28] sm:$0xff] %vm504, %v1472
      %1740 = vst.msk [vmem:[#allocation2 + $0x30] sm:$0xff] %vm504, %v1498
      %1741 = vst.msk [vmem:[#allocation2 + $0x38] sm:$0xff] %vm504, %v1524
      %1742 = vst.msk [vmem:[#allocation2 + $0x40] sm:$0xff] %vm504, %v1550
      %1743 = vst.msk [vmem:[#allocation2 + $0x48] sm:$0xff] %vm504, %v1576
      %1744 = vst.msk [vmem:[#allocation2 + $0x50] sm:$0xff] %vm504, %v1602
      %1745 = vst.msk [vmem:[#allocation2 + $0x58] sm:$0xff] %vm504, %v1628
      %1746 = vst.msk [vmem:[#allocation2 + $0x60] sm:$0xff] %vm504, %v1654
      %1747 = vst.msk [vmem:[#allocation2 + $0x68] sm:$0xff] %vm504, %v1680
      %1748 = vst.msk [vmem:[#allocation2 + $0x70] sm:$0xff] %vm504, %v1706
      %1749 = vst.msk [vmem:[#allocation2 + $0x78] sm:$0xff] %vm504, %v1732
      %1750 = vrot.lane.b32.xlu0 %v454, 120
      %v1751 = vpop.permute.xlu0 %1750
      %1752 = vrot.lane.b32.xlu0 %v454, 88
      %v1753 = vpop.permute.xlu0 %1752
      %v1754 = vsel %vm504, %v1751, 0
      %v1756 = vsel %vm504, %v1753, 0
      %1758 = vmatpush.xpose.msra.mxu0 0.0
      %1759 = vmatpush.xpose.msra.mxu0 0.0
      %1760 = vmatpush.xpose.msra.mxu0 0.0
      %1761 = vmatpush.xpose.msra.mxu0 0.0
      %1762 = vmatpush.xpose.msra.mxu0 0.0
      %1763 = vmatpush.xpose.msra.mxu0 0.0
      %1764 = vmatpush.xpose.msra.mxu0 0.0
      %1765 = vmatpush.xpose.msra.mxu0 0.0
      %1766 = vmatpush.xpose.msra.mxu0 0.0
      %1767 = vmatpush.xpose.msra.mxu0 0.0
      %1768 = vmatpush.xpose.msra.mxu0 0.0
      %1769 = vmatpush.xpose.msra.mxu0 0.0
      %1770 = vmatpush.xpose.msra.mxu0 0.0
      %1771 = vmatpush.xpose.msra.mxu0 0.0
      %1772 = vmatpush.xpose.msra.mxu0 0.0
      %1773 = vmatpush.xpose.msra.mxu0 %v1756
      %1774 = vmatmul.f32.gmra.mxu0 %v1754
      %v1775 = vpop.f32.mrf.mxu0
      %v1776 = vadd.f32 0.0, %v1775
      %1777 = vdwg.mxu0
      %1778 = vrot.lane.b32.xlu0 %v457, 120
      %v1779 = vpop.permute.xlu0 %1778
      %1780 = vrot.lane.b32.xlu0 %v457, 88
      %v1781 = vpop.permute.xlu0 %1780
      %v1782 = vsel %vm504, %v1779, 0
      %v1784 = vsel %vm504, %v1781, 0
      %1786 = vmatpush.xpose.msra.mxu0 0.0
      %1787 = vmatpush.xpose.msra.mxu0 0.0
      %1788 = vmatpush.xpose.msra.mxu0 0.0
      %1789 = vmatpush.xpose.msra.mxu0 0.0
      %1790 = vmatpush.xpose.msra.mxu0 0.0
      %1791 = vmatpush.xpose.msra.mxu0 0.0
      %1792 = vmatpush.xpose.msra.mxu0 0.0
      %1793 = vmatpush.xpose.msra.mxu0 0.0
      %1794 = vmatpush.xpose.msra.mxu0 0.0
      %1795 = vmatpush.xpose.msra.mxu0 0.0
      %1796 = vmatpush.xpose.msra.mxu0 0.0
      %1797 = vmatpush.xpose.msra.mxu0 0.0
      %1798 = vmatpush.xpose.msra.mxu0 0.0
      %1799 = vmatpush.xpose.msra.mxu0 0.0
      %1800 = vmatpush.xpose.msra.mxu0 0.0
      %1801 = vmatpush.xpose.msra.mxu0 %v1784
      %1802 = vmatmul.f32.gmra.mxu0 %v1782
      %v1803 = vpop.f32.mrf.mxu0
      %v1804 = vadd.f32 0.0, %v1803
      %1805 = vdwg.mxu0
      %1806 = vrot.lane.b32.xlu0 %v460, 120
      %v1807 = vpop.permute.xlu0 %1806
      %1808 = vrot.lane.b32.xlu0 %v460, 88
      %v1809 = vpop.permute.xlu0 %1808
      %v1810 = vsel %vm504, %v1807, 0
      %v1812 = vsel %vm504, %v1809, 0
      %1814 = vmatpush.xpose.msra.mxu0 0.0
      %1815 = vmatpush.xpose.msra.mxu0 0.0
      %1816 = vmatpush.xpose.msra.mxu0 0.0
      %1817 = vmatpush.xpose.msra.mxu0 0.0
      %1818 = vmatpush.xpose.msra.mxu0 0.0
      %1819 = vmatpush.xpose.msra.mxu0 0.0
      %1820 = vmatpush.xpose.msra.mxu0 0.0
      %1821 = vmatpush.xpose.msra.mxu0 0.0
      %1822 = vmatpush.xpose.msra.mxu0 0.0
      %1823 = vmatpush.xpose.msra.mxu0 0.0
      %1824 = vmatpush.xpose.msra.mxu0 0.0
      %1825 = vmatpush.xpose.msra.mxu0 0.0
      %1826 = vmatpush.xpose.msra.mxu0 0.0
      %1827 = vmatpush.xpose.msra.mxu0 0.0
      %1828 = vmatpush.xpose.msra.mxu0 0.0
      %1829 = vmatpush.xpose.msra.mxu0 %v1812
      %1830 = vmatmul.f32.gmra.mxu0 %v1810
      %v1831 = vpop.f32.mrf.mxu0
      %v1832 = vadd.f32 0.0, %v1831
      %1833 = vdwg.mxu0
      %1834 = vrot.lane.b32.xlu0 %v463, 120
      %v1835 = vpop.permute.xlu0 %1834
      %1836 = vrot.lane.b32.xlu0 %v463, 88
      %v1837 = vpop.permute.xlu0 %1836
      %v1838 = vsel %vm504, %v1835, 0
      %v1840 = vsel %vm504, %v1837, 0
      %1842 = vmatpush.xpose.msra.mxu0 0.0
      %1843 = vmatpush.xpose.msra.mxu0 0.0
      %1844 = vmatpush.xpose.msra.mxu0 0.0
      %1845 = vmatpush.xpose.msra.mxu0 0.0
      %1846 = vmatpush.xpose.msra.mxu0 0.0
      %1847 = vmatpush.xpose.msra.mxu0 0.0
      %1848 = vmatpush.xpose.msra.mxu0 0.0
      %1849 = vmatpush.xpose.msra.mxu0 0.0
      %1850 = vmatpush.xpose.msra.mxu0 0.0
      %1851 = vmatpush.xpose.msra.mxu0 0.0
      %1852 = vmatpush.xpose.msra.mxu0 0.0
      %1853 = vmatpush.xpose.msra.mxu0 0.0
      %1854 = vmatpush.xpose.msra.mxu0 0.0
      %1855 = vmatpush.xpose.msra.mxu0 0.0
      %1856 = vmatpush.xpose.msra.mxu0 0.0
      %1857 = vmatpush.xpose.msra.mxu0 %v1840
      %1858 = vmatmul.f32.gmra.mxu0 %v1838
      %v1859 = vpop.f32.mrf.mxu0
      %v1860 = vadd.f32 0.0, %v1859
      %1861 = vdwg.mxu0
      %1862 = vrot.lane.b32.xlu0 %v466, 120
      %v1863 = vpop.permute.xlu0 %1862
      %1864 = vrot.lane.b32.xlu0 %v466, 88
      %v1865 = vpop.permute.xlu0 %1864
      %v1866 = vsel %vm504, %v1863, 0
      %v1868 = vsel %vm504, %v1865, 0
      %1870 = vmatpush.xpose.msra.mxu0 0.0
      %1871 = vmatpush.xpose.msra.mxu0 0.0
      %1872 = vmatpush.xpose.msra.mxu0 0.0
      %1873 = vmatpush.xpose.msra.mxu0 0.0
      %1874 = vmatpush.xpose.msra.mxu0 0.0
      %1875 = vmatpush.xpose.msra.mxu0 0.0
      %1876 = vmatpush.xpose.msra.mxu0 0.0
      %1877 = vmatpush.xpose.msra.mxu0 0.0
      %1878 = vmatpush.xpose.msra.mxu0 0.0
      %1879 = vmatpush.xpose.msra.mxu0 0.0
      %1880 = vmatpush.xpose.msra.mxu0 0.0
      %1881 = vmatpush.xpose.msra.mxu0 0.0
      %1882 = vmatpush.xpose.msra.mxu0 0.0
      %1883 = vmatpush.xpose.msra.mxu0 0.0
      %1884 = vmatpush.xpose.msra.mxu0 0.0
      %1885 = vmatpush.xpose.msra.mxu0 %v1868
      %1886 = vmatmul.f32.gmra.mxu0 %v1866
      %v1887 = vpop.f32.mrf.mxu0
      %v1888 = vadd.f32 0.0, %v1887
      %1889 = vdwg.mxu0
      %1890 = vrot.lane.b32.xlu0 %v469, 120
      %v1891 = vpop.permute.xlu0 %1890
      %1892 = vrot.lane.b32.xlu0 %v469, 88
      %v1893 = vpop.permute.xlu0 %1892
      %v1894 = vsel %vm504, %v1891, 0
      %v1896 = vsel %vm504, %v1893, 0
      %1898 = vmatpush.xpose.msra.mxu0 0.0
      %1899 = vmatpush.xpose.msra.mxu0 0.0
      %1900 = vmatpush.xpose.msra.mxu0 0.0
      %1901 = vmatpush.xpose.msra.mxu0 0.0
      %1902 = vmatpush.xpose.msra.mxu0 0.0
      %1903 = vmatpush.xpose.msra.mxu0 0.0
      %1904 = vmatpush.xpose.msra.mxu0 0.0
      %1905 = vmatpush.xpose.msra.mxu0 0.0
      %1906 = vmatpush.xpose.msra.mxu0 0.0
      %1907 = vmatpush.xpose.msra.mxu0 0.0
      %1908 = vmatpush.xpose.msra.mxu0 0.0
      %1909 = vmatpush.xpose.msra.mxu0 0.0
      %1910 = vmatpush.xpose.msra.mxu0 0.0
      %1911 = vmatpush.xpose.msra.mxu0 0.0
      %1912 = vmatpush.xpose.msra.mxu0 0.0
      %1913 = vmatpush.xpose.msra.mxu0 %v1896
      %1914 = vmatmul.f32.gmra.mxu0 %v1894
      %v1915 = vpop.f32.mrf.mxu0
      %v1916 = vadd.f32 0.0, %v1915
      %1917 = vdwg.mxu0
      %1918 = vrot.lane.b32.xlu0 %v472, 120
      %v1919 = vpop.permute.xlu0 %1918
      %1920 = vrot.lane.b32.xlu0 %v472, 88
      %v1921 = vpop.permute.xlu0 %1920
      %v1922 = vsel %vm504, %v1919, 0
      %v1924 = vsel %vm504, %v1921, 0
      %1926 = vmatpush.xpose.msra.mxu0 0.0
      %1927 = vmatpush.xpose.msra.mxu0 0.0
      %1928 = vmatpush.xpose.msra.mxu0 0.0
      %1929 = vmatpush.xpose.msra.mxu0 0.0
      %1930 = vmatpush.xpose.msra.mxu0 0.0
      %1931 = vmatpush.xpose.msra.mxu0 0.0
      %1932 = vmatpush.xpose.msra.mxu0 0.0
      %1933 = vmatpush.xpose.msra.mxu0 0.0
      %1934 = vmatpush.xpose.msra.mxu0 0.0
      %1935 = vmatpush.xpose.msra.mxu0 0.0
      %1936 = vmatpush.xpose.msra.mxu0 0.0
      %1937 = vmatpush.xpose.msra.mxu0 0.0
      %1938 = vmatpush.xpose.msra.mxu0 0.0
      %1939 = vmatpush.xpose.msra.mxu0 0.0
      %1940 = vmatpush.xpose.msra.mxu0 0.0
      %1941 = vmatpush.xpose.msra.mxu0 %v1924
      %1942 = vmatmul.f32.gmra.mxu0 %v1922
      %v1943 = vpop.f32.mrf.mxu0
      %v1944 = vadd.f32 0.0, %v1943
      %1945 = vdwg.mxu0
      %1946 = vrot.lane.b32.xlu0 %v475, 120
      %v1947 = vpop.permute.xlu0 %1946
      %1948 = vrot.lane.b32.xlu0 %v475, 88
      %v1949 = vpop.permute.xlu0 %1948
      %v1950 = vsel %vm504, %v1947, 0
      %v1952 = vsel %vm504, %v1949, 0
      %1954 = vmatpush.xpose.msra.mxu0 0.0
      %1955 = vmatpush.xpose.msra.mxu0 0.0
      %1956 = vmatpush.xpose.msra.mxu0 0.0
      %1957 = vmatpush.xpose.msra.mxu0 0.0
      %1958 = vmatpush.xpose.msra.mxu0 0.0
      %1959 = vmatpush.xpose.msra.mxu0 0.0
      %1960 = vmatpush.xpose.msra.mxu0 0.0
      %1961 = vmatpush.xpose.msra.mxu0 0.0
      %1962 = vmatpush.xpose.msra.mxu0 0.0
      %1963 = vmatpush.xpose.msra.mxu0 0.0
      %1964 = vmatpush.xpose.msra.mxu0 0.0
      %1965 = vmatpush.xpose.msra.mxu0 0.0
      %1966 = vmatpush.xpose.msra.mxu0 0.0
      %1967 = vmatpush.xpose.msra.mxu0 0.0
      %1968 = vmatpush.xpose.msra.mxu0 0.0
      %1969 = vmatpush.xpose.msra.mxu0 %v1952
      %1970 = vmatmul.f32.gmra.mxu0 %v1950
      %v1971 = vpop.f32.mrf.mxu0
      %v1972 = vadd.f32 0.0, %v1971
      %1973 = vdwg.mxu0
      %1974 = vrot.lane.b32.xlu0 %v478, 120
      %v1975 = vpop.permute.xlu0 %1974
      %1976 = vrot.lane.b32.xlu0 %v478, 88
      %v1977 = vpop.permute.xlu0 %1976
      %v1978 = vsel %vm504, %v1975, 0
      %v1980 = vsel %vm504, %v1977, 0
      %1982 = vmatpush.xpose.msra.mxu0 0.0
      %1983 = vmatpush.xpose.msra.mxu0 0.0
      %1984 = vmatpush.xpose.msra.mxu0 0.0
      %1985 = vmatpush.xpose.msra.mxu0 0.0
      %1986 = vmatpush.xpose.msra.mxu0 0.0
      %1987 = vmatpush.xpose.msra.mxu0 0.0
      %1988 = vmatpush.xpose.msra.mxu0 0.0
      %1989 = vmatpush.xpose.msra.mxu0 0.0
      %1990 = vmatpush.xpose.msra.mxu0 0.0
      %1991 = vmatpush.xpose.msra.mxu0 0.0
      %1992 = vmatpush.xpose.msra.mxu0 0.0
      %1993 = vmatpush.xpose.msra.mxu0 0.0
      %1994 = vmatpush.xpose.msra.mxu0 0.0
      %1995 = vmatpush.xpose.msra.mxu0 0.0
      %1996 = vmatpush.xpose.msra.mxu0 0.0
      %1997 = vmatpush.xpose.msra.mxu0 %v1980
      %1998 = vmatmul.f32.gmra.mxu0 %v1978
      %v1999 = vpop.f32.mrf.mxu0
      %v2000 = vadd.f32 0.0, %v1999
      %2001 = vdwg.mxu0
      %2002 = vrot.lane.b32.xlu0 %v481, 120
      %v2003 = vpop.permute.xlu0 %2002
      %2004 = vrot.lane.b32.xlu0 %v481, 88
      %v2005 = vpop.permute.xlu0 %2004
      %v2006 = vsel %vm504, %v2003, 0
      %v2008 = vsel %vm504, %v2005, 0
      %2010 = vmatpush.xpose.msra.mxu0 0.0
      %2011 = vmatpush.xpose.msra.mxu0 0.0
      %2012 = vmatpush.xpose.msra.mxu0 0.0
      %2013 = vmatpush.xpose.msra.mxu0 0.0
      %2014 = vmatpush.xpose.msra.mxu0 0.0
      %2015 = vmatpush.xpose.msra.mxu0 0.0
      %2016 = vmatpush.xpose.msra.mxu0 0.0
      %2017 = vmatpush.xpose.msra.mxu0 0.0
      %2018 = vmatpush.xpose.msra.mxu0 0.0
      %2019 = vmatpush.xpose.msra.mxu0 0.0
      %2020 = vmatpush.xpose.msra.mxu0 0.0
      %2021 = vmatpush.xpose.msra.mxu0 0.0
      %2022 = vmatpush.xpose.msra.mxu0 0.0
      %2023 = vmatpush.xpose.msra.mxu0 0.0
      %2024 = vmatpush.xpose.msra.mxu0 0.0
      %2025 = vmatpush.xpose.msra.mxu0 %v2008
      %2026 = vmatmul.f32.gmra.mxu0 %v2006
      %v2027 = vpop.f32.mrf.mxu0
      %v2028 = vadd.f32 0.0, %v2027
      %2029 = vdwg.mxu0
      %2030 = vrot.lane.b32.xlu0 %v484, 120
      %v2031 = vpop.permute.xlu0 %2030
      %2032 = vrot.lane.b32.xlu0 %v484, 88
      %v2033 = vpop.permute.xlu0 %2032
      %v2034 = vsel %vm504, %v2031, 0
      %v2036 = vsel %vm504, %v2033, 0
      %2038 = vmatpush.xpose.msra.mxu0 0.0
      %2039 = vmatpush.xpose.msra.mxu0 0.0
      %2040 = vmatpush.xpose.msra.mxu0 0.0
      %2041 = vmatpush.xpose.msra.mxu0 0.0
      %2042 = vmatpush.xpose.msra.mxu0 0.0
      %2043 = vmatpush.xpose.msra.mxu0 0.0
      %2044 = vmatpush.xpose.msra.mxu0 0.0
      %2045 = vmatpush.xpose.msra.mxu0 0.0
      %2046 = vmatpush.xpose.msra.mxu0 0.0
      %2047 = vmatpush.xpose.msra.mxu0 0.0
      %2048 = vmatpush.xpose.msra.mxu0 0.0
      %2049 = vmatpush.xpose.msra.mxu0 0.0
      %2050 = vmatpush.xpose.msra.mxu0 0.0
      %2051 = vmatpush.xpose.msra.mxu0 0.0
      %2052 = vmatpush.xpose.msra.mxu0 0.0
      %2053 = vmatpush.xpose.msra.mxu0 %v2036
      %2054 = vmatmul.f32.gmra.mxu0 %v2034
      %v2055 = vpop.f32.mrf.mxu0
      %v2056 = vadd.f32 0.0, %v2055
      %2057 = vdwg.mxu0
      %2058 = vrot.lane.b32.xlu0 %v487, 120
      %v2059 = vpop.permute.xlu0 %2058
      %2060 = vrot.lane.b32.xlu0 %v487, 88
      %v2061 = vpop.permute.xlu0 %2060
      %v2062 = vsel %vm504, %v2059, 0
      %v2064 = vsel %vm504, %v2061, 0
      %2066 = vmatpush.xpose.msra.mxu0 0.0
      %2067 = vmatpush.xpose.msra.mxu0 0.0
      %2068 = vmatpush.xpose.msra.mxu0 0.0
      %2069 = vmatpush.xpose.msra.mxu0 0.0
      %2070 = vmatpush.xpose.msra.mxu0 0.0
      %2071 = vmatpush.xpose.msra.mxu0 0.0
      %2072 = vmatpush.xpose.msra.mxu0 0.0
      %2073 = vmatpush.xpose.msra.mxu0 0.0
      %2074 = vmatpush.xpose.msra.mxu0 0.0
      %2075 = vmatpush.xpose.msra.mxu0 0.0
      %2076 = vmatpush.xpose.msra.mxu0 0.0
      %2077 = vmatpush.xpose.msra.mxu0 0.0
      %2078 = vmatpush.xpose.msra.mxu0 0.0
      %2079 = vmatpush.xpose.msra.mxu0 0.0
      %2080 = vmatpush.xpose.msra.mxu0 0.0
      %2081 = vmatpush.xpose.msra.mxu0 %v2064
      %2082 = vmatmul.f32.gmra.mxu0 %v2062
      %v2083 = vpop.f32.mrf.mxu0
      %v2084 = vadd.f32 0.0, %v2083
      %2085 = vdwg.mxu0
      %2086 = vrot.lane.b32.xlu0 %v490, 120
      %v2087 = vpop.permute.xlu0 %2086
      %2088 = vrot.lane.b32.xlu0 %v490, 88
      %v2089 = vpop.permute.xlu0 %2088
      %v2090 = vsel %vm504, %v2087, 0
      %v2092 = vsel %vm504, %v2089, 0
      %2094 = vmatpush.xpose.msra.mxu0 0.0
      %2095 = vmatpush.xpose.msra.mxu0 0.0
      %2096 = vmatpush.xpose.msra.mxu0 0.0
      %2097 = vmatpush.xpose.msra.mxu0 0.0
      %2098 = vmatpush.xpose.msra.mxu0 0.0
      %2099 = vmatpush.xpose.msra.mxu0 0.0
      %2100 = vmatpush.xpose.msra.mxu0 0.0
      %2101 = vmatpush.xpose.msra.mxu0 0.0
      %2102 = vmatpush.xpose.msra.mxu0 0.0
      %2103 = vmatpush.xpose.msra.mxu0 0.0
      %2104 = vmatpush.xpose.msra.mxu0 0.0
      %2105 = vmatpush.xpose.msra.mxu0 0.0
      %2106 = vmatpush.xpose.msra.mxu0 0.0
      %2107 = vmatpush.xpose.msra.mxu0 0.0
      %2108 = vmatpush.xpose.msra.mxu0 0.0
      %2109 = vmatpush.xpose.msra.mxu0 %v2092
      %2110 = vmatmul.f32.gmra.mxu0 %v2090
      %v2111 = vpop.f32.mrf.mxu0
      %v2112 = vadd.f32 0.0, %v2111
      %2113 = vdwg.mxu0
      %2114 = vrot.lane.b32.xlu0 %v493, 120
      %v2115 = vpop.permute.xlu0 %2114
      %2116 = vrot.lane.b32.xlu0 %v493, 88
      %v2117 = vpop.permute.xlu0 %2116
      %v2118 = vsel %vm504, %v2115, 0
      %v2120 = vsel %vm504, %v2117, 0
      %2122 = vmatpush.xpose.msra.mxu0 0.0
      %2123 = vmatpush.xpose.msra.mxu0 0.0
      %2124 = vmatpush.xpose.msra.mxu0 0.0
      %2125 = vmatpush.xpose.msra.mxu0 0.0
      %2126 = vmatpush.xpose.msra.mxu0 0.0
      %2127 = vmatpush.xpose.msra.mxu0 0.0
      %2128 = vmatpush.xpose.msra.mxu0 0.0
      %2129 = vmatpush.xpose.msra.mxu0 0.0
      %2130 = vmatpush.xpose.msra.mxu0 0.0
      %2131 = vmatpush.xpose.msra.mxu0 0.0
      %2132 = vmatpush.xpose.msra.mxu0 0.0
      %2133 = vmatpush.xpose.msra.mxu0 0.0
      %2134 = vmatpush.xpose.msra.mxu0 0.0
      %2135 = vmatpush.xpose.msra.mxu0 0.0
      %2136 = vmatpush.xpose.msra.mxu0 0.0
      %2137 = vmatpush.xpose.msra.mxu0 %v2120
      %2138 = vmatmul.f32.gmra.mxu0 %v2118
      %v2139 = vpop.f32.mrf.mxu0
      %v2140 = vadd.f32 0.0, %v2139
      %2141 = vdwg.mxu0
      %2142 = vrot.lane.b32.xlu0 %v496, 120
      %v2143 = vpop.permute.xlu0 %2142
      %2144 = vrot.lane.b32.xlu0 %v496, 88
      %v2145 = vpop.permute.xlu0 %2144
      %v2146 = vsel %vm504, %v2143, 0
      %v2148 = vsel %vm504, %v2145, 0
      %2150 = vmatpush.xpose.msra.mxu0 0.0
      %2151 = vmatpush.xpose.msra.mxu0 0.0
      %2152 = vmatpush.xpose.msra.mxu0 0.0
      %2153 = vmatpush.xpose.msra.mxu0 0.0
      %2154 = vmatpush.xpose.msra.mxu0 0.0
      %2155 = vmatpush.xpose.msra.mxu0 0.0
      %2156 = vmatpush.xpose.msra.mxu0 0.0
      %2157 = vmatpush.xpose.msra.mxu0 0.0
      %2158 = vmatpush.xpose.msra.mxu0 0.0
      %2159 = vmatpush.xpose.msra.mxu0 0.0
      %2160 = vmatpush.xpose.msra.mxu0 0.0
      %2161 = vmatpush.xpose.msra.mxu0 0.0
      %2162 = vmatpush.xpose.msra.mxu0 0.0
      %2163 = vmatpush.xpose.msra.mxu0 0.0
      %2164 = vmatpush.xpose.msra.mxu0 0.0
      %2165 = vmatpush.xpose.msra.mxu0 %v2148
      %2166 = vmatmul.f32.gmra.mxu0 %v2146
      %v2167 = vpop.f32.mrf.mxu0
      %v2168 = vadd.f32 0.0, %v2167
      %2169 = vdwg.mxu0
      %2170 = vrot.lane.b32.xlu0 %v499, 120
      %v2171 = vpop.permute.xlu0 %2170
      %2172 = vrot.lane.b32.xlu0 %v499, 88
      %v2173 = vpop.permute.xlu0 %2172
      %v2174 = vsel %vm504, %v2171, 0
      %v2176 = vsel %vm504, %v2173, 0
      %2178 = vmatpush.xpose.msra.mxu0 0.0
      %2179 = vmatpush.xpose.msra.mxu0 0.0
      %2180 = vmatpush.xpose.msra.mxu0 0.0
      %2181 = vmatpush.xpose.msra.mxu0 0.0
      %2182 = vmatpush.xpose.msra.mxu0 0.0
      %2183 = vmatpush.xpose.msra.mxu0 0.0
      %2184 = vmatpush.xpose.msra.mxu0 0.0
      %2185 = vmatpush.xpose.msra.mxu0 0.0
      %2186 = vmatpush.xpose.msra.mxu0 0.0
      %2187 = vmatpush.xpose.msra.mxu0 0.0
      %2188 = vmatpush.xpose.msra.mxu0 0.0
      %2189 = vmatpush.xpose.msra.mxu0 0.0
      %2190 = vmatpush.xpose.msra.mxu0 0.0
      %2191 = vmatpush.xpose.msra.mxu0 0.0
      %2192 = vmatpush.xpose.msra.mxu0 0.0
      %2193 = vmatpush.xpose.msra.mxu0 %v2176
      %2194 = vmatmul.f32.gmra.mxu0 %v2174
      %v2195 = vpop.f32.mrf.mxu0
      %v2196 = vadd.f32 0.0, %v2195
      %2197 = vdwg.mxu0
      %v2198 = vsel %vm504, %v1776, -inf
      %2199 = vmax.xlane.f32.xlu0 %v2198
      %v2200 = vpop.xlane.xlu0 %2199
      %v2201 = vsel %vm504, %v1804, -inf
      %2202 = vmax.xlane.f32.xlu0 %v2201
      %v2203 = vpop.xlane.xlu0 %2202
      %v2204 = vsel %vm504, %v1832, -inf
      %2205 = vmax.xlane.f32.xlu0 %v2204
      %v2206 = vpop.xlane.xlu0 %2205
      %v2207 = vsel %vm504, %v1860, -inf
      %2208 = vmax.xlane.f32.xlu0 %v2207
      %v2209 = vpop.xlane.xlu0 %2208
      %v2210 = vsel %vm504, %v1888, -inf
      %2211 = vmax.xlane.f32.xlu0 %v2210
      %v2212 = vpop.xlane.xlu0 %2211
      %v2213 = vsel %vm504, %v1916, -inf
      %2214 = vmax.xlane.f32.xlu0 %v2213
      %v2215 = vpop.xlane.xlu0 %2214
      %v2216 = vsel %vm504, %v1944, -inf
      %2217 = vmax.xlane.f32.xlu0 %v2216
      %v2218 = vpop.xlane.xlu0 %2217
      %v2219 = vsel %vm504, %v1972, -inf
      %2220 = vmax.xlane.f32.xlu0 %v2219
      %v2221 = vpop.xlane.xlu0 %2220
      %v2222 = vsel %vm504, %v2000, -inf
      %2223 = vmax.xlane.f32.xlu0 %v2222
      %v2224 = vpop.xlane.xlu0 %2223
      %v2225 = vsel %vm504, %v2028, -inf
      %2226 = vmax.xlane.f32.xlu0 %v2225
      %v2227 = vpop.xlane.xlu0 %2226
      %v2228 = vsel %vm504, %v2056, -inf
      %2229 = vmax.xlane.f32.xlu0 %v2228
      %v2230 = vpop.xlane.xlu0 %2229
      %v2231 = vsel %vm504, %v2084, -inf
      %2232 = vmax.xlane.f32.xlu0 %v2231
      %v2233 = vpop.xlane.xlu0 %2232
      %v2234 = vsel %vm504, %v2112, -inf
      %2235 = vmax.xlane.f32.xlu0 %v2234
      %v2236 = vpop.xlane.xlu0 %2235
      %v2237 = vsel %vm504, %v2140, -inf
      %2238 = vmax.xlane.f32.xlu0 %v2237
      %v2239 = vpop.xlane.xlu0 %2238
      %v2240 = vsel %vm504, %v2168, -inf
      %2241 = vmax.xlane.f32.xlu0 %v2240
      %v2242 = vpop.xlane.xlu0 %2241
      %v2243 = vsel %vm504, %v2196, -inf
      %2244 = vmax.xlane.f32.xlu0 %v2243
      %v2245 = vpop.xlane.xlu0 %2244
      %v2246 = vsub.f32 %v1776, %v2200
      %v2247 = vsub.f32 %v1804, %v2203
      %v2248 = vsub.f32 %v1832, %v2206
      %v2249 = vsub.f32 %v1860, %v2209
      %v2250 = vsub.f32 %v1888, %v2212
      %v2251 = vsub.f32 %v1916, %v2215
      %v2252 = vsub.f32 %v1944, %v2218
      %v2253 = vsub.f32 %v1972, %v2221
      %v2254 = vsub.f32 %v2000, %v2224
      %v2255 = vsub.f32 %v2028, %v2227
      %v2256 = vsub.f32 %v2056, %v2230
      %v2257 = vsub.f32 %v2084, %v2233
      %v2258 = vsub.f32 %v2112, %v2236
      %v2259 = vsub.f32 %v2140, %v2239
      %v2260 = vsub.f32 %v2168, %v2242
      %v2261 = vsub.f32 %v2196, %v2245
      %v2262 = vmul.f32 %v2246, 1.442695
      %v2263 = vpow.pop %v2262
      %v2264 = vmul.f32 %v2247, 1.442695
      %v2265 = vpow.pop %v2264
      %v2266 = vmul.f32 %v2248, 1.442695
      %v2267 = vpow.pop %v2266
      %v2268 = vmul.f32 %v2249, 1.442695
      %v2269 = vpow.pop %v2268
      %v2270 = vmul.f32 %v2250, 1.442695
      %v2271 = vpow.pop %v2270
      %v2272 = vmul.f32 %v2251, 1.442695
      %v2273 = vpow.pop %v2272
      %v2274 = vmul.f32 %v2252, 1.442695
      %v2275 = vpow.pop %v2274
      %v2276 = vmul.f32 %v2253, 1.442695
      %v2277 = vpow.pop %v2276
      %v2278 = vmul.f32 %v2254, 1.442695
      %v2279 = vpow.pop %v2278
      %v2280 = vmul.f32 %v2255, 1.442695
      %v2281 = vpow.pop %v2280
      %v2282 = vmul.f32 %v2256, 1.442695
      %v2283 = vpow.pop %v2282
      %v2284 = vmul.f32 %v2257, 1.442695
      %v2285 = vpow.pop %v2284
      %v2286 = vmul.f32 %v2258, 1.442695
      %v2287 = vpow.pop %v2286
      %v2288 = vmul.f32 %v2259, 1.442695
      %v2289 = vpow.pop %v2288
      %v2290 = vmul.f32 %v2260, 1.442695
      %v2291 = vpow.pop %v2290
      %v2292 = vmul.f32 %v2261, 1.442695
      %v2293 = vpow.pop %v2292
      %v2294 = vsel %vm504, %v2263, 0.0
      %2295 = vadd.xlane.f32.xlu0 %v2294
      %v2296 = vpop.xlane.xlu0 %2295
      %v2297 = vsel %vm504, %v2265, 0.0
      %2298 = vadd.xlane.f32.xlu0 %v2297
      %v2299 = vpop.xlane.xlu0 %2298
      %v2300 = vsel %vm504, %v2267, 0.0
      %2301 = vadd.xlane.f32.xlu0 %v2300
      %v2302 = vpop.xlane.xlu0 %2301
      %v2303 = vsel %vm504, %v2269, 0.0
      %2304 = vadd.xlane.f32.xlu0 %v2303
      %v2305 = vpop.xlane.xlu0 %2304
      %v2306 = vsel %vm504, %v2271, 0.0
      %2307 = vadd.xlane.f32.xlu0 %v2306
      %v2308 = vpop.xlane.xlu0 %2307
      %v2309 = vsel %vm504, %v2273, 0.0
      %2310 = vadd.xlane.f32.xlu0 %v2309
      %v2311 = vpop.xlane.xlu0 %2310
      %v2312 = vsel %vm504, %v2275, 0.0
      %2313 = vadd.xlane.f32.xlu0 %v2312
      %v2314 = vpop.xlane.xlu0 %2313
      %v2315 = vsel %vm504, %v2277, 0.0
      %2316 = vadd.xlane.f32.xlu0 %v2315
      %v2317 = vpop.xlane.xlu0 %2316
      %v2318 = vsel %vm504, %v2279, 0.0
      %2319 = vadd.xlane.f32.xlu0 %v2318
      %v2320 = vpop.xlane.xlu0 %2319
      %v2321 = vsel %vm504, %v2281, 0.0
      %2322 = vadd.xlane.f32.xlu0 %v2321
      %v2323 = vpop.xlane.xlu0 %2322
      %v2324 = vsel %vm504, %v2283, 0.0
      %2325 = vadd.xlane.f32.xlu0 %v2324
      %v2326 = vpop.xlane.xlu0 %2325
      %v2327 = vsel %vm504, %v2285, 0.0
      %2328 = vadd.xlane.f32.xlu0 %v2327
      %v2329 = vpop.xlane.xlu0 %2328
      %v2330 = vsel %vm504, %v2287, 0.0
      %2331 = vadd.xlane.f32.xlu0 %v2330
      %v2332 = vpop.xlane.xlu0 %2331
      %v2333 = vsel %vm504, %v2289, 0.0
      %2334 = vadd.xlane.f32.xlu0 %v2333
      %v2335 = vpop.xlane.xlu0 %2334
      %v2336 = vsel %vm504, %v2291, 0.0
      %2337 = vadd.xlane.f32.xlu0 %v2336
      %v2338 = vpop.xlane.xlu0 %2337
      %v2339 = vsel %vm504, %v2293, 0.0
      %2340 = vadd.xlane.f32.xlu0 %v2339
      %v2341 = vpop.xlane.xlu0 %2340
      %v2342 = vrcp.pop %v2296
      %v2343 = vmul.f32 %v2296, %v2342
      %v2344 = vsub.f32 1.0, %v2343
      %v2345 = vmul.f32 %v2342, %v2344
      %v2346 = vadd.f32 %v2342, %v2345
      %vm2347 = vweird.f32 %v2296
      %vm2348 = vweird.f32 %v2342
      %vm2349 = vmor %vm2347, %vm2348
      %v2350 = vsel %vm2349, %v2342, %v2346
      %v2351 = vand.u32 2147483647, %v2296
      %vm2352 = vcmp.eq.f32.partialorder %v2351, 8.507059e+37
      %v2353 = vand.u32 %v2296, 2147483648
      %v2354 = vor.u32 1.1754944e-38, %v2353
      %v2355 = vsel %vm2352, %v2354, %v2350
      %v2356 = vmul.f32 %v2263, %v2355
      %v2357 = vrcp.pop %v2299
      %v2358 = vmul.f32 %v2299, %v2357
      %v2359 = vsub.f32 1.0, %v2358
      %v2360 = vmul.f32 %v2357, %v2359
      %v2361 = vadd.f32 %v2357, %v2360
      %vm2362 = vweird.f32 %v2299
      %vm2363 = vweird.f32 %v2357
      %vm2364 = vmor %vm2362, %vm2363
      %v2365 = vsel %vm2364, %v2357, %v2361
      %v2366 = vand.u32 2147483647, %v2299
      %vm2367 = vcmp.eq.f32.partialorder %v2366, 8.507059e+37
      %v2368 = vand.u32 %v2299, 2147483648
      %v2369 = vor.u32 1.1754944e-38, %v2368
      %v2370 = vsel %vm2367, %v2369, %v2365
      %v2371 = vmul.f32 %v2265, %v2370
      %v2372 = vrcp.pop %v2302
      %v2373 = vmul.f32 %v2302, %v2372
      %v2374 = vsub.f32 1.0, %v2373
      %v2375 = vmul.f32 %v2372, %v2374
      %v2376 = vadd.f32 %v2372, %v2375
      %vm2377 = vweird.f32 %v2302
      %vm2378 = vweird.f32 %v2372
      %vm2379 = vmor %vm2377, %vm2378
      %v2380 = vsel %vm2379, %v2372, %v2376
      %v2381 = vand.u32 2147483647, %v2302
      %vm2382 = vcmp.eq.f32.partialorder %v2381, 8.507059e+37
      %v2383 = vand.u32 %v2302, 2147483648
      %v2384 = vor.u32 1.1754944e-38, %v2383
      %v2385 = vsel %vm2382, %v2384, %v2380
      %v2386 = vmul.f32 %v2267, %v2385
      %v2387 = vrcp.pop %v2305
      %v2388 = vmul.f32 %v2305, %v2387
      %v2389 = vsub.f32 1.0, %v2388
      %v2390 = vmul.f32 %v2387, %v2389
      %v2391 = vadd.f32 %v2387, %v2390
      %vm2392 = vweird.f32 %v2305
      %vm2393 = vweird.f32 %v2387
      %vm2394 = vmor %vm2392, %vm2393
      %v2395 = vsel %vm2394, %v2387, %v2391
      %v2396 = vand.u32 2147483647, %v2305
      %vm2397 = vcmp.eq.f32.partialorder %v2396, 8.507059e+37
      %v2398 = vand.u32 %v2305, 2147483648
      %v2399 = vor.u32 1.1754944e-38, %v2398
      %v2400 = vsel %vm2397, %v2399, %v2395
      %v2401 = vmul.f32 %v2269, %v2400
      %v2402 = vrcp.pop %v2308
      %v2403 = vmul.f32 %v2308, %v2402
      %v2404 = vsub.f32 1.0, %v2403
      %v2405 = vmul.f32 %v2402, %v2404
      %v2406 = vadd.f32 %v2402, %v2405
      %vm2407 = vweird.f32 %v2308
      %vm2408 = vweird.f32 %v2402
      %vm2409 = vmor %vm2407, %vm2408
      %v2410 = vsel %vm2409, %v2402, %v2406
      %v2411 = vand.u32 2147483647, %v2308
      %vm2412 = vcmp.eq.f32.partialorder %v2411, 8.507059e+37
      %v2413 = vand.u32 %v2308, 2147483648
      %v2414 = vor.u32 1.1754944e-38, %v2413
      %v2415 = vsel %vm2412, %v2414, %v2410
      %v2416 = vmul.f32 %v2271, %v2415
      %v2417 = vrcp.pop %v2311
      %v2418 = vmul.f32 %v2311, %v2417
      %v2419 = vsub.f32 1.0, %v2418
      %v2420 = vmul.f32 %v2417, %v2419
      %v2421 = vadd.f32 %v2417, %v2420
      %vm2422 = vweird.f32 %v2311
      %vm2423 = vweird.f32 %v2417
      %vm2424 = vmor %vm2422, %vm2423
      %v2425 = vsel %vm2424, %v2417, %v2421
      %v2426 = vand.u32 2147483647, %v2311
      %vm2427 = vcmp.eq.f32.partialorder %v2426, 8.507059e+37
      %v2428 = vand.u32 %v2311, 2147483648
      %v2429 = vor.u32 1.1754944e-38, %v2428
      %v2430 = vsel %vm2427, %v2429, %v2425
      %v2431 = vmul.f32 %v2273, %v2430
      %v2432 = vrcp.pop %v2314
      %v2433 = vmul.f32 %v2314, %v2432
      %v2434 = vsub.f32 1.0, %v2433
      %v2435 = vmul.f32 %v2432, %v2434
      %v2436 = vadd.f32 %v2432, %v2435
      %vm2437 = vweird.f32 %v2314
      %vm2438 = vweird.f32 %v2432
      %vm2439 = vmor %vm2437, %vm2438
      %v2440 = vsel %vm2439, %v2432, %v2436
      %v2441 = vand.u32 2147483647, %v2314
      %vm2442 = vcmp.eq.f32.partialorder %v2441, 8.507059e+37
      %v2443 = vand.u32 %v2314, 2147483648
      %v2444 = vor.u32 1.1754944e-38, %v2443
      %v2445 = vsel %vm2442, %v2444, %v2440
      %v2446 = vmul.f32 %v2275, %v2445
      %v2447 = vrcp.pop %v2317
      %v2448 = vmul.f32 %v2317, %v2447
      %v2449 = vsub.f32 1.0, %v2448
      %v2450 = vmul.f32 %v2447, %v2449
      %v2451 = vadd.f32 %v2447, %v2450
      %vm2452 = vweird.f32 %v2317
      %vm2453 = vweird.f32 %v2447
      %vm2454 = vmor %vm2452, %vm2453
      %v2455 = vsel %vm2454, %v2447, %v2451
      %v2456 = vand.u32 2147483647, %v2317
      %vm2457 = vcmp.eq.f32.partialorder %v2456, 8.507059e+37
      %v2458 = vand.u32 %v2317, 2147483648
      %v2459 = vor.u32 1.1754944e-38, %v2458
      %v2460 = vsel %vm2457, %v2459, %v2455
      %v2461 = vmul.f32 %v2277, %v2460
      %v2462 = vrcp.pop %v2320
      %v2463 = vmul.f32 %v2320, %v2462
      %v2464 = vsub.f32 1.0, %v2463
      %v2465 = vmul.f32 %v2462, %v2464
      %v2466 = vadd.f32 %v2462, %v2465
      %vm2467 = vweird.f32 %v2320
      %vm2468 = vweird.f32 %v2462
      %vm2469 = vmor %vm2467, %vm2468
      %v2470 = vsel %vm2469, %v2462, %v2466
      %v2471 = vand.u32 2147483647, %v2320
      %vm2472 = vcmp.eq.f32.partialorder %v2471, 8.507059e+37
      %v2473 = vand.u32 %v2320, 2147483648
      %v2474 = vor.u32 1.1754944e-38, %v2473
      %v2475 = vsel %vm2472, %v2474, %v2470
      %v2476 = vmul.f32 %v2279, %v2475
      %v2477 = vrcp.pop %v2323
      %v2478 = vmul.f32 %v2323, %v2477
      %v2479 = vsub.f32 1.0, %v2478
      %v2480 = vmul.f32 %v2477, %v2479
      %v2481 = vadd.f32 %v2477, %v2480
      %vm2482 = vweird.f32 %v2323
      %vm2483 = vweird.f32 %v2477
      %vm2484 = vmor %vm2482, %vm2483
      %v2485 = vsel %vm2484, %v2477, %v2481
      %v2486 = vand.u32 2147483647, %v2323
      %vm2487 = vcmp.eq.f32.partialorder %v2486, 8.507059e+37
      %v2488 = vand.u32 %v2323, 2147483648
      %v2489 = vor.u32 1.1754944e-38, %v2488
      %v2490 = vsel %vm2487, %v2489, %v2485
      %v2491 = vmul.f32 %v2281, %v2490
      %v2492 = vrcp.pop %v2326
      %v2493 = vmul.f32 %v2326, %v2492
      %v2494 = vsub.f32 1.0, %v2493
      %v2495 = vmul.f32 %v2492, %v2494
      %v2496 = vadd.f32 %v2492, %v2495
      %vm2497 = vweird.f32 %v2326
      %vm2498 = vweird.f32 %v2492
      %vm2499 = vmor %vm2497, %vm2498
      %v2500 = vsel %vm2499, %v2492, %v2496
      %v2501 = vand.u32 2147483647, %v2326
      %vm2502 = vcmp.eq.f32.partialorder %v2501, 8.507059e+37
      %v2503 = vand.u32 %v2326, 2147483648
      %v2504 = vor.u32 1.1754944e-38, %v2503
      %v2505 = vsel %vm2502, %v2504, %v2500
      %v2506 = vmul.f32 %v2283, %v2505
      %v2507 = vrcp.pop %v2329
      %v2508 = vmul.f32 %v2329, %v2507
      %v2509 = vsub.f32 1.0, %v2508
      %v2510 = vmul.f32 %v2507, %v2509
      %v2511 = vadd.f32 %v2507, %v2510
      %vm2512 = vweird.f32 %v2329
      %vm2513 = vweird.f32 %v2507
      %vm2514 = vmor %vm2512, %vm2513
      %v2515 = vsel %vm2514, %v2507, %v2511
      %v2516 = vand.u32 2147483647, %v2329
      %vm2517 = vcmp.eq.f32.partialorder %v2516, 8.507059e+37
      %v2518 = vand.u32 %v2329, 2147483648
      %v2519 = vor.u32 1.1754944e-38, %v2518
      %v2520 = vsel %vm2517, %v2519, %v2515
      %v2521 = vmul.f32 %v2285, %v2520
      %v2522 = vrcp.pop %v2332
      %v2523 = vmul.f32 %v2332, %v2522
      %v2524 = vsub.f32 1.0, %v2523
      %v2525 = vmul.f32 %v2522, %v2524
      %v2526 = vadd.f32 %v2522, %v2525
      %vm2527 = vweird.f32 %v2332
      %vm2528 = vweird.f32 %v2522
      %vm2529 = vmor %vm2527, %vm2528
      %v2530 = vsel %vm2529, %v2522, %v2526
      %v2531 = vand.u32 2147483647, %v2332
      %vm2532 = vcmp.eq.f32.partialorder %v2531, 8.507059e+37
      %v2533 = vand.u32 %v2332, 2147483648
      %v2534 = vor.u32 1.1754944e-38, %v2533
      %v2535 = vsel %vm2532, %v2534, %v2530
      %v2536 = vmul.f32 %v2287, %v2535
      %v2537 = vrcp.pop %v2335
      %v2538 = vmul.f32 %v2335, %v2537
      %v2539 = vsub.f32 1.0, %v2538
      %v2540 = vmul.f32 %v2537, %v2539
      %v2541 = vadd.f32 %v2537, %v2540
      %vm2542 = vweird.f32 %v2335
      %vm2543 = vweird.f32 %v2537
      %vm2544 = vmor %vm2542, %vm2543
      %v2545 = vsel %vm2544, %v2537, %v2541
      %v2546 = vand.u32 2147483647, %v2335
      %vm2547 = vcmp.eq.f32.partialorder %v2546, 8.507059e+37
      %v2548 = vand.u32 %v2335, 2147483648
      %v2549 = vor.u32 1.1754944e-38, %v2548
      %v2550 = vsel %vm2547, %v2549, %v2545
      %v2551 = vmul.f32 %v2289, %v2550
      %v2552 = vrcp.pop %v2338
      %v2553 = vmul.f32 %v2338, %v2552
      %v2554 = vsub.f32 1.0, %v2553
      %v2555 = vmul.f32 %v2552, %v2554
      %v2556 = vadd.f32 %v2552, %v2555
      %vm2557 = vweird.f32 %v2338
      %vm2558 = vweird.f32 %v2552
      %vm2559 = vmor %vm2557, %vm2558
      %v2560 = vsel %vm2559, %v2552, %v2556
      %v2561 = vand.u32 2147483647, %v2338
      %vm2562 = vcmp.eq.f32.partialorder %v2561, 8.507059e+37
      %v2563 = vand.u32 %v2338, 2147483648
      %v2564 = vor.u32 1.1754944e-38, %v2563
      %v2565 = vsel %vm2562, %v2564, %v2560
      %v2566 = vmul.f32 %v2291, %v2565
      %v2567 = vrcp.pop %v2341
      %v2568 = vmul.f32 %v2341, %v2567
      %v2569 = vsub.f32 1.0, %v2568
      %v2570 = vmul.f32 %v2567, %v2569
      %v2571 = vadd.f32 %v2567, %v2570
      %vm2572 = vweird.f32 %v2341
      %vm2573 = vweird.f32 %v2567
      %vm2574 = vmor %vm2572, %vm2573
      %v2575 = vsel %vm2574, %v2567, %v2571
      %v2576 = vand.u32 2147483647, %v2341
      %vm2577 = vcmp.eq.f32.partialorder %v2576, 8.507059e+37
      %v2578 = vand.u32 %v2341, 2147483648
      %v2579 = vor.u32 1.1754944e-38, %v2578
      %v2580 = vsel %vm2577, %v2579, %v2575
      %v2581 = vmul.f32 %v2293, %v2580
      %2582 = vrot.lane.b32.xlu0 %v454, 56
      %v2583 = vpop.permute.xlu0 %2582
      %v2586 = vsel %vm504, %v2356, 0
      %2588 = vmatpush.msra.mxu0 0.0
      %2589 = vmatpush.msra.mxu0 0.0
      %2590 = vmatpush.msra.mxu0 0.0
      %2591 = vmatpush.msra.mxu0 0.0
      %2592 = vmatpush.msra.mxu0 0.0
      %2593 = vmatpush.msra.mxu0 0.0
      %2594 = vmatpush.msra.mxu0 0.0
      %2595 = vmatpush.msra.mxu0 0.0
      %2596 = vmatpush.msra.mxu0 0.0
      %2597 = vmatpush.msra.mxu0 0.0
      %2598 = vmatpush.msra.mxu0 0.0
      %2599 = vmatpush.msra.mxu0 0.0
      %2600 = vmatpush.msra.mxu0 0.0
      %2601 = vmatpush.msra.mxu0 0.0
      %2602 = vmatpush.msra.mxu0 0.0
      %2603 = vmatpush.msra.mxu0 %v2583
      %2604 = vmatmul.f32.gmra.mxu0 %v2586
      %v2605 = vpop.f32.mrf.mxu0
      %v2606 = vadd.f32 0.0, %v2605
      %2607 = vdwg.mxu0
      %2608 = vrot.lane.b32.xlu0 %v457, 56
      %v2609 = vpop.permute.xlu0 %2608
      %v2612 = vsel %vm504, %v2371, 0
      %2614 = vmatpush.msra.mxu0 0.0
      %2615 = vmatpush.msra.mxu0 0.0
      %2616 = vmatpush.msra.mxu0 0.0
      %2617 = vmatpush.msra.mxu0 0.0
      %2618 = vmatpush.msra.mxu0 0.0
      %2619 = vmatpush.msra.mxu0 0.0
      %2620 = vmatpush.msra.mxu0 0.0
      %2621 = vmatpush.msra.mxu0 0.0
      %2622 = vmatpush.msra.mxu0 0.0
      %2623 = vmatpush.msra.mxu0 0.0
      %2624 = vmatpush.msra.mxu0 0.0
      %2625 = vmatpush.msra.mxu0 0.0
      %2626 = vmatpush.msra.mxu0 0.0
      %2627 = vmatpush.msra.mxu0 0.0
      %2628 = vmatpush.msra.mxu0 0.0
      %2629 = vmatpush.msra.mxu0 %v2609
      %2630 = vmatmul.f32.gmra.mxu0 %v2612
      %v2631 = vpop.f32.mrf.mxu0
      %v2632 = vadd.f32 0.0, %v2631
      %2633 = vdwg.mxu0
      %2634 = vrot.lane.b32.xlu0 %v460, 56
      %v2635 = vpop.permute.xlu0 %2634
      %v2638 = vsel %vm504, %v2386, 0
      %2640 = vmatpush.msra.mxu0 0.0
      %2641 = vmatpush.msra.mxu0 0.0
      %2642 = vmatpush.msra.mxu0 0.0
      %2643 = vmatpush.msra.mxu0 0.0
      %2644 = vmatpush.msra.mxu0 0.0
      %2645 = vmatpush.msra.mxu0 0.0
      %2646 = vmatpush.msra.mxu0 0.0
      %2647 = vmatpush.msra.mxu0 0.0
      %2648 = vmatpush.msra.mxu0 0.0
      %2649 = vmatpush.msra.mxu0 0.0
      %2650 = vmatpush.msra.mxu0 0.0
      %2651 = vmatpush.msra.mxu0 0.0
      %2652 = vmatpush.msra.mxu0 0.0
      %2653 = vmatpush.msra.mxu0 0.0
      %2654 = vmatpush.msra.mxu0 0.0
      %2655 = vmatpush.msra.mxu0 %v2635
      %2656 = vmatmul.f32.gmra.mxu0 %v2638
      %v2657 = vpop.f32.mrf.mxu0
      %v2658 = vadd.f32 0.0, %v2657
      %2659 = vdwg.mxu0
      %2660 = vrot.lane.b32.xlu0 %v463, 56
      %v2661 = vpop.permute.xlu0 %2660
      %v2664 = vsel %vm504, %v2401, 0
      %2666 = vmatpush.msra.mxu0 0.0
      %2667 = vmatpush.msra.mxu0 0.0
      %2668 = vmatpush.msra.mxu0 0.0
      %2669 = vmatpush.msra.mxu0 0.0
      %2670 = vmatpush.msra.mxu0 0.0
      %2671 = vmatpush.msra.mxu0 0.0
      %2672 = vmatpush.msra.mxu0 0.0
      %2673 = vmatpush.msra.mxu0 0.0
      %2674 = vmatpush.msra.mxu0 0.0
      %2675 = vmatpush.msra.mxu0 0.0
      %2676 = vmatpush.msra.mxu0 0.0
      %2677 = vmatpush.msra.mxu0 0.0
      %2678 = vmatpush.msra.mxu0 0.0
      %2679 = vmatpush.msra.mxu0 0.0
      %2680 = vmatpush.msra.mxu0 0.0
      %2681 = vmatpush.msra.mxu0 %v2661
      %2682 = vmatmul.f32.gmra.mxu0 %v2664
      %v2683 = vpop.f32.mrf.mxu0
      %v2684 = vadd.f32 0.0, %v2683
      %2685 = vdwg.mxu0
      %2686 = vrot.lane.b32.xlu0 %v466, 56
      %v2687 = vpop.permute.xlu0 %2686
      %v2690 = vsel %vm504, %v2416, 0
      %2692 = vmatpush.msra.mxu0 0.0
      %2693 = vmatpush.msra.mxu0 0.0
      %2694 = vmatpush.msra.mxu0 0.0
      %2695 = vmatpush.msra.mxu0 0.0
      %2696 = vmatpush.msra.mxu0 0.0
      %2697 = vmatpush.msra.mxu0 0.0
      %2698 = vmatpush.msra.mxu0 0.0
      %2699 = vmatpush.msra.mxu0 0.0
      %2700 = vmatpush.msra.mxu0 0.0
      %2701 = vmatpush.msra.mxu0 0.0
      %2702 = vmatpush.msra.mxu0 0.0
      %2703 = vmatpush.msra.mxu0 0.0
      %2704 = vmatpush.msra.mxu0 0.0
      %2705 = vmatpush.msra.mxu0 0.0
      %2706 = vmatpush.msra.mxu0 0.0
      %2707 = vmatpush.msra.mxu0 %v2687
      %2708 = vmatmul.f32.gmra.mxu0 %v2690
      %v2709 = vpop.f32.mrf.mxu0
      %v2710 = vadd.f32 0.0, %v2709
      %2711 = vdwg.mxu0
      %2712 = vrot.lane.b32.xlu0 %v469, 56
      %v2713 = vpop.permute.xlu0 %2712
      %v2716 = vsel %vm504, %v2431, 0
      %2718 = vmatpush.msra.mxu0 0.0
      %2719 = vmatpush.msra.mxu0 0.0
      %2720 = vmatpush.msra.mxu0 0.0
      %2721 = vmatpush.msra.mxu0 0.0
      %2722 = vmatpush.msra.mxu0 0.0
      %2723 = vmatpush.msra.mxu0 0.0
      %2724 = vmatpush.msra.mxu0 0.0
      %2725 = vmatpush.msra.mxu0 0.0
      %2726 = vmatpush.msra.mxu0 0.0
      %2727 = vmatpush.msra.mxu0 0.0
      %2728 = vmatpush.msra.mxu0 0.0
      %2729 = vmatpush.msra.mxu0 0.0
      %2730 = vmatpush.msra.mxu0 0.0
      %2731 = vmatpush.msra.mxu0 0.0
      %2732 = vmatpush.msra.mxu0 0.0
      %2733 = vmatpush.msra.mxu0 %v2713
      %2734 = vmatmul.f32.gmra.mxu0 %v2716
      %v2735 = vpop.f32.mrf.mxu0
      %v2736 = vadd.f32 0.0, %v2735
      %2737 = vdwg.mxu0
      %2738 = vrot.lane.b32.xlu0 %v472, 56
      %v2739 = vpop.permute.xlu0 %2738
      %v2742 = vsel %vm504, %v2446, 0
      %2744 = vmatpush.msra.mxu0 0.0
      %2745 = vmatpush.msra.mxu0 0.0
      %2746 = vmatpush.msra.mxu0 0.0
      %2747 = vmatpush.msra.mxu0 0.0
      %2748 = vmatpush.msra.mxu0 0.0
      %2749 = vmatpush.msra.mxu0 0.0
      %2750 = vmatpush.msra.mxu0 0.0
      %2751 = vmatpush.msra.mxu0 0.0
      %2752 = vmatpush.msra.mxu0 0.0
      %2753 = vmatpush.msra.mxu0 0.0
      %2754 = vmatpush.msra.mxu0 0.0
      %2755 = vmatpush.msra.mxu0 0.0
      %2756 = vmatpush.msra.mxu0 0.0
      %2757 = vmatpush.msra.mxu0 0.0
      %2758 = vmatpush.msra.mxu0 0.0
      %2759 = vmatpush.msra.mxu0 %v2739
      %2760 = vmatmul.f32.gmra.mxu0 %v2742
      %v2761 = vpop.f32.mrf.mxu0
      %v2762 = vadd.f32 0.0, %v2761
      %2763 = vdwg.mxu0
      %2764 = vrot.lane.b32.xlu0 %v475, 56
      %v2765 = vpop.permute.xlu0 %2764
      %v2768 = vsel %vm504, %v2461, 0
      %2770 = vmatpush.msra.mxu0 0.0
      %2771 = vmatpush.msra.mxu0 0.0
      %2772 = vmatpush.msra.mxu0 0.0
      %2773 = vmatpush.msra.mxu0 0.0
      %2774 = vmatpush.msra.mxu0 0.0
      %2775 = vmatpush.msra.mxu0 0.0
      %2776 = vmatpush.msra.mxu0 0.0
      %2777 = vmatpush.msra.mxu0 0.0
      %2778 = vmatpush.msra.mxu0 0.0
      %2779 = vmatpush.msra.mxu0 0.0
      %2780 = vmatpush.msra.mxu0 0.0
      %2781 = vmatpush.msra.mxu0 0.0
      %2782 = vmatpush.msra.mxu0 0.0
      %2783 = vmatpush.msra.mxu0 0.0
      %2784 = vmatpush.msra.mxu0 0.0
      %2785 = vmatpush.msra.mxu0 %v2765
      %2786 = vmatmul.f32.gmra.mxu0 %v2768
      %v2787 = vpop.f32.mrf.mxu0
      %v2788 = vadd.f32 0.0, %v2787
      %2789 = vdwg.mxu0
      %2790 = vrot.lane.b32.xlu0 %v478, 56
      %v2791 = vpop.permute.xlu0 %2790
      %v2794 = vsel %vm504, %v2476, 0
      %2796 = vmatpush.msra.mxu0 0.0
      %2797 = vmatpush.msra.mxu0 0.0
      %2798 = vmatpush.msra.mxu0 0.0
      %2799 = vmatpush.msra.mxu0 0.0
      %2800 = vmatpush.msra.mxu0 0.0
      %2801 = vmatpush.msra.mxu0 0.0
      %2802 = vmatpush.msra.mxu0 0.0
      %2803 = vmatpush.msra.mxu0 0.0
      %2804 = vmatpush.msra.mxu0 0.0
      %2805 = vmatpush.msra.mxu0 0.0
      %2806 = vmatpush.msra.mxu0 0.0
      %2807 = vmatpush.msra.mxu0 0.0
      %2808 = vmatpush.msra.mxu0 0.0
      %2809 = vmatpush.msra.mxu0 0.0
      %2810 = vmatpush.msra.mxu0 0.0
      %2811 = vmatpush.msra.mxu0 %v2791
      %2812 = vmatmul.f32.gmra.mxu0 %v2794
      %v2813 = vpop.f32.mrf.mxu0
      %v2814 = vadd.f32 0.0, %v2813
      %2815 = vdwg.mxu0
      %2816 = vrot.lane.b32.xlu0 %v481, 56
      %v2817 = vpop.permute.xlu0 %2816
      %v2820 = vsel %vm504, %v2491, 0
      %2822 = vmatpush.msra.mxu0 0.0
      %2823 = vmatpush.msra.mxu0 0.0
      %2824 = vmatpush.msra.mxu0 0.0
      %2825 = vmatpush.msra.mxu0 0.0
      %2826 = vmatpush.msra.mxu0 0.0
      %2827 = vmatpush.msra.mxu0 0.0
      %2828 = vmatpush.msra.mxu0 0.0
      %2829 = vmatpush.msra.mxu0 0.0
      %2830 = vmatpush.msra.mxu0 0.0
      %2831 = vmatpush.msra.mxu0 0.0
      %2832 = vmatpush.msra.mxu0 0.0
      %2833 = vmatpush.msra.mxu0 0.0
      %2834 = vmatpush.msra.mxu0 0.0
      %2835 = vmatpush.msra.mxu0 0.0
      %2836 = vmatpush.msra.mxu0 0.0
      %2837 = vmatpush.msra.mxu0 %v2817
      %2838 = vmatmul.f32.gmra.mxu0 %v2820
      %v2839 = vpop.f32.mrf.mxu0
      %v2840 = vadd.f32 0.0, %v2839
      %2841 = vdwg.mxu0
      %2842 = vrot.lane.b32.xlu0 %v484, 56
      %v2843 = vpop.permute.xlu0 %2842
      %v2846 = vsel %vm504, %v2506, 0
      %2848 = vmatpush.msra.mxu0 0.0
      %2849 = vmatpush.msra.mxu0 0.0
      %2850 = vmatpush.msra.mxu0 0.0
      %2851 = vmatpush.msra.mxu0 0.0
      %2852 = vmatpush.msra.mxu0 0.0
      %2853 = vmatpush.msra.mxu0 0.0
      %2854 = vmatpush.msra.mxu0 0.0
      %2855 = vmatpush.msra.mxu0 0.0
      %2856 = vmatpush.msra.mxu0 0.0
      %2857 = vmatpush.msra.mxu0 0.0
      %2858 = vmatpush.msra.mxu0 0.0
      %2859 = vmatpush.msra.mxu0 0.0
      %2860 = vmatpush.msra.mxu0 0.0
      %2861 = vmatpush.msra.mxu0 0.0
      %2862 = vmatpush.msra.mxu0 0.0
      %2863 = vmatpush.msra.mxu0 %v2843
      %2864 = vmatmul.f32.gmra.mxu0 %v2846
      %v2865 = vpop.f32.mrf.mxu0
      %v2866 = vadd.f32 0.0, %v2865
      %2867 = vdwg.mxu0
      %2868 = vrot.lane.b32.xlu0 %v487, 56
      %v2869 = vpop.permute.xlu0 %2868
      %v2872 = vsel %vm504, %v2521, 0
      %2874 = vmatpush.msra.mxu0 0.0
      %2875 = vmatpush.msra.mxu0 0.0
      %2876 = vmatpush.msra.mxu0 0.0
      %2877 = vmatpush.msra.mxu0 0.0
      %2878 = vmatpush.msra.mxu0 0.0
      %2879 = vmatpush.msra.mxu0 0.0
      %2880 = vmatpush.msra.mxu0 0.0
      %2881 = vmatpush.msra.mxu0 0.0
      %2882 = vmatpush.msra.mxu0 0.0
      %2883 = vmatpush.msra.mxu0 0.0
      %2884 = vmatpush.msra.mxu0 0.0
      %2885 = vmatpush.msra.mxu0 0.0
      %2886 = vmatpush.msra.mxu0 0.0
      %2887 = vmatpush.msra.mxu0 0.0
      %2888 = vmatpush.msra.mxu0 0.0
      %2889 = vmatpush.msra.mxu0 %v2869
      %2890 = vmatmul.f32.gmra.mxu0 %v2872
      %v2891 = vpop.f32.mrf.mxu0
      %v2892 = vadd.f32 0.0, %v2891
      %2893 = vdwg.mxu0
      %2894 = vrot.lane.b32.xlu0 %v490, 56
      %v2895 = vpop.permute.xlu0 %2894
      %v2898 = vsel %vm504, %v2536, 0
      %2900 = vmatpush.msra.mxu0 0.0
      %2901 = vmatpush.msra.mxu0 0.0
      %2902 = vmatpush.msra.mxu0 0.0
      %2903 = vmatpush.msra.mxu0 0.0
      %2904 = vmatpush.msra.mxu0 0.0
      %2905 = vmatpush.msra.mxu0 0.0
      %2906 = vmatpush.msra.mxu0 0.0
      %2907 = vmatpush.msra.mxu0 0.0
      %2908 = vmatpush.msra.mxu0 0.0
      %2909 = vmatpush.msra.mxu0 0.0
      %2910 = vmatpush.msra.mxu0 0.0
      %2911 = vmatpush.msra.mxu0 0.0
      %2912 = vmatpush.msra.mxu0 0.0
      %2913 = vmatpush.msra.mxu0 0.0
      %2914 = vmatpush.msra.mxu0 0.0
      %2915 = vmatpush.msra.mxu0 %v2895
      %2916 = vmatmul.f32.gmra.mxu0 %v2898
      %v2917 = vpop.f32.mrf.mxu0
      %v2918 = vadd.f32 0.0, %v2917
      %2919 = vdwg.mxu0
      %2920 = vrot.lane.b32.xlu0 %v493, 56
      %v2921 = vpop.permute.xlu0 %2920
      %v2924 = vsel %vm504, %v2551, 0
      %2926 = vmatpush.msra.mxu0 0.0
      %2927 = vmatpush.msra.mxu0 0.0
      %2928 = vmatpush.msra.mxu0 0.0
      %2929 = vmatpush.msra.mxu0 0.0
      %2930 = vmatpush.msra.mxu0 0.0
      %2931 = vmatpush.msra.mxu0 0.0
      %2932 = vmatpush.msra.mxu0 0.0
      %2933 = vmatpush.msra.mxu0 0.0
      %2934 = vmatpush.msra.mxu0 0.0
      %2935 = vmatpush.msra.mxu0 0.0
      %2936 = vmatpush.msra.mxu0 0.0
      %2937 = vmatpush.msra.mxu0 0.0
      %2938 = vmatpush.msra.mxu0 0.0
      %2939 = vmatpush.msra.mxu0 0.0
      %2940 = vmatpush.msra.mxu0 0.0
      %2941 = vmatpush.msra.mxu0 %v2921
      %2942 = vmatmul.f32.gmra.mxu0 %v2924
      %v2943 = vpop.f32.mrf.mxu0
      %v2944 = vadd.f32 0.0, %v2943
      %2945 = vdwg.mxu0
      %2946 = vrot.lane.b32.xlu0 %v496, 56
      %v2947 = vpop.permute.xlu0 %2946
      %v2950 = vsel %vm504, %v2566, 0
      %2952 = vmatpush.msra.mxu0 0.0
      %2953 = vmatpush.msra.mxu0 0.0
      %2954 = vmatpush.msra.mxu0 0.0
      %2955 = vmatpush.msra.mxu0 0.0
      %2956 = vmatpush.msra.mxu0 0.0
      %2957 = vmatpush.msra.mxu0 0.0
      %2958 = vmatpush.msra.mxu0 0.0
      %2959 = vmatpush.msra.mxu0 0.0
      %2960 = vmatpush.msra.mxu0 0.0
      %2961 = vmatpush.msra.mxu0 0.0
      %2962 = vmatpush.msra.mxu0 0.0
      %2963 = vmatpush.msra.mxu0 0.0
      %2964 = vmatpush.msra.mxu0 0.0
      %2965 = vmatpush.msra.mxu0 0.0
      %2966 = vmatpush.msra.mxu0 0.0
      %2967 = vmatpush.msra.mxu0 %v2947
      %2968 = vmatmul.f32.gmra.mxu0 %v2950
      %v2969 = vpop.f32.mrf.mxu0
      %v2970 = vadd.f32 0.0, %v2969
      %2971 = vdwg.mxu0
      %2972 = vrot.lane.b32.xlu0 %v499, 56
      %v2973 = vpop.permute.xlu0 %2972
      %v2976 = vsel %vm504, %v2581, 0
      %2978 = vmatpush.msra.mxu0 0.0
      %2979 = vmatpush.msra.mxu0 0.0
      %2980 = vmatpush.msra.mxu0 0.0
      %2981 = vmatpush.msra.mxu0 0.0
      %2982 = vmatpush.msra.mxu0 0.0
      %2983 = vmatpush.msra.mxu0 0.0
      %2984 = vmatpush.msra.mxu0 0.0
      %2985 = vmatpush.msra.mxu0 0.0
      %2986 = vmatpush.msra.mxu0 0.0
      %2987 = vmatpush.msra.mxu0 0.0
      %2988 = vmatpush.msra.mxu0 0.0
      %2989 = vmatpush.msra.mxu0 0.0
      %2990 = vmatpush.msra.mxu0 0.0
      %2991 = vmatpush.msra.mxu0 0.0
      %2992 = vmatpush.msra.mxu0 0.0
      %2993 = vmatpush.msra.mxu0 %v2973
      %2994 = vmatmul.f32.gmra.mxu0 %v2976
      %v2995 = vpop.f32.mrf.mxu0
      %v2996 = vadd.f32 0.0, %v2995
      %2997 = vdwg.mxu0
      %3014 = vrot.lane.b32.xlu0 %v2606, 8
      %v3015 = vpop.permute.xlu0 %3014
      %3016 = vrot.lane.b32.xlu0 %v2632, 8
      %v3017 = vpop.permute.xlu0 %3016
      %3018 = vrot.lane.b32.xlu0 %v2658, 8
      %v3019 = vpop.permute.xlu0 %3018
      %3020 = vrot.lane.b32.xlu0 %v2684, 8
      %v3021 = vpop.permute.xlu0 %3020
      %3022 = vrot.lane.b32.xlu0 %v2710, 8
      %v3023 = vpop.permute.xlu0 %3022
      %3024 = vrot.lane.b32.xlu0 %v2736, 8
      %v3025 = vpop.permute.xlu0 %3024
      %3026 = vrot.lane.b32.xlu0 %v2762, 8
      %v3027 = vpop.permute.xlu0 %3026
      %3028 = vrot.lane.b32.xlu0 %v2788, 8
      %v3029 = vpop.permute.xlu0 %3028
      %3030 = vrot.lane.b32.xlu0 %v2814, 8
      %v3031 = vpop.permute.xlu0 %3030
      %3032 = vrot.lane.b32.xlu0 %v2840, 8
      %v3033 = vpop.permute.xlu0 %3032
      %3034 = vrot.lane.b32.xlu0 %v2866, 8
      %v3035 = vpop.permute.xlu0 %3034
      %3036 = vrot.lane.b32.xlu0 %v2892, 8
      %v3037 = vpop.permute.xlu0 %3036
      %3038 = vrot.lane.b32.xlu0 %v2918, 8
      %v3039 = vpop.permute.xlu0 %3038
      %3040 = vrot.lane.b32.xlu0 %v2944, 8
      %v3041 = vpop.permute.xlu0 %3040
      %3042 = vrot.lane.b32.xlu0 %v2970, 8
      %v3043 = vpop.permute.xlu0 %3042
      %3044 = vrot.lane.b32.xlu0 %v2996, 8
      %v3045 = vpop.permute.xlu0 %3044
      %vm3062 = vcmask 130112
      %3063 = vst.msk [vmem:[#allocation2] sm:$0xff] %vm3062, %v3015
      %3064 = vst.msk [vmem:[#allocation2 + $0x8] sm:$0xff] %vm3062, %v3017
      %3065 = vst.msk [vmem:[#allocation2 + $0x10] sm:$0xff] %vm3062, %v3019
      %3066 = vst.msk [vmem:[#allocation2 + $0x18] sm:$0xff] %vm3062, %v3021
      %3067 = vst.msk [vmem:[#allocation2 + $0x20] sm:$0xff] %vm3062, %v3023
      %3068 = vst.msk [vmem:[#allocation2 + $0x28] sm:$0xff] %vm3062, %v3025
      %3069 = vst.msk [vmem:[#allocation2 + $0x30] sm:$0xff] %vm3062, %v3027
      %3070 = vst.msk [vmem:[#allocation2 + $0x38] sm:$0xff] %vm3062, %v3029
      %3071 = vst.msk [vmem:[#allocation2 + $0x40] sm:$0xff] %vm3062, %v3031
      %3072 = vst.msk [vmem:[#allocation2 + $0x48] sm:$0xff] %vm3062, %v3033
      %3073 = vst.msk [vmem:[#allocation2 + $0x50] sm:$0xff] %vm3062, %v3035
      %3074 = vst.msk [vmem:[#allocation2 + $0x58] sm:$0xff] %vm3062, %v3037
      %3075 = vst.msk [vmem:[#allocation2 + $0x60] sm:$0xff] %vm3062, %v3039
      %3076 = vst.msk [vmem:[#allocation2 + $0x68] sm:$0xff] %vm3062, %v3041
      %3077 = vst.msk [vmem:[#allocation2 + $0x70] sm:$0xff] %vm3062, %v3043
      %3078 = vst.msk [vmem:[#allocation2 + $0x78] sm:$0xff] %vm3062, %v3045
      %3079 = vrot.lane.b32.xlu0 %v454, 112
      %v3080 = vpop.permute.xlu0 %3079
      %3081 = vrot.lane.b32.xlu0 %v454, 80
      %v3082 = vpop.permute.xlu0 %3081
      %v3083 = vsel %vm504, %v3080, 0
      %v3085 = vsel %vm504, %v3082, 0
      %3087 = vmatpush.xpose.msra.mxu0 0.0
      %3088 = vmatpush.xpose.msra.mxu0 0.0
      %3089 = vmatpush.xpose.msra.mxu0 0.0
      %3090 = vmatpush.xpose.msra.mxu0 0.0
      %3091 = vmatpush.xpose.msra.mxu0 0.0
      %3092 = vmatpush.xpose.msra.mxu0 0.0
      %3093 = vmatpush.xpose.msra.mxu0 0.0
      %3094 = vmatpush.xpose.msra.mxu0 0.0
      %3095 = vmatpush.xpose.msra.mxu0 0.0
      %3096 = vmatpush.xpose.msra.mxu0 0.0
      %3097 = vmatpush.xpose.msra.mxu0 0.0
      %3098 = vmatpush.xpose.msra.mxu0 0.0
      %3099 = vmatpush.xpose.msra.mxu0 0.0
      %3100 = vmatpush.xpose.msra.mxu0 0.0
      %3101 = vmatpush.xpose.msra.mxu0 0.0
      %3102 = vmatpush.xpose.msra.mxu0 %v3085
      %3103 = vmatmul.f32.gmra.mxu0 %v3083
      %v3104 = vpop.f32.mrf.mxu0
      %v3105 = vadd.f32 0.0, %v3104
      %3106 = vdwg.mxu0
      %3107 = vrot.lane.b32.xlu0 %v457, 112
      %v3108 = vpop.permute.xlu0 %3107
      %3109 = vrot.lane.b32.xlu0 %v457, 80
      %v3110 = vpop.permute.xlu0 %3109
      %v3111 = vsel %vm504, %v3108, 0
      %v3113 = vsel %vm504, %v3110, 0
      %3115 = vmatpush.xpose.msra.mxu0 0.0
      %3116 = vmatpush.xpose.msra.mxu0 0.0
      %3117 = vmatpush.xpose.msra.mxu0 0.0
      %3118 = vmatpush.xpose.msra.mxu0 0.0
      %3119 = vmatpush.xpose.msra.mxu0 0.0
      %3120 = vmatpush.xpose.msra.mxu0 0.0
      %3121 = vmatpush.xpose.msra.mxu0 0.0
      %3122 = vmatpush.xpose.msra.mxu0 0.0
      %3123 = vmatpush.xpose.msra.mxu0 0.0
      %3124 = vmatpush.xpose.msra.mxu0 0.0
      %3125 = vmatpush.xpose.msra.mxu0 0.0
      %3126 = vmatpush.xpose.msra.mxu0 0.0
      %3127 = vmatpush.xpose.msra.mxu0 0.0
      %3128 = vmatpush.xpose.msra.mxu0 0.0
      %3129 = vmatpush.xpose.msra.mxu0 0.0
      %3130 = vmatpush.xpose.msra.mxu0 %v3113
      %3131 = vmatmul.f32.gmra.mxu0 %v3111
      %v3132 = vpop.f32.mrf.mxu0
      %v3133 = vadd.f32 0.0, %v3132
      %3134 = vdwg.mxu0
      %3135 = vrot.lane.b32.xlu0 %v460, 112
      %v3136 = vpop.permute.xlu0 %3135
      %3137 = vrot.lane.b32.xlu0 %v460, 80
      %v3138 = vpop.permute.xlu0 %3137
      %v3139 = vsel %vm504, %v3136, 0
      %v3141 = vsel %vm504, %v3138, 0
      %3143 = vmatpush.xpose.msra.mxu0 0.0
      %3144 = vmatpush.xpose.msra.mxu0 0.0
      %3145 = vmatpush.xpose.msra.mxu0 0.0
      %3146 = vmatpush.xpose.msra.mxu0 0.0
      %3147 = vmatpush.xpose.msra.mxu0 0.0
      %3148 = vmatpush.xpose.msra.mxu0 0.0
      %3149 = vmatpush.xpose.msra.mxu0 0.0
      %3150 = vmatpush.xpose.msra.mxu0 0.0
      %3151 = vmatpush.xpose.msra.mxu0 0.0
      %3152 = vmatpush.xpose.msra.mxu0 0.0
      %3153 = vmatpush.xpose.msra.mxu0 0.0
      %3154 = vmatpush.xpose.msra.mxu0 0.0
      %3155 = vmatpush.xpose.msra.mxu0 0.0
      %3156 = vmatpush.xpose.msra.mxu0 0.0
      %3157 = vmatpush.xpose.msra.mxu0 0.0
      %3158 = vmatpush.xpose.msra.mxu0 %v3141
      %3159 = vmatmul.f32.gmra.mxu0 %v3139
      %v3160 = vpop.f32.mrf.mxu0
      %v3161 = vadd.f32 0.0, %v3160
      %3162 = vdwg.mxu0
      %3163 = vrot.lane.b32.xlu0 %v463, 112
      %v3164 = vpop.permute.xlu0 %3163
      %3165 = vrot.lane.b32.xlu0 %v463, 80
      %v3166 = vpop.permute.xlu0 %3165
      %v3167 = vsel %vm504, %v3164, 0
      %v3169 = vsel %vm504, %v3166, 0
      %3171 = vmatpush.xpose.msra.mxu0 0.0
      %3172 = vmatpush.xpose.msra.mxu0 0.0
      %3173 = vmatpush.xpose.msra.mxu0 0.0
      %3174 = vmatpush.xpose.msra.mxu0 0.0
      %3175 = vmatpush.xpose.msra.mxu0 0.0
      %3176 = vmatpush.xpose.msra.mxu0 0.0
      %3177 = vmatpush.xpose.msra.mxu0 0.0
      %3178 = vmatpush.xpose.msra.mxu0 0.0
      %3179 = vmatpush.xpose.msra.mxu0 0.0
      %3180 = vmatpush.xpose.msra.mxu0 0.0
      %3181 = vmatpush.xpose.msra.mxu0 0.0
      %3182 = vmatpush.xpose.msra.mxu0 0.0
      %3183 = vmatpush.xpose.msra.mxu0 0.0
      %3184 = vmatpush.xpose.msra.mxu0 0.0
      %3185 = vmatpush.xpose.msra.mxu0 0.0
      %3186 = vmatpush.xpose.msra.mxu0 %v3169
      %3187 = vmatmul.f32.gmra.mxu0 %v3167
      %v3188 = vpop.f32.mrf.mxu0
      %v3189 = vadd.f32 0.0, %v3188
      %3190 = vdwg.mxu0
      %3191 = vrot.lane.b32.xlu0 %v466, 112
      %v3192 = vpop.permute.xlu0 %3191
      %3193 = vrot.lane.b32.xlu0 %v466, 80
      %v3194 = vpop.permute.xlu0 %3193
      %v3195 = vsel %vm504, %v3192, 0
      %v3197 = vsel %vm504, %v3194, 0
      %3199 = vmatpush.xpose.msra.mxu0 0.0
      %3200 = vmatpush.xpose.msra.mxu0 0.0
      %3201 = vmatpush.xpose.msra.mxu0 0.0
      %3202 = vmatpush.xpose.msra.mxu0 0.0
      %3203 = vmatpush.xpose.msra.mxu0 0.0
      %3204 = vmatpush.xpose.msra.mxu0 0.0
      %3205 = vmatpush.xpose.msra.mxu0 0.0
      %3206 = vmatpush.xpose.msra.mxu0 0.0
      %3207 = vmatpush.xpose.msra.mxu0 0.0
      %3208 = vmatpush.xpose.msra.mxu0 0.0
      %3209 = vmatpush.xpose.msra.mxu0 0.0
      %3210 = vmatpush.xpose.msra.mxu0 0.0
      %3211 = vmatpush.xpose.msra.mxu0 0.0
      %3212 = vmatpush.xpose.msra.mxu0 0.0
      %3213 = vmatpush.xpose.msra.mxu0 0.0
      %3214 = vmatpush.xpose.msra.mxu0 %v3197
      %3215 = vmatmul.f32.gmra.mxu0 %v3195
      %v3216 = vpop.f32.mrf.mxu0
      %v3217 = vadd.f32 0.0, %v3216
      %3218 = vdwg.mxu0
      %3219 = vrot.lane.b32.xlu0 %v469, 112
      %v3220 = vpop.permute.xlu0 %3219
      %3221 = vrot.lane.b32.xlu0 %v469, 80
      %v3222 = vpop.permute.xlu0 %3221
      %v3223 = vsel %vm504, %v3220, 0
      %v3225 = vsel %vm504, %v3222, 0
      %3227 = vmatpush.xpose.msra.mxu0 0.0
      %3228 = vmatpush.xpose.msra.mxu0 0.0
      %3229 = vmatpush.xpose.msra.mxu0 0.0
      %3230 = vmatpush.xpose.msra.mxu0 0.0
      %3231 = vmatpush.xpose.msra.mxu0 0.0
      %3232 = vmatpush.xpose.msra.mxu0 0.0
      %3233 = vmatpush.xpose.msra.mxu0 0.0
      %3234 = vmatpush.xpose.msra.mxu0 0.0
      %3235 = vmatpush.xpose.msra.mxu0 0.0
      %3236 = vmatpush.xpose.msra.mxu0 0.0
      %3237 = vmatpush.xpose.msra.mxu0 0.0
      %3238 = vmatpush.xpose.msra.mxu0 0.0
      %3239 = vmatpush.xpose.msra.mxu0 0.0
      %3240 = vmatpush.xpose.msra.mxu0 0.0
      %3241 = vmatpush.xpose.msra.mxu0 0.0
      %3242 = vmatpush.xpose.msra.mxu0 %v3225
      %3243 = vmatmul.f32.gmra.mxu0 %v3223
      %v3244 = vpop.f32.mrf.mxu0
      %v3245 = vadd.f32 0.0, %v3244
      %3246 = vdwg.mxu0
      %3247 = vrot.lane.b32.xlu0 %v472, 112
      %v3248 = vpop.permute.xlu0 %3247
      %3249 = vrot.lane.b32.xlu0 %v472, 80
      %v3250 = vpop.permute.xlu0 %3249
      %v3251 = vsel %vm504, %v3248, 0
      %v3253 = vsel %vm504, %v3250, 0
      %3255 = vmatpush.xpose.msra.mxu0 0.0
      %3256 = vmatpush.xpose.msra.mxu0 0.0
      %3257 = vmatpush.xpose.msra.mxu0 0.0
      %3258 = vmatpush.xpose.msra.mxu0 0.0
      %3259 = vmatpush.xpose.msra.mxu0 0.0
      %3260 = vmatpush.xpose.msra.mxu0 0.0
      %3261 = vmatpush.xpose.msra.mxu0 0.0
      %3262 = vmatpush.xpose.msra.mxu0 0.0
      %3263 = vmatpush.xpose.msra.mxu0 0.0
      %3264 = vmatpush.xpose.msra.mxu0 0.0
      %3265 = vmatpush.xpose.msra.mxu0 0.0
      %3266 = vmatpush.xpose.msra.mxu0 0.0
      %3267 = vmatpush.xpose.msra.mxu0 0.0
      %3268 = vmatpush.xpose.msra.mxu0 0.0
      %3269 = vmatpush.xpose.msra.mxu0 0.0
      %3270 = vmatpush.xpose.msra.mxu0 %v3253
      %3271 = vmatmul.f32.gmra.mxu0 %v3251
      %v3272 = vpop.f32.mrf.mxu0
      %v3273 = vadd.f32 0.0, %v3272
      %3274 = vdwg.mxu0
      %3275 = vrot.lane.b32.xlu0 %v475, 112
      %v3276 = vpop.permute.xlu0 %3275
      %3277 = vrot.lane.b32.xlu0 %v475, 80
      %v3278 = vpop.permute.xlu0 %3277
      %v3279 = vsel %vm504, %v3276, 0
      %v3281 = vsel %vm504, %v3278, 0
      %3283 = vmatpush.xpose.msra.mxu0 0.0
      %3284 = vmatpush.xpose.msra.mxu0 0.0
      %3285 = vmatpush.xpose.msra.mxu0 0.0
      %3286 = vmatpush.xpose.msra.mxu0 0.0
      %3287 = vmatpush.xpose.msra.mxu0 0.0
      %3288 = vmatpush.xpose.msra.mxu0 0.0
      %3289 = vmatpush.xpose.msra.mxu0 0.0
      %3290 = vmatpush.xpose.msra.mxu0 0.0
      %3291 = vmatpush.xpose.msra.mxu0 0.0
      %3292 = vmatpush.xpose.msra.mxu0 0.0
      %3293 = vmatpush.xpose.msra.mxu0 0.0
      %3294 = vmatpush.xpose.msra.mxu0 0.0
      %3295 = vmatpush.xpose.msra.mxu0 0.0
      %3296 = vmatpush.xpose.msra.mxu0 0.0
      %3297 = vmatpush.xpose.msra.mxu0 0.0
      %3298 = vmatpush.xpose.msra.mxu0 %v3281
      %3299 = vmatmul.f32.gmra.mxu0 %v3279
      %v3300 = vpop.f32.mrf.mxu0
      %v3301 = vadd.f32 0.0, %v3300
      %3302 = vdwg.mxu0
      %3303 = vrot.lane.b32.xlu0 %v478, 112
      %v3304 = vpop.permute.xlu0 %3303
      %3305 = vrot.lane.b32.xlu0 %v478, 80
      %v3306 = vpop.permute.xlu0 %3305
      %v3307 = vsel %vm504, %v3304, 0
      %v3309 = vsel %vm504, %v3306, 0
      %3311 = vmatpush.xpose.msra.mxu0 0.0
      %3312 = vmatpush.xpose.msra.mxu0 0.0
      %3313 = vmatpush.xpose.msra.mxu0 0.0
      %3314 = vmatpush.xpose.msra.mxu0 0.0
      %3315 = vmatpush.xpose.msra.mxu0 0.0
      %3316 = vmatpush.xpose.msra.mxu0 0.0
      %3317 = vmatpush.xpose.msra.mxu0 0.0
      %3318 = vmatpush.xpose.msra.mxu0 0.0
      %3319 = vmatpush.xpose.msra.mxu0 0.0
      %3320 = vmatpush.xpose.msra.mxu0 0.0
      %3321 = vmatpush.xpose.msra.mxu0 0.0
      %3322 = vmatpush.xpose.msra.mxu0 0.0
      %3323 = vmatpush.xpose.msra.mxu0 0.0
      %3324 = vmatpush.xpose.msra.mxu0 0.0
      %3325 = vmatpush.xpose.msra.mxu0 0.0
      %3326 = vmatpush.xpose.msra.mxu0 %v3309
      %3327 = vmatmul.f32.gmra.mxu0 %v3307
      %v3328 = vpop.f32.mrf.mxu0
      %v3329 = vadd.f32 0.0, %v3328
      %3330 = vdwg.mxu0
      %3331 = vrot.lane.b32.xlu0 %v481, 112
      %v3332 = vpop.permute.xlu0 %3331
      %3333 = vrot.lane.b32.xlu0 %v481, 80
      %v3334 = vpop.permute.xlu0 %3333
      %v3335 = vsel %vm504, %v3332, 0
      %v3337 = vsel %vm504, %v3334, 0
      %3339 = vmatpush.xpose.msra.mxu0 0.0
      %3340 = vmatpush.xpose.msra.mxu0 0.0
      %3341 = vmatpush.xpose.msra.mxu0 0.0
      %3342 = vmatpush.xpose.msra.mxu0 0.0
      %3343 = vmatpush.xpose.msra.mxu0 0.0
      %3344 = vmatpush.xpose.msra.mxu0 0.0
      %3345 = vmatpush.xpose.msra.mxu0 0.0
      %3346 = vmatpush.xpose.msra.mxu0 0.0
      %3347 = vmatpush.xpose.msra.mxu0 0.0
      %3348 = vmatpush.xpose.msra.mxu0 0.0
      %3349 = vmatpush.xpose.msra.mxu0 0.0
      %3350 = vmatpush.xpose.msra.mxu0 0.0
      %3351 = vmatpush.xpose.msra.mxu0 0.0
      %3352 = vmatpush.xpose.msra.mxu0 0.0
      %3353 = vmatpush.xpose.msra.mxu0 0.0
      %3354 = vmatpush.xpose.msra.mxu0 %v3337
      %3355 = vmatmul.f32.gmra.mxu0 %v3335
      %v3356 = vpop.f32.mrf.mxu0
      %v3357 = vadd.f32 0.0, %v3356
      %3358 = vdwg.mxu0
      %3359 = vrot.lane.b32.xlu0 %v484, 112
      %v3360 = vpop.permute.xlu0 %3359
      %3361 = vrot.lane.b32.xlu0 %v484, 80
      %v3362 = vpop.permute.xlu0 %3361
      %v3363 = vsel %vm504, %v3360, 0
      %v3365 = vsel %vm504, %v3362, 0
      %3367 = vmatpush.xpose.msra.mxu0 0.0
      %3368 = vmatpush.xpose.msra.mxu0 0.0
      %3369 = vmatpush.xpose.msra.mxu0 0.0
      %3370 = vmatpush.xpose.msra.mxu0 0.0
      %3371 = vmatpush.xpose.msra.mxu0 0.0
      %3372 = vmatpush.xpose.msra.mxu0 0.0
      %3373 = vmatpush.xpose.msra.mxu0 0.0
      %3374 = vmatpush.xpose.msra.mxu0 0.0
      %3375 = vmatpush.xpose.msra.mxu0 0.0
      %3376 = vmatpush.xpose.msra.mxu0 0.0
      %3377 = vmatpush.xpose.msra.mxu0 0.0
      %3378 = vmatpush.xpose.msra.mxu0 0.0
      %3379 = vmatpush.xpose.msra.mxu0 0.0
      %3380 = vmatpush.xpose.msra.mxu0 0.0
      %3381 = vmatpush.xpose.msra.mxu0 0.0
      %3382 = vmatpush.xpose.msra.mxu0 %v3365
      %3383 = vmatmul.f32.gmra.mxu0 %v3363
      %v3384 = vpop.f32.mrf.mxu0
      %v3385 = vadd.f32 0.0, %v3384
      %3386 = vdwg.mxu0
      %3387 = vrot.lane.b32.xlu0 %v487, 112
      %v3388 = vpop.permute.xlu0 %3387
      %3389 = vrot.lane.b32.xlu0 %v487, 80
      %v3390 = vpop.permute.xlu0 %3389
      %v3391 = vsel %vm504, %v3388, 0
      %v3393 = vsel %vm504, %v3390, 0
      %3395 = vmatpush.xpose.msra.mxu0 0.0
      %3396 = vmatpush.xpose.msra.mxu0 0.0
      %3397 = vmatpush.xpose.msra.mxu0 0.0
      %3398 = vmatpush.xpose.msra.mxu0 0.0
      %3399 = vmatpush.xpose.msra.mxu0 0.0
      %3400 = vmatpush.xpose.msra.mxu0 0.0
      %3401 = vmatpush.xpose.msra.mxu0 0.0
      %3402 = vmatpush.xpose.msra.mxu0 0.0
      %3403 = vmatpush.xpose.msra.mxu0 0.0
      %3404 = vmatpush.xpose.msra.mxu0 0.0
      %3405 = vmatpush.xpose.msra.mxu0 0.0
      %3406 = vmatpush.xpose.msra.mxu0 0.0
      %3407 = vmatpush.xpose.msra.mxu0 0.0
      %3408 = vmatpush.xpose.msra.mxu0 0.0
      %3409 = vmatpush.xpose.msra.mxu0 0.0
      %3410 = vmatpush.xpose.msra.mxu0 %v3393
      %3411 = vmatmul.f32.gmra.mxu0 %v3391
      %v3412 = vpop.f32.mrf.mxu0
      %v3413 = vadd.f32 0.0, %v3412
      %3414 = vdwg.mxu0
      %3415 = vrot.lane.b32.xlu0 %v490, 112
      %v3416 = vpop.permute.xlu0 %3415
      %3417 = vrot.lane.b32.xlu0 %v490, 80
      %v3418 = vpop.permute.xlu0 %3417
      %v3419 = vsel %vm504, %v3416, 0
      %v3421 = vsel %vm504, %v3418, 0
      %3423 = vmatpush.xpose.msra.mxu0 0.0
      %3424 = vmatpush.xpose.msra.mxu0 0.0
      %3425 = vmatpush.xpose.msra.mxu0 0.0
      %3426 = vmatpush.xpose.msra.mxu0 0.0
      %3427 = vmatpush.xpose.msra.mxu0 0.0
      %3428 = vmatpush.xpose.msra.mxu0 0.0
      %3429 = vmatpush.xpose.msra.mxu0 0.0
      %3430 = vmatpush.xpose.msra.mxu0 0.0
      %3431 = vmatpush.xpose.msra.mxu0 0.0
      %3432 = vmatpush.xpose.msra.mxu0 0.0
      %3433 = vmatpush.xpose.msra.mxu0 0.0
      %3434 = vmatpush.xpose.msra.mxu0 0.0
      %3435 = vmatpush.xpose.msra.mxu0 0.0
      %3436 = vmatpush.xpose.msra.mxu0 0.0
      %3437 = vmatpush.xpose.msra.mxu0 0.0
      %3438 = vmatpush.xpose.msra.mxu0 %v3421
      %3439 = vmatmul.f32.gmra.mxu0 %v3419
      %v3440 = vpop.f32.mrf.mxu0
      %v3441 = vadd.f32 0.0, %v3440
      %3442 = vdwg.mxu0
      %3443 = vrot.lane.b32.xlu0 %v493, 112
      %v3444 = vpop.permute.xlu0 %3443
      %3445 = vrot.lane.b32.xlu0 %v493, 80
      %v3446 = vpop.permute.xlu0 %3445
      %v3447 = vsel %vm504, %v3444, 0
      %v3449 = vsel %vm504, %v3446, 0
      %3451 = vmatpush.xpose.msra.mxu0 0.0
      %3452 = vmatpush.xpose.msra.mxu0 0.0
      %3453 = vmatpush.xpose.msra.mxu0 0.0
      %3454 = vmatpush.xpose.msra.mxu0 0.0
      %3455 = vmatpush.xpose.msra.mxu0 0.0
      %3456 = vmatpush.xpose.msra.mxu0 0.0
      %3457 = vmatpush.xpose.msra.mxu0 0.0
      %3458 = vmatpush.xpose.msra.mxu0 0.0
      %3459 = vmatpush.xpose.msra.mxu0 0.0
      %3460 = vmatpush.xpose.msra.mxu0 0.0
      %3461 = vmatpush.xpose.msra.mxu0 0.0
      %3462 = vmatpush.xpose.msra.mxu0 0.0
      %3463 = vmatpush.xpose.msra.mxu0 0.0
      %3464 = vmatpush.xpose.msra.mxu0 0.0
      %3465 = vmatpush.xpose.msra.mxu0 0.0
      %3466 = vmatpush.xpose.msra.mxu0 %v3449
      %3467 = vmatmul.f32.gmra.mxu0 %v3447
      %v3468 = vpop.f32.mrf.mxu0
      %v3469 = vadd.f32 0.0, %v3468
      %3470 = vdwg.mxu0
      %3471 = vrot.lane.b32.xlu0 %v496, 112
      %v3472 = vpop.permute.xlu0 %3471
      %3473 = vrot.lane.b32.xlu0 %v496, 80
      %v3474 = vpop.permute.xlu0 %3473
      %v3475 = vsel %vm504, %v3472, 0
      %v3477 = vsel %vm504, %v3474, 0
      %3479 = vmatpush.xpose.msra.mxu0 0.0
      %3480 = vmatpush.xpose.msra.mxu0 0.0
      %3481 = vmatpush.xpose.msra.mxu0 0.0
      %3482 = vmatpush.xpose.msra.mxu0 0.0
      %3483 = vmatpush.xpose.msra.mxu0 0.0
      %3484 = vmatpush.xpose.msra.mxu0 0.0
      %3485 = vmatpush.xpose.msra.mxu0 0.0
      %3486 = vmatpush.xpose.msra.mxu0 0.0
      %3487 = vmatpush.xpose.msra.mxu0 0.0
      %3488 = vmatpush.xpose.msra.mxu0 0.0
      %3489 = vmatpush.xpose.msra.mxu0 0.0
      %3490 = vmatpush.xpose.msra.mxu0 0.0
      %3491 = vmatpush.xpose.msra.mxu0 0.0
      %3492 = vmatpush.xpose.msra.mxu0 0.0
      %3493 = vmatpush.xpose.msra.mxu0 0.0
      %3494 = vmatpush.xpose.msra.mxu0 %v3477
      %3495 = vmatmul.f32.gmra.mxu0 %v3475
      %v3496 = vpop.f32.mrf.mxu0
      %v3497 = vadd.f32 0.0, %v3496
      %3498 = vdwg.mxu0
      %3499 = vrot.lane.b32.xlu0 %v499, 112
      %v3500 = vpop.permute.xlu0 %3499
      %3501 = vrot.lane.b32.xlu0 %v499, 80
      %v3502 = vpop.permute.xlu0 %3501
      %v3503 = vsel %vm504, %v3500, 0
      %v3505 = vsel %vm504, %v3502, 0
      %3507 = vmatpush.xpose.msra.mxu0 0.0
      %3508 = vmatpush.xpose.msra.mxu0 0.0
      %3509 = vmatpush.xpose.msra.mxu0 0.0
      %3510 = vmatpush.xpose.msra.mxu0 0.0
      %3511 = vmatpush.xpose.msra.mxu0 0.0
      %3512 = vmatpush.xpose.msra.mxu0 0.0
      %3513 = vmatpush.xpose.msra.mxu0 0.0
      %3514 = vmatpush.xpose.msra.mxu0 0.0
      %3515 = vmatpush.xpose.msra.mxu0 0.0
      %3516 = vmatpush.xpose.msra.mxu0 0.0
      %3517 = vmatpush.xpose.msra.mxu0 0.0
      %3518 = vmatpush.xpose.msra.mxu0 0.0
      %3519 = vmatpush.xpose.msra.mxu0 0.0
      %3520 = vmatpush.xpose.msra.mxu0 0.0
      %3521 = vmatpush.xpose.msra.mxu0 0.0
      %3522 = vmatpush.xpose.msra.mxu0 %v3505
      %3523 = vmatmul.f32.gmra.mxu0 %v3503
      %v3524 = vpop.f32.mrf.mxu0
      %v3525 = vadd.f32 0.0, %v3524
      %3526 = vdwg.mxu0
      %v3527 = vsel %vm504, %v3105, -inf
      %3528 = vmax.xlane.f32.xlu0 %v3527
      %v3529 = vpop.xlane.xlu0 %3528
      %v3530 = vsel %vm504, %v3133, -inf
      %3531 = vmax.xlane.f32.xlu0 %v3530
      %v3532 = vpop.xlane.xlu0 %3531
      %v3533 = vsel %vm504, %v3161, -inf
      %3534 = vmax.xlane.f32.xlu0 %v3533
      %v3535 = vpop.xlane.xlu0 %3534
      %v3536 = vsel %vm504, %v3189, -inf
      %3537 = vmax.xlane.f32.xlu0 %v3536
      %v3538 = vpop.xlane.xlu0 %3537
      %v3539 = vsel %vm504, %v3217, -inf
      %3540 = vmax.xlane.f32.xlu0 %v3539
      %v3541 = vpop.xlane.xlu0 %3540
      %v3542 = vsel %vm504, %v3245, -inf
      %3543 = vmax.xlane.f32.xlu0 %v3542
      %v3544 = vpop.xlane.xlu0 %3543
      %v3545 = vsel %vm504, %v3273, -inf
      %3546 = vmax.xlane.f32.xlu0 %v3545
      %v3547 = vpop.xlane.xlu0 %3546
      %v3548 = vsel %vm504, %v3301, -inf
      %3549 = vmax.xlane.f32.xlu0 %v3548
      %v3550 = vpop.xlane.xlu0 %3549
      %v3551 = vsel %vm504, %v3329, -inf
      %3552 = vmax.xlane.f32.xlu0 %v3551
      %v3553 = vpop.xlane.xlu0 %3552
      %v3554 = vsel %vm504, %v3357, -inf
      %3555 = vmax.xlane.f32.xlu0 %v3554
      %v3556 = vpop.xlane.xlu0 %3555
      %v3557 = vsel %vm504, %v3385, -inf
      %3558 = vmax.xlane.f32.xlu0 %v3557
      %v3559 = vpop.xlane.xlu0 %3558
      %v3560 = vsel %vm504, %v3413, -inf
      %3561 = vmax.xlane.f32.xlu0 %v3560
      %v3562 = vpop.xlane.xlu0 %3561
      %v3563 = vsel %vm504, %v3441, -inf
      %3564 = vmax.xlane.f32.xlu0 %v3563
      %v3565 = vpop.xlane.xlu0 %3564
      %v3566 = vsel %vm504, %v3469, -inf
      %3567 = vmax.xlane.f32.xlu0 %v3566
      %v3568 = vpop.xlane.xlu0 %3567
      %v3569 = vsel %vm504, %v3497, -inf
      %3570 = vmax.xlane.f32.xlu0 %v3569
      %v3571 = vpop.xlane.xlu0 %3570
      %v3572 = vsel %vm504, %v3525, -inf
      %3573 = vmax.xlane.f32.xlu0 %v3572
      %v3574 = vpop.xlane.xlu0 %3573
      %v3575 = vsub.f32 %v3105, %v3529
      %v3576 = vsub.f32 %v3133, %v3532
      %v3577 = vsub.f32 %v3161, %v3535
      %v3578 = vsub.f32 %v3189, %v3538
      %v3579 = vsub.f32 %v3217, %v3541
      %v3580 = vsub.f32 %v3245, %v3544
      %v3581 = vsub.f32 %v3273, %v3547
      %v3582 = vsub.f32 %v3301, %v3550
      %v3583 = vsub.f32 %v3329, %v3553
      %v3584 = vsub.f32 %v3357, %v3556
      %v3585 = vsub.f32 %v3385, %v3559
      %v3586 = vsub.f32 %v3413, %v3562
      %v3587 = vsub.f32 %v3441, %v3565
      %v3588 = vsub.f32 %v3469, %v3568
      %v3589 = vsub.f32 %v3497, %v3571
      %v3590 = vsub.f32 %v3525, %v3574
      %v3591 = vmul.f32 %v3575, 1.442695
      %v3592 = vpow.pop %v3591
      %v3593 = vmul.f32 %v3576, 1.442695
      %v3594 = vpow.pop %v3593
      %v3595 = vmul.f32 %v3577, 1.442695
      %v3596 = vpow.pop %v3595
      %v3597 = vmul.f32 %v3578, 1.442695
      %v3598 = vpow.pop %v3597
      %v3599 = vmul.f32 %v3579, 1.442695
      %v3600 = vpow.pop %v3599
      %v3601 = vmul.f32 %v3580, 1.442695
      %v3602 = vpow.pop %v3601
      %v3603 = vmul.f32 %v3581, 1.442695
      %v3604 = vpow.pop %v3603
      %v3605 = vmul.f32 %v3582, 1.442695
      %v3606 = vpow.pop %v3605
      %v3607 = vmul.f32 %v3583, 1.442695
      %v3608 = vpow.pop %v3607
      %v3609 = vmul.f32 %v3584, 1.442695
      %v3610 = vpow.pop %v3609
      %v3611 = vmul.f32 %v3585, 1.442695
      %v3612 = vpow.pop %v3611
      %v3613 = vmul.f32 %v3586, 1.442695
      %v3614 = vpow.pop %v3613
      %v3615 = vmul.f32 %v3587, 1.442695
      %v3616 = vpow.pop %v3615
      %v3617 = vmul.f32 %v3588, 1.442695
      %v3618 = vpow.pop %v3617
      %v3619 = vmul.f32 %v3589, 1.442695
      %v3620 = vpow.pop %v3619
      %v3621 = vmul.f32 %v3590, 1.442695
      %v3622 = vpow.pop %v3621
      %v3623 = vsel %vm504, %v3592, 0.0
      %3624 = vadd.xlane.f32.xlu0 %v3623
      %v3625 = vpop.xlane.xlu0 %3624
      %v3626 = vsel %vm504, %v3594, 0.0
      %3627 = vadd.xlane.f32.xlu0 %v3626
      %v3628 = vpop.xlane.xlu0 %3627
      %v3629 = vsel %vm504, %v3596, 0.0
      %3630 = vadd.xlane.f32.xlu0 %v3629
      %v3631 = vpop.xlane.xlu0 %3630
      %v3632 = vsel %vm504, %v3598, 0.0
      %3633 = vadd.xlane.f32.xlu0 %v3632
      %v3634 = vpop.xlane.xlu0 %3633
      %v3635 = vsel %vm504, %v3600, 0.0
      %3636 = vadd.xlane.f32.xlu0 %v3635
      %v3637 = vpop.xlane.xlu0 %3636
      %v3638 = vsel %vm504, %v3602, 0.0
      %3639 = vadd.xlane.f32.xlu0 %v3638
      %v3640 = vpop.xlane.xlu0 %3639
      %v3641 = vsel %vm504, %v3604, 0.0
      %3642 = vadd.xlane.f32.xlu0 %v3641
      %v3643 = vpop.xlane.xlu0 %3642
      %v3644 = vsel %vm504, %v3606, 0.0
      %3645 = vadd.xlane.f32.xlu0 %v3644
      %v3646 = vpop.xlane.xlu0 %3645
      %v3647 = vsel %vm504, %v3608, 0.0
      %3648 = vadd.xlane.f32.xlu0 %v3647
      %v3649 = vpop.xlane.xlu0 %3648
      %v3650 = vsel %vm504, %v3610, 0.0
      %3651 = vadd.xlane.f32.xlu0 %v3650
      %v3652 = vpop.xlane.xlu0 %3651
      %v3653 = vsel %vm504, %v3612, 0.0
      %3654 = vadd.xlane.f32.xlu0 %v3653
      %v3655 = vpop.xlane.xlu0 %3654
      %v3656 = vsel %vm504, %v3614, 0.0
      %3657 = vadd.xlane.f32.xlu0 %v3656
      %v3658 = vpop.xlane.xlu0 %3657
      %v3659 = vsel %vm504, %v3616, 0.0
      %3660 = vadd.xlane.f32.xlu0 %v3659
      %v3661 = vpop.xlane.xlu0 %3660
      %v3662 = vsel %vm504, %v3618, 0.0
      %3663 = vadd.xlane.f32.xlu0 %v3662
      %v3664 = vpop.xlane.xlu0 %3663
      %v3665 = vsel %vm504, %v3620, 0.0
      %3666 = vadd.xlane.f32.xlu0 %v3665
      %v3667 = vpop.xlane.xlu0 %3666
      %v3668 = vsel %vm504, %v3622, 0.0
      %3669 = vadd.xlane.f32.xlu0 %v3668
      %v3670 = vpop.xlane.xlu0 %3669
      %v3671 = vrcp.pop %v3625
      %v3672 = vmul.f32 %v3625, %v3671
      %v3673 = vsub.f32 1.0, %v3672
      %v3674 = vmul.f32 %v3671, %v3673
      %v3675 = vadd.f32 %v3671, %v3674
      %vm3676 = vweird.f32 %v3625
      %vm3677 = vweird.f32 %v3671
      %vm3678 = vmor %vm3676, %vm3677
      %v3679 = vsel %vm3678, %v3671, %v3675
      %v3680 = vand.u32 2147483647, %v3625
      %vm3681 = vcmp.eq.f32.partialorder %v3680, 8.507059e+37
      %v3682 = vand.u32 %v3625, 2147483648
      %v3683 = vor.u32 1.1754944e-38, %v3682
      %v3684 = vsel %vm3681, %v3683, %v3679
      %v3685 = vmul.f32 %v3592, %v3684
      %v3686 = vrcp.pop %v3628
      %v3687 = vmul.f32 %v3628, %v3686
      %v3688 = vsub.f32 1.0, %v3687
      %v3689 = vmul.f32 %v3686, %v3688
      %v3690 = vadd.f32 %v3686, %v3689
      %vm3691 = vweird.f32 %v3628
      %vm3692 = vweird.f32 %v3686
      %vm3693 = vmor %vm3691, %vm3692
      %v3694 = vsel %vm3693, %v3686, %v3690
      %v3695 = vand.u32 2147483647, %v3628
      %vm3696 = vcmp.eq.f32.partialorder %v3695, 8.507059e+37
      %v3697 = vand.u32 %v3628, 2147483648
      %v3698 = vor.u32 1.1754944e-38, %v3697
      %v3699 = vsel %vm3696, %v3698, %v3694
      %v3700 = vmul.f32 %v3594, %v3699
      %v3701 = vrcp.pop %v3631
      %v3702 = vmul.f32 %v3631, %v3701
      %v3703 = vsub.f32 1.0, %v3702
      %v3704 = vmul.f32 %v3701, %v3703
      %v3705 = vadd.f32 %v3701, %v3704
      %vm3706 = vweird.f32 %v3631
      %vm3707 = vweird.f32 %v3701
      %vm3708 = vmor %vm3706, %vm3707
      %v3709 = vsel %vm3708, %v3701, %v3705
      %v3710 = vand.u32 2147483647, %v3631
      %vm3711 = vcmp.eq.f32.partialorder %v3710, 8.507059e+37
      %v3712 = vand.u32 %v3631, 2147483648
      %v3713 = vor.u32 1.1754944e-38, %v3712
      %v3714 = vsel %vm3711, %v3713, %v3709
      %v3715 = vmul.f32 %v3596, %v3714
      %v3716 = vrcp.pop %v3634
      %v3717 = vmul.f32 %v3634, %v3716
      %v3718 = vsub.f32 1.0, %v3717
      %v3719 = vmul.f32 %v3716, %v3718
      %v3720 = vadd.f32 %v3716, %v3719
      %vm3721 = vweird.f32 %v3634
      %vm3722 = vweird.f32 %v3716
      %vm3723 = vmor %vm3721, %vm3722
      %v3724 = vsel %vm3723, %v3716, %v3720
      %v3725 = vand.u32 2147483647, %v3634
      %vm3726 = vcmp.eq.f32.partialorder %v3725, 8.507059e+37
      %v3727 = vand.u32 %v3634, 2147483648
      %v3728 = vor.u32 1.1754944e-38, %v3727
      %v3729 = vsel %vm3726, %v3728, %v3724
      %v3730 = vmul.f32 %v3598, %v3729
      %v3731 = vrcp.pop %v3637
      %v3732 = vmul.f32 %v3637, %v3731
      %v3733 = vsub.f32 1.0, %v3732
      %v3734 = vmul.f32 %v3731, %v3733
      %v3735 = vadd.f32 %v3731, %v3734
      %vm3736 = vweird.f32 %v3637
      %vm3737 = vweird.f32 %v3731
      %vm3738 = vmor %vm3736, %vm3737
      %v3739 = vsel %vm3738, %v3731, %v3735
      %v3740 = vand.u32 2147483647, %v3637
      %vm3741 = vcmp.eq.f32.partialorder %v3740, 8.507059e+37
      %v3742 = vand.u32 %v3637, 2147483648
      %v3743 = vor.u32 1.1754944e-38, %v3742
      %v3744 = vsel %vm3741, %v3743, %v3739
      %v3745 = vmul.f32 %v3600, %v3744
      %v3746 = vrcp.pop %v3640
      %v3747 = vmul.f32 %v3640, %v3746
      %v3748 = vsub.f32 1.0, %v3747
      %v3749 = vmul.f32 %v3746, %v3748
      %v3750 = vadd.f32 %v3746, %v3749
      %vm3751 = vweird.f32 %v3640
      %vm3752 = vweird.f32 %v3746
      %vm3753 = vmor %vm3751, %vm3752
      %v3754 = vsel %vm3753, %v3746, %v3750
      %v3755 = vand.u32 2147483647, %v3640
      %vm3756 = vcmp.eq.f32.partialorder %v3755, 8.507059e+37
      %v3757 = vand.u32 %v3640, 2147483648
      %v3758 = vor.u32 1.1754944e-38, %v3757
      %v3759 = vsel %vm3756, %v3758, %v3754
      %v3760 = vmul.f32 %v3602, %v3759
      %v3761 = vrcp.pop %v3643
      %v3762 = vmul.f32 %v3643, %v3761
      %v3763 = vsub.f32 1.0, %v3762
      %v3764 = vmul.f32 %v3761, %v3763
      %v3765 = vadd.f32 %v3761, %v3764
      %vm3766 = vweird.f32 %v3643
      %vm3767 = vweird.f32 %v3761
      %vm3768 = vmor %vm3766, %vm3767
      %v3769 = vsel %vm3768, %v3761, %v3765
      %v3770 = vand.u32 2147483647, %v3643
      %vm3771 = vcmp.eq.f32.partialorder %v3770, 8.507059e+37
      %v3772 = vand.u32 %v3643, 2147483648
      %v3773 = vor.u32 1.1754944e-38, %v3772
      %v3774 = vsel %vm3771, %v3773, %v3769
      %v3775 = vmul.f32 %v3604, %v3774
      %v3776 = vrcp.pop %v3646
      %v3777 = vmul.f32 %v3646, %v3776
      %v3778 = vsub.f32 1.0, %v3777
      %v3779 = vmul.f32 %v3776, %v3778
      %v3780 = vadd.f32 %v3776, %v3779
      %vm3781 = vweird.f32 %v3646
      %vm3782 = vweird.f32 %v3776
      %vm3783 = vmor %vm3781, %vm3782
      %v3784 = vsel %vm3783, %v3776, %v3780
      %v3785 = vand.u32 2147483647, %v3646
      %vm3786 = vcmp.eq.f32.partialorder %v3785, 8.507059e+37
      %v3787 = vand.u32 %v3646, 2147483648
      %v3788 = vor.u32 1.1754944e-38, %v3787
      %v3789 = vsel %vm3786, %v3788, %v3784
      %v3790 = vmul.f32 %v3606, %v3789
      %v3791 = vrcp.pop %v3649
      %v3792 = vmul.f32 %v3649, %v3791
      %v3793 = vsub.f32 1.0, %v3792
      %v3794 = vmul.f32 %v3791, %v3793
      %v3795 = vadd.f32 %v3791, %v3794
      %vm3796 = vweird.f32 %v3649
      %vm3797 = vweird.f32 %v3791
      %vm3798 = vmor %vm3796, %vm3797
      %v3799 = vsel %vm3798, %v3791, %v3795
      %v3800 = vand.u32 2147483647, %v3649
      %vm3801 = vcmp.eq.f32.partialorder %v3800, 8.507059e+37
      %v3802 = vand.u32 %v3649, 2147483648
      %v3803 = vor.u32 1.1754944e-38, %v3802
      %v3804 = vsel %vm3801, %v3803, %v3799
      %v3805 = vmul.f32 %v3608, %v3804
      %v3806 = vrcp.pop %v3652
      %v3807 = vmul.f32 %v3652, %v3806
      %v3808 = vsub.f32 1.0, %v3807
      %v3809 = vmul.f32 %v3806, %v3808
      %v3810 = vadd.f32 %v3806, %v3809
      %vm3811 = vweird.f32 %v3652
      %vm3812 = vweird.f32 %v3806
      %vm3813 = vmor %vm3811, %vm3812
      %v3814 = vsel %vm3813, %v3806, %v3810
      %v3815 = vand.u32 2147483647, %v3652
      %vm3816 = vcmp.eq.f32.partialorder %v3815, 8.507059e+37
      %v3817 = vand.u32 %v3652, 2147483648
      %v3818 = vor.u32 1.1754944e-38, %v3817
      %v3819 = vsel %vm3816, %v3818, %v3814
      %v3820 = vmul.f32 %v3610, %v3819
      %v3821 = vrcp.pop %v3655
      %v3822 = vmul.f32 %v3655, %v3821
      %v3823 = vsub.f32 1.0, %v3822
      %v3824 = vmul.f32 %v3821, %v3823
      %v3825 = vadd.f32 %v3821, %v3824
      %vm3826 = vweird.f32 %v3655
      %vm3827 = vweird.f32 %v3821
      %vm3828 = vmor %vm3826, %vm3827
      %v3829 = vsel %vm3828, %v3821, %v3825
      %v3830 = vand.u32 2147483647, %v3655
      %vm3831 = vcmp.eq.f32.partialorder %v3830, 8.507059e+37
      %v3832 = vand.u32 %v3655, 2147483648
      %v3833 = vor.u32 1.1754944e-38, %v3832
      %v3834 = vsel %vm3831, %v3833, %v3829
      %v3835 = vmul.f32 %v3612, %v3834
      %v3836 = vrcp.pop %v3658
      %v3837 = vmul.f32 %v3658, %v3836
      %v3838 = vsub.f32 1.0, %v3837
      %v3839 = vmul.f32 %v3836, %v3838
      %v3840 = vadd.f32 %v3836, %v3839
      %vm3841 = vweird.f32 %v3658
      %vm3842 = vweird.f32 %v3836
      %vm3843 = vmor %vm3841, %vm3842
      %v3844 = vsel %vm3843, %v3836, %v3840
      %v3845 = vand.u32 2147483647, %v3658
      %vm3846 = vcmp.eq.f32.partialorder %v3845, 8.507059e+37
      %v3847 = vand.u32 %v3658, 2147483648
      %v3848 = vor.u32 1.1754944e-38, %v3847
      %v3849 = vsel %vm3846, %v3848, %v3844
      %v3850 = vmul.f32 %v3614, %v3849
      %v3851 = vrcp.pop %v3661
      %v3852 = vmul.f32 %v3661, %v3851
      %v3853 = vsub.f32 1.0, %v3852
      %v3854 = vmul.f32 %v3851, %v3853
      %v3855 = vadd.f32 %v3851, %v3854
      %vm3856 = vweird.f32 %v3661
      %vm3857 = vweird.f32 %v3851
      %vm3858 = vmor %vm3856, %vm3857
      %v3859 = vsel %vm3858, %v3851, %v3855
      %v3860 = vand.u32 2147483647, %v3661
      %vm3861 = vcmp.eq.f32.partialorder %v3860, 8.507059e+37
      %v3862 = vand.u32 %v3661, 2147483648
      %v3863 = vor.u32 1.1754944e-38, %v3862
      %v3864 = vsel %vm3861, %v3863, %v3859
      %v3865 = vmul.f32 %v3616, %v3864
      %v3866 = vrcp.pop %v3664
      %v3867 = vmul.f32 %v3664, %v3866
      %v3868 = vsub.f32 1.0, %v3867
      %v3869 = vmul.f32 %v3866, %v3868
      %v3870 = vadd.f32 %v3866, %v3869
      %vm3871 = vweird.f32 %v3664
      %vm3872 = vweird.f32 %v3866
      %vm3873 = vmor %vm3871, %vm3872
      %v3874 = vsel %vm3873, %v3866, %v3870
      %v3875 = vand.u32 2147483647, %v3664
      %vm3876 = vcmp.eq.f32.partialorder %v3875, 8.507059e+37
      %v3877 = vand.u32 %v3664, 2147483648
      %v3878 = vor.u32 1.1754944e-38, %v3877
      %v3879 = vsel %vm3876, %v3878, %v3874
      %v3880 = vmul.f32 %v3618, %v3879
      %v3881 = vrcp.pop %v3667
      %v3882 = vmul.f32 %v3667, %v3881
      %v3883 = vsub.f32 1.0, %v3882
      %v3884 = vmul.f32 %v3881, %v3883
      %v3885 = vadd.f32 %v3881, %v3884
      %vm3886 = vweird.f32 %v3667
      %vm3887 = vweird.f32 %v3881
      %vm3888 = vmor %vm3886, %vm3887
      %v3889 = vsel %vm3888, %v3881, %v3885
      %v3890 = vand.u32 2147483647, %v3667
      %vm3891 = vcmp.eq.f32.partialorder %v3890, 8.507059e+37
      %v3892 = vand.u32 %v3667, 2147483648
      %v3893 = vor.u32 1.1754944e-38, %v3892
      %v3894 = vsel %vm3891, %v3893, %v3889
      %v3895 = vmul.f32 %v3620, %v3894
      %v3896 = vrcp.pop %v3670
      %v3897 = vmul.f32 %v3670, %v3896
      %v3898 = vsub.f32 1.0, %v3897
      %v3899 = vmul.f32 %v3896, %v3898
      %v3900 = vadd.f32 %v3896, %v3899
      %vm3901 = vweird.f32 %v3670
      %vm3902 = vweird.f32 %v3896
      %vm3903 = vmor %vm3901, %vm3902
      %v3904 = vsel %vm3903, %v3896, %v3900
      %v3905 = vand.u32 2147483647, %v3670
      %vm3906 = vcmp.eq.f32.partialorder %v3905, 8.507059e+37
      %v3907 = vand.u32 %v3670, 2147483648
      %v3908 = vor.u32 1.1754944e-38, %v3907
      %v3909 = vsel %vm3906, %v3908, %v3904
      %v3910 = vmul.f32 %v3622, %v3909
      %3911 = vrot.lane.b32.xlu0 %v454, 48
      %v3912 = vpop.permute.xlu0 %3911
      %v3915 = vsel %vm504, %v3685, 0
      %3917 = vmatpush.msra.mxu0 0.0
      %3918 = vmatpush.msra.mxu0 0.0
      %3919 = vmatpush.msra.mxu0 0.0
      %3920 = vmatpush.msra.mxu0 0.0
      %3921 = vmatpush.msra.mxu0 0.0
      %3922 = vmatpush.msra.mxu0 0.0
      %3923 = vmatpush.msra.mxu0 0.0
      %3924 = vmatpush.msra.mxu0 0.0
      %3925 = vmatpush.msra.mxu0 0.0
      %3926 = vmatpush.msra.mxu0 0.0
      %3927 = vmatpush.msra.mxu0 0.0
      %3928 = vmatpush.msra.mxu0 0.0
      %3929 = vmatpush.msra.mxu0 0.0
      %3930 = vmatpush.msra.mxu0 0.0
      %3931 = vmatpush.msra.mxu0 0.0
      %3932 = vmatpush.msra.mxu0 %v3912
      %3933 = vmatmul.f32.gmra.mxu0 %v3915
      %v3934 = vpop.f32.mrf.mxu0
      %v3935 = vadd.f32 0.0, %v3934
      %3936 = vdwg.mxu0
      %3937 = vrot.lane.b32.xlu0 %v457, 48
      %v3938 = vpop.permute.xlu0 %3937
      %v3941 = vsel %vm504, %v3700, 0
      %3943 = vmatpush.msra.mxu0 0.0
      %3944 = vmatpush.msra.mxu0 0.0
      %3945 = vmatpush.msra.mxu0 0.0
      %3946 = vmatpush.msra.mxu0 0.0
      %3947 = vmatpush.msra.mxu0 0.0
      %3948 = vmatpush.msra.mxu0 0.0
      %3949 = vmatpush.msra.mxu0 0.0
      %3950 = vmatpush.msra.mxu0 0.0
      %3951 = vmatpush.msra.mxu0 0.0
      %3952 = vmatpush.msra.mxu0 0.0
      %3953 = vmatpush.msra.mxu0 0.0
      %3954 = vmatpush.msra.mxu0 0.0
      %3955 = vmatpush.msra.mxu0 0.0
      %3956 = vmatpush.msra.mxu0 0.0
      %3957 = vmatpush.msra.mxu0 0.0
      %3958 = vmatpush.msra.mxu0 %v3938
      %3959 = vmatmul.f32.gmra.mxu0 %v3941
      %v3960 = vpop.f32.mrf.mxu0
      %v3961 = vadd.f32 0.0, %v3960
      %3962 = vdwg.mxu0
      %3963 = vrot.lane.b32.xlu0 %v460, 48
      %v3964 = vpop.permute.xlu0 %3963
      %v3967 = vsel %vm504, %v3715, 0
      %3969 = vmatpush.msra.mxu0 0.0
      %3970 = vmatpush.msra.mxu0 0.0
      %3971 = vmatpush.msra.mxu0 0.0
      %3972 = vmatpush.msra.mxu0 0.0
      %3973 = vmatpush.msra.mxu0 0.0
      %3974 = vmatpush.msra.mxu0 0.0
      %3975 = vmatpush.msra.mxu0 0.0
      %3976 = vmatpush.msra.mxu0 0.0
      %3977 = vmatpush.msra.mxu0 0.0
      %3978 = vmatpush.msra.mxu0 0.0
      %3979 = vmatpush.msra.mxu0 0.0
      %3980 = vmatpush.msra.mxu0 0.0
      %3981 = vmatpush.msra.mxu0 0.0
      %3982 = vmatpush.msra.mxu0 0.0
      %3983 = vmatpush.msra.mxu0 0.0
      %3984 = vmatpush.msra.mxu0 %v3964
      %3985 = vmatmul.f32.gmra.mxu0 %v3967
      %v3986 = vpop.f32.mrf.mxu0
      %v3987 = vadd.f32 0.0, %v3986
      %3988 = vdwg.mxu0
      %3989 = vrot.lane.b32.xlu0 %v463, 48
      %v3990 = vpop.permute.xlu0 %3989
      %v3993 = vsel %vm504, %v3730, 0
      %3995 = vmatpush.msra.mxu0 0.0
      %3996 = vmatpush.msra.mxu0 0.0
      %3997 = vmatpush.msra.mxu0 0.0
      %3998 = vmatpush.msra.mxu0 0.0
      %3999 = vmatpush.msra.mxu0 0.0
      %4000 = vmatpush.msra.mxu0 0.0
      %4001 = vmatpush.msra.mxu0 0.0
      %4002 = vmatpush.msra.mxu0 0.0
      %4003 = vmatpush.msra.mxu0 0.0
      %4004 = vmatpush.msra.mxu0 0.0
      %4005 = vmatpush.msra.mxu0 0.0
      %4006 = vmatpush.msra.mxu0 0.0
      %4007 = vmatpush.msra.mxu0 0.0
      %4008 = vmatpush.msra.mxu0 0.0
      %4009 = vmatpush.msra.mxu0 0.0
      %4010 = vmatpush.msra.mxu0 %v3990
      %4011 = vmatmul.f32.gmra.mxu0 %v3993
      %v4012 = vpop.f32.mrf.mxu0
      %v4013 = vadd.f32 0.0, %v4012
      %4014 = vdwg.mxu0
      %4015 = vrot.lane.b32.xlu0 %v466, 48
      %v4016 = vpop.permute.xlu0 %4015
      %v4019 = vsel %vm504, %v3745, 0
      %4021 = vmatpush.msra.mxu0 0.0
      %4022 = vmatpush.msra.mxu0 0.0
      %4023 = vmatpush.msra.mxu0 0.0
      %4024 = vmatpush.msra.mxu0 0.0
      %4025 = vmatpush.msra.mxu0 0.0
      %4026 = vmatpush.msra.mxu0 0.0
      %4027 = vmatpush.msra.mxu0 0.0
      %4028 = vmatpush.msra.mxu0 0.0
      %4029 = vmatpush.msra.mxu0 0.0
      %4030 = vmatpush.msra.mxu0 0.0
      %4031 = vmatpush.msra.mxu0 0.0
      %4032 = vmatpush.msra.mxu0 0.0
      %4033 = vmatpush.msra.mxu0 0.0
      %4034 = vmatpush.msra.mxu0 0.0
      %4035 = vmatpush.msra.mxu0 0.0
      %4036 = vmatpush.msra.mxu0 %v4016
      %4037 = vmatmul.f32.gmra.mxu0 %v4019
      %v4038 = vpop.f32.mrf.mxu0
      %v4039 = vadd.f32 0.0, %v4038
      %4040 = vdwg.mxu0
      %4041 = vrot.lane.b32.xlu0 %v469, 48
      %v4042 = vpop.permute.xlu0 %4041
      %v4045 = vsel %vm504, %v3760, 0
      %4047 = vmatpush.msra.mxu0 0.0
      %4048 = vmatpush.msra.mxu0 0.0
      %4049 = vmatpush.msra.mxu0 0.0
      %4050 = vmatpush.msra.mxu0 0.0
      %4051 = vmatpush.msra.mxu0 0.0
      %4052 = vmatpush.msra.mxu0 0.0
      %4053 = vmatpush.msra.mxu0 0.0
      %4054 = vmatpush.msra.mxu0 0.0
      %4055 = vmatpush.msra.mxu0 0.0
      %4056 = vmatpush.msra.mxu0 0.0
      %4057 = vmatpush.msra.mxu0 0.0
      %4058 = vmatpush.msra.mxu0 0.0
      %4059 = vmatpush.msra.mxu0 0.0
      %4060 = vmatpush.msra.mxu0 0.0
      %4061 = vmatpush.msra.mxu0 0.0
      %4062 = vmatpush.msra.mxu0 %v4042
      %4063 = vmatmul.f32.gmra.mxu0 %v4045
      %v4064 = vpop.f32.mrf.mxu0
      %v4065 = vadd.f32 0.0, %v4064
      %4066 = vdwg.mxu0
      %4067 = vrot.lane.b32.xlu0 %v472, 48
      %v4068 = vpop.permute.xlu0 %4067
      %v4071 = vsel %vm504, %v3775, 0
      %4073 = vmatpush.msra.mxu0 0.0
      %4074 = vmatpush.msra.mxu0 0.0
      %4075 = vmatpush.msra.mxu0 0.0
      %4076 = vmatpush.msra.mxu0 0.0
      %4077 = vmatpush.msra.mxu0 0.0
      %4078 = vmatpush.msra.mxu0 0.0
      %4079 = vmatpush.msra.mxu0 0.0
      %4080 = vmatpush.msra.mxu0 0.0
      %4081 = vmatpush.msra.mxu0 0.0
      %4082 = vmatpush.msra.mxu0 0.0
      %4083 = vmatpush.msra.mxu0 0.0
      %4084 = vmatpush.msra.mxu0 0.0
      %4085 = vmatpush.msra.mxu0 0.0
      %4086 = vmatpush.msra.mxu0 0.0
      %4087 = vmatpush.msra.mxu0 0.0
      %4088 = vmatpush.msra.mxu0 %v4068
      %4089 = vmatmul.f32.gmra.mxu0 %v4071
      %v4090 = vpop.f32.mrf.mxu0
      %v4091 = vadd.f32 0.0, %v4090
      %4092 = vdwg.mxu0
      %4093 = vrot.lane.b32.xlu0 %v475, 48
      %v4094 = vpop.permute.xlu0 %4093
      %v4097 = vsel %vm504, %v3790, 0
      %4099 = vmatpush.msra.mxu0 0.0
      %4100 = vmatpush.msra.mxu0 0.0
      %4101 = vmatpush.msra.mxu0 0.0
      %4102 = vmatpush.msra.mxu0 0.0
      %4103 = vmatpush.msra.mxu0 0.0
      %4104 = vmatpush.msra.mxu0 0.0
      %4105 = vmatpush.msra.mxu0 0.0
      %4106 = vmatpush.msra.mxu0 0.0
      %4107 = vmatpush.msra.mxu0 0.0
      %4108 = vmatpush.msra.mxu0 0.0
      %4109 = vmatpush.msra.mxu0 0.0
      %4110 = vmatpush.msra.mxu0 0.0
      %4111 = vmatpush.msra.mxu0 0.0
      %4112 = vmatpush.msra.mxu0 0.0
      %4113 = vmatpush.msra.mxu0 0.0
      %4114 = vmatpush.msra.mxu0 %v4094
      %4115 = vmatmul.f32.gmra.mxu0 %v4097
      %v4116 = vpop.f32.mrf.mxu0
      %v4117 = vadd.f32 0.0, %v4116
      %4118 = vdwg.mxu0
      %4119 = vrot.lane.b32.xlu0 %v478, 48
      %v4120 = vpop.permute.xlu0 %4119
      %v4123 = vsel %vm504, %v3805, 0
      %4125 = vmatpush.msra.mxu0 0.0
      %4126 = vmatpush.msra.mxu0 0.0
      %4127 = vmatpush.msra.mxu0 0.0
      %4128 = vmatpush.msra.mxu0 0.0
      %4129 = vmatpush.msra.mxu0 0.0
      %4130 = vmatpush.msra.mxu0 0.0
      %4131 = vmatpush.msra.mxu0 0.0
      %4132 = vmatpush.msra.mxu0 0.0
      %4133 = vmatpush.msra.mxu0 0.0
      %4134 = vmatpush.msra.mxu0 0.0
      %4135 = vmatpush.msra.mxu0 0.0
      %4136 = vmatpush.msra.mxu0 0.0
      %4137 = vmatpush.msra.mxu0 0.0
      %4138 = vmatpush.msra.mxu0 0.0
      %4139 = vmatpush.msra.mxu0 0.0
      %4140 = vmatpush.msra.mxu0 %v4120
      %4141 = vmatmul.f32.gmra.mxu0 %v4123
      %v4142 = vpop.f32.mrf.mxu0
      %v4143 = vadd.f32 0.0, %v4142
      %4144 = vdwg.mxu0
      %4145 = vrot.lane.b32.xlu0 %v481, 48
      %v4146 = vpop.permute.xlu0 %4145
      %v4149 = vsel %vm504, %v3820, 0
      %4151 = vmatpush.msra.mxu0 0.0
      %4152 = vmatpush.msra.mxu0 0.0
      %4153 = vmatpush.msra.mxu0 0.0
      %4154 = vmatpush.msra.mxu0 0.0
      %4155 = vmatpush.msra.mxu0 0.0
      %4156 = vmatpush.msra.mxu0 0.0
      %4157 = vmatpush.msra.mxu0 0.0
      %4158 = vmatpush.msra.mxu0 0.0
      %4159 = vmatpush.msra.mxu0 0.0
      %4160 = vmatpush.msra.mxu0 0.0
      %4161 = vmatpush.msra.mxu0 0.0
      %4162 = vmatpush.msra.mxu0 0.0
      %4163 = vmatpush.msra.mxu0 0.0
      %4164 = vmatpush.msra.mxu0 0.0
      %4165 = vmatpush.msra.mxu0 0.0
      %4166 = vmatpush.msra.mxu0 %v4146
      %4167 = vmatmul.f32.gmra.mxu0 %v4149
      %v4168 = vpop.f32.mrf.mxu0
      %v4169 = vadd.f32 0.0, %v4168
      %4170 = vdwg.mxu0
      %4171 = vrot.lane.b32.xlu0 %v484, 48
      %v4172 = vpop.permute.xlu0 %4171
      %v4175 = vsel %vm504, %v3835, 0
      %4177 = vmatpush.msra.mxu0 0.0
      %4178 = vmatpush.msra.mxu0 0.0
      %4179 = vmatpush.msra.mxu0 0.0
      %4180 = vmatpush.msra.mxu0 0.0
      %4181 = vmatpush.msra.mxu0 0.0
      %4182 = vmatpush.msra.mxu0 0.0
      %4183 = vmatpush.msra.mxu0 0.0
      %4184 = vmatpush.msra.mxu0 0.0
      %4185 = vmatpush.msra.mxu0 0.0
      %4186 = vmatpush.msra.mxu0 0.0
      %4187 = vmatpush.msra.mxu0 0.0
      %4188 = vmatpush.msra.mxu0 0.0
      %4189 = vmatpush.msra.mxu0 0.0
      %4190 = vmatpush.msra.mxu0 0.0
      %4191 = vmatpush.msra.mxu0 0.0
      %4192 = vmatpush.msra.mxu0 %v4172
      %4193 = vmatmul.f32.gmra.mxu0 %v4175
      %v4194 = vpop.f32.mrf.mxu0
      %v4195 = vadd.f32 0.0, %v4194
      %4196 = vdwg.mxu0
      %4197 = vrot.lane.b32.xlu0 %v487, 48
      %v4198 = vpop.permute.xlu0 %4197
      %v4201 = vsel %vm504, %v3850, 0
      %4203 = vmatpush.msra.mxu0 0.0
      %4204 = vmatpush.msra.mxu0 0.0
      %4205 = vmatpush.msra.mxu0 0.0
      %4206 = vmatpush.msra.mxu0 0.0
      %4207 = vmatpush.msra.mxu0 0.0
      %4208 = vmatpush.msra.mxu0 0.0
      %4209 = vmatpush.msra.mxu0 0.0
      %4210 = vmatpush.msra.mxu0 0.0
      %4211 = vmatpush.msra.mxu0 0.0
      %4212 = vmatpush.msra.mxu0 0.0
      %4213 = vmatpush.msra.mxu0 0.0
      %4214 = vmatpush.msra.mxu0 0.0
      %4215 = vmatpush.msra.mxu0 0.0
      %4216 = vmatpush.msra.mxu0 0.0
      %4217 = vmatpush.msra.mxu0 0.0
      %4218 = vmatpush.msra.mxu0 %v4198
      %4219 = vmatmul.f32.gmra.mxu0 %v4201
      %v4220 = vpop.f32.mrf.mxu0
      %v4221 = vadd.f32 0.0, %v4220
      %4222 = vdwg.mxu0
      %4223 = vrot.lane.b32.xlu0 %v490, 48
      %v4224 = vpop.permute.xlu0 %4223
      %v4227 = vsel %vm504, %v3865, 0
      %4229 = vmatpush.msra.mxu0 0.0
      %4230 = vmatpush.msra.mxu0 0.0
      %4231 = vmatpush.msra.mxu0 0.0
      %4232 = vmatpush.msra.mxu0 0.0
      %4233 = vmatpush.msra.mxu0 0.0
      %4234 = vmatpush.msra.mxu0 0.0
      %4235 = vmatpush.msra.mxu0 0.0
      %4236 = vmatpush.msra.mxu0 0.0
      %4237 = vmatpush.msra.mxu0 0.0
      %4238 = vmatpush.msra.mxu0 0.0
      %4239 = vmatpush.msra.mxu0 0.0
      %4240 = vmatpush.msra.mxu0 0.0
      %4241 = vmatpush.msra.mxu0 0.0
      %4242 = vmatpush.msra.mxu0 0.0
      %4243 = vmatpush.msra.mxu0 0.0
      %4244 = vmatpush.msra.mxu0 %v4224
      %4245 = vmatmul.f32.gmra.mxu0 %v4227
      %v4246 = vpop.f32.mrf.mxu0
      %v4247 = vadd.f32 0.0, %v4246
      %4248 = vdwg.mxu0
      %4249 = vrot.lane.b32.xlu0 %v493, 48
      %v4250 = vpop.permute.xlu0 %4249
      %v4253 = vsel %vm504, %v3880, 0
      %4255 = vmatpush.msra.mxu0 0.0
      %4256 = vmatpush.msra.mxu0 0.0
      %4257 = vmatpush.msra.mxu0 0.0
      %4258 = vmatpush.msra.mxu0 0.0
      %4259 = vmatpush.msra.mxu0 0.0
      %4260 = vmatpush.msra.mxu0 0.0
      %4261 = vmatpush.msra.mxu0 0.0
      %4262 = vmatpush.msra.mxu0 0.0
      %4263 = vmatpush.msra.mxu0 0.0
      %4264 = vmatpush.msra.mxu0 0.0
      %4265 = vmatpush.msra.mxu0 0.0
      %4266 = vmatpush.msra.mxu0 0.0
      %4267 = vmatpush.msra.mxu0 0.0
      %4268 = vmatpush.msra.mxu0 0.0
      %4269 = vmatpush.msra.mxu0 0.0
      %4270 = vmatpush.msra.mxu0 %v4250
      %4271 = vmatmul.f32.gmra.mxu0 %v4253
      %v4272 = vpop.f32.mrf.mxu0
      %v4273 = vadd.f32 0.0, %v4272
      %4274 = vdwg.mxu0
      %4275 = vrot.lane.b32.xlu0 %v496, 48
      %v4276 = vpop.permute.xlu0 %4275
      %v4279 = vsel %vm504, %v3895, 0
      %4281 = vmatpush.msra.mxu0 0.0
      %4282 = vmatpush.msra.mxu0 0.0
      %4283 = vmatpush.msra.mxu0 0.0
      %4284 = vmatpush.msra.mxu0 0.0
      %4285 = vmatpush.msra.mxu0 0.0
      %4286 = vmatpush.msra.mxu0 0.0
      %4287 = vmatpush.msra.mxu0 0.0
      %4288 = vmatpush.msra.mxu0 0.0
      %4289 = vmatpush.msra.mxu0 0.0
      %4290 = vmatpush.msra.mxu0 0.0
      %4291 = vmatpush.msra.mxu0 0.0
      %4292 = vmatpush.msra.mxu0 0.0
      %4293 = vmatpush.msra.mxu0 0.0
      %4294 = vmatpush.msra.mxu0 0.0
      %4295 = vmatpush.msra.mxu0 0.0
      %4296 = vmatpush.msra.mxu0 %v4276
      %4297 = vmatmul.f32.gmra.mxu0 %v4279
      %v4298 = vpop.f32.mrf.mxu0
      %v4299 = vadd.f32 0.0, %v4298
      %4300 = vdwg.mxu0
      %4301 = vrot.lane.b32.xlu0 %v499, 48
      %v4302 = vpop.permute.xlu0 %4301
      %v4305 = vsel %vm504, %v3910, 0
      %4307 = vmatpush.msra.mxu0 0.0
      %4308 = vmatpush.msra.mxu0 0.0
      %4309 = vmatpush.msra.mxu0 0.0
      %4310 = vmatpush.msra.mxu0 0.0
      %4311 = vmatpush.msra.mxu0 0.0
      %4312 = vmatpush.msra.mxu0 0.0
      %4313 = vmatpush.msra.mxu0 0.0
      %4314 = vmatpush.msra.mxu0 0.0
      %4315 = vmatpush.msra.mxu0 0.0
      %4316 = vmatpush.msra.mxu0 0.0
      %4317 = vmatpush.msra.mxu0 0.0
      %4318 = vmatpush.msra.mxu0 0.0
      %4319 = vmatpush.msra.mxu0 0.0
      %4320 = vmatpush.msra.mxu0 0.0
      %4321 = vmatpush.msra.mxu0 0.0
      %4322 = vmatpush.msra.mxu0 %v4302
      %4323 = vmatmul.f32.gmra.mxu0 %v4305
      %v4324 = vpop.f32.mrf.mxu0
      %v4325 = vadd.f32 0.0, %v4324
      %4326 = vdwg.mxu0
      %4343 = vrot.lane.b32.xlu0 %v3935, 16
      %v4344 = vpop.permute.xlu0 %4343
      %4345 = vrot.lane.b32.xlu0 %v3961, 16
      %v4346 = vpop.permute.xlu0 %4345
      %4347 = vrot.lane.b32.xlu0 %v3987, 16
      %v4348 = vpop.permute.xlu0 %4347
      %4349 = vrot.lane.b32.xlu0 %v4013, 16
      %v4350 = vpop.permute.xlu0 %4349
      %4351 = vrot.lane.b32.xlu0 %v4039, 16
      %v4352 = vpop.permute.xlu0 %4351
      %4353 = vrot.lane.b32.xlu0 %v4065, 16
      %v4354 = vpop.permute.xlu0 %4353
      %4355 = vrot.lane.b32.xlu0 %v4091, 16
      %v4356 = vpop.permute.xlu0 %4355
      %4357 = vrot.lane.b32.xlu0 %v4117, 16
      %v4358 = vpop.permute.xlu0 %4357
      %4359 = vrot.lane.b32.xlu0 %v4143, 16
      %v4360 = vpop.permute.xlu0 %4359
      %4361 = vrot.lane.b32.xlu0 %v4169, 16
      %v4362 = vpop.permute.xlu0 %4361
      %4363 = vrot.lane.b32.xlu0 %v4195, 16
      %v4364 = vpop.permute.xlu0 %4363
      %4365 = vrot.lane.b32.xlu0 %v4221, 16
      %v4366 = vpop.permute.xlu0 %4365
      %4367 = vrot.lane.b32.xlu0 %v4247, 16
      %v4368 = vpop.permute.xlu0 %4367
      %4369 = vrot.lane.b32.xlu0 %v4273, 16
      %v4370 = vpop.permute.xlu0 %4369
      %4371 = vrot.lane.b32.xlu0 %v4299, 16
      %v4372 = vpop.permute.xlu0 %4371
      %4373 = vrot.lane.b32.xlu0 %v4325, 16
      %v4374 = vpop.permute.xlu0 %4373
      %vm4391 = vcmask 195712
      %4392 = vst.msk [vmem:[#allocation2] sm:$0xff] %vm4391, %v4344
      %4393 = vst.msk [vmem:[#allocation2 + $0x8] sm:$0xff] %vm4391, %v4346
      %4394 = vst.msk [vmem:[#allocation2 + $0x10] sm:$0xff] %vm4391, %v4348
      %4395 = vst.msk [vmem:[#allocation2 + $0x18] sm:$0xff] %vm4391, %v4350
      %4396 = vst.msk [vmem:[#allocation2 + $0x20] sm:$0xff] %vm4391, %v4352
      %4397 = vst.msk [vmem:[#allocation2 + $0x28] sm:$0xff] %vm4391, %v4354
      %4398 = vst.msk [vmem:[#allocation2 + $0x30] sm:$0xff] %vm4391, %v4356
      %4399 = vst.msk [vmem:[#allocation2 + $0x38] sm:$0xff] %vm4391, %v4358
      %4400 = vst.msk [vmem:[#allocation2 + $0x40] sm:$0xff] %vm4391, %v4360
      %4401 = vst.msk [vmem:[#allocation2 + $0x48] sm:$0xff] %vm4391, %v4362
      %4402 = vst.msk [vmem:[#allocation2 + $0x50] sm:$0xff] %vm4391, %v4364
      %4403 = vst.msk [vmem:[#allocation2 + $0x58] sm:$0xff] %vm4391, %v4366
      %4404 = vst.msk [vmem:[#allocation2 + $0x60] sm:$0xff] %vm4391, %v4368
      %4405 = vst.msk [vmem:[#allocation2 + $0x68] sm:$0xff] %vm4391, %v4370
      %4406 = vst.msk [vmem:[#allocation2 + $0x70] sm:$0xff] %vm4391, %v4372
      %4407 = vst.msk [vmem:[#allocation2 + $0x78] sm:$0xff] %vm4391, %v4374
      %4408 = vrot.lane.b32.xlu0 %v454, 104
      %v4409 = vpop.permute.xlu0 %4408
      %4410 = vrot.lane.b32.xlu0 %v454, 72
      %v4411 = vpop.permute.xlu0 %4410
      %v4412 = vsel %vm504, %v4409, 0
      %v4414 = vsel %vm504, %v4411, 0
      %4416 = vmatpush.xpose.msra.mxu0 0.0
      %4417 = vmatpush.xpose.msra.mxu0 0.0
      %4418 = vmatpush.xpose.msra.mxu0 0.0
      %4419 = vmatpush.xpose.msra.mxu0 0.0
      %4420 = vmatpush.xpose.msra.mxu0 0.0
      %4421 = vmatpush.xpose.msra.mxu0 0.0
      %4422 = vmatpush.xpose.msra.mxu0 0.0
      %4423 = vmatpush.xpose.msra.mxu0 0.0
      %4424 = vmatpush.xpose.msra.mxu0 0.0
      %4425 = vmatpush.xpose.msra.mxu0 0.0
      %4426 = vmatpush.xpose.msra.mxu0 0.0
      %4427 = vmatpush.xpose.msra.mxu0 0.0
      %4428 = vmatpush.xpose.msra.mxu0 0.0
      %4429 = vmatpush.xpose.msra.mxu0 0.0
      %4430 = vmatpush.xpose.msra.mxu0 0.0
      %4431 = vmatpush.xpose.msra.mxu0 %v4414
      %4432 = vmatmul.f32.gmra.mxu0 %v4412
      %v4433 = vpop.f32.mrf.mxu0
      %v4434 = vadd.f32 0.0, %v4433
      %4435 = vdwg.mxu0
      %4436 = vrot.lane.b32.xlu0 %v457, 104
      %v4437 = vpop.permute.xlu0 %4436
      %4438 = vrot.lane.b32.xlu0 %v457, 72
      %v4439 = vpop.permute.xlu0 %4438
      %v4440 = vsel %vm504, %v4437, 0
      %v4442 = vsel %vm504, %v4439, 0
      %4444 = vmatpush.xpose.msra.mxu0 0.0
      %4445 = vmatpush.xpose.msra.mxu0 0.0
      %4446 = vmatpush.xpose.msra.mxu0 0.0
      %4447 = vmatpush.xpose.msra.mxu0 0.0
      %4448 = vmatpush.xpose.msra.mxu0 0.0
      %4449 = vmatpush.xpose.msra.mxu0 0.0
      %4450 = vmatpush.xpose.msra.mxu0 0.0
      %4451 = vmatpush.xpose.msra.mxu0 0.0
      %4452 = vmatpush.xpose.msra.mxu0 0.0
      %4453 = vmatpush.xpose.msra.mxu0 0.0
      %4454 = vmatpush.xpose.msra.mxu0 0.0
      %4455 = vmatpush.xpose.msra.mxu0 0.0
      %4456 = vmatpush.xpose.msra.mxu0 0.0
      %4457 = vmatpush.xpose.msra.mxu0 0.0
      %4458 = vmatpush.xpose.msra.mxu0 0.0
      %4459 = vmatpush.xpose.msra.mxu0 %v4442
      %4460 = vmatmul.f32.gmra.mxu0 %v4440
      %v4461 = vpop.f32.mrf.mxu0
      %v4462 = vadd.f32 0.0, %v4461
      %4463 = vdwg.mxu0
      %4464 = vrot.lane.b32.xlu0 %v460, 104
      %v4465 = vpop.permute.xlu0 %4464
      %4466 = vrot.lane.b32.xlu0 %v460, 72
      %v4467 = vpop.permute.xlu0 %4466
      %v4468 = vsel %vm504, %v4465, 0
      %v4470 = vsel %vm504, %v4467, 0
      %4472 = vmatpush.xpose.msra.mxu0 0.0
      %4473 = vmatpush.xpose.msra.mxu0 0.0
      %4474 = vmatpush.xpose.msra.mxu0 0.0
      %4475 = vmatpush.xpose.msra.mxu0 0.0
      %4476 = vmatpush.xpose.msra.mxu0 0.0
      %4477 = vmatpush.xpose.msra.mxu0 0.0
      %4478 = vmatpush.xpose.msra.mxu0 0.0
      %4479 = vmatpush.xpose.msra.mxu0 0.0
      %4480 = vmatpush.xpose.msra.mxu0 0.0
      %4481 = vmatpush.xpose.msra.mxu0 0.0
      %4482 = vmatpush.xpose.msra.mxu0 0.0
      %4483 = vmatpush.xpose.msra.mxu0 0.0
      %4484 = vmatpush.xpose.msra.mxu0 0.0
      %4485 = vmatpush.xpose.msra.mxu0 0.0
      %4486 = vmatpush.xpose.msra.mxu0 0.0
      %4487 = vmatpush.xpose.msra.mxu0 %v4470
      %4488 = vmatmul.f32.gmra.mxu0 %v4468
      %v4489 = vpop.f32.mrf.mxu0
      %v4490 = vadd.f32 0.0, %v4489
      %4491 = vdwg.mxu0
      %4492 = vrot.lane.b32.xlu0 %v463, 104
      %v4493 = vpop.permute.xlu0 %4492
      %4494 = vrot.lane.b32.xlu0 %v463, 72
      %v4495 = vpop.permute.xlu0 %4494
      %v4496 = vsel %vm504, %v4493, 0
      %v4498 = vsel %vm504, %v4495, 0
      %4500 = vmatpush.xpose.msra.mxu0 0.0
      %4501 = vmatpush.xpose.msra.mxu0 0.0
      %4502 = vmatpush.xpose.msra.mxu0 0.0
      %4503 = vmatpush.xpose.msra.mxu0 0.0
      %4504 = vmatpush.xpose.msra.mxu0 0.0
      %4505 = vmatpush.xpose.msra.mxu0 0.0
      %4506 = vmatpush.xpose.msra.mxu0 0.0
      %4507 = vmatpush.xpose.msra.mxu0 0.0
      %4508 = vmatpush.xpose.msra.mxu0 0.0
      %4509 = vmatpush.xpose.msra.mxu0 0.0
      %4510 = vmatpush.xpose.msra.mxu0 0.0
      %4511 = vmatpush.xpose.msra.mxu0 0.0
      %4512 = vmatpush.xpose.msra.mxu0 0.0
      %4513 = vmatpush.xpose.msra.mxu0 0.0
      %4514 = vmatpush.xpose.msra.mxu0 0.0
      %4515 = vmatpush.xpose.msra.mxu0 %v4498
      %4516 = vmatmul.f32.gmra.mxu0 %v4496
      %v4517 = vpop.f32.mrf.mxu0
      %v4518 = vadd.f32 0.0, %v4517
      %4519 = vdwg.mxu0
      %4520 = vrot.lane.b32.xlu0 %v466, 104
      %v4521 = vpop.permute.xlu0 %4520
      %4522 = vrot.lane.b32.xlu0 %v466, 72
      %v4523 = vpop.permute.xlu0 %4522
      %v4524 = vsel %vm504, %v4521, 0
      %v4526 = vsel %vm504, %v4523, 0
      %4528 = vmatpush.xpose.msra.mxu0 0.0
      %4529 = vmatpush.xpose.msra.mxu0 0.0
      %4530 = vmatpush.xpose.msra.mxu0 0.0
      %4531 = vmatpush.xpose.msra.mxu0 0.0
      %4532 = vmatpush.xpose.msra.mxu0 0.0
      %4533 = vmatpush.xpose.msra.mxu0 0.0
      %4534 = vmatpush.xpose.msra.mxu0 0.0
      %4535 = vmatpush.xpose.msra.mxu0 0.0
      %4536 = vmatpush.xpose.msra.mxu0 0.0
      %4537 = vmatpush.xpose.msra.mxu0 0.0
      %4538 = vmatpush.xpose.msra.mxu0 0.0
      %4539 = vmatpush.xpose.msra.mxu0 0.0
      %4540 = vmatpush.xpose.msra.mxu0 0.0
      %4541 = vmatpush.xpose.msra.mxu0 0.0
      %4542 = vmatpush.xpose.msra.mxu0 0.0
      %4543 = vmatpush.xpose.msra.mxu0 %v4526
      %4544 = vmatmul.f32.gmra.mxu0 %v4524
      %v4545 = vpop.f32.mrf.mxu0
      %v4546 = vadd.f32 0.0, %v4545
      %4547 = vdwg.mxu0
      %4548 = vrot.lane.b32.xlu0 %v469, 104
      %v4549 = vpop.permute.xlu0 %4548
      %4550 = vrot.lane.b32.xlu0 %v469, 72
      %v4551 = vpop.permute.xlu0 %4550
      %v4552 = vsel %vm504, %v4549, 0
      %v4554 = vsel %vm504, %v4551, 0
      %4556 = vmatpush.xpose.msra.mxu0 0.0
      %4557 = vmatpush.xpose.msra.mxu0 0.0
      %4558 = vmatpush.xpose.msra.mxu0 0.0
      %4559 = vmatpush.xpose.msra.mxu0 0.0
      %4560 = vmatpush.xpose.msra.mxu0 0.0
      %4561 = vmatpush.xpose.msra.mxu0 0.0
      %4562 = vmatpush.xpose.msra.mxu0 0.0
      %4563 = vmatpush.xpose.msra.mxu0 0.0
      %4564 = vmatpush.xpose.msra.mxu0 0.0
      %4565 = vmatpush.xpose.msra.mxu0 0.0
      %4566 = vmatpush.xpose.msra.mxu0 0.0
      %4567 = vmatpush.xpose.msra.mxu0 0.0
      %4568 = vmatpush.xpose.msra.mxu0 0.0
      %4569 = vmatpush.xpose.msra.mxu0 0.0
      %4570 = vmatpush.xpose.msra.mxu0 0.0
      %4571 = vmatpush.xpose.msra.mxu0 %v4554
      %4572 = vmatmul.f32.gmra.mxu0 %v4552
      %v4573 = vpop.f32.mrf.mxu0
      %v4574 = vadd.f32 0.0, %v4573
      %4575 = vdwg.mxu0
      %4576 = vrot.lane.b32.xlu0 %v472, 104
      %v4577 = vpop.permute.xlu0 %4576
      %4578 = vrot.lane.b32.xlu0 %v472, 72
      %v4579 = vpop.permute.xlu0 %4578
      %v4580 = vsel %vm504, %v4577, 0
      %v4582 = vsel %vm504, %v4579, 0
      %4584 = vmatpush.xpose.msra.mxu0 0.0
      %4585 = vmatpush.xpose.msra.mxu0 0.0
      %4586 = vmatpush.xpose.msra.mxu0 0.0
      %4587 = vmatpush.xpose.msra.mxu0 0.0
      %4588 = vmatpush.xpose.msra.mxu0 0.0
      %4589 = vmatpush.xpose.msra.mxu0 0.0
      %4590 = vmatpush.xpose.msra.mxu0 0.0
      %4591 = vmatpush.xpose.msra.mxu0 0.0
      %4592 = vmatpush.xpose.msra.mxu0 0.0
      %4593 = vmatpush.xpose.msra.mxu0 0.0
      %4594 = vmatpush.xpose.msra.mxu0 0.0
      %4595 = vmatpush.xpose.msra.mxu0 0.0
      %4596 = vmatpush.xpose.msra.mxu0 0.0
      %4597 = vmatpush.xpose.msra.mxu0 0.0
      %4598 = vmatpush.xpose.msra.mxu0 0.0
      %4599 = vmatpush.xpose.msra.mxu0 %v4582
      %4600 = vmatmul.f32.gmra.mxu0 %v4580
      %v4601 = vpop.f32.mrf.mxu0
      %v4602 = vadd.f32 0.0, %v4601
      %4603 = vdwg.mxu0
      %4604 = vrot.lane.b32.xlu0 %v475, 104
      %v4605 = vpop.permute.xlu0 %4604
      %4606 = vrot.lane.b32.xlu0 %v475, 72
      %v4607 = vpop.permute.xlu0 %4606
      %v4608 = vsel %vm504, %v4605, 0
      %v4610 = vsel %vm504, %v4607, 0
      %4612 = vmatpush.xpose.msra.mxu0 0.0
      %4613 = vmatpush.xpose.msra.mxu0 0.0
      %4614 = vmatpush.xpose.msra.mxu0 0.0
      %4615 = vmatpush.xpose.msra.mxu0 0.0
      %4616 = vmatpush.xpose.msra.mxu0 0.0
      %4617 = vmatpush.xpose.msra.mxu0 0.0
      %4618 = vmatpush.xpose.msra.mxu0 0.0
      %4619 = vmatpush.xpose.msra.mxu0 0.0
      %4620 = vmatpush.xpose.msra.mxu0 0.0
      %4621 = vmatpush.xpose.msra.mxu0 0.0
      %4622 = vmatpush.xpose.msra.mxu0 0.0
      %4623 = vmatpush.xpose.msra.mxu0 0.0
      %4624 = vmatpush.xpose.msra.mxu0 0.0
      %4625 = vmatpush.xpose.msra.mxu0 0.0
      %4626 = vmatpush.xpose.msra.mxu0 0.0
      %4627 = vmatpush.xpose.msra.mxu0 %v4610
      %4628 = vmatmul.f32.gmra.mxu0 %v4608
      %v4629 = vpop.f32.mrf.mxu0
      %v4630 = vadd.f32 0.0, %v4629
      %4631 = vdwg.mxu0
      %4632 = vrot.lane.b32.xlu0 %v478, 104
      %v4633 = vpop.permute.xlu0 %4632
      %4634 = vrot.lane.b32.xlu0 %v478, 72
      %v4635 = vpop.permute.xlu0 %4634
      %v4636 = vsel %vm504, %v4633, 0
      %v4638 = vsel %vm504, %v4635, 0
      %4640 = vmatpush.xpose.msra.mxu0 0.0
      %4641 = vmatpush.xpose.msra.mxu0 0.0
      %4642 = vmatpush.xpose.msra.mxu0 0.0
      %4643 = vmatpush.xpose.msra.mxu0 0.0
      %4644 = vmatpush.xpose.msra.mxu0 0.0
      %4645 = vmatpush.xpose.msra.mxu0 0.0
      %4646 = vmatpush.xpose.msra.mxu0 0.0
      %4647 = vmatpush.xpose.msra.mxu0 0.0
      %4648 = vmatpush.xpose.msra.mxu0 0.0
      %4649 = vmatpush.xpose.msra.mxu0 0.0
      %4650 = vmatpush.xpose.msra.mxu0 0.0
      %4651 = vmatpush.xpose.msra.mxu0 0.0
      %4652 = vmatpush.xpose.msra.mxu0 0.0
      %4653 = vmatpush.xpose.msra.mxu0 0.0
      %4654 = vmatpush.xpose.msra.mxu0 0.0
      %4655 = vmatpush.xpose.msra.mxu0 %v4638
      %4656 = vmatmul.f32.gmra.mxu0 %v4636
      %v4657 = vpop.f32.mrf.mxu0
      %v4658 = vadd.f32 0.0, %v4657
      %4659 = vdwg.mxu0
      %4660 = vrot.lane.b32.xlu0 %v481, 104
      %v4661 = vpop.permute.xlu0 %4660
      %4662 = vrot.lane.b32.xlu0 %v481, 72
      %v4663 = vpop.permute.xlu0 %4662
      %v4664 = vsel %vm504, %v4661, 0
      %v4666 = vsel %vm504, %v4663, 0
      %4668 = vmatpush.xpose.msra.mxu0 0.0
      %4669 = vmatpush.xpose.msra.mxu0 0.0
      %4670 = vmatpush.xpose.msra.mxu0 0.0
      %4671 = vmatpush.xpose.msra.mxu0 0.0
      %4672 = vmatpush.xpose.msra.mxu0 0.0
      %4673 = vmatpush.xpose.msra.mxu0 0.0
      %4674 = vmatpush.xpose.msra.mxu0 0.0
      %4675 = vmatpush.xpose.msra.mxu0 0.0
      %4676 = vmatpush.xpose.msra.mxu0 0.0
      %4677 = vmatpush.xpose.msra.mxu0 0.0
      %4678 = vmatpush.xpose.msra.mxu0 0.0
      %4679 = vmatpush.xpose.msra.mxu0 0.0
      %4680 = vmatpush.xpose.msra.mxu0 0.0
      %4681 = vmatpush.xpose.msra.mxu0 0.0
      %4682 = vmatpush.xpose.msra.mxu0 0.0
      %4683 = vmatpush.xpose.msra.mxu0 %v4666
      %4684 = vmatmul.f32.gmra.mxu0 %v4664
      %v4685 = vpop.f32.mrf.mxu0
      %v4686 = vadd.f32 0.0, %v4685
      %4687 = vdwg.mxu0
      %4688 = vrot.lane.b32.xlu0 %v484, 104
      %v4689 = vpop.permute.xlu0 %4688
      %4690 = vrot.lane.b32.xlu0 %v484, 72
      %v4691 = vpop.permute.xlu0 %4690
      %v4692 = vsel %vm504, %v4689, 0
      %v4694 = vsel %vm504, %v4691, 0
      %4696 = vmatpush.xpose.msra.mxu0 0.0
      %4697 = vmatpush.xpose.msra.mxu0 0.0
      %4698 = vmatpush.xpose.msra.mxu0 0.0
      %4699 = vmatpush.xpose.msra.mxu0 0.0
      %4700 = vmatpush.xpose.msra.mxu0 0.0
      %4701 = vmatpush.xpose.msra.mxu0 0.0
      %4702 = vmatpush.xpose.msra.mxu0 0.0
      %4703 = vmatpush.xpose.msra.mxu0 0.0
      %4704 = vmatpush.xpose.msra.mxu0 0.0
      %4705 = vmatpush.xpose.msra.mxu0 0.0
      %4706 = vmatpush.xpose.msra.mxu0 0.0
      %4707 = vmatpush.xpose.msra.mxu0 0.0
      %4708 = vmatpush.xpose.msra.mxu0 0.0
      %4709 = vmatpush.xpose.msra.mxu0 0.0
      %4710 = vmatpush.xpose.msra.mxu0 0.0
      %4711 = vmatpush.xpose.msra.mxu0 %v4694
      %4712 = vmatmul.f32.gmra.mxu0 %v4692
      %v4713 = vpop.f32.mrf.mxu0
      %v4714 = vadd.f32 0.0, %v4713
      %4715 = vdwg.mxu0
      %4716 = vrot.lane.b32.xlu0 %v487, 104
      %v4717 = vpop.permute.xlu0 %4716
      %4718 = vrot.lane.b32.xlu0 %v487, 72
      %v4719 = vpop.permute.xlu0 %4718
      %v4720 = vsel %vm504, %v4717, 0
      %v4722 = vsel %vm504, %v4719, 0
      %4724 = vmatpush.xpose.msra.mxu0 0.0
      %4725 = vmatpush.xpose.msra.mxu0 0.0
      %4726 = vmatpush.xpose.msra.mxu0 0.0
      %4727 = vmatpush.xpose.msra.mxu0 0.0
      %4728 = vmatpush.xpose.msra.mxu0 0.0
      %4729 = vmatpush.xpose.msra.mxu0 0.0
      %4730 = vmatpush.xpose.msra.mxu0 0.0
      %4731 = vmatpush.xpose.msra.mxu0 0.0
      %4732 = vmatpush.xpose.msra.mxu0 0.0
      %4733 = vmatpush.xpose.msra.mxu0 0.0
      %4734 = vmatpush.xpose.msra.mxu0 0.0
      %4735 = vmatpush.xpose.msra.mxu0 0.0
      %4736 = vmatpush.xpose.msra.mxu0 0.0
      %4737 = vmatpush.xpose.msra.mxu0 0.0
      %4738 = vmatpush.xpose.msra.mxu0 0.0
      %4739 = vmatpush.xpose.msra.mxu0 %v4722
      %4740 = vmatmul.f32.gmra.mxu0 %v4720
      %v4741 = vpop.f32.mrf.mxu0
      %v4742 = vadd.f32 0.0, %v4741
      %4743 = vdwg.mxu0
      %4744 = vrot.lane.b32.xlu0 %v490, 104
      %v4745 = vpop.permute.xlu0 %4744
      %4746 = vrot.lane.b32.xlu0 %v490, 72
      %v4747 = vpop.permute.xlu0 %4746
      %v4748 = vsel %vm504, %v4745, 0
      %v4750 = vsel %vm504, %v4747, 0
      %4752 = vmatpush.xpose.msra.mxu0 0.0
      %4753 = vmatpush.xpose.msra.mxu0 0.0
      %4754 = vmatpush.xpose.msra.mxu0 0.0
      %4755 = vmatpush.xpose.msra.mxu0 0.0
      %4756 = vmatpush.xpose.msra.mxu0 0.0
      %4757 = vmatpush.xpose.msra.mxu0 0.0
      %4758 = vmatpush.xpose.msra.mxu0 0.0
      %4759 = vmatpush.xpose.msra.mxu0 0.0
      %4760 = vmatpush.xpose.msra.mxu0 0.0
      %4761 = vmatpush.xpose.msra.mxu0 0.0
      %4762 = vmatpush.xpose.msra.mxu0 0.0
      %4763 = vmatpush.xpose.msra.mxu0 0.0
      %4764 = vmatpush.xpose.msra.mxu0 0.0
      %4765 = vmatpush.xpose.msra.mxu0 0.0
      %4766 = vmatpush.xpose.msra.mxu0 0.0
      %4767 = vmatpush.xpose.msra.mxu0 %v4750
      %4768 = vmatmul.f32.gmra.mxu0 %v4748
      %v4769 = vpop.f32.mrf.mxu0
      %v4770 = vadd.f32 0.0, %v4769
      %4771 = vdwg.mxu0
      %4772 = vrot.lane.b32.xlu0 %v493, 104
      %v4773 = vpop.permute.xlu0 %4772
      %4774 = vrot.lane.b32.xlu0 %v493, 72
      %v4775 = vpop.permute.xlu0 %4774
      %v4776 = vsel %vm504, %v4773, 0
      %v4778 = vsel %vm504, %v4775, 0
      %4780 = vmatpush.xpose.msra.mxu0 0.0
      %4781 = vmatpush.xpose.msra.mxu0 0.0
      %4782 = vmatpush.xpose.msra.mxu0 0.0
      %4783 = vmatpush.xpose.msra.mxu0 0.0
      %4784 = vmatpush.xpose.msra.mxu0 0.0
      %4785 = vmatpush.xpose.msra.mxu0 0.0
      %4786 = vmatpush.xpose.msra.mxu0 0.0
      %4787 = vmatpush.xpose.msra.mxu0 0.0
      %4788 = vmatpush.xpose.msra.mxu0 0.0
      %4789 = vmatpush.xpose.msra.mxu0 0.0
      %4790 = vmatpush.xpose.msra.mxu0 0.0
      %4791 = vmatpush.xpose.msra.mxu0 0.0
      %4792 = vmatpush.xpose.msra.mxu0 0.0
      %4793 = vmatpush.xpose.msra.mxu0 0.0
      %4794 = vmatpush.xpose.msra.mxu0 0.0
      %4795 = vmatpush.xpose.msra.mxu0 %v4778
      %4796 = vmatmul.f32.gmra.mxu0 %v4776
      %v4797 = vpop.f32.mrf.mxu0
      %v4798 = vadd.f32 0.0, %v4797
      %4799 = vdwg.mxu0
      %4800 = vrot.lane.b32.xlu0 %v496, 104
      %v4801 = vpop.permute.xlu0 %4800
      %4802 = vrot.lane.b32.xlu0 %v496, 72
      %v4803 = vpop.permute.xlu0 %4802
      %v4804 = vsel %vm504, %v4801, 0
      %v4806 = vsel %vm504, %v4803, 0
      %4808 = vmatpush.xpose.msra.mxu0 0.0
      %4809 = vmatpush.xpose.msra.mxu0 0.0
      %4810 = vmatpush.xpose.msra.mxu0 0.0
      %4811 = vmatpush.xpose.msra.mxu0 0.0
      %4812 = vmatpush.xpose.msra.mxu0 0.0
      %4813 = vmatpush.xpose.msra.mxu0 0.0
      %4814 = vmatpush.xpose.msra.mxu0 0.0
      %4815 = vmatpush.xpose.msra.mxu0 0.0
      %4816 = vmatpush.xpose.msra.mxu0 0.0
      %4817 = vmatpush.xpose.msra.mxu0 0.0
      %4818 = vmatpush.xpose.msra.mxu0 0.0
      %4819 = vmatpush.xpose.msra.mxu0 0.0
      %4820 = vmatpush.xpose.msra.mxu0 0.0
      %4821 = vmatpush.xpose.msra.mxu0 0.0
      %4822 = vmatpush.xpose.msra.mxu0 0.0
      %4823 = vmatpush.xpose.msra.mxu0 %v4806
      %4824 = vmatmul.f32.gmra.mxu0 %v4804
      %v4825 = vpop.f32.mrf.mxu0
      %v4826 = vadd.f32 0.0, %v4825
      %4827 = vdwg.mxu0
      %4828 = vrot.lane.b32.xlu0 %v499, 104
      %v4829 = vpop.permute.xlu0 %4828
      %4830 = vrot.lane.b32.xlu0 %v499, 72
      %v4831 = vpop.permute.xlu0 %4830
      %v4832 = vsel %vm504, %v4829, 0
      %v4834 = vsel %vm504, %v4831, 0
      %4836 = vmatpush.xpose.msra.mxu0 0.0
      %4837 = vmatpush.xpose.msra.mxu0 0.0
      %4838 = vmatpush.xpose.msra.mxu0 0.0
      %4839 = vmatpush.xpose.msra.mxu0 0.0
      %4840 = vmatpush.xpose.msra.mxu0 0.0
      %4841 = vmatpush.xpose.msra.mxu0 0.0
      %4842 = vmatpush.xpose.msra.mxu0 0.0
      %4843 = vmatpush.xpose.msra.mxu0 0.0
      %4844 = vmatpush.xpose.msra.mxu0 0.0
      %4845 = vmatpush.xpose.msra.mxu0 0.0
      %4846 = vmatpush.xpose.msra.mxu0 0.0
      %4847 = vmatpush.xpose.msra.mxu0 0.0
      %4848 = vmatpush.xpose.msra.mxu0 0.0
      %4849 = vmatpush.xpose.msra.mxu0 0.0
      %4850 = vmatpush.xpose.msra.mxu0 0.0
      %4851 = vmatpush.xpose.msra.mxu0 %v4834
      %4852 = vmatmul.f32.gmra.mxu0 %v4832
      %v4853 = vpop.f32.mrf.mxu0
      %v4854 = vadd.f32 0.0, %v4853
      %4855 = vdwg.mxu0
      %v4856 = vsel %vm504, %v4434, -inf
      %4857 = vmax.xlane.f32.xlu0 %v4856
      %v4858 = vpop.xlane.xlu0 %4857
      %v4859 = vsel %vm504, %v4462, -inf
      %4860 = vmax.xlane.f32.xlu0 %v4859
      %v4861 = vpop.xlane.xlu0 %4860
      %v4862 = vsel %vm504, %v4490, -inf
      %4863 = vmax.xlane.f32.xlu0 %v4862
      %v4864 = vpop.xlane.xlu0 %4863
      %v4865 = vsel %vm504, %v4518, -inf
      %4866 = vmax.xlane.f32.xlu0 %v4865
      %v4867 = vpop.xlane.xlu0 %4866
      %v4868 = vsel %vm504, %v4546, -inf
      %4869 = vmax.xlane.f32.xlu0 %v4868
      %v4870 = vpop.xlane.xlu0 %4869
      %v4871 = vsel %vm504, %v4574, -inf
      %4872 = vmax.xlane.f32.xlu0 %v4871
      %v4873 = vpop.xlane.xlu0 %4872
      %v4874 = vsel %vm504, %v4602, -inf
      %4875 = vmax.xlane.f32.xlu0 %v4874
      %v4876 = vpop.xlane.xlu0 %4875
      %v4877 = vsel %vm504, %v4630, -inf
      %4878 = vmax.xlane.f32.xlu0 %v4877
      %v4879 = vpop.xlane.xlu0 %4878
      %v4880 = vsel %vm504, %v4658, -inf
      %4881 = vmax.xlane.f32.xlu0 %v4880
      %v4882 = vpop.xlane.xlu0 %4881
      %v4883 = vsel %vm504, %v4686, -inf
      %4884 = vmax.xlane.f32.xlu0 %v4883
      %v4885 = vpop.xlane.xlu0 %4884
      %v4886 = vsel %vm504, %v4714, -inf
      %4887 = vmax.xlane.f32.xlu0 %v4886
      %v4888 = vpop.xlane.xlu0 %4887
      %v4889 = vsel %vm504, %v4742, -inf
      %4890 = vmax.xlane.f32.xlu0 %v4889
      %v4891 = vpop.xlane.xlu0 %4890
      %v4892 = vsel %vm504, %v4770, -inf
      %4893 = vmax.xlane.f32.xlu0 %v4892
      %v4894 = vpop.xlane.xlu0 %4893
      %v4895 = vsel %vm504, %v4798, -inf
      %4896 = vmax.xlane.f32.xlu0 %v4895
      %v4897 = vpop.xlane.xlu0 %4896
      %v4898 = vsel %vm504, %v4826, -inf
      %4899 = vmax.xlane.f32.xlu0 %v4898
      %v4900 = vpop.xlane.xlu0 %4899
      %v4901 = vsel %vm504, %v4854, -inf
      %4902 = vmax.xlane.f32.xlu0 %v4901
      %v4903 = vpop.xlane.xlu0 %4902
      %v4904 = vsub.f32 %v4434, %v4858
      %v4905 = vsub.f32 %v4462, %v4861
      %v4906 = vsub.f32 %v4490, %v4864
      %v4907 = vsub.f32 %v4518, %v4867
      %v4908 = vsub.f32 %v4546, %v4870
      %v4909 = vsub.f32 %v4574, %v4873
      %v4910 = vsub.f32 %v4602, %v4876
      %v4911 = vsub.f32 %v4630, %v4879
      %v4912 = vsub.f32 %v4658, %v4882
      %v4913 = vsub.f32 %v4686, %v4885
      %v4914 = vsub.f32 %v4714, %v4888
      %v4915 = vsub.f32 %v4742, %v4891
      %v4916 = vsub.f32 %v4770, %v4894
      %v4917 = vsub.f32 %v4798, %v4897
      %v4918 = vsub.f32 %v4826, %v4900
      %v4919 = vsub.f32 %v4854, %v4903
      %v4920 = vmul.f32 %v4904, 1.442695
      %v4921 = vpow.pop %v4920
      %v4922 = vmul.f32 %v4905, 1.442695
      %v4923 = vpow.pop %v4922
      %v4924 = vmul.f32 %v4906, 1.442695
      %v4925 = vpow.pop %v4924
      %v4926 = vmul.f32 %v4907, 1.442695
      %v4927 = vpow.pop %v4926
      %v4928 = vmul.f32 %v4908, 1.442695
      %v4929 = vpow.pop %v4928
      %v4930 = vmul.f32 %v4909, 1.442695
      %v4931 = vpow.pop %v4930
      %v4932 = vmul.f32 %v4910, 1.442695
      %v4933 = vpow.pop %v4932
      %v4934 = vmul.f32 %v4911, 1.442695
      %v4935 = vpow.pop %v4934
      %v4936 = vmul.f32 %v4912, 1.442695
      %v4937 = vpow.pop %v4936
      %v4938 = vmul.f32 %v4913, 1.442695
      %v4939 = vpow.pop %v4938
      %v4940 = vmul.f32 %v4914, 1.442695
      %v4941 = vpow.pop %v4940
      %v4942 = vmul.f32 %v4915, 1.442695
      %v4943 = vpow.pop %v4942
      %v4944 = vmul.f32 %v4916, 1.442695
      %v4945 = vpow.pop %v4944
      %v4946 = vmul.f32 %v4917, 1.442695
      %v4947 = vpow.pop %v4946
      %v4948 = vmul.f32 %v4918, 1.442695
      %v4949 = vpow.pop %v4948
      %v4950 = vmul.f32 %v4919, 1.442695
      %v4951 = vpow.pop %v4950
      %v4952 = vsel %vm504, %v4921, 0.0
      %4953 = vadd.xlane.f32.xlu0 %v4952
      %v4954 = vpop.xlane.xlu0 %4953
      %v4955 = vsel %vm504, %v4923, 0.0
      %4956 = vadd.xlane.f32.xlu0 %v4955
      %v4957 = vpop.xlane.xlu0 %4956
      %v4958 = vsel %vm504, %v4925, 0.0
      %4959 = vadd.xlane.f32.xlu0 %v4958
      %v4960 = vpop.xlane.xlu0 %4959
      %v4961 = vsel %vm504, %v4927, 0.0
      %4962 = vadd.xlane.f32.xlu0 %v4961
      %v4963 = vpop.xlane.xlu0 %4962
      %v4964 = vsel %vm504, %v4929, 0.0
      %4965 = vadd.xlane.f32.xlu0 %v4964
      %v4966 = vpop.xlane.xlu0 %4965
      %v4967 = vsel %vm504, %v4931, 0.0
      %4968 = vadd.xlane.f32.xlu0 %v4967
      %v4969 = vpop.xlane.xlu0 %4968
      %v4970 = vsel %vm504, %v4933, 0.0
      %4971 = vadd.xlane.f32.xlu0 %v4970
      %v4972 = vpop.xlane.xlu0 %4971
      %v4973 = vsel %vm504, %v4935, 0.0
      %4974 = vadd.xlane.f32.xlu0 %v4973
      %v4975 = vpop.xlane.xlu0 %4974
      %v4976 = vsel %vm504, %v4937, 0.0
      %4977 = vadd.xlane.f32.xlu0 %v4976
      %v4978 = vpop.xlane.xlu0 %4977
      %v4979 = vsel %vm504, %v4939, 0.0
      %4980 = vadd.xlane.f32.xlu0 %v4979
      %v4981 = vpop.xlane.xlu0 %4980
      %v4982 = vsel %vm504, %v4941, 0.0
      %4983 = vadd.xlane.f32.xlu0 %v4982
      %v4984 = vpop.xlane.xlu0 %4983
      %v4985 = vsel %vm504, %v4943, 0.0
      %4986 = vadd.xlane.f32.xlu0 %v4985
      %v4987 = vpop.xlane.xlu0 %4986
      %v4988 = vsel %vm504, %v4945, 0.0
      %4989 = vadd.xlane.f32.xlu0 %v4988
      %v4990 = vpop.xlane.xlu0 %4989
      %v4991 = vsel %vm504, %v4947, 0.0
      %4992 = vadd.xlane.f32.xlu0 %v4991
      %v4993 = vpop.xlane.xlu0 %4992
      %v4994 = vsel %vm504, %v4949, 0.0
      %4995 = vadd.xlane.f32.xlu0 %v4994
      %v4996 = vpop.xlane.xlu0 %4995
      %v4997 = vsel %vm504, %v4951, 0.0
      %4998 = vadd.xlane.f32.xlu0 %v4997
      %v4999 = vpop.xlane.xlu0 %4998
      %v5000 = vrcp.pop %v4954
      %v5001 = vmul.f32 %v4954, %v5000
      %v5002 = vsub.f32 1.0, %v5001
      %v5003 = vmul.f32 %v5000, %v5002
      %v5004 = vadd.f32 %v5000, %v5003
      %vm5005 = vweird.f32 %v4954
      %vm5006 = vweird.f32 %v5000
      %vm5007 = vmor %vm5005, %vm5006
      %v5008 = vsel %vm5007, %v5000, %v5004
      %v5009 = vand.u32 2147483647, %v4954
      %vm5010 = vcmp.eq.f32.partialorder %v5009, 8.507059e+37
      %v5011 = vand.u32 %v4954, 2147483648
      %v5012 = vor.u32 1.1754944e-38, %v5011
      %v5013 = vsel %vm5010, %v5012, %v5008
      %v5014 = vmul.f32 %v4921, %v5013
      %v5015 = vrcp.pop %v4957
      %v5016 = vmul.f32 %v4957, %v5015
      %v5017 = vsub.f32 1.0, %v5016
      %v5018 = vmul.f32 %v5015, %v5017
      %v5019 = vadd.f32 %v5015, %v5018
      %vm5020 = vweird.f32 %v4957
      %vm5021 = vweird.f32 %v5015
      %vm5022 = vmor %vm5020, %vm5021
      %v5023 = vsel %vm5022, %v5015, %v5019
      %v5024 = vand.u32 2147483647, %v4957
      %vm5025 = vcmp.eq.f32.partialorder %v5024, 8.507059e+37
      %v5026 = vand.u32 %v4957, 2147483648
      %v5027 = vor.u32 1.1754944e-38, %v5026
      %v5028 = vsel %vm5025, %v5027, %v5023
      %v5029 = vmul.f32 %v4923, %v5028
      %v5030 = vrcp.pop %v4960
      %v5031 = vmul.f32 %v4960, %v5030
      %v5032 = vsub.f32 1.0, %v5031
      %v5033 = vmul.f32 %v5030, %v5032
      %v5034 = vadd.f32 %v5030, %v5033
      %vm5035 = vweird.f32 %v4960
      %vm5036 = vweird.f32 %v5030
      %vm5037 = vmor %vm5035, %vm5036
      %v5038 = vsel %vm5037, %v5030, %v5034
      %v5039 = vand.u32 2147483647, %v4960
      %vm5040 = vcmp.eq.f32.partialorder %v5039, 8.507059e+37
      %v5041 = vand.u32 %v4960, 2147483648
      %v5042 = vor.u32 1.1754944e-38, %v5041
      %v5043 = vsel %vm5040, %v5042, %v5038
      %v5044 = vmul.f32 %v4925, %v5043
      %v5045 = vrcp.pop %v4963
      %v5046 = vmul.f32 %v4963, %v5045
      %v5047 = vsub.f32 1.0, %v5046
      %v5048 = vmul.f32 %v5045, %v5047
      %v5049 = vadd.f32 %v5045, %v5048
      %vm5050 = vweird.f32 %v4963
      %vm5051 = vweird.f32 %v5045
      %vm5052 = vmor %vm5050, %vm5051
      %v5053 = vsel %vm5052, %v5045, %v5049
      %v5054 = vand.u32 2147483647, %v4963
      %vm5055 = vcmp.eq.f32.partialorder %v5054, 8.507059e+37
      %v5056 = vand.u32 %v4963, 2147483648
      %v5057 = vor.u32 1.1754944e-38, %v5056
      %v5058 = vsel %vm5055, %v5057, %v5053
      %v5059 = vmul.f32 %v4927, %v5058
      %v5060 = vrcp.pop %v4966
      %v5061 = vmul.f32 %v4966, %v5060
      %v5062 = vsub.f32 1.0, %v5061
      %v5063 = vmul.f32 %v5060, %v5062
      %v5064 = vadd.f32 %v5060, %v5063
      %vm5065 = vweird.f32 %v4966
      %vm5066 = vweird.f32 %v5060
      %vm5067 = vmor %vm5065, %vm5066
      %v5068 = vsel %vm5067, %v5060, %v5064
      %v5069 = vand.u32 2147483647, %v4966
      %vm5070 = vcmp.eq.f32.partialorder %v5069, 8.507059e+37
      %v5071 = vand.u32 %v4966, 2147483648
      %v5072 = vor.u32 1.1754944e-38, %v5071
      %v5073 = vsel %vm5070, %v5072, %v5068
      %v5074 = vmul.f32 %v4929, %v5073
      %v5075 = vrcp.pop %v4969
      %v5076 = vmul.f32 %v4969, %v5075
      %v5077 = vsub.f32 1.0, %v5076
      %v5078 = vmul.f32 %v5075, %v5077
      %v5079 = vadd.f32 %v5075, %v5078
      %vm5080 = vweird.f32 %v4969
      %vm5081 = vweird.f32 %v5075
      %vm5082 = vmor %vm5080, %vm5081
      %v5083 = vsel %vm5082, %v5075, %v5079
      %v5084 = vand.u32 2147483647, %v4969
      %vm5085 = vcmp.eq.f32.partialorder %v5084, 8.507059e+37
      %v5086 = vand.u32 %v4969, 2147483648
      %v5087 = vor.u32 1.1754944e-38, %v5086
      %v5088 = vsel %vm5085, %v5087, %v5083
      %v5089 = vmul.f32 %v4931, %v5088
      %v5090 = vrcp.pop %v4972
      %v5091 = vmul.f32 %v4972, %v5090
      %v5092 = vsub.f32 1.0, %v5091
      %v5093 = vmul.f32 %v5090, %v5092
      %v5094 = vadd.f32 %v5090, %v5093
      %vm5095 = vweird.f32 %v4972
      %vm5096 = vweird.f32 %v5090
      %vm5097 = vmor %vm5095, %vm5096
      %v5098 = vsel %vm5097, %v5090, %v5094
      %v5099 = vand.u32 2147483647, %v4972
      %vm5100 = vcmp.eq.f32.partialorder %v5099, 8.507059e+37
      %v5101 = vand.u32 %v4972, 2147483648
      %v5102 = vor.u32 1.1754944e-38, %v5101
      %v5103 = vsel %vm5100, %v5102, %v5098
      %v5104 = vmul.f32 %v4933, %v5103
      %v5105 = vrcp.pop %v4975
      %v5106 = vmul.f32 %v4975, %v5105
      %v5107 = vsub.f32 1.0, %v5106
      %v5108 = vmul.f32 %v5105, %v5107
      %v5109 = vadd.f32 %v5105, %v5108
      %vm5110 = vweird.f32 %v4975
      %vm5111 = vweird.f32 %v5105
      %vm5112 = vmor %vm5110, %vm5111
      %v5113 = vsel %vm5112, %v5105, %v5109
      %v5114 = vand.u32 2147483647, %v4975
      %vm5115 = vcmp.eq.f32.partialorder %v5114, 8.507059e+37
      %v5116 = vand.u32 %v4975, 2147483648
      %v5117 = vor.u32 1.1754944e-38, %v5116
      %v5118 = vsel %vm5115, %v5117, %v5113
      %v5119 = vmul.f32 %v4935, %v5118
      %v5120 = vrcp.pop %v4978
      %v5121 = vmul.f32 %v4978, %v5120
      %v5122 = vsub.f32 1.0, %v5121
      %v5123 = vmul.f32 %v5120, %v5122
      %v5124 = vadd.f32 %v5120, %v5123
      %vm5125 = vweird.f32 %v4978
      %vm5126 = vweird.f32 %v5120
      %vm5127 = vmor %vm5125, %vm5126
      %v5128 = vsel %vm5127, %v5120, %v5124
      %v5129 = vand.u32 2147483647, %v4978
      %vm5130 = vcmp.eq.f32.partialorder %v5129, 8.507059e+37
      %v5131 = vand.u32 %v4978, 2147483648
      %v5132 = vor.u32 1.1754944e-38, %v5131
      %v5133 = vsel %vm5130, %v5132, %v5128
      %v5134 = vmul.f32 %v4937, %v5133
      %v5135 = vrcp.pop %v4981
      %v5136 = vmul.f32 %v4981, %v5135
      %v5137 = vsub.f32 1.0, %v5136
      %v5138 = vmul.f32 %v5135, %v5137
      %v5139 = vadd.f32 %v5135, %v5138
      %vm5140 = vweird.f32 %v4981
      %vm5141 = vweird.f32 %v5135
      %vm5142 = vmor %vm5140, %vm5141
      %v5143 = vsel %vm5142, %v5135, %v5139
      %v5144 = vand.u32 2147483647, %v4981
      %vm5145 = vcmp.eq.f32.partialorder %v5144, 8.507059e+37
      %v5146 = vand.u32 %v4981, 2147483648
      %v5147 = vor.u32 1.1754944e-38, %v5146
      %v5148 = vsel %vm5145, %v5147, %v5143
      %v5149 = vmul.f32 %v4939, %v5148
      %v5150 = vrcp.pop %v4984
      %v5151 = vmul.f32 %v4984, %v5150
      %v5152 = vsub.f32 1.0, %v5151
      %v5153 = vmul.f32 %v5150, %v5152
      %v5154 = vadd.f32 %v5150, %v5153
      %vm5155 = vweird.f32 %v4984
      %vm5156 = vweird.f32 %v5150
      %vm5157 = vmor %vm5155, %vm5156
      %v5158 = vsel %vm5157, %v5150, %v5154
      %v5159 = vand.u32 2147483647, %v4984
      %vm5160 = vcmp.eq.f32.partialorder %v5159, 8.507059e+37
      %v5161 = vand.u32 %v4984, 2147483648
      %v5162 = vor.u32 1.1754944e-38, %v5161
      %v5163 = vsel %vm5160, %v5162, %v5158
      %v5164 = vmul.f32 %v4941, %v5163
      %v5165 = vrcp.pop %v4987
      %v5166 = vmul.f32 %v4987, %v5165
      %v5167 = vsub.f32 1.0, %v5166
      %v5168 = vmul.f32 %v5165, %v5167
      %v5169 = vadd.f32 %v5165, %v5168
      %vm5170 = vweird.f32 %v4987
      %vm5171 = vweird.f32 %v5165
      %vm5172 = vmor %vm5170, %vm5171
      %v5173 = vsel %vm5172, %v5165, %v5169
      %v5174 = vand.u32 2147483647, %v4987
      %vm5175 = vcmp.eq.f32.partialorder %v5174, 8.507059e+37
      %v5176 = vand.u32 %v4987, 2147483648
      %v5177 = vor.u32 1.1754944e-38, %v5176
      %v5178 = vsel %vm5175, %v5177, %v5173
      %v5179 = vmul.f32 %v4943, %v5178
      %v5180 = vrcp.pop %v4990
      %v5181 = vmul.f32 %v4990, %v5180
      %v5182 = vsub.f32 1.0, %v5181
      %v5183 = vmul.f32 %v5180, %v5182
      %v5184 = vadd.f32 %v5180, %v5183
      %vm5185 = vweird.f32 %v4990
      %vm5186 = vweird.f32 %v5180
      %vm5187 = vmor %vm5185, %vm5186
      %v5188 = vsel %vm5187, %v5180, %v5184
      %v5189 = vand.u32 2147483647, %v4990
      %vm5190 = vcmp.eq.f32.partialorder %v5189, 8.507059e+37
      %v5191 = vand.u32 %v4990, 2147483648
      %v5192 = vor.u32 1.1754944e-38, %v5191
      %v5193 = vsel %vm5190, %v5192, %v5188
      %v5194 = vmul.f32 %v4945, %v5193
      %v5195 = vrcp.pop %v4993
      %v5196 = vmul.f32 %v4993, %v5195
      %v5197 = vsub.f32 1.0, %v5196
      %v5198 = vmul.f32 %v5195, %v5197
      %v5199 = vadd.f32 %v5195, %v5198
      %vm5200 = vweird.f32 %v4993
      %vm5201 = vweird.f32 %v5195
      %vm5202 = vmor %vm5200, %vm5201
      %v5203 = vsel %vm5202, %v5195, %v5199
      %v5204 = vand.u32 2147483647, %v4993
      %vm5205 = vcmp.eq.f32.partialorder %v5204, 8.507059e+37
      %v5206 = vand.u32 %v4993, 2147483648
      %v5207 = vor.u32 1.1754944e-38, %v5206
      %v5208 = vsel %vm5205, %v5207, %v5203
      %v5209 = vmul.f32 %v4947, %v5208
      %v5210 = vrcp.pop %v4996
      %v5211 = vmul.f32 %v4996, %v5210
      %v5212 = vsub.f32 1.0, %v5211
      %v5213 = vmul.f32 %v5210, %v5212
      %v5214 = vadd.f32 %v5210, %v5213
      %vm5215 = vweird.f32 %v4996
      %vm5216 = vweird.f32 %v5210
      %vm5217 = vmor %vm5215, %vm5216
      %v5218 = vsel %vm5217, %v5210, %v5214
      %v5219 = vand.u32 2147483647, %v4996
      %vm5220 = vcmp.eq.f32.partialorder %v5219, 8.507059e+37
      %v5221 = vand.u32 %v4996, 2147483648
      %v5222 = vor.u32 1.1754944e-38, %v5221
      %v5223 = vsel %vm5220, %v5222, %v5218
      %v5224 = vmul.f32 %v4949, %v5223
      %v5225 = vrcp.pop %v4999
      %v5226 = vmul.f32 %v4999, %v5225
      %v5227 = vsub.f32 1.0, %v5226
      %v5228 = vmul.f32 %v5225, %v5227
      %v5229 = vadd.f32 %v5225, %v5228
      %vm5230 = vweird.f32 %v4999
      %vm5231 = vweird.f32 %v5225
      %vm5232 = vmor %vm5230, %vm5231
      %v5233 = vsel %vm5232, %v5225, %v5229
      %v5234 = vand.u32 2147483647, %v4999
      %vm5235 = vcmp.eq.f32.partialorder %v5234, 8.507059e+37
      %v5236 = vand.u32 %v4999, 2147483648
      %v5237 = vor.u32 1.1754944e-38, %v5236
      %v5238 = vsel %vm5235, %v5237, %v5233
      %v5239 = vmul.f32 %v4951, %v5238
      %5240 = vrot.lane.b32.xlu0 %v454, 40
      %v5241 = vpop.permute.xlu0 %5240
      %v5244 = vsel %vm504, %v5014, 0
      %5246 = vmatpush.msra.mxu0 0.0
      %5247 = vmatpush.msra.mxu0 0.0
      %5248 = vmatpush.msra.mxu0 0.0
      %5249 = vmatpush.msra.mxu0 0.0
      %5250 = vmatpush.msra.mxu0 0.0
      %5251 = vmatpush.msra.mxu0 0.0
      %5252 = vmatpush.msra.mxu0 0.0
      %5253 = vmatpush.msra.mxu0 0.0
      %5254 = vmatpush.msra.mxu0 0.0
      %5255 = vmatpush.msra.mxu0 0.0
      %5256 = vmatpush.msra.mxu0 0.0
      %5257 = vmatpush.msra.mxu0 0.0
      %5258 = vmatpush.msra.mxu0 0.0
      %5259 = vmatpush.msra.mxu0 0.0
      %5260 = vmatpush.msra.mxu0 0.0
      %5261 = vmatpush.msra.mxu0 %v5241
      %5262 = vmatmul.f32.gmra.mxu0 %v5244
      %v5263 = vpop.f32.mrf.mxu0
      %v5264 = vadd.f32 0.0, %v5263
      %5265 = vdwg.mxu0
      %5266 = vrot.lane.b32.xlu0 %v457, 40
      %v5267 = vpop.permute.xlu0 %5266
      %v5270 = vsel %vm504, %v5029, 0
      %5272 = vmatpush.msra.mxu0 0.0
      %5273 = vmatpush.msra.mxu0 0.0
      %5274 = vmatpush.msra.mxu0 0.0
      %5275 = vmatpush.msra.mxu0 0.0
      %5276 = vmatpush.msra.mxu0 0.0
      %5277 = vmatpush.msra.mxu0 0.0
      %5278 = vmatpush.msra.mxu0 0.0
      %5279 = vmatpush.msra.mxu0 0.0
      %5280 = vmatpush.msra.mxu0 0.0
      %5281 = vmatpush.msra.mxu0 0.0
      %5282 = vmatpush.msra.mxu0 0.0
      %5283 = vmatpush.msra.mxu0 0.0
      %5284 = vmatpush.msra.mxu0 0.0
      %5285 = vmatpush.msra.mxu0 0.0
      %5286 = vmatpush.msra.mxu0 0.0
      %5287 = vmatpush.msra.mxu0 %v5267
      %5288 = vmatmul.f32.gmra.mxu0 %v5270
      %v5289 = vpop.f32.mrf.mxu0
      %v5290 = vadd.f32 0.0, %v5289
      %5291 = vdwg.mxu0
      %5292 = vrot.lane.b32.xlu0 %v460, 40
      %v5293 = vpop.permute.xlu0 %5292
      %v5296 = vsel %vm504, %v5044, 0
      %5298 = vmatpush.msra.mxu0 0.0
      %5299 = vmatpush.msra.mxu0 0.0
      %5300 = vmatpush.msra.mxu0 0.0
      %5301 = vmatpush.msra.mxu0 0.0
      %5302 = vmatpush.msra.mxu0 0.0
      %5303 = vmatpush.msra.mxu0 0.0
      %5304 = vmatpush.msra.mxu0 0.0
      %5305 = vmatpush.msra.mxu0 0.0
      %5306 = vmatpush.msra.mxu0 0.0
      %5307 = vmatpush.msra.mxu0 0.0
      %5308 = vmatpush.msra.mxu0 0.0
      %5309 = vmatpush.msra.mxu0 0.0
      %5310 = vmatpush.msra.mxu0 0.0
      %5311 = vmatpush.msra.mxu0 0.0
      %5312 = vmatpush.msra.mxu0 0.0
      %5313 = vmatpush.msra.mxu0 %v5293
      %5314 = vmatmul.f32.gmra.mxu0 %v5296
      %v5315 = vpop.f32.mrf.mxu0
      %v5316 = vadd.f32 0.0, %v5315
      %5317 = vdwg.mxu0
      %5318 = vrot.lane.b32.xlu0 %v463, 40
      %v5319 = vpop.permute.xlu0 %5318
      %v5322 = vsel %vm504, %v5059, 0
      %5324 = vmatpush.msra.mxu0 0.0
      %5325 = vmatpush.msra.mxu0 0.0
      %5326 = vmatpush.msra.mxu0 0.0
      %5327 = vmatpush.msra.mxu0 0.0
      %5328 = vmatpush.msra.mxu0 0.0
      %5329 = vmatpush.msra.mxu0 0.0
      %5330 = vmatpush.msra.mxu0 0.0
      %5331 = vmatpush.msra.mxu0 0.0
      %5332 = vmatpush.msra.mxu0 0.0
      %5333 = vmatpush.msra.mxu0 0.0
      %5334 = vmatpush.msra.mxu0 0.0
      %5335 = vmatpush.msra.mxu0 0.0
      %5336 = vmatpush.msra.mxu0 0.0
      %5337 = vmatpush.msra.mxu0 0.0
      %5338 = vmatpush.msra.mxu0 0.0
      %5339 = vmatpush.msra.mxu0 %v5319
      %5340 = vmatmul.f32.gmra.mxu0 %v5322
      %v5341 = vpop.f32.mrf.mxu0
      %v5342 = vadd.f32 0.0, %v5341
      %5343 = vdwg.mxu0
      %5344 = vrot.lane.b32.xlu0 %v466, 40
      %v5345 = vpop.permute.xlu0 %5344
      %v5348 = vsel %vm504, %v5074, 0
      %5350 = vmatpush.msra.mxu0 0.0
      %5351 = vmatpush.msra.mxu0 0.0
      %5352 = vmatpush.msra.mxu0 0.0
      %5353 = vmatpush.msra.mxu0 0.0
      %5354 = vmatpush.msra.mxu0 0.0
      %5355 = vmatpush.msra.mxu0 0.0
      %5356 = vmatpush.msra.mxu0 0.0
      %5357 = vmatpush.msra.mxu0 0.0
      %5358 = vmatpush.msra.mxu0 0.0
      %5359 = vmatpush.msra.mxu0 0.0
      %5360 = vmatpush.msra.mxu0 0.0
      %5361 = vmatpush.msra.mxu0 0.0
      %5362 = vmatpush.msra.mxu0 0.0
      %5363 = vmatpush.msra.mxu0 0.0
      %5364 = vmatpush.msra.mxu0 0.0
      %5365 = vmatpush.msra.mxu0 %v5345
      %5366 = vmatmul.f32.gmra.mxu0 %v5348
      %v5367 = vpop.f32.mrf.mxu0
      %v5368 = vadd.f32 0.0, %v5367
      %5369 = vdwg.mxu0
      %5370 = vrot.lane.b32.xlu0 %v469, 40
      %v5371 = vpop.permute.xlu0 %5370
      %v5374 = vsel %vm504, %v5089, 0
      %5376 = vmatpush.msra.mxu0 0.0
      %5377 = vmatpush.msra.mxu0 0.0
      %5378 = vmatpush.msra.mxu0 0.0
      %5379 = vmatpush.msra.mxu0 0.0
      %5380 = vmatpush.msra.mxu0 0.0
      %5381 = vmatpush.msra.mxu0 0.0
      %5382 = vmatpush.msra.mxu0 0.0
      %5383 = vmatpush.msra.mxu0 0.0
      %5384 = vmatpush.msra.mxu0 0.0
      %5385 = vmatpush.msra.mxu0 0.0
      %5386 = vmatpush.msra.mxu0 0.0
      %5387 = vmatpush.msra.mxu0 0.0
      %5388 = vmatpush.msra.mxu0 0.0
      %5389 = vmatpush.msra.mxu0 0.0
      %5390 = vmatpush.msra.mxu0 0.0
      %5391 = vmatpush.msra.mxu0 %v5371
      %5392 = vmatmul.f32.gmra.mxu0 %v5374
      %v5393 = vpop.f32.mrf.mxu0
      %v5394 = vadd.f32 0.0, %v5393
      %5395 = vdwg.mxu0
      %5396 = vrot.lane.b32.xlu0 %v472, 40
      %v5397 = vpop.permute.xlu0 %5396
      %v5400 = vsel %vm504, %v5104, 0
      %5402 = vmatpush.msra.mxu0 0.0
      %5403 = vmatpush.msra.mxu0 0.0
      %5404 = vmatpush.msra.mxu0 0.0
      %5405 = vmatpush.msra.mxu0 0.0
      %5406 = vmatpush.msra.mxu0 0.0
      %5407 = vmatpush.msra.mxu0 0.0
      %5408 = vmatpush.msra.mxu0 0.0
      %5409 = vmatpush.msra.mxu0 0.0
      %5410 = vmatpush.msra.mxu0 0.0
      %5411 = vmatpush.msra.mxu0 0.0
      %5412 = vmatpush.msra.mxu0 0.0
      %5413 = vmatpush.msra.mxu0 0.0
      %5414 = vmatpush.msra.mxu0 0.0
      %5415 = vmatpush.msra.mxu0 0.0
      %5416 = vmatpush.msra.mxu0 0.0
      %5417 = vmatpush.msra.mxu0 %v5397
      %5418 = vmatmul.f32.gmra.mxu0 %v5400
      %v5419 = vpop.f32.mrf.mxu0
      %v5420 = vadd.f32 0.0, %v5419
      %5421 = vdwg.mxu0
      %5422 = vrot.lane.b32.xlu0 %v475, 40
      %v5423 = vpop.permute.xlu0 %5422
      %v5426 = vsel %vm504, %v5119, 0
      %5428 = vmatpush.msra.mxu0 0.0
      %5429 = vmatpush.msra.mxu0 0.0
      %5430 = vmatpush.msra.mxu0 0.0
      %5431 = vmatpush.msra.mxu0 0.0
      %5432 = vmatpush.msra.mxu0 0.0
      %5433 = vmatpush.msra.mxu0 0.0
      %5434 = vmatpush.msra.mxu0 0.0
      %5435 = vmatpush.msra.mxu0 0.0
      %5436 = vmatpush.msra.mxu0 0.0
      %5437 = vmatpush.msra.mxu0 0.0
      %5438 = vmatpush.msra.mxu0 0.0
      %5439 = vmatpush.msra.mxu0 0.0
      %5440 = vmatpush.msra.mxu0 0.0
      %5441 = vmatpush.msra.mxu0 0.0
      %5442 = vmatpush.msra.mxu0 0.0
      %5443 = vmatpush.msra.mxu0 %v5423
      %5444 = vmatmul.f32.gmra.mxu0 %v5426
      %v5445 = vpop.f32.mrf.mxu0
      %v5446 = vadd.f32 0.0, %v5445
      %5447 = vdwg.mxu0
      %5448 = vrot.lane.b32.xlu0 %v478, 40
      %v5449 = vpop.permute.xlu0 %5448
      %v5452 = vsel %vm504, %v5134, 0
      %5454 = vmatpush.msra.mxu0 0.0
      %5455 = vmatpush.msra.mxu0 0.0
      %5456 = vmatpush.msra.mxu0 0.0
      %5457 = vmatpush.msra.mxu0 0.0
      %5458 = vmatpush.msra.mxu0 0.0
      %5459 = vmatpush.msra.mxu0 0.0
      %5460 = vmatpush.msra.mxu0 0.0
      %5461 = vmatpush.msra.mxu0 0.0
      %5462 = vmatpush.msra.mxu0 0.0
      %5463 = vmatpush.msra.mxu0 0.0
      %5464 = vmatpush.msra.mxu0 0.0
      %5465 = vmatpush.msra.mxu0 0.0
      %5466 = vmatpush.msra.mxu0 0.0
      %5467 = vmatpush.msra.mxu0 0.0
      %5468 = vmatpush.msra.mxu0 0.0
      %5469 = vmatpush.msra.mxu0 %v5449
      %5470 = vmatmul.f32.gmra.mxu0 %v5452
      %v5471 = vpop.f32.mrf.mxu0
      %v5472 = vadd.f32 0.0, %v5471
      %5473 = vdwg.mxu0
      %5474 = vrot.lane.b32.xlu0 %v481, 40
      %v5475 = vpop.permute.xlu0 %5474
      %v5478 = vsel %vm504, %v5149, 0
      %5480 = vmatpush.msra.mxu0 0.0
      %5481 = vmatpush.msra.mxu0 0.0
      %5482 = vmatpush.msra.mxu0 0.0
      %5483 = vmatpush.msra.mxu0 0.0
      %5484 = vmatpush.msra.mxu0 0.0
      %5485 = vmatpush.msra.mxu0 0.0
      %5486 = vmatpush.msra.mxu0 0.0
      %5487 = vmatpush.msra.mxu0 0.0
      %5488 = vmatpush.msra.mxu0 0.0
      %5489 = vmatpush.msra.mxu0 0.0
      %5490 = vmatpush.msra.mxu0 0.0
      %5491 = vmatpush.msra.mxu0 0.0
      %5492 = vmatpush.msra.mxu0 0.0
      %5493 = vmatpush.msra.mxu0 0.0
      %5494 = vmatpush.msra.mxu0 0.0
      %5495 = vmatpush.msra.mxu0 %v5475
      %5496 = vmatmul.f32.gmra.mxu0 %v5478
      %v5497 = vpop.f32.mrf.mxu0
      %v5498 = vadd.f32 0.0, %v5497
      %5499 = vdwg.mxu0
      %5500 = vrot.lane.b32.xlu0 %v484, 40
      %v5501 = vpop.permute.xlu0 %5500
      %v5504 = vsel %vm504, %v5164, 0
      %5506 = vmatpush.msra.mxu0 0.0
      %5507 = vmatpush.msra.mxu0 0.0
      %5508 = vmatpush.msra.mxu0 0.0
      %5509 = vmatpush.msra.mxu0 0.0
      %5510 = vmatpush.msra.mxu0 0.0
      %5511 = vmatpush.msra.mxu0 0.0
      %5512 = vmatpush.msra.mxu0 0.0
      %5513 = vmatpush.msra.mxu0 0.0
      %5514 = vmatpush.msra.mxu0 0.0
      %5515 = vmatpush.msra.mxu0 0.0
      %5516 = vmatpush.msra.mxu0 0.0
      %5517 = vmatpush.msra.mxu0 0.0
      %5518 = vmatpush.msra.mxu0 0.0
      %5519 = vmatpush.msra.mxu0 0.0
      %5520 = vmatpush.msra.mxu0 0.0
      %5521 = vmatpush.msra.mxu0 %v5501
      %5522 = vmatmul.f32.gmra.mxu0 %v5504
      %v5523 = vpop.f32.mrf.mxu0
      %v5524 = vadd.f32 0.0, %v5523
      %5525 = vdwg.mxu0
      %5526 = vrot.lane.b32.xlu0 %v487, 40
      %v5527 = vpop.permute.xlu0 %5526
      %v5530 = vsel %vm504, %v5179, 0
      %5532 = vmatpush.msra.mxu0 0.0
      %5533 = vmatpush.msra.mxu0 0.0
      %5534 = vmatpush.msra.mxu0 0.0
      %5535 = vmatpush.msra.mxu0 0.0
      %5536 = vmatpush.msra.mxu0 0.0
      %5537 = vmatpush.msra.mxu0 0.0
      %5538 = vmatpush.msra.mxu0 0.0
      %5539 = vmatpush.msra.mxu0 0.0
      %5540 = vmatpush.msra.mxu0 0.0
      %5541 = vmatpush.msra.mxu0 0.0
      %5542 = vmatpush.msra.mxu0 0.0
      %5543 = vmatpush.msra.mxu0 0.0
      %5544 = vmatpush.msra.mxu0 0.0
      %5545 = vmatpush.msra.mxu0 0.0
      %5546 = vmatpush.msra.mxu0 0.0
      %5547 = vmatpush.msra.mxu0 %v5527
      %5548 = vmatmul.f32.gmra.mxu0 %v5530
      %v5549 = vpop.f32.mrf.mxu0
      %v5550 = vadd.f32 0.0, %v5549
      %5551 = vdwg.mxu0
      %5552 = vrot.lane.b32.xlu0 %v490, 40
      %v5553 = vpop.permute.xlu0 %5552
      %v5556 = vsel %vm504, %v5194, 0
      %5558 = vmatpush.msra.mxu0 0.0
      %5559 = vmatpush.msra.mxu0 0.0
      %5560 = vmatpush.msra.mxu0 0.0
      %5561 = vmatpush.msra.mxu0 0.0
      %5562 = vmatpush.msra.mxu0 0.0
      %5563 = vmatpush.msra.mxu0 0.0
      %5564 = vmatpush.msra.mxu0 0.0
      %5565 = vmatpush.msra.mxu0 0.0
      %5566 = vmatpush.msra.mxu0 0.0
      %5567 = vmatpush.msra.mxu0 0.0
      %5568 = vmatpush.msra.mxu0 0.0
      %5569 = vmatpush.msra.mxu0 0.0
      %5570 = vmatpush.msra.mxu0 0.0
      %5571 = vmatpush.msra.mxu0 0.0
      %5572 = vmatpush.msra.mxu0 0.0
      %5573 = vmatpush.msra.mxu0 %v5553
      %5574 = vmatmul.f32.gmra.mxu0 %v5556
      %v5575 = vpop.f32.mrf.mxu0
      %v5576 = vadd.f32 0.0, %v5575
      %5577 = vdwg.mxu0
      %5578 = vrot.lane.b32.xlu0 %v493, 40
      %v5579 = vpop.permute.xlu0 %5578
      %v5582 = vsel %vm504, %v5209, 0
      %5584 = vmatpush.msra.mxu0 0.0
      %5585 = vmatpush.msra.mxu0 0.0
      %5586 = vmatpush.msra.mxu0 0.0
      %5587 = vmatpush.msra.mxu0 0.0
      %5588 = vmatpush.msra.mxu0 0.0
      %5589 = vmatpush.msra.mxu0 0.0
      %5590 = vmatpush.msra.mxu0 0.0
      %5591 = vmatpush.msra.mxu0 0.0
      %5592 = vmatpush.msra.mxu0 0.0
      %5593 = vmatpush.msra.mxu0 0.0
      %5594 = vmatpush.msra.mxu0 0.0
      %5595 = vmatpush.msra.mxu0 0.0
      %5596 = vmatpush.msra.mxu0 0.0
      %5597 = vmatpush.msra.mxu0 0.0
      %5598 = vmatpush.msra.mxu0 0.0
      %5599 = vmatpush.msra.mxu0 %v5579
      %5600 = vmatmul.f32.gmra.mxu0 %v5582
      %v5601 = vpop.f32.mrf.mxu0
      %v5602 = vadd.f32 0.0, %v5601
      %5603 = vdwg.mxu0
      %5604 = vrot.lane.b32.xlu0 %v496, 40
      %v5605 = vpop.permute.xlu0 %5604
      %v5608 = vsel %vm504, %v5224, 0
      %5610 = vmatpush.msra.mxu0 0.0
      %5611 = vmatpush.msra.mxu0 0.0
      %5612 = vmatpush.msra.mxu0 0.0
      %5613 = vmatpush.msra.mxu0 0.0
      %5614 = vmatpush.msra.mxu0 0.0
      %5615 = vmatpush.msra.mxu0 0.0
      %5616 = vmatpush.msra.mxu0 0.0
      %5617 = vmatpush.msra.mxu0 0.0
      %5618 = vmatpush.msra.mxu0 0.0
      %5619 = vmatpush.msra.mxu0 0.0
      %5620 = vmatpush.msra.mxu0 0.0
      %5621 = vmatpush.msra.mxu0 0.0
      %5622 = vmatpush.msra.mxu0 0.0
      %5623 = vmatpush.msra.mxu0 0.0
      %5624 = vmatpush.msra.mxu0 0.0
      %5625 = vmatpush.msra.mxu0 %v5605
      %5626 = vmatmul.f32.gmra.mxu0 %v5608
      %v5627 = vpop.f32.mrf.mxu0
      %v5628 = vadd.f32 0.0, %v5627
      %5629 = vdwg.mxu0
      %5630 = vrot.lane.b32.xlu0 %v499, 40
      %v5631 = vpop.permute.xlu0 %5630
      %v5634 = vsel %vm504, %v5239, 0
      %5636 = vmatpush.msra.mxu0 0.0
      %5637 = vmatpush.msra.mxu0 0.0
      %5638 = vmatpush.msra.mxu0 0.0
      %5639 = vmatpush.msra.mxu0 0.0
      %5640 = vmatpush.msra.mxu0 0.0
      %5641 = vmatpush.msra.mxu0 0.0
      %5642 = vmatpush.msra.mxu0 0.0
      %5643 = vmatpush.msra.mxu0 0.0
      %5644 = vmatpush.msra.mxu0 0.0
      %5645 = vmatpush.msra.mxu0 0.0
      %5646 = vmatpush.msra.mxu0 0.0
      %5647 = vmatpush.msra.mxu0 0.0
      %5648 = vmatpush.msra.mxu0 0.0
      %5649 = vmatpush.msra.mxu0 0.0
      %5650 = vmatpush.msra.mxu0 0.0
      %5651 = vmatpush.msra.mxu0 %v5631
      %5652 = vmatmul.f32.gmra.mxu0 %v5634
      %v5653 = vpop.f32.mrf.mxu0
      %v5654 = vadd.f32 0.0, %v5653
      %5655 = vdwg.mxu0
      %5672 = vrot.lane.b32.xlu0 %v5264, 24
      %v5673 = vpop.permute.xlu0 %5672
      %5674 = vrot.lane.b32.xlu0 %v5290, 24
      %v5675 = vpop.permute.xlu0 %5674
      %5676 = vrot.lane.b32.xlu0 %v5316, 24
      %v5677 = vpop.permute.xlu0 %5676
      %5678 = vrot.lane.b32.xlu0 %v5342, 24
      %v5679 = vpop.permute.xlu0 %5678
      %5680 = vrot.lane.b32.xlu0 %v5368, 24
      %v5681 = vpop.permute.xlu0 %5680
      %5682 = vrot.lane.b32.xlu0 %v5394, 24
      %v5683 = vpop.permute.xlu0 %5682
      %5684 = vrot.lane.b32.xlu0 %v5420, 24
      %v5685 = vpop.permute.xlu0 %5684
      %5686 = vrot.lane.b32.xlu0 %v5446, 24
      %v5687 = vpop.permute.xlu0 %5686
      %5688 = vrot.lane.b32.xlu0 %v5472, 24
      %v5689 = vpop.permute.xlu0 %5688
      %5690 = vrot.lane.b32.xlu0 %v5498, 24
      %v5691 = vpop.permute.xlu0 %5690
      %5692 = vrot.lane.b32.xlu0 %v5524, 24
      %v5693 = vpop.permute.xlu0 %5692
      %5694 = vrot.lane.b32.xlu0 %v5550, 24
      %v5695 = vpop.permute.xlu0 %5694
      %5696 = vrot.lane.b32.xlu0 %v5576, 24
      %v5697 = vpop.permute.xlu0 %5696
      %5698 = vrot.lane.b32.xlu0 %v5602, 24
      %v5699 = vpop.permute.xlu0 %5698
      %5700 = vrot.lane.b32.xlu0 %v5628, 24
      %v5701 = vpop.permute.xlu0 %5700
      %5702 = vrot.lane.b32.xlu0 %v5654, 24
      %v5703 = vpop.permute.xlu0 %5702
      %vm5720 = vcmask 261312
      %5721 = vst.msk [vmem:[#allocation2] sm:$0xff] %vm5720, %v5673
      %5722 = vst.msk [vmem:[#allocation2 + $0x8] sm:$0xff] %vm5720, %v5675
      %5723 = vst.msk [vmem:[#allocation2 + $0x10] sm:$0xff] %vm5720, %v5677
      %5724 = vst.msk [vmem:[#allocation2 + $0x18] sm:$0xff] %vm5720, %v5679
      %5725 = vst.msk [vmem:[#allocation2 + $0x20] sm:$0xff] %vm5720, %v5681
      %5726 = vst.msk [vmem:[#allocation2 + $0x28] sm:$0xff] %vm5720, %v5683
      %5727 = vst.msk [vmem:[#allocation2 + $0x30] sm:$0xff] %vm5720, %v5685
      %5728 = vst.msk [vmem:[#allocation2 + $0x38] sm:$0xff] %vm5720, %v5687
      %5729 = vst.msk [vmem:[#allocation2 + $0x40] sm:$0xff] %vm5720, %v5689
      %5730 = vst.msk [vmem:[#allocation2 + $0x48] sm:$0xff] %vm5720, %v5691
      %5731 = vst.msk [vmem:[#allocation2 + $0x50] sm:$0xff] %vm5720, %v5693
      %5732 = vst.msk [vmem:[#allocation2 + $0x58] sm:$0xff] %vm5720, %v5695
      %5733 = vst.msk [vmem:[#allocation2 + $0x60] sm:$0xff] %vm5720, %v5697
      %5734 = vst.msk [vmem:[#allocation2 + $0x68] sm:$0xff] %vm5720, %v5699
      %5735 = vst.msk [vmem:[#allocation2 + $0x70] sm:$0xff] %vm5720, %v5701
      %5736 = vst.msk [vmem:[#allocation2 + $0x78] sm:$0xff] %vm5720, %v5703
      %v5737 = vld [vmem:[#allocation2] sm:$0xff]
      %v5738 = vld [vmem:[#allocation2 + $0x8] sm:$0xff]
      %v5739 = vld [vmem:[#allocation2 + $0x10] sm:$0xff]
      %v5740 = vld [vmem:[#allocation2 + $0x18] sm:$0xff]
      %v5741 = vld [vmem:[#allocation2 + $0x20] sm:$0xff]
      %v5742 = vld [vmem:[#allocation2 + $0x28] sm:$0xff]
      %v5743 = vld [vmem:[#allocation2 + $0x30] sm:$0xff]
      %v5744 = vld [vmem:[#allocation2 + $0x38] sm:$0xff]
      %v5745 = vld [vmem:[#allocation2 + $0x40] sm:$0xff]
      %v5746 = vld [vmem:[#allocation2 + $0x48] sm:$0xff]
      %v5747 = vld [vmem:[#allocation2 + $0x50] sm:$0xff]
      %v5748 = vld [vmem:[#allocation2 + $0x58] sm:$0xff]
      %v5749 = vld [vmem:[#allocation2 + $0x60] sm:$0xff]
      %v5750 = vld [vmem:[#allocation2 + $0x68] sm:$0xff]
      %v5751 = vld [vmem:[#allocation2 + $0x70] sm:$0xff]
      %v5752 = vld [vmem:[#allocation2 + $0x78] sm:$0xff]
      %v5753 = vld [vmem:[%s3] sm:$0xff]
      %v5754 = vld [vmem:[%s3 + $0x8] sm:$0xff]
      %v5755 = vld [vmem:[%s3 + $0x10] sm:$0xff]
      %v5756 = vld [vmem:[%s3 + $0x18] sm:$0xff]
      %v5757 = vld [vmem:[%s4] sm:$0x1]
      %v5759 = vperm.slane %v5757, 0
      %v5762 = vsel %vm387, %v5737, 0
      %v5765 = vsel %vm387, %v5738, 0
      %v5768 = vsel %vm387, %v5739, 0
      %v5771 = vsel %vm387, %v5740, 0
      %v5774 = vsel %vm387, %v5741, 0
      %v5777 = vsel %vm387, %v5742, 0
      %v5780 = vsel %vm387, %v5743, 0
      %v5783 = vsel %vm387, %v5744, 0
      %v5786 = vsel %vm387, %v5745, 0
      %v5789 = vsel %vm387, %v5746, 0
      %v5792 = vsel %vm387, %v5747, 0
      %v5795 = vsel %vm387, %v5748, 0
      %v5798 = vsel %vm387, %v5749, 0
      %v5801 = vsel %vm387, %v5750, 0
      %v5804 = vsel %vm387, %v5751, 0
      %v5807 = vsel %vm387, %v5752, 0
      %5809 = vmatpush.msra.mxu0 0.0
      %5810 = vmatpush.msra.mxu0 0.0
      %5811 = vmatpush.msra.mxu0 0.0
      %5812 = vmatpush.msra.mxu0 0.0
      %5813 = vmatpush.msra.mxu0 0.0
      %5814 = vmatpush.msra.mxu0 0.0
      %5815 = vmatpush.msra.mxu0 0.0
      %5816 = vmatpush.msra.mxu0 0.0
      %5817 = vmatpush.msra.mxu0 0.0
      %5818 = vmatpush.msra.mxu0 0.0
      %5819 = vmatpush.msra.mxu0 0.0
      %5820 = vmatpush.msra.mxu0 0.0
      %5821 = vmatpush.msra.mxu0 %v5756
      %5822 = vmatpush.msra.mxu0 %v5755
      %5823 = vmatpush.msra.mxu0 %v5754
      %5824 = vmatpush.msra.mxu0 %v5753
      %5825 = vmatmul.f32.gmra.mxu0 %v5762
      %v5826 = vpop.f32.mrf.mxu0
      %v5827 = vadd.f32 %v5759, %v5826
      %5828 = vmatmul.f32.gmra.mxu0 %v5765
      %v5829 = vpop.f32.mrf.mxu0
      %v5830 = vadd.f32 %v5759, %v5829
      %5831 = vmatmul.f32.gmra.mxu0 %v5768
      %v5832 = vpop.f32.mrf.mxu0
      %v5833 = vadd.f32 %v5759, %v5832
      %5834 = vmatmul.f32.gmra.mxu0 %v5771
      %v5835 = vpop.f32.mrf.mxu0
      %v5836 = vadd.f32 %v5759, %v5835
      %5837 = vmatmul.f32.gmra.mxu0 %v5774
      %v5838 = vpop.f32.mrf.mxu0
      %v5839 = vadd.f32 %v5759, %v5838
      %5840 = vmatmul.f32.gmra.mxu0 %v5777
      %v5841 = vpop.f32.mrf.mxu0
      %v5842 = vadd.f32 %v5759, %v5841
      %5843 = vmatmul.f32.gmra.mxu0 %v5780
      %v5844 = vpop.f32.mrf.mxu0
      %v5845 = vadd.f32 %v5759, %v5844
      %5846 = vmatmul.f32.gmra.mxu0 %v5783
      %v5847 = vpop.f32.mrf.mxu0
      %v5848 = vadd.f32 %v5759, %v5847
      %5849 = vmatmul.f32.gmra.mxu0 %v5786
      %v5850 = vpop.f32.mrf.mxu0
      %v5851 = vadd.f32 %v5759, %v5850
      %5852 = vmatmul.f32.gmra.mxu0 %v5789
      %v5853 = vpop.f32.mrf.mxu0
      %v5854 = vadd.f32 %v5759, %v5853
      %5855 = vmatmul.f32.gmra.mxu0 %v5792
      %v5856 = vpop.f32.mrf.mxu0
      %v5857 = vadd.f32 %v5759, %v5856
      %5858 = vmatmul.f32.gmra.mxu0 %v5795
      %v5859 = vpop.f32.mrf.mxu0
      %v5860 = vadd.f32 %v5759, %v5859
      %5861 = vmatmul.f32.gmra.mxu0 %v5798
      %v5862 = vpop.f32.mrf.mxu0
      %v5863 = vadd.f32 %v5759, %v5862
      %5864 = vmatmul.f32.gmra.mxu0 %v5801
      %v5865 = vpop.f32.mrf.mxu0
      %v5866 = vadd.f32 %v5759, %v5865
      %5867 = vmatmul.f32.gmra.mxu0 %v5804
      %v5868 = vpop.f32.mrf.mxu0
      %v5869 = vadd.f32 %v5759, %v5868
      %5870 = vmatmul.f32.gmra.mxu0 %v5807
      %v5871 = vpop.f32.mrf.mxu0
      %v5872 = vadd.f32 %v5759, %v5871
      %5873 = vdwg.mxu0
      %v5874 = vld [vmem:[%s5] sm:$0xff]
      %v5875 = vld [vmem:[%s5 + $0x8] sm:$0xff]
      %v5876 = vld [vmem:[%s5 + $0x10] sm:$0xff]
      %v5877 = vld [vmem:[%s5 + $0x18] sm:$0xff]
      %v5878 = vld [vmem:[%s6] sm:$0x1]
      %v5880 = vperm.slane %v5878, 0
      %v5883 = vsel %vm387, %v5827, 0
      %v5886 = vsel %vm387, %v5830, 0
      %v5889 = vsel %vm387, %v5833, 0
      %v5892 = vsel %vm387, %v5836, 0
      %v5895 = vsel %vm387, %v5839, 0
      %v5898 = vsel %vm387, %v5842, 0
      %v5901 = vsel %vm387, %v5845, 0
      %v5904 = vsel %vm387, %v5848, 0
      %v5907 = vsel %vm387, %v5851, 0
      %v5910 = vsel %vm387, %v5854, 0
      %v5913 = vsel %vm387, %v5857, 0
      %v5916 = vsel %vm387, %v5860, 0
      %v5919 = vsel %vm387, %v5863, 0
      %v5922 = vsel %vm387, %v5866, 0
      %v5925 = vsel %vm387, %v5869, 0
      %v5928 = vsel %vm387, %v5872, 0
      %5930 = vmatpush.msra.mxu0 0.0
      %5931 = vmatpush.msra.mxu0 0.0
      %5932 = vmatpush.msra.mxu0 0.0
      %5933 = vmatpush.msra.mxu0 0.0
      %5934 = vmatpush.msra.mxu0 0.0
      %5935 = vmatpush.msra.mxu0 0.0
      %5936 = vmatpush.msra.mxu0 0.0
      %5937 = vmatpush.msra.mxu0 0.0
      %5938 = vmatpush.msra.mxu0 0.0
      %5939 = vmatpush.msra.mxu0 0.0
      %5940 = vmatpush.msra.mxu0 0.0
      %5941 = vmatpush.msra.mxu0 0.0
      %5942 = vmatpush.msra.mxu0 %v5877
      %5943 = vmatpush.msra.mxu0 %v5876
      %5944 = vmatpush.msra.mxu0 %v5875
      %5945 = vmatpush.msra.mxu0 %v5874
      %5946 = vmatmul.f32.gmra.mxu0 %v5883
      %v5947 = vpop.f32.mrf.mxu0
      %v5948 = vadd.f32 %v5880, %v5947
      %5949 = vmatmul.f32.gmra.mxu0 %v5886
      %v5950 = vpop.f32.mrf.mxu0
      %v5951 = vadd.f32 %v5880, %v5950
      %5952 = vmatmul.f32.gmra.mxu0 %v5889
      %v5953 = vpop.f32.mrf.mxu0
      %v5954 = vadd.f32 %v5880, %v5953
      %5955 = vmatmul.f32.gmra.mxu0 %v5892
      %v5956 = vpop.f32.mrf.mxu0
      %v5957 = vadd.f32 %v5880, %v5956
      %5958 = vmatmul.f32.gmra.mxu0 %v5895
      %v5959 = vpop.f32.mrf.mxu0
      %v5960 = vadd.f32 %v5880, %v5959
      %5961 = vmatmul.f32.gmra.mxu0 %v5898
      %v5962 = vpop.f32.mrf.mxu0
      %v5963 = vadd.f32 %v5880, %v5962
      %5964 = vmatmul.f32.gmra.mxu0 %v5901
      %v5965 = vpop.f32.mrf.mxu0
      %v5966 = vadd.f32 %v5880, %v5965
      %5967 = vmatmul.f32.gmra.mxu0 %v5904
      %v5968 = vpop.f32.mrf.mxu0
      %v5969 = vadd.f32 %v5880, %v5968
      %5970 = vmatmul.f32.gmra.mxu0 %v5907
      %v5971 = vpop.f32.mrf.mxu0
      %v5972 = vadd.f32 %v5880, %v5971
      %5973 = vmatmul.f32.gmra.mxu0 %v5910
      %v5974 = vpop.f32.mrf.mxu0
      %v5975 = vadd.f32 %v5880, %v5974
      %5976 = vmatmul.f32.gmra.mxu0 %v5913
      %v5977 = vpop.f32.mrf.mxu0
      %v5978 = vadd.f32 %v5880, %v5977
      %5979 = vmatmul.f32.gmra.mxu0 %v5916
      %v5980 = vpop.f32.mrf.mxu0
      %v5981 = vadd.f32 %v5880, %v5980
      %5982 = vmatmul.f32.gmra.mxu0 %v5919
      %v5983 = vpop.f32.mrf.mxu0
      %v5984 = vadd.f32 %v5880, %v5983
      %5985 = vmatmul.f32.gmra.mxu0 %v5922
      %v5986 = vpop.f32.mrf.mxu0
      %v5987 = vadd.f32 %v5880, %v5986
      %5988 = vmatmul.f32.gmra.mxu0 %v5925
      %v5989 = vpop.f32.mrf.mxu0
      %v5990 = vadd.f32 %v5880, %v5989
      %5991 = vmatmul.f32.gmra.mxu0 %v5928
      %v5992 = vpop.f32.mrf.mxu0
      %v5993 = vadd.f32 %v5880, %v5992
      %5994 = vdwg.mxu0
      %v5995 = vld [vmem:[%s7] sm:$0xff]
      %v5996 = vld [vmem:[%s7 + $0x8] sm:$0xff]
      %v5997 = vld [vmem:[%s7 + $0x10] sm:$0xff]
      %v5998 = vld [vmem:[%s7 + $0x18] sm:$0xff]
      %v5999 = vld [vmem:[%s8] sm:$0x1]
      %v6001 = vperm.slane %v5999, 0
      %v6004 = vsel %vm387, %v5948, 0
      %v6007 = vsel %vm387, %v5951, 0
      %v6010 = vsel %vm387, %v5954, 0
      %v6013 = vsel %vm387, %v5957, 0
      %v6016 = vsel %vm387, %v5960, 0
      %v6019 = vsel %vm387, %v5963, 0
      %v6022 = vsel %vm387, %v5966, 0
      %v6025 = vsel %vm387, %v5969, 0
      %v6028 = vsel %vm387, %v5972, 0
      %v6031 = vsel %vm387, %v5975, 0
      %v6034 = vsel %vm387, %v5978, 0
      %v6037 = vsel %vm387, %v5981, 0
      %v6040 = vsel %vm387, %v5984, 0
      %v6043 = vsel %vm387, %v5987, 0
      %v6046 = vsel %vm387, %v5990, 0
      %v6049 = vsel %vm387, %v5993, 0
      %6051 = vmatpush.msra.mxu0 0.0
      %6052 = vmatpush.msra.mxu0 0.0
      %6053 = vmatpush.msra.mxu0 0.0
      %6054 = vmatpush.msra.mxu0 0.0
      %6055 = vmatpush.msra.mxu0 0.0
      %6056 = vmatpush.msra.mxu0 0.0
      %6057 = vmatpush.msra.mxu0 0.0
      %6058 = vmatpush.msra.mxu0 0.0
      %6059 = vmatpush.msra.mxu0 0.0
      %6060 = vmatpush.msra.mxu0 0.0
      %6061 = vmatpush.msra.mxu0 0.0
      %6062 = vmatpush.msra.mxu0 0.0
      %6063 = vmatpush.msra.mxu0 %v5998
      %6064 = vmatpush.msra.mxu0 %v5997
      %6065 = vmatpush.msra.mxu0 %v5996
      %6066 = vmatpush.msra.mxu0 %v5995
      %6067 = vmatmul.f32.gmra.mxu0 %v6004
      %v6068 = vpop.f32.mrf.mxu0
      %v6069 = vadd.f32 %v6001, %v6068
      %6070 = vmatmul.f32.gmra.mxu0 %v6007
      %v6071 = vpop.f32.mrf.mxu0
      %v6072 = vadd.f32 %v6001, %v6071
      %6073 = vmatmul.f32.gmra.mxu0 %v6010
      %v6074 = vpop.f32.mrf.mxu0
      %v6075 = vadd.f32 %v6001, %v6074
      %6076 = vmatmul.f32.gmra.mxu0 %v6013
      %v6077 = vpop.f32.mrf.mxu0
      %v6078 = vadd.f32 %v6001, %v6077
      %6079 = vmatmul.f32.gmra.mxu0 %v6016
      %v6080 = vpop.f32.mrf.mxu0
      %v6081 = vadd.f32 %v6001, %v6080
      %6082 = vmatmul.f32.gmra.mxu0 %v6019
      %v6083 = vpop.f32.mrf.mxu0
      %v6084 = vadd.f32 %v6001, %v6083
      %6085 = vmatmul.f32.gmra.mxu0 %v6022
      %v6086 = vpop.f32.mrf.mxu0
      %v6087 = vadd.f32 %v6001, %v6086
      %6088 = vmatmul.f32.gmra.mxu0 %v6025
      %v6089 = vpop.f32.mrf.mxu0
      %v6090 = vadd.f32 %v6001, %v6089
      %6091 = vmatmul.f32.gmra.mxu0 %v6028
      %v6092 = vpop.f32.mrf.mxu0
      %v6093 = vadd.f32 %v6001, %v6092
      %6094 = vmatmul.f32.gmra.mxu0 %v6031
      %v6095 = vpop.f32.mrf.mxu0
      %v6096 = vadd.f32 %v6001, %v6095
      %6097 = vmatmul.f32.gmra.mxu0 %v6034
      %v6098 = vpop.f32.mrf.mxu0
      %v6099 = vadd.f32 %v6001, %v6098
      %6100 = vmatmul.f32.gmra.mxu0 %v6037
      %v6101 = vpop.f32.mrf.mxu0
      %v6102 = vadd.f32 %v6001, %v6101
      %6103 = vmatmul.f32.gmra.mxu0 %v6040
      %v6104 = vpop.f32.mrf.mxu0
      %v6105 = vadd.f32 %v6001, %v6104
      %6106 = vmatmul.f32.gmra.mxu0 %v6043
      %v6107 = vpop.f32.mrf.mxu0
      %v6108 = vadd.f32 %v6001, %v6107
      %6109 = vmatmul.f32.gmra.mxu0 %v6046
      %v6110 = vpop.f32.mrf.mxu0
      %v6111 = vadd.f32 %v6001, %v6110
      %6112 = vmatmul.f32.gmra.mxu0 %v6049
      %v6113 = vpop.f32.mrf.mxu0
      %v6114 = vadd.f32 %v6001, %v6113
      %6115 = vdwg.mxu0
      %v6116 = vtanh.pop %v6069
      %v6117 = vtanh.pop %v6072
      %v6118 = vtanh.pop %v6075
      %v6119 = vtanh.pop %v6078
      %v6120 = vtanh.pop %v6081
      %v6121 = vtanh.pop %v6084
      %v6122 = vtanh.pop %v6087
      %v6123 = vtanh.pop %v6090
      %v6124 = vtanh.pop %v6093
      %v6125 = vtanh.pop %v6096
      %v6126 = vtanh.pop %v6099
      %v6127 = vtanh.pop %v6102
      %v6128 = vtanh.pop %v6105
      %v6129 = vtanh.pop %v6108
      %v6130 = vtanh.pop %v6111
      %v6131 = vtanh.pop %v6114
      %v6132 = vld [vmem:[%s9] sm:$0xff]
      %v6133 = vld [vmem:[%s9 + $0x8] sm:$0xff]
      %vm6134 = vcmask 130048
      %v6136 = vsel %vm6134, %v6116, 0
      %v6139 = vsel %vm6134, %v6117, 0
      %v6142 = vsel %vm6134, %v6118, 0
      %v6145 = vsel %vm6134, %v6119, 0
      %v6148 = vsel %vm6134, %v6120, 0
      %v6151 = vsel %vm6134, %v6121, 0
      %v6154 = vsel %vm6134, %v6122, 0
      %v6157 = vsel %vm6134, %v6123, 0
      %v6160 = vsel %vm6134, %v6124, 0
      %v6163 = vsel %vm6134, %v6125, 0
      %v6166 = vsel %vm6134, %v6126, 0
      %v6169 = vsel %vm6134, %v6127, 0
      %v6172 = vsel %vm6134, %v6128, 0
      %v6175 = vsel %vm6134, %v6129, 0
      %v6178 = vsel %vm6134, %v6130, 0
      %v6181 = vsel %vm6134, %v6131, 0
      %6183 = vmatpush.msra.mxu0 0.0
      %6184 = vmatpush.msra.mxu0 0.0
      %6185 = vmatpush.msra.mxu0 0.0
      %6186 = vmatpush.msra.mxu0 0.0
      %6187 = vmatpush.msra.mxu0 0.0
      %6188 = vmatpush.msra.mxu0 0.0
      %6189 = vmatpush.msra.mxu0 0.0
      %6190 = vmatpush.msra.mxu0 0.0
      %6191 = vmatpush.msra.mxu0 0.0
      %6192 = vmatpush.msra.mxu0 0.0
      %6193 = vmatpush.msra.mxu0 0.0
      %6194 = vmatpush.msra.mxu0 0.0
      %6195 = vmatpush.msra.mxu0 0.0
      %6196 = vmatpush.msra.mxu0 0.0
      %6197 = vmatpush.msra.mxu0 %v6133
      %6198 = vmatpush.msra.mxu0 %v6132
      %6199 = vmatmul.f32.gmra.mxu0 %v6136
      %v6200 = vpop.f32.mrf.mxu0
      %v6201 = vadd.f32 0.0, %v6200
      %6202 = vmatmul.f32.gmra.mxu0 %v6139
      %v6203 = vpop.f32.mrf.mxu0
      %v6204 = vadd.f32 0.0, %v6203
      %6205 = vmatmul.f32.gmra.mxu0 %v6142
      %v6206 = vpop.f32.mrf.mxu0
      %v6207 = vadd.f32 0.0, %v6206
      %6208 = vmatmul.f32.gmra.mxu0 %v6145
      %v6209 = vpop.f32.mrf.mxu0
      %v6210 = vadd.f32 0.0, %v6209
      %6211 = vmatmul.f32.gmra.mxu0 %v6148
      %v6212 = vpop.f32.mrf.mxu0
      %v6213 = vadd.f32 0.0, %v6212
      %6214 = vmatmul.f32.gmra.mxu0 %v6151
      %v6215 = vpop.f32.mrf.mxu0
      %v6216 = vadd.f32 0.0, %v6215
      %6217 = vmatmul.f32.gmra.mxu0 %v6154
      %v6218 = vpop.f32.mrf.mxu0
      %v6219 = vadd.f32 0.0, %v6218
      %6220 = vmatmul.f32.gmra.mxu0 %v6157
      %v6221 = vpop.f32.mrf.mxu0
      %v6222 = vadd.f32 0.0, %v6221
      %6223 = vmatmul.f32.gmra.mxu0 %v6160
      %v6224 = vpop.f32.mrf.mxu0
      %v6225 = vadd.f32 0.0, %v6224
      %6226 = vmatmul.f32.gmra.mxu0 %v6163
      %v6227 = vpop.f32.mrf.mxu0
      %v6228 = vadd.f32 0.0, %v6227
      %6229 = vmatmul.f32.gmra.mxu0 %v6166
      %v6230 = vpop.f32.mrf.mxu0
      %v6231 = vadd.f32 0.0, %v6230
      %6232 = vmatmul.f32.gmra.mxu0 %v6169
      %v6233 = vpop.f32.mrf.mxu0
      %v6234 = vadd.f32 0.0, %v6233
      %6235 = vmatmul.f32.gmra.mxu0 %v6172
      %v6236 = vpop.f32.mrf.mxu0
      %v6237 = vadd.f32 0.0, %v6236
      %6238 = vmatmul.f32.gmra.mxu0 %v6175
      %v6239 = vpop.f32.mrf.mxu0
      %v6240 = vadd.f32 0.0, %v6239
      %6241 = vmatmul.f32.gmra.mxu0 %v6178
      %v6242 = vpop.f32.mrf.mxu0
      %v6243 = vadd.f32 0.0, %v6242
      %6244 = vmatmul.f32.gmra.mxu0 %v6181
      %v6245 = vpop.f32.mrf.mxu0
      %v6246 = vadd.f32 0.0, %v6245
      %6247 = vdwg.mxu0
      %vm6248 = vcmask 7168
      %v6249 = vsel %vm6248, %v6201, -inf
      %v6250 = vrot.slane %v6249, 4
      %v6251 = vmax.f32 %v6249, %v6250
      %v6252 = vrot.slane %v6251, 2
      %v6253 = vmax.f32 %v6251, %v6252
      %v6254 = vrot.slane %v6253, 1
      %v6255 = vmax.f32 %v6253, %v6254
      %v6256 = vsel %vm6248, %v6204, -inf
      %v6257 = vrot.slane %v6256, 4
      %v6258 = vmax.f32 %v6256, %v6257
      %v6259 = vrot.slane %v6258, 2
      %v6260 = vmax.f32 %v6258, %v6259
      %v6261 = vrot.slane %v6260, 1
      %v6262 = vmax.f32 %v6260, %v6261
      %v6263 = vsel %vm6248, %v6207, -inf
      %v6264 = vrot.slane %v6263, 4
      %v6265 = vmax.f32 %v6263, %v6264
      %v6266 = vrot.slane %v6265, 2
      %v6267 = vmax.f32 %v6265, %v6266
      %v6268 = vrot.slane %v6267, 1
      %v6269 = vmax.f32 %v6267, %v6268
      %v6270 = vsel %vm6248, %v6210, -inf
      %v6271 = vrot.slane %v6270, 4
      %v6272 = vmax.f32 %v6270, %v6271
      %v6273 = vrot.slane %v6272, 2
      %v6274 = vmax.f32 %v6272, %v6273
      %v6275 = vrot.slane %v6274, 1
      %v6276 = vmax.f32 %v6274, %v6275
      %v6277 = vsel %vm6248, %v6213, -inf
      %v6278 = vrot.slane %v6277, 4
      %v6279 = vmax.f32 %v6277, %v6278
      %v6280 = vrot.slane %v6279, 2
      %v6281 = vmax.f32 %v6279, %v6280
      %v6282 = vrot.slane %v6281, 1
      %v6283 = vmax.f32 %v6281, %v6282
      %v6284 = vsel %vm6248, %v6216, -inf
      %v6285 = vrot.slane %v6284, 4
      %v6286 = vmax.f32 %v6284, %v6285
      %v6287 = vrot.slane %v6286, 2
      %v6288 = vmax.f32 %v6286, %v6287
      %v6289 = vrot.slane %v6288, 1
      %v6290 = vmax.f32 %v6288, %v6289
      %v6291 = vsel %vm6248, %v6219, -inf
      %v6292 = vrot.slane %v6291, 4
      %v6293 = vmax.f32 %v6291, %v6292
      %v6294 = vrot.slane %v6293, 2
      %v6295 = vmax.f32 %v6293, %v6294
      %v6296 = vrot.slane %v6295, 1
      %v6297 = vmax.f32 %v6295, %v6296
      %v6298 = vsel %vm6248, %v6222, -inf
      %v6299 = vrot.slane %v6298, 4
      %v6300 = vmax.f32 %v6298, %v6299
      %v6301 = vrot.slane %v6300, 2
      %v6302 = vmax.f32 %v6300, %v6301
      %v6303 = vrot.slane %v6302, 1
      %v6304 = vmax.f32 %v6302, %v6303
      %v6305 = vsel %vm6248, %v6225, -inf
      %v6306 = vrot.slane %v6305, 4
      %v6307 = vmax.f32 %v6305, %v6306
      %v6308 = vrot.slane %v6307, 2
      %v6309 = vmax.f32 %v6307, %v6308
      %v6310 = vrot.slane %v6309, 1
      %v6311 = vmax.f32 %v6309, %v6310
      %v6312 = vsel %vm6248, %v6228, -inf
      %v6313 = vrot.slane %v6312, 4
      %v6314 = vmax.f32 %v6312, %v6313
      %v6315 = vrot.slane %v6314, 2
      %v6316 = vmax.f32 %v6314, %v6315
      %v6317 = vrot.slane %v6316, 1
      %v6318 = vmax.f32 %v6316, %v6317
      %v6319 = vsel %vm6248, %v6231, -inf
      %v6320 = vrot.slane %v6319, 4
      %v6321 = vmax.f32 %v6319, %v6320
      %v6322 = vrot.slane %v6321, 2
      %v6323 = vmax.f32 %v6321, %v6322
      %v6324 = vrot.slane %v6323, 1
      %v6325 = vmax.f32 %v6323, %v6324
      %v6326 = vsel %vm6248, %v6234, -inf
      %v6327 = vrot.slane %v6326, 4
      %v6328 = vmax.f32 %v6326, %v6327
      %v6329 = vrot.slane %v6328, 2
      %v6330 = vmax.f32 %v6328, %v6329
      %v6331 = vrot.slane %v6330, 1
      %v6332 = vmax.f32 %v6330, %v6331
      %v6333 = vsel %vm6248, %v6237, -inf
      %v6334 = vrot.slane %v6333, 4
      %v6335 = vmax.f32 %v6333, %v6334
      %v6336 = vrot.slane %v6335, 2
      %v6337 = vmax.f32 %v6335, %v6336
      %v6338 = vrot.slane %v6337, 1
      %v6339 = vmax.f32 %v6337, %v6338
      %v6340 = vsel %vm6248, %v6240, -inf
      %v6341 = vrot.slane %v6340, 4
      %v6342 = vmax.f32 %v6340, %v6341
      %v6343 = vrot.slane %v6342, 2
      %v6344 = vmax.f32 %v6342, %v6343
      %v6345 = vrot.slane %v6344, 1
      %v6346 = vmax.f32 %v6344, %v6345
      %v6347 = vsel %vm6248, %v6243, -inf
      %v6348 = vrot.slane %v6347, 4
      %v6349 = vmax.f32 %v6347, %v6348
      %v6350 = vrot.slane %v6349, 2
      %v6351 = vmax.f32 %v6349, %v6350
      %v6352 = vrot.slane %v6351, 1
      %v6353 = vmax.f32 %v6351, %v6352
      %v6354 = vsel %vm6248, %v6246, -inf
      %v6355 = vrot.slane %v6354, 4
      %v6356 = vmax.f32 %v6354, %v6355
      %v6357 = vrot.slane %v6356, 2
      %v6358 = vmax.f32 %v6356, %v6357
      %v6359 = vrot.slane %v6358, 1
      %v6360 = vmax.f32 %v6358, %v6359
      %v6361 = vsub.f32 %v6201, %v6255
      %v6362 = vsub.f32 %v6204, %v6262
      %v6363 = vsub.f32 %v6207, %v6269
      %v6364 = vsub.f32 %v6210, %v6276
      %v6365 = vsub.f32 %v6213, %v6283
      %v6366 = vsub.f32 %v6216, %v6290
      %v6367 = vsub.f32 %v6219, %v6297
      %v6368 = vsub.f32 %v6222, %v6304
      %v6369 = vsub.f32 %v6225, %v6311
      %v6370 = vsub.f32 %v6228, %v6318
      %v6371 = vsub.f32 %v6231, %v6325
      %v6372 = vsub.f32 %v6234, %v6332
      %v6373 = vsub.f32 %v6237, %v6339
      %v6374 = vsub.f32 %v6240, %v6346
      %v6375 = vsub.f32 %v6243, %v6353
      %v6376 = vsub.f32 %v6246, %v6360
      %v6377 = vmul.f32 %v6361, 1.442695
      %v6378 = vpow.pop %v6377
      %v6379 = vmul.f32 %v6362, 1.442695
      %v6380 = vpow.pop %v6379
      %v6381 = vmul.f32 %v6363, 1.442695
      %v6382 = vpow.pop %v6381
      %v6383 = vmul.f32 %v6364, 1.442695
      %v6384 = vpow.pop %v6383
      %v6385 = vmul.f32 %v6365, 1.442695
      %v6386 = vpow.pop %v6385
      %v6387 = vmul.f32 %v6366, 1.442695
      %v6388 = vpow.pop %v6387
      %v6389 = vmul.f32 %v6367, 1.442695
      %v6390 = vpow.pop %v6389
      %v6391 = vmul.f32 %v6368, 1.442695
      %v6392 = vpow.pop %v6391
      %v6393 = vmul.f32 %v6369, 1.442695
      %v6394 = vpow.pop %v6393
      %v6395 = vmul.f32 %v6370, 1.442695
      %v6396 = vpow.pop %v6395
      %v6397 = vmul.f32 %v6371, 1.442695
      %v6398 = vpow.pop %v6397
      %v6399 = vmul.f32 %v6372, 1.442695
      %v6400 = vpow.pop %v6399
      %v6401 = vmul.f32 %v6373, 1.442695
      %v6402 = vpow.pop %v6401
      %v6403 = vmul.f32 %v6374, 1.442695
      %v6404 = vpow.pop %v6403
      %v6405 = vmul.f32 %v6375, 1.442695
      %v6406 = vpow.pop %v6405
      %v6407 = vmul.f32 %v6376, 1.442695
      %v6408 = vpow.pop %v6407
      %v6409 = vsel %vm6248, %v6378, 0.0
      %v6410 = vrot.slane %v6409, 4
      %v6411 = vadd.f32 %v6409, %v6410
      %v6412 = vrot.slane %v6411, 2
      %v6413 = vadd.f32 %v6411, %v6412
      %v6414 = vrot.slane %v6413, 1
      %v6415 = vadd.f32 %v6413, %v6414
      %v6416 = vsel %vm6248, %v6380, 0.0
      %v6417 = vrot.slane %v6416, 4
      %v6418 = vadd.f32 %v6416, %v6417
      %v6419 = vrot.slane %v6418, 2
      %v6420 = vadd.f32 %v6418, %v6419
      %v6421 = vrot.slane %v6420, 1
      %v6422 = vadd.f32 %v6420, %v6421
      %v6423 = vsel %vm6248, %v6382, 0.0
      %v6424 = vrot.slane %v6423, 4
      %v6425 = vadd.f32 %v6423, %v6424
      %v6426 = vrot.slane %v6425, 2
      %v6427 = vadd.f32 %v6425, %v6426
      %v6428 = vrot.slane %v6427, 1
      %v6429 = vadd.f32 %v6427, %v6428
      %v6430 = vsel %vm6248, %v6384, 0.0
      %v6431 = vrot.slane %v6430, 4
      %v6432 = vadd.f32 %v6430, %v6431
      %v6433 = vrot.slane %v6432, 2
      %v6434 = vadd.f32 %v6432, %v6433
      %v6435 = vrot.slane %v6434, 1
      %v6436 = vadd.f32 %v6434, %v6435
      %v6437 = vsel %vm6248, %v6386, 0.0
      %v6438 = vrot.slane %v6437, 4
      %v6439 = vadd.f32 %v6437, %v6438
      %v6440 = vrot.slane %v6439, 2
      %v6441 = vadd.f32 %v6439, %v6440
      %v6442 = vrot.slane %v6441, 1
      %v6443 = vadd.f32 %v6441, %v6442
      %v6444 = vsel %vm6248, %v6388, 0.0
      %v6445 = vrot.slane %v6444, 4
      %v6446 = vadd.f32 %v6444, %v6445
      %v6447 = vrot.slane %v6446, 2
      %v6448 = vadd.f32 %v6446, %v6447
      %v6449 = vrot.slane %v6448, 1
      %v6450 = vadd.f32 %v6448, %v6449
      %v6451 = vsel %vm6248, %v6390, 0.0
      %v6452 = vrot.slane %v6451, 4
      %v6453 = vadd.f32 %v6451, %v6452
      %v6454 = vrot.slane %v6453, 2
      %v6455 = vadd.f32 %v6453, %v6454
      %v6456 = vrot.slane %v6455, 1
      %v6457 = vadd.f32 %v6455, %v6456
      %v6458 = vsel %vm6248, %v6392, 0.0
      %v6459 = vrot.slane %v6458, 4
      %v6460 = vadd.f32 %v6458, %v6459
      %v6461 = vrot.slane %v6460, 2
      %v6462 = vadd.f32 %v6460, %v6461
      %v6463 = vrot.slane %v6462, 1
      %v6464 = vadd.f32 %v6462, %v6463
      %v6465 = vsel %vm6248, %v6394, 0.0
      %v6466 = vrot.slane %v6465, 4
      %v6467 = vadd.f32 %v6465, %v6466
      %v6468 = vrot.slane %v6467, 2
      %v6469 = vadd.f32 %v6467, %v6468
      %v6470 = vrot.slane %v6469, 1
      %v6471 = vadd.f32 %v6469, %v6470
      %v6472 = vsel %vm6248, %v6396, 0.0
      %v6473 = vrot.slane %v6472, 4
      %v6474 = vadd.f32 %v6472, %v6473
      %v6475 = vrot.slane %v6474, 2
      %v6476 = vadd.f32 %v6474, %v6475
      %v6477 = vrot.slane %v6476, 1
      %v6478 = vadd.f32 %v6476, %v6477
      %v6479 = vsel %vm6248, %v6398, 0.0
      %v6480 = vrot.slane %v6479, 4
      %v6481 = vadd.f32 %v6479, %v6480
      %v6482 = vrot.slane %v6481, 2
      %v6483 = vadd.f32 %v6481, %v6482
      %v6484 = vrot.slane %v6483, 1
      %v6485 = vadd.f32 %v6483, %v6484
      %v6486 = vsel %vm6248, %v6400, 0.0
      %v6487 = vrot.slane %v6486, 4
      %v6488 = vadd.f32 %v6486, %v6487
      %v6489 = vrot.slane %v6488, 2
      %v6490 = vadd.f32 %v6488, %v6489
      %v6491 = vrot.slane %v6490, 1
      %v6492 = vadd.f32 %v6490, %v6491
      %v6493 = vsel %vm6248, %v6402, 0.0
      %v6494 = vrot.slane %v6493, 4
      %v6495 = vadd.f32 %v6493, %v6494
      %v6496 = vrot.slane %v6495, 2
      %v6497 = vadd.f32 %v6495, %v6496
      %v6498 = vrot.slane %v6497, 1
      %v6499 = vadd.f32 %v6497, %v6498
      %v6500 = vsel %vm6248, %v6404, 0.0
      %v6501 = vrot.slane %v6500, 4
      %v6502 = vadd.f32 %v6500, %v6501
      %v6503 = vrot.slane %v6502, 2
      %v6504 = vadd.f32 %v6502, %v6503
      %v6505 = vrot.slane %v6504, 1
      %v6506 = vadd.f32 %v6504, %v6505
      %v6507 = vsel %vm6248, %v6406, 0.0
      %v6508 = vrot.slane %v6507, 4
      %v6509 = vadd.f32 %v6507, %v6508
      %v6510 = vrot.slane %v6509, 2
      %v6511 = vadd.f32 %v6509, %v6510
      %v6512 = vrot.slane %v6511, 1
      %v6513 = vadd.f32 %v6511, %v6512
      %v6514 = vsel %vm6248, %v6408, 0.0
      %v6515 = vrot.slane %v6514, 4
      %v6516 = vadd.f32 %v6514, %v6515
      %v6517 = vrot.slane %v6516, 2
      %v6518 = vadd.f32 %v6516, %v6517
      %v6519 = vrot.slane %v6518, 1
      %v6520 = vadd.f32 %v6518, %v6519
      %v6521 = vrcp.pop %v6415
      %v6522 = vmul.f32 %v6415, %v6521
      %v6523 = vsub.f32 1.0, %v6522
      %v6524 = vmul.f32 %v6521, %v6523
      %v6525 = vadd.f32 %v6521, %v6524
      %vm6526 = vweird.f32 %v6415
      %vm6527 = vweird.f32 %v6521
      %vm6528 = vmor %vm6526, %vm6527
      %v6529 = vsel %vm6528, %v6521, %v6525
      %v6530 = vand.u32 2147483647, %v6415
      %vm6531 = vcmp.eq.f32.partialorder %v6530, 8.507059e+37
      %v6532 = vand.u32 %v6415, 2147483648
      %v6533 = vor.u32 1.1754944e-38, %v6532
      %v6534 = vsel %vm6531, %v6533, %v6529
      %v6535 = vmul.f32 %v6378, %v6534
      %v6536 = vrcp.pop %v6422
      %v6537 = vmul.f32 %v6422, %v6536
      %v6538 = vsub.f32 1.0, %v6537
      %v6539 = vmul.f32 %v6536, %v6538
      %v6540 = vadd.f32 %v6536, %v6539
      %vm6541 = vweird.f32 %v6422
      %vm6542 = vweird.f32 %v6536
      %vm6543 = vmor %vm6541, %vm6542
      %v6544 = vsel %vm6543, %v6536, %v6540
      %v6545 = vand.u32 2147483647, %v6422
      %vm6546 = vcmp.eq.f32.partialorder %v6545, 8.507059e+37
      %v6547 = vand.u32 %v6422, 2147483648
      %v6548 = vor.u32 1.1754944e-38, %v6547
      %v6549 = vsel %vm6546, %v6548, %v6544
      %v6550 = vmul.f32 %v6380, %v6549
      %v6551 = vrcp.pop %v6429
      %v6552 = vmul.f32 %v6429, %v6551
      %v6553 = vsub.f32 1.0, %v6552
      %v6554 = vmul.f32 %v6551, %v6553
      %v6555 = vadd.f32 %v6551, %v6554
      %vm6556 = vweird.f32 %v6429
      %vm6557 = vweird.f32 %v6551
      %vm6558 = vmor %vm6556, %vm6557
      %v6559 = vsel %vm6558, %v6551, %v6555
      %v6560 = vand.u32 2147483647, %v6429
      %vm6561 = vcmp.eq.f32.partialorder %v6560, 8.507059e+37
      %v6562 = vand.u32 %v6429, 2147483648
      %v6563 = vor.u32 1.1754944e-38, %v6562
      %v6564 = vsel %vm6561, %v6563, %v6559
      %v6565 = vmul.f32 %v6382, %v6564
      %v6566 = vrcp.pop %v6436
      %v6567 = vmul.f32 %v6436, %v6566
      %v6568 = vsub.f32 1.0, %v6567
      %v6569 = vmul.f32 %v6566, %v6568
      %v6570 = vadd.f32 %v6566, %v6569
      %vm6571 = vweird.f32 %v6436
      %vm6572 = vweird.f32 %v6566
      %vm6573 = vmor %vm6571, %vm6572
      %v6574 = vsel %vm6573, %v6566, %v6570
      %v6575 = vand.u32 2147483647, %v6436
      %vm6576 = vcmp.eq.f32.partialorder %v6575, 8.507059e+37
      %v6577 = vand.u32 %v6436, 2147483648
      %v6578 = vor.u32 1.1754944e-38, %v6577
      %v6579 = vsel %vm6576, %v6578, %v6574
      %v6580 = vmul.f32 %v6384, %v6579
      %v6581 = vrcp.pop %v6443
      %v6582 = vmul.f32 %v6443, %v6581
      %v6583 = vsub.f32 1.0, %v6582
      %v6584 = vmul.f32 %v6581, %v6583
      %v6585 = vadd.f32 %v6581, %v6584
      %vm6586 = vweird.f32 %v6443
      %vm6587 = vweird.f32 %v6581
      %vm6588 = vmor %vm6586, %vm6587
      %v6589 = vsel %vm6588, %v6581, %v6585
      %v6590 = vand.u32 2147483647, %v6443
      %vm6591 = vcmp.eq.f32.partialorder %v6590, 8.507059e+37
      %v6592 = vand.u32 %v6443, 2147483648
      %v6593 = vor.u32 1.1754944e-38, %v6592
      %v6594 = vsel %vm6591, %v6593, %v6589
      %v6595 = vmul.f32 %v6386, %v6594
      %v6596 = vrcp.pop %v6450
      %v6597 = vmul.f32 %v6450, %v6596
      %v6598 = vsub.f32 1.0, %v6597
      %v6599 = vmul.f32 %v6596, %v6598
      %v6600 = vadd.f32 %v6596, %v6599
      %vm6601 = vweird.f32 %v6450
      %vm6602 = vweird.f32 %v6596
      %vm6603 = vmor %vm6601, %vm6602
      %v6604 = vsel %vm6603, %v6596, %v6600
      %v6605 = vand.u32 2147483647, %v6450
      %vm6606 = vcmp.eq.f32.partialorder %v6605, 8.507059e+37
      %v6607 = vand.u32 %v6450, 2147483648
      %v6608 = vor.u32 1.1754944e-38, %v6607
      %v6609 = vsel %vm6606, %v6608, %v6604
      %v6610 = vmul.f32 %v6388, %v6609
      %v6611 = vrcp.pop %v6457
      %v6612 = vmul.f32 %v6457, %v6611
      %v6613 = vsub.f32 1.0, %v6612
      %v6614 = vmul.f32 %v6611, %v6613
      %v6615 = vadd.f32 %v6611, %v6614
      %vm6616 = vweird.f32 %v6457
      %vm6617 = vweird.f32 %v6611
      %vm6618 = vmor %vm6616, %vm6617
      %v6619 = vsel %vm6618, %v6611, %v6615
      %v6620 = vand.u32 2147483647, %v6457
      %vm6621 = vcmp.eq.f32.partialorder %v6620, 8.507059e+37
      %v6622 = vand.u32 %v6457, 2147483648
      %v6623 = vor.u32 1.1754944e-38, %v6622
      %v6624 = vsel %vm6621, %v6623, %v6619
      %v6625 = vmul.f32 %v6390, %v6624
      %v6626 = vrcp.pop %v6464
      %v6627 = vmul.f32 %v6464, %v6626
      %v6628 = vsub.f32 1.0, %v6627
      %v6629 = vmul.f32 %v6626, %v6628
      %v6630 = vadd.f32 %v6626, %v6629
      %vm6631 = vweird.f32 %v6464
      %vm6632 = vweird.f32 %v6626
      %vm6633 = vmor %vm6631, %vm6632
      %v6634 = vsel %vm6633, %v6626, %v6630
      %v6635 = vand.u32 2147483647, %v6464
      %vm6636 = vcmp.eq.f32.partialorder %v6635, 8.507059e+37
      %v6637 = vand.u32 %v6464, 2147483648
      %v6638 = vor.u32 1.1754944e-38, %v6637
      %v6639 = vsel %vm6636, %v6638, %v6634
      %v6640 = vmul.f32 %v6392, %v6639
      %v6641 = vrcp.pop %v6471
      %v6642 = vmul.f32 %v6471, %v6641
      %v6643 = vsub.f32 1.0, %v6642
      %v6644 = vmul.f32 %v6641, %v6643
      %v6645 = vadd.f32 %v6641, %v6644
      %vm6646 = vweird.f32 %v6471
      %vm6647 = vweird.f32 %v6641
      %vm6648 = vmor %vm6646, %vm6647
      %v6649 = vsel %vm6648, %v6641, %v6645
      %v6650 = vand.u32 2147483647, %v6471
      %vm6651 = vcmp.eq.f32.partialorder %v6650, 8.507059e+37
      %v6652 = vand.u32 %v6471, 2147483648
      %v6653 = vor.u32 1.1754944e-38, %v6652
      %v6654 = vsel %vm6651, %v6653, %v6649
      %v6655 = vmul.f32 %v6394, %v6654
      %v6656 = vrcp.pop %v6478
      %v6657 = vmul.f32 %v6478, %v6656
      %v6658 = vsub.f32 1.0, %v6657
      %v6659 = vmul.f32 %v6656, %v6658
      %v6660 = vadd.f32 %v6656, %v6659
      %vm6661 = vweird.f32 %v6478
      %vm6662 = vweird.f32 %v6656
      %vm6663 = vmor %vm6661, %vm6662
      %v6664 = vsel %vm6663, %v6656, %v6660
      %v6665 = vand.u32 2147483647, %v6478
      %vm6666 = vcmp.eq.f32.partialorder %v6665, 8.507059e+37
      %v6667 = vand.u32 %v6478, 2147483648
      %v6668 = vor.u32 1.1754944e-38, %v6667
      %v6669 = vsel %vm6666, %v6668, %v6664
      %v6670 = vmul.f32 %v6396, %v6669
      %v6671 = vrcp.pop %v6485
      %v6672 = vmul.f32 %v6485, %v6671
      %v6673 = vsub.f32 1.0, %v6672
      %v6674 = vmul.f32 %v6671, %v6673
      %v6675 = vadd.f32 %v6671, %v6674
      %vm6676 = vweird.f32 %v6485
      %vm6677 = vweird.f32 %v6671
      %vm6678 = vmor %vm6676, %vm6677
      %v6679 = vsel %vm6678, %v6671, %v6675
      %v6680 = vand.u32 2147483647, %v6485
      %vm6681 = vcmp.eq.f32.partialorder %v6680, 8.507059e+37
      %v6682 = vand.u32 %v6485, 2147483648
      %v6683 = vor.u32 1.1754944e-38, %v6682
      %v6684 = vsel %vm6681, %v6683, %v6679
      %v6685 = vmul.f32 %v6398, %v6684
      %v6686 = vrcp.pop %v6492
      %v6687 = vmul.f32 %v6492, %v6686
      %v6688 = vsub.f32 1.0, %v6687
      %v6689 = vmul.f32 %v6686, %v6688
      %v6690 = vadd.f32 %v6686, %v6689
      %vm6691 = vweird.f32 %v6492
      %vm6692 = vweird.f32 %v6686
      %vm6693 = vmor %vm6691, %vm6692
      %v6694 = vsel %vm6693, %v6686, %v6690
      %v6695 = vand.u32 2147483647, %v6492
      %vm6696 = vcmp.eq.f32.partialorder %v6695, 8.507059e+37
      %v6697 = vand.u32 %v6492, 2147483648
      %v6698 = vor.u32 1.1754944e-38, %v6697
      %v6699 = vsel %vm6696, %v6698, %v6694
      %v6700 = vmul.f32 %v6400, %v6699
      %v6701 = vrcp.pop %v6499
      %v6702 = vmul.f32 %v6499, %v6701
      %v6703 = vsub.f32 1.0, %v6702
      %v6704 = vmul.f32 %v6701, %v6703
      %v6705 = vadd.f32 %v6701, %v6704
      %vm6706 = vweird.f32 %v6499
      %vm6707 = vweird.f32 %v6701
      %vm6708 = vmor %vm6706, %vm6707
      %v6709 = vsel %vm6708, %v6701, %v6705
      %v6710 = vand.u32 2147483647, %v6499
      %vm6711 = vcmp.eq.f32.partialorder %v6710, 8.507059e+37
      %v6712 = vand.u32 %v6499, 2147483648
      %v6713 = vor.u32 1.1754944e-38, %v6712
      %v6714 = vsel %vm6711, %v6713, %v6709
      %v6715 = vmul.f32 %v6402, %v6714
      %v6716 = vrcp.pop %v6506
      %v6717 = vmul.f32 %v6506, %v6716
      %v6718 = vsub.f32 1.0, %v6717
      %v6719 = vmul.f32 %v6716, %v6718
      %v6720 = vadd.f32 %v6716, %v6719
      %vm6721 = vweird.f32 %v6506
      %vm6722 = vweird.f32 %v6716
      %vm6723 = vmor %vm6721, %vm6722
      %v6724 = vsel %vm6723, %v6716, %v6720
      %v6725 = vand.u32 2147483647, %v6506
      %vm6726 = vcmp.eq.f32.partialorder %v6725, 8.507059e+37
      %v6727 = vand.u32 %v6506, 2147483648
      %v6728 = vor.u32 1.1754944e-38, %v6727
      %v6729 = vsel %vm6726, %v6728, %v6724
      %v6730 = vmul.f32 %v6404, %v6729
      %v6731 = vrcp.pop %v6513
      %v6732 = vmul.f32 %v6513, %v6731
      %v6733 = vsub.f32 1.0, %v6732
      %v6734 = vmul.f32 %v6731, %v6733
      %v6735 = vadd.f32 %v6731, %v6734
      %vm6736 = vweird.f32 %v6513
      %vm6737 = vweird.f32 %v6731
      %vm6738 = vmor %vm6736, %vm6737
      %v6739 = vsel %vm6738, %v6731, %v6735
      %v6740 = vand.u32 2147483647, %v6513
      %vm6741 = vcmp.eq.f32.partialorder %v6740, 8.507059e+37
      %v6742 = vand.u32 %v6513, 2147483648
      %v6743 = vor.u32 1.1754944e-38, %v6742
      %v6744 = vsel %vm6741, %v6743, %v6739
      %v6745 = vmul.f32 %v6406, %v6744
      %v6746 = vrcp.pop %v6520
      %v6747 = vmul.f32 %v6520, %v6746
      %v6748 = vsub.f32 1.0, %v6747
      %v6749 = vmul.f32 %v6746, %v6748
      %v6750 = vadd.f32 %v6746, %v6749
      %vm6751 = vweird.f32 %v6520
      %vm6752 = vweird.f32 %v6746
      %vm6753 = vmor %vm6751, %vm6752
      %v6754 = vsel %vm6753, %v6746, %v6750
      %v6755 = vand.u32 2147483647, %v6520
      %vm6756 = vcmp.eq.f32.partialorder %v6755, 8.507059e+37
      %v6757 = vand.u32 %v6520, 2147483648
      %v6758 = vor.u32 1.1754944e-38, %v6757
      %v6759 = vsel %vm6756, %v6758, %v6754
      %v6760 = vmul.f32 %v6408, %v6759
      %6762 = vset.pattern.permute.xlu0 0
      %6763 = vperm.xlu0 %6762, %v6535
      %v6764 = vpop.permute.xlu0 %6763
      %6767 = vset.pattern.permute.xlu0 0
      %6768 = vperm.xlu0 %6767, %v6550
      %v6769 = vpop.permute.xlu0 %6768
      %6772 = vset.pattern.permute.xlu0 0
      %6773 = vperm.xlu0 %6772, %v6565
      %v6774 = vpop.permute.xlu0 %6773
      %6777 = vset.pattern.permute.xlu0 0
      %6778 = vperm.xlu0 %6777, %v6580
      %v6779 = vpop.permute.xlu0 %6778
      %6782 = vset.pattern.permute.xlu0 0
      %6783 = vperm.xlu0 %6782, %v6595
      %v6784 = vpop.permute.xlu0 %6783
      %6787 = vset.pattern.permute.xlu0 0
      %6788 = vperm.xlu0 %6787, %v6610
      %v6789 = vpop.permute.xlu0 %6788
      %6792 = vset.pattern.permute.xlu0 0
      %6793 = vperm.xlu0 %6792, %v6625
      %v6794 = vpop.permute.xlu0 %6793
      %6797 = vset.pattern.permute.xlu0 0
      %6798 = vperm.xlu0 %6797, %v6640
      %v6799 = vpop.permute.xlu0 %6798
      %6802 = vset.pattern.permute.xlu0 0
      %6803 = vperm.xlu0 %6802, %v6655
      %v6804 = vpop.permute.xlu0 %6803
      %6807 = vset.pattern.permute.xlu0 0
      %6808 = vperm.xlu0 %6807, %v6670
      %v6809 = vpop.permute.xlu0 %6808
      %6812 = vset.pattern.permute.xlu0 0
      %6813 = vperm.xlu0 %6812, %v6685
      %v6814 = vpop.permute.xlu0 %6813
      %6817 = vset.pattern.permute.xlu0 0
      %6818 = vperm.xlu0 %6817, %v6700
      %v6819 = vpop.permute.xlu0 %6818
      %6822 = vset.pattern.permute.xlu0 0
      %6823 = vperm.xlu0 %6822, %v6715
      %v6824 = vpop.permute.xlu0 %6823
      %6827 = vset.pattern.permute.xlu0 0
      %6828 = vperm.xlu0 %6827, %v6730
      %v6829 = vpop.permute.xlu0 %6828
      %6832 = vset.pattern.permute.xlu0 0
      %6833 = vperm.xlu0 %6832, %v6745
      %v6834 = vpop.permute.xlu0 %6833
      %6837 = vset.pattern.permute.xlu0 0
      %6838 = vperm.xlu0 %6837, %v6760
      %v6839 = vpop.permute.xlu0 %6838
      %v6841 = vmul.f32 %v6764, %v5948
      %v6842 = vmul.f32 %v6769, %v5951
      %v6843 = vmul.f32 %v6774, %v5954
      %v6844 = vmul.f32 %v6779, %v5957
      %v6845 = vmul.f32 %v6784, %v5960
      %v6846 = vmul.f32 %v6789, %v5963
      %v6847 = vmul.f32 %v6794, %v5966
      %v6848 = vmul.f32 %v6799, %v5969
      %v6849 = vmul.f32 %v6804, %v5972
      %v6850 = vmul.f32 %v6809, %v5975
      %v6851 = vmul.f32 %v6814, %v5978
      %v6852 = vmul.f32 %v6819, %v5981
      %v6853 = vmul.f32 %v6824, %v5984
      %v6854 = vmul.f32 %v6829, %v5987
      %v6855 = vmul.f32 %v6834, %v5990
      %v6856 = vmul.f32 %v6839, %v5993
      %v6857 = vsel %vm387, %v6841, 0.0
      %v6858 = vrot.slane %v6857, 4
      %v6859 = vadd.f32 %v6857, %v6858
      %v6860 = vrot.slane %v6859, 2
      %v6861 = vadd.f32 %v6859, %v6860
      %v6862 = vrot.slane %v6861, 1
      %v6863 = vadd.f32 %v6861, %v6862
      %v6864 = vsel %vm387, %v6842, 0.0
      %v6865 = vrot.slane %v6864, 4
      %v6866 = vadd.f32 %v6864, %v6865
      %v6867 = vrot.slane %v6866, 2
      %v6868 = vadd.f32 %v6866, %v6867
      %v6869 = vrot.slane %v6868, 1
      %v6870 = vadd.f32 %v6868, %v6869
      %v6871 = vsel %vm387, %v6843, 0.0
      %v6872 = vrot.slane %v6871, 4
      %v6873 = vadd.f32 %v6871, %v6872
      %v6874 = vrot.slane %v6873, 2
      %v6875 = vadd.f32 %v6873, %v6874
      %v6876 = vrot.slane %v6875, 1
      %v6877 = vadd.f32 %v6875, %v6876
      %v6878 = vsel %vm387, %v6844, 0.0
      %v6879 = vrot.slane %v6878, 4
      %v6880 = vadd.f32 %v6878, %v6879
      %v6881 = vrot.slane %v6880, 2
      %v6882 = vadd.f32 %v6880, %v6881
      %v6883 = vrot.slane %v6882, 1
      %v6884 = vadd.f32 %v6882, %v6883
      %v6885 = vsel %vm387, %v6845, 0.0
      %v6886 = vrot.slane %v6885, 4
      %v6887 = vadd.f32 %v6885, %v6886
      %v6888 = vrot.slane %v6887, 2
      %v6889 = vadd.f32 %v6887, %v6888
      %v6890 = vrot.slane %v6889, 1
      %v6891 = vadd.f32 %v6889, %v6890
      %v6892 = vsel %vm387, %v6846, 0.0
      %v6893 = vrot.slane %v6892, 4
      %v6894 = vadd.f32 %v6892, %v6893
      %v6895 = vrot.slane %v6894, 2
      %v6896 = vadd.f32 %v6894, %v6895
      %v6897 = vrot.slane %v6896, 1
      %v6898 = vadd.f32 %v6896, %v6897
      %v6899 = vsel %vm387, %v6847, 0.0
      %v6900 = vrot.slane %v6899, 4
      %v6901 = vadd.f32 %v6899, %v6900
      %v6902 = vrot.slane %v6901, 2
      %v6903 = vadd.f32 %v6901, %v6902
      %v6904 = vrot.slane %v6903, 1
      %v6905 = vadd.f32 %v6903, %v6904
      %v6906 = vsel %vm387, %v6848, 0.0
      %v6907 = vrot.slane %v6906, 4
      %v6908 = vadd.f32 %v6906, %v6907
      %v6909 = vrot.slane %v6908, 2
      %v6910 = vadd.f32 %v6908, %v6909
      %v6911 = vrot.slane %v6910, 1
      %v6912 = vadd.f32 %v6910, %v6911
      %v6913 = vsel %vm387, %v6849, 0.0
      %v6914 = vrot.slane %v6913, 4
      %v6915 = vadd.f32 %v6913, %v6914
      %v6916 = vrot.slane %v6915, 2
      %v6917 = vadd.f32 %v6915, %v6916
      %v6918 = vrot.slane %v6917, 1
      %v6919 = vadd.f32 %v6917, %v6918
      %v6920 = vsel %vm387, %v6850, 0.0
      %v6921 = vrot.slane %v6920, 4
      %v6922 = vadd.f32 %v6920, %v6921
      %v6923 = vrot.slane %v6922, 2
      %v6924 = vadd.f32 %v6922, %v6923
      %v6925 = vrot.slane %v6924, 1
      %v6926 = vadd.f32 %v6924, %v6925
      %v6927 = vsel %vm387, %v6851, 0.0
      %v6928 = vrot.slane %v6927, 4
      %v6929 = vadd.f32 %v6927, %v6928
      %v6930 = vrot.slane %v6929, 2
      %v6931 = vadd.f32 %v6929, %v6930
      %v6932 = vrot.slane %v6931, 1
      %v6933 = vadd.f32 %v6931, %v6932
      %v6934 = vsel %vm387, %v6852, 0.0
      %v6935 = vrot.slane %v6934, 4
      %v6936 = vadd.f32 %v6934, %v6935
      %v6937 = vrot.slane %v6936, 2
      %v6938 = vadd.f32 %v6936, %v6937
      %v6939 = vrot.slane %v6938, 1
      %v6940 = vadd.f32 %v6938, %v6939
      %v6941 = vsel %vm387, %v6853, 0.0
      %v6942 = vrot.slane %v6941, 4
      %v6943 = vadd.f32 %v6941, %v6942
      %v6944 = vrot.slane %v6943, 2
      %v6945 = vadd.f32 %v6943, %v6944
      %v6946 = vrot.slane %v6945, 1
      %v6947 = vadd.f32 %v6945, %v6946
      %v6948 = vsel %vm387, %v6854, 0.0
      %v6949 = vrot.slane %v6948, 4
      %v6950 = vadd.f32 %v6948, %v6949
      %v6951 = vrot.slane %v6950, 2
      %v6952 = vadd.f32 %v6950, %v6951
      %v6953 = vrot.slane %v6952, 1
      %v6954 = vadd.f32 %v6952, %v6953
      %v6955 = vsel %vm387, %v6855, 0.0
      %v6956 = vrot.slane %v6955, 4
      %v6957 = vadd.f32 %v6955, %v6956
      %v6958 = vrot.slane %v6957, 2
      %v6959 = vadd.f32 %v6957, %v6958
      %v6960 = vrot.slane %v6959, 1
      %v6961 = vadd.f32 %v6959, %v6960
      %v6962 = vsel %vm387, %v6856, 0.0
      %v6963 = vrot.slane %v6962, 4
      %v6964 = vadd.f32 %v6962, %v6963
      %v6965 = vrot.slane %v6964, 2
      %v6966 = vadd.f32 %v6964, %v6965
      %v6967 = vrot.slane %v6966, 1
      %v6968 = vadd.f32 %v6966, %v6967
      %vm6985 = vcmask 1041409
      %v6986 = vsel %vm6985, %v6870, %v6863
      %vm6987 = vcmask 1042434
      %v6988 = vsel %vm6987, %v6877, %v6986
      %vm6989 = vcmask 1043459
      %v6990 = vsel %vm6989, %v6884, %v6988
      %vm6991 = vcmask 1044484
      %v6992 = vsel %vm6991, %v6891, %v6990
      %vm6993 = vcmask 1045509
      %v6994 = vsel %vm6993, %v6898, %v6992
      %vm6995 = vcmask 1046534
      %v6996 = vsel %vm6995, %v6905, %v6994
      %vm6997 = vcmask 1047559
      %v6998 = vsel %vm6997, %v6912, %v6996
      %v6999 = vsel %vm6985, %v6926, %v6919
      %v7000 = vsel %vm6987, %v6933, %v6999
      %v7001 = vsel %vm6989, %v6940, %v7000
      %v7002 = vsel %vm6991, %v6947, %v7001
      %v7003 = vsel %vm6993, %v6954, %v7002
      %v7004 = vsel %vm6995, %v6961, %v7003
      %v7005 = vsel %vm6997, %v6968, %v7004
      %7008 = vst.msk [vmem:[%s361] sm:$0xff] %vm387, %v6998
      %7009 = vst.msk [vmem:[%s361 + $0x8] sm:$0xff] %vm387, %v7005
      %s7010 = smul.u32 2, %s21
      %p7011 = scmp.lt.s32.totalorder %s7010, 3
      %s7012 = scalar_select %p7011, %s7010, 3
      %s7013 = smul.addr %s7012, 8
      %s7014 = scalar_lea.vmem %s10, %s7013
      // Predicated region
      $region61: #{_lambda_.2} parent=59 // pred_check
        %p7015 = pneg %p254
      $region62: #{_lambda_.2} parent=59 // pred_check_branch
        %7017 = sbr.rel (%p7015) target = $region64
      $region63: #{_lambda_.2} parent=59 // pred_region
        %s7018 = smul.u32 2, %s21
      $region64: #{_lambda_.2} parent=59 // pred_fallthru
        _
    $region60: #{_lambda_.2} parent=5 // pred_fallthru
      _
    %p7019 = scmp.le.s32.totalorder 2, %s16
    // Predicated region
    $region65: #{_lambda_.2} parent=5 // pred_check
      %p7020 = pneg %p7019
    $region66: #{_lambda_.2} parent=5 // pred_check_branch
      %7022 = sbr.rel (%p7020) target = $region68
    $region67: #{_lambda_.2} parent=5 // pred_region
      %s7023 = ssub.s32 %s16, 2
      // Predicated region
      $region69: #{_lambda_.2} parent=67 // pred_check
        %p7024 = pneg %p260
      $region70: #{_lambda_.2} parent=67 // pred_check_branch
        %7026 = sbr.rel (%p7024) target = $region72
      $region71: #{_lambda_.2} parent=67 // pred_region
        %s7027 = smul.u32 2, %s22
        %p7028 = scmp.lt.s32.totalorder %s7027, 3
        %s7029 = scalar_select %p7028, %s7027, 3
        %s7030 = smul.addr %s7029, 8
        %s7031 = scalar_lea.vmem %s10, %s7030
      $region72: #{_lambda_.2} parent=67 // pred_fallthru
        _
    $region68: #{_lambda_.2} parent=5 // pred_fallthru
      _
  $region6: #{_lambda_.2} parent=0 // loop_footer
    %s20 = sadd.s32 1, %s16
  $region7: #{_lambda_.2} parent=0 // loop_footer_branch
    %15 = sbr.rel target = $region3
  $region8: #{_lambda_.2} parent=0 // loop_exit
    _

</llo_original>
